<compile_context>
chip_gen: v7x
topology: tpu7x:2x2x1
jax: 0.10.0
libtpu: 0.0.40
codegen_flags: <defaults>
</compile_context>

<pallas_src>
import functools

import jax
import jax.numpy as jnp
from jax import lax
from jax.experimental import pallas as pl
from jax.experimental.pallas import tpu as pltpu


# ---------------------------------------------------------------------------
# Elementwise helpers (kernel + references).
# ---------------------------------------------------------------------------
def _gelu_tanh(x):
    # tanh-form GELU: ~6 VALU ops + 1 EUP tanh (EUP slot otherwise idle).
    # Deviates from exact erf-GELU by ~1e-3, inside bf16-matmul rounding.
    c = 0.7978845608028654  # sqrt(2/pi)
    return 0.5 * x * (1.0 + jnp.tanh(c * (x + 0.044715 * x * x * x)))


def _gelu_exact(x):
    # Exact erf GELU (PyTorch nn.GELU default) — reference only.
    return 0.5 * x * (1.0 + lax.erf(x * 0.7071067811865476))


def _layernorm(x, g, b, eps=1e-5):
    mu = jnp.mean(x, axis=-1, keepdims=True)
    xc = x - mu
    var = jnp.mean(xc * xc, axis=-1, keepdims=True)
    return xc * lax.rsqrt(var + eps) * g + b


def _round_up(x, m):
    return ((x + m - 1) // m) * m


# Packed per-layer small vectors: rows of the (L, 9, P) vec array.
VEC_NAMES = ("gq", "bq", "gv", "bv", "bp", "g2", "b2", "b2m", "b1")


# ---------------------------------------------------------------------------
# Fused multi-layer kernel: one grid step = one DecoderBlock on one token tile.
# grid = (token_tiles, num_layers); v is carried across the layer axis in a
# resident f32 VMEM scratch; output is flushed at the last layer.
# ---------------------------------------------------------------------------
def decoder_fuser_kernel(q_ref, v_ref, wqkv_ref, wp_ref, w1_ref, w2_ref, vec_ref,
                         out_ref, v_acc, *, num_heads, head_dim, hidden_dim,
                         num_layers):
    H, HD = num_heads, head_dim
    D = H * HD
    Dh = hidden_dim
    layer = pl.program_id(1)

    # First layer for this token tile: initialize the resident f32 carry.
    @pl.when(layer == 0)
    def _():
        v_acc[...] = v_ref[...].astype(jnp.float32)

    v = v_acc[...]                                   # (tn, D) f32 carry
    q = q_ref[...].astype(jnp.float32)               # (tn, D)
    tn = q.shape[0]
    mm_dtype = wqkv_ref.dtype                        # bf16 matmul inputs

    # Packed per-layer vectors (single DMA stream), rows: gq,bq,gv,bv,bp,g2,b2,b2m,b1
    vecs = vec_ref[...]                              # (9, P) f32
    gq, bq = vecs[0:1, :D], vecs[1:2, :D]
    gv, bv = vecs[2:3, :D], vecs[3:4, :D]
    bp = vecs[4:5, :D]
    g2, b2 = vecs[5:6, :D], vecs[6:7, :D]
    b2m = vecs[7:8, :D]
    b1 = vecs[8:9, :Dh]

    # ---- cross attention (head-mixing, per token) --------------------------
    qn = _layernorm(q, gq, bq).astype(mm_dtype)
    vn = _layernorm(v, gv, bv).astype(mm_dtype)

    wqkv = wqkv_ref[...]                             # (D, 3D) = [wq*scale | wk | wv]
    Q = jnp.dot(qn, wqkv[:, :D], preferred_element_type=jnp.float32)    # (tn, D)
    KV = jnp.dot(vn, wqkv[:, D:], preferred_element_type=jnp.float32)   # (tn, 2D)
    K3 = KV[:, :D].reshape(tn, H, HD)
    V3 = KV[:, D:].reshape(tn, H, HD)

    # Unrolled loop over query heads (H is a small static constant): the live
    # temporary is only (tn, H, HD) — the (tn, H, H, HD) products are never
    # materialized.  Softmax scale is already folded into wq.
    x_parts = []
    for h in range(H):
        qh = Q[:, h * HD:(h + 1) * HD]                           # (tn, HD)
        s = jnp.sum(qh[:, None, :] * K3, axis=-1)                # (tn, H)
        s = s - jnp.max(s, axis=-1, keepdims=True)
        p = jnp.exp(s)
        p = p / jnp.sum(p, axis=-1, keepdims=True)
        x_parts.append(jnp.sum(p[:, :, None] * V3, axis=1))      # (tn, HD)
    X = jnp.concatenate(x_parts, axis=-1)                        # (tn, D)

    X = jnp.dot(X.astype(mm_dtype), wp_ref[...],
                preferred_element_type=jnp.float32) + bp
    v = v + X

    # ---- MLP ----------------------------------------------------------------
    vn2 = _layernorm(v, g2, b2).astype(mm_dtype)
    h1 = jnp.dot(vn2, w1_ref[...], preferred_element_type=jnp.float32) + b1
    h1 = _gelu_tanh(h1).astype(mm_dtype)
    h2 = jnp.dot(h1, w2_ref[...], preferred_element_type=jnp.float32) + b2m
    v = v + h2

    v_acc[...] = v

    @pl.when(layer == num_layers - 1)
    def _():
        out_ref[...] = v.astype(out_ref.dtype)


# ---------------------------------------------------------------------------
# VMEM budgeting / tile selection (generation-aware).
# ---------------------------------------------------------------------------
def _weight_bytes_per_layer(D, Dh, P, w_bytes):
    # wqkv (D,3D) + wp (D,D) + w1 (D,Dh) + w2 (Dh,D) in bf16, vectors in f32.
    return (4 * D * D + 2 * D * Dh) * w_bytes + 9 * P * 4


def _act_bytes(tile_n, D, Dh, H):
    HD = D // H
    # q / v / out token tiles (double-buffered, f32) + resident f32 carry.
    tok = (3 * 2 + 1) * tile_n * D * 4
    # Peak live temporaries (compiler reuses buffers across the two phases):
    #   attention: Q + KV + K3/V3 + per-head temp + X (f32), qn/vn (bf16)
    attn = tile_n * (6 * D + _round_up(H, 8) * _round_up(HD, 128)) * 4 \
        + tile_n * 2 * D * 2
    #   MLP: h1 (f32, Dh) + h2 (f32, D), vn2 + h1 (bf16)
    mlp = tile_n * (Dh + D) * 4 + tile_n * (D + Dh) * 2
    return tok + max(attn, mlp)


def _vmem_bytes_estimate(tile_n, D, Dh, H, P, w_bytes):
    return 2 * _weight_bytes_per_layer(D, Dh, P, w_bytes) + _act_bytes(tile_n, D, Dh, H)


_MIN_TILE = 128   # never collapse the token tile below this because of weights


def _choose_tile_n(N, D, Dh, H, P, w_bytes, budget_bytes, tile_cap):
    n8 = _round_up(max(N, 8), 8)
    # The double-buffered per-layer weight term is tile-independent: budget the
    # activations against what is left so the tile never collapses uselessly.
    act_budget = budget_bytes - 2 * _weight_bytes_per_layer(D, Dh, P, w_bytes)
    tile = tile_cap
    while tile > _MIN_TILE and _act_bytes(tile, D, Dh, H) > act_budget:
        tile //= 2
    # TODO(synk): when 2x whole-layer weights alone exceed the budget (D>=~1024
    # with mlp_ratio=4 on v7x's 64 MiB VMEM), K-tile w1/w2 over Dh chunks with
    # an extra inner grid axis / pltpu.emit_pipeline instead of shrinking tiles.
    return max(8, min(tile, n8))


def _vmem_capacity_bytes():
    try:
        return int(pltpu.get_tpu_info().vmem_capacity_bytes)
    except Exception:
        return 64 << 20   # conservative (v7x-sized) fallback


# ---------------------------------------------------------------------------
# Wrapper: packs per-layer params, pads tokens, launches ONE pallas_call.
# ---------------------------------------------------------------------------
def decoder_fuser_forward(q, v, layer_params, *, num_heads,
                          weight_dtype=jnp.bfloat16):
    """q, v: (B, T, D).  Returns v after all DecoderBlocks (eval mode)."""
    B, T, D = v.shape
    assert q.shape == (B, T, D), "head-mixing attention requires q_T == v_T"
    H = num_heads
    assert D % H == 0
    HD = D // H
    L = len(layer_params)
    Dh = layer_params[0]["w1"].shape[-1]
    N = B * T
    scale = HD ** (-0.5)

    # --- pack parameters -----------------------------------------------------
    # Softmax scale folded into wq once; wq|wk|wv concatenated so K and V share
    # one matmul and the QKV weights arrive as a single DMA stream.
    wqkv = jnp.stack([jnp.concatenate([p["wq"] * scale, p["wk"], p["wv"]], axis=-1)
                      for p in layer_params]).astype(weight_dtype)        # (L, D, 3D)
    wp = jnp.stack([p["wp"] for p in layer_params]).astype(weight_dtype)  # (L, D, D)
    w1 = jnp.stack([p["w1"] for p in layer_params]).astype(weight_dtype)  # (L, D, Dh)
    w2 = jnp.stack([p["w2"] for p in layer_params]).astype(weight_dtype)  # (L, Dh, D)

    P = max(D, Dh)

    def _pad_vec(a):
        a = jnp.asarray(a, jnp.float32).reshape(1, -1)
        return jnp.pad(a, ((0, 0), (0, P - a.shape[-1])))

    vecs = jnp.stack([jnp.concatenate([_pad_vec(p[n]) for n in VEC_NAMES], axis=0)
                      for p in layer_params])                             # (L, 9, P)

    # --- generation-aware VMEM budget / tile cap -----------------------------
    vmem_cap = _vmem_capacity_bytes()
    if vmem_cap >= (96 << 20):        # v5e / v6e class (128 MiB physical VMEM)
        tile_cap, budget, limit_cap = 1024, 96 << 20, 110 << 20
    else:                             # v7x class (64 MiB physical VMEM per TC)
        tile_cap, budget, limit_cap = 512, 44 << 20, 52 << 20

    w_bytes = jnp.dtype(weight_dtype).itemsize
    tile_n = _choose_tile_n(N, D, Dh, H, P, w_bytes, budget, tile_cap)
    N_pad = _round_up(N, tile_n)

    qf = q.reshape(N, D).astype(jnp.float32)
    vf = v.reshape(N, D).astype(jnp.float32)
    if N_pad != N:
        pad = ((0, N_pad - N), (0, 0))
        qf = jnp.pad(qf, pad)
        vf = jnp.pad(vf, pad)

    grid = (N_pad // tile_n, L)

    tok_spec = pl.BlockSpec((tile_n, D), lambda i, l: (i, 0))
    wqkv_spec = pl.BlockSpec((None, D, 3 * D), lambda i, l: (l, 0, 0))
    wp_spec = pl.BlockSpec((None, D, D), lambda i, l: (l, 0, 0))
    w1_spec = pl.BlockSpec((None, D, Dh), lambda i, l: (l, 0, 0))
    w2_spec = pl.BlockSpec((None, Dh, D), lambda i, l: (l, 0, 0))
    vec_spec = pl.BlockSpec((None, 9, P), lambda i, l: (l, 0, 0))

    vmem_est = _vmem_bytes_estimate(tile_n, D, Dh, H, P, w_bytes)
    vmem_limit = int(min(max(int(1.25 * vmem_est), 32 << 20), limit_cap))

    kernel = functools.partial(decoder_fuser_kernel,
                               num_heads=H, head_dim=HD, hidden_dim=Dh,
                               num_layers=L)

    # TODO(synk): alias the padded v input to the output (input_output_aliases)
    # once the call site is jitted with buffer donation; omitted here to keep
    # the eager call warning-free.
    out = pl.pallas_call(
        kernel,
        out_shape=jax.ShapeDtypeStruct((N_pad, D), jnp.float32),
        grid_spec=pltpu.PrefetchScalarGridSpec(
            num_scalar_prefetch=0,
            grid=grid,
            in_specs=[tok_spec, tok_spec, wqkv_spec, wp_spec, w1_spec, w2_spec,
                      vec_spec],
            out_specs=tok_spec,
            scratch_shapes=[pltpu.VMEM((tile_n, D), jnp.float32)],
        ),
        compiler_params=pltpu.CompilerParams(
            dimension_semantics=("parallel", "arbitrary"),
            vmem_limit_bytes=vmem_limit,
        ),
    )(qf, vf, wqkv, wp, w1, w2, vecs)

    return out[:N].reshape(B, T, D)


# ---------------------------------------------------------------------------
# Pure-JAX reference (mirrors the PyTorch forward, eval mode).
# matmul_dtype / gelu_fn let us mirror the kernel's precision choices exactly.
# ---------------------------------------------------------------------------
def ref_decoder_block(q, v, p, num_heads, matmul_dtype, gelu_fn):
    B, T, D = q.shape
    H = num_heads
    hd = D // H
    scale = hd ** (-0.5)

    def mm(x, w):
        return jnp.dot(x.astype(matmul_dtype), w.astype(matmul_dtype),
                       preferred_element_type=jnp.float32)

    qn = _layernorm(q, p["gq"], p["bq"])
    vn = _layernorm(v, p["gv"], p["bv"])
    Q = mm(qn, p["wq"] * scale).reshape(B, T, H, hd)     # scale folded into wq
    K = mm(vn, p["wk"]).reshape(B, T, H, hd)
    V = mm(vn, p["wv"]).reshape(B, T, H, hd)
    S = jnp.einsum("bthd,btgd->bthg", Q, K)
    Pm = jax.nn.softmax(S, axis=-1)
    X = jnp.einsum("bthg,btgd->bthd", Pm, V).reshape(B, T, D)
    X = mm(X, p["wp"]) + p["bp"]
    v = v + X
    vn2 = _layernorm(v, p["g2"], p["b2"])
    h = gelu_fn(mm(vn2, p["w1"]) + p["b1"])
    h = mm(h, p["w2"]) + p["b2m"]
    return v + h


def ref_forward(q, v, layer_params, *, num_heads, matmul_dtype=jnp.float32,
                gelu_fn=_gelu_exact):
    for p in layer_params:
        v = ref_decoder_block(q, v, p, num_heads, matmul_dtype, gelu_fn)
    return v


# ---------------------------------------------------------------------------
# Deterministic parameter init (shapes from the module's __init__).
# ---------------------------------------------------------------------------
def init_params(key, dim, num_layers, mlp_ratio=4):
    dh = int(dim * mlp_ratio)
    layers = []
    for i in range(num_layers):
        ks = jax.random.split(jax.random.fold_in(key, i), 15)

        def nrm(k, shape, s=0.05):
            return (s * jax.random.normal(k, shape)).astype(jnp.float32)

        p = dict(
            gq=1.0 + nrm(ks[0], (1, dim)),  bq=nrm(ks[1], (1, dim)),
            gv=1.0 + nrm(ks[2], (1, dim)),  bv=nrm(ks[3], (1, dim)),
            wq=nrm(ks[4], (dim, dim), 0.1), wk=nrm(ks[5], (dim, dim), 0.1),
            wv=nrm(ks[6], (dim, dim), 0.1),
            wp=nrm(ks[7], (dim, dim), 0.1), bp=nrm(ks[8], (1, dim)),
            g2=1.0 + nrm(ks[9], (1, dim)),  b2=nrm(ks[10], (1, dim)),
            w1=nrm(ks[11], (dim, dh), 0.1), b1=nrm(ks[12], (1, dh)),
            w2=nrm(ks[13], (dh, dim), 0.1), b2m=nrm(ks[14], (1, dim)),
        )
        layers.append(p)
    return layers


if __name__ == "__main__":
    B, T, D, H, L = 2, 8, 32, 8, 2
    key = jax.random.PRNGKey(0)
    kq, kv, kp = jax.random.split(key, 3)
    q = jax.random.normal(kq, (B, T, D), dtype=jnp.float32)
    v = jax.random.normal(kv, (B, T, D), dtype=jnp.float32)
    params = init_params(kp, D, L)

    out = decoder_fuser_forward(q, v, params, num_heads=H)
    out = jax.block_until_ready(out)
    assert out.shape == (B, T, D)
    assert bool(jnp.isfinite(out).all())

    # Matched-precision reference (bf16 matmul inputs, tanh-GELU, scale folded
    # into wq): verifies the kernel math at the precision it actually runs at.
    ref_bf16 = ref_forward(q, v, params, num_heads=H,
                           matmul_dtype=jnp.bfloat16, gelu_fn=_gelu_tanh)
    err = float(jnp.max(jnp.abs(out - ref_bf16)))
    assert err < 1e-2, f"kernel vs matched-precision reference: max err {err}"

    # Exact f32 reference (PyTorch math: f32 matmuls + exact erf GELU):
    # deviation is the expected bf16-matmul + tanh-GELU rounding only.
    ref_f32 = ref_forward(q, v, params, num_heads=H,
                          matmul_dtype=jnp.float32, gelu_fn=_gelu_exact)
    drift = float(jnp.max(jnp.abs(out - ref_f32)))
    print(f"max|kernel - bf16_ref| = {err:.3e}   max|kernel - f32_ref| = {drift:.3e}")

    print("KERNEL_OK")
</pallas_src>

<mosaic_0001>
module attributes {stable_mosaic.version = 11 : i64} {
  func.func @decoder_fuser_kernel(%arg0: i32, %arg1: i32, %arg2: memref<16x32xf32, #tpu.memory_space<vmem>>, %arg3: memref<16x32xf32, #tpu.memory_space<vmem>>, %arg4: memref<1x32x96xbf16, #tpu.memory_space<vmem>>, %arg5: memref<1x32x32xbf16, #tpu.memory_space<vmem>>, %arg6: memref<1x32x128xbf16, #tpu.memory_space<vmem>>, %arg7: memref<1x128x32xbf16, #tpu.memory_space<vmem>>, %arg8: memref<1x9x128xf32, #tpu.memory_space<vmem>>, %arg9: memref<16x32xf32, #tpu.memory_space<vmem>>, %arg10: memref<16x32xf32, #tpu.memory_space<vmem>>) attributes {dimension_semantics = [#tpu.dimension_semantics<parallel>, #tpu.dimension_semantics<arbitrary>], iteration_bounds = array<i64: 1, 2>, scalar_prefetch = 0 : i64, scratch_operands = 1 : i64, tpu.core_type = #tpu.core_type<tc>, window_params = [{transform_indices = @transform_0, window_bounds = array<i64: 16, 32>}, {transform_indices = @transform_1, window_bounds = array<i64: 16, 32>}, {transform_indices = @transform_2, window_bounds = array<i64: 1, 32, 96>}, {transform_indices = @transform_3, window_bounds = array<i64: 1, 32, 32>}, {transform_indices = @transform_4, window_bounds = array<i64: 1, 32, 128>}, {transform_indices = @transform_5, window_bounds = array<i64: 1, 128, 32>}, {transform_indices = @transform_6, window_bounds = array<i64: 1, 9, 128>}, {transform_indices = @transform_7, window_bounds = array<i64: 16, 32>}]} {
    %c0_i32 = arith.constant 0 : i32
    %0 = arith.cmpi eq, %arg1, %c0_i32 : i32
    %1 = arith.extui %0 : i1 to i32
    %c0_i32_0 = arith.constant 0 : i32
    %2 = arith.cmpi ne, %1, %c0_i32_0 : i32
    scf.if %2 {
      %c0_77 = arith.constant 0 : index
      %c0_78 = arith.constant 0 : index
      %270 = vector.load %arg3[%c0_77, %c0_78] : memref<16x32xf32, #tpu.memory_space<vmem>>, vector<16x32xf32>
      %c0_79 = arith.constant 0 : index
      %c0_80 = arith.constant 0 : index
      %271 = vector.load %arg10[%c0_79, %c0_80] : memref<16x32xf32, #tpu.memory_space<vmem>>, vector<16x32xf32>
      tpu.vector_store %arg10[%c0_79, %c0_80], %270 {strides = array<i32>} : memref<16x32xf32, #tpu.memory_space<vmem>>, vector<16x32xf32>,
    } else {
    }
    %c0 = arith.constant 0 : index
    %c0_1 = arith.constant 0 : index
    %3 = vector.load %arg10[%c0, %c0_1] : memref<16x32xf32, #tpu.memory_space<vmem>>, vector<16x32xf32>
    %c0_2 = arith.constant 0 : index
    %c0_3 = arith.constant 0 : index
    %4 = vector.load %arg2[%c0_2, %c0_3] : memref<16x32xf32, #tpu.memory_space<vmem>>, vector<16x32xf32>
    %c0_4 = arith.constant 0 : index
    %c0_5 = arith.constant 0 : index
    %c0_6 = arith.constant 0 : index
    %5 = vector.load %arg8[%c0_4, %c0_5, %c0_6] : memref<1x9x128xf32, #tpu.memory_space<vmem>>, vector<1x9x128xf32>
    %6 = vector.shape_cast %5 : vector<1x9x128xf32> to vector<9x128xf32>
    %7 = vector.extract_strided_slice %6 {offsets = [0, 0], sizes = [1, 32], strides = [1, 1]} : vector<9x128xf32> to vector<1x32xf32>
    %8 = vector.extract_strided_slice %6 {offsets = [1, 0], sizes = [1, 32], strides = [1, 1]} : vector<9x128xf32> to vector<1x32xf32>
    %9 = vector.extract_strided_slice %6 {offsets = [2, 0], sizes = [1, 32], strides = [1, 1]} : vector<9x128xf32> to vector<1x32xf32>
    %10 = vector.extract_strided_slice %6 {offsets = [3, 0], sizes = [1, 32], strides = [1, 1]} : vector<9x128xf32> to vector<1x32xf32>
    %11 = vector.extract_strided_slice %6 {offsets = [4, 0], sizes = [1, 32], strides = [1, 1]} : vector<9x128xf32> to vector<1x32xf32>
    %12 = vector.extract_strided_slice %6 {offsets = [5, 0], sizes = [1, 32], strides = [1, 1]} : vector<9x128xf32> to vector<1x32xf32>
    %13 = vector.extract_strided_slice %6 {offsets = [6, 0], sizes = [1, 32], strides = [1, 1]} : vector<9x128xf32> to vector<1x32xf32>
    %14 = vector.extract_strided_slice %6 {offsets = [7, 0], sizes = [1, 32], strides = [1, 1]} : vector<9x128xf32> to vector<1x32xf32>
    %15 = vector.extract_strided_slice %6 {offsets = [8, 0], sizes = [1, 128], strides = [1, 1]} : vector<9x128xf32> to vector<1x128xf32>
    %cst = arith.constant dense<0.000000e+00> : vector<16xf32>
    %16 = vector.multi_reduction <add>, %4, %cst [1] : vector<16x32xf32> to vector<16xf32>
    %17 = vector.shape_cast %16 : vector<16xf32> to vector<16x1xf32>
    %cst_7 = arith.constant 3.200000e+01 : f32
    %18 = vector.broadcast %cst_7 : f32 to vector<16x1xf32>
    %19 = arith.divf %17, %18 : vector<16x1xf32>
    %20 = vector.broadcast %19 : vector<16x1xf32> to vector<16x32xf32>
    %21 = arith.subf %4, %20 : vector<16x32xf32>
    %22 = arith.mulf %21, %21 : vector<16x32xf32>
    %cst_8 = arith.constant dense<0.000000e+00> : vector<16xf32>
    %23 = vector.multi_reduction <add>, %22, %cst_8 [1] : vector<16x32xf32> to vector<16xf32>
    %24 = vector.shape_cast %23 : vector<16xf32> to vector<16x1xf32>
    %cst_9 = arith.constant 3.200000e+01 : f32
    %25 = vector.broadcast %cst_9 : f32 to vector<16x1xf32>
    %26 = arith.divf %24, %25 : vector<16x1xf32>
    %cst_10 = arith.constant 9.99999974E-6 : f32
    %27 = vector.broadcast %cst_10 : f32 to vector<16x1xf32>
    %28 = arith.addf %26, %27 : vector<16x1xf32>
    %29 = math.rsqrt %28 : vector<16x1xf32>
    %30 = vector.broadcast %29 : vector<16x1xf32> to vector<16x32xf32>
    %31 = arith.mulf %21, %30 : vector<16x32xf32>
    %32 = vector.broadcast %7 : vector<1x32xf32> to vector<16x32xf32>
    %33 = arith.mulf %31, %32 : vector<16x32xf32>
    %34 = vector.broadcast %8 : vector<1x32xf32> to vector<16x32xf32>
    %35 = arith.addf %33, %34 : vector<16x32xf32>
    %36 = arith.truncf %35 : vector<16x32xf32> to vector<16x32xbf16>
    %cst_11 = arith.constant dense<0.000000e+00> : vector<16xf32>
    %37 = vector.multi_reduction <add>, %3, %cst_11 [1] : vector<16x32xf32> to vector<16xf32>
    %38 = vector.shape_cast %37 : vector<16xf32> to vector<16x1xf32>
    %cst_12 = arith.constant 3.200000e+01 : f32
    %39 = vector.broadcast %cst_12 : f32 to vector<16x1xf32>
    %40 = arith.divf %38, %39 : vector<16x1xf32>
    %41 = vector.broadcast %40 : vector<16x1xf32> to vector<16x32xf32>
    %42 = arith.subf %3, %41 : vector<16x32xf32>
    %43 = arith.mulf %42, %42 : vector<16x32xf32>
    %cst_13 = arith.constant dense<0.000000e+00> : vector<16xf32>
    %44 = vector.multi_reduction <add>, %43, %cst_13 [1] : vector<16x32xf32> to vector<16xf32>
    %45 = vector.shape_cast %44 : vector<16xf32> to vector<16x1xf32>
    %cst_14 = arith.constant 3.200000e+01 : f32
    %46 = vector.broadcast %cst_14 : f32 to vector<16x1xf32>
    %47 = arith.divf %45, %46 : vector<16x1xf32>
    %cst_15 = arith.constant 9.99999974E-6 : f32
    %48 = vector.broadcast %cst_15 : f32 to vector<16x1xf32>
    %49 = arith.addf %47, %48 : vector<16x1xf32>
    %50 = math.rsqrt %49 : vector<16x1xf32>
    %51 = vector.broadcast %50 : vector<16x1xf32> to vector<16x32xf32>
    %52 = arith.mulf %42, %51 : vector<16x32xf32>
    %53 = vector.broadcast %9 : vector<1x32xf32> to vector<16x32xf32>
    %54 = arith.mulf %52, %53 : vector<16x32xf32>
    %55 = vector.broadcast %10 : vector<1x32xf32> to vector<16x32xf32>
    %56 = arith.addf %54, %55 : vector<16x32xf32>
    %57 = arith.truncf %56 : vector<16x32xf32> to vector<16x32xbf16>
    %c0_16 = arith.constant 0 : index
    %c0_17 = arith.constant 0 : index
    %c0_18 = arith.constant 0 : index
    %58 = vector.load %arg4[%c0_16, %c0_17, %c0_18] : memref<1x32x96xbf16, #tpu.memory_space<vmem>>, vector<1x32x96xbf16>
    %59 = vector.shape_cast %58 : vector<1x32x96xbf16> to vector<32x96xbf16>
    %60 = vector.extract_strided_slice %59 {offsets = [0, 0], sizes = [32, 32], strides = [1, 1]} : vector<32x96xbf16> to vector<32x32xbf16>
    %cst_19 = arith.constant dense<0.000000e+00> : vector<16x32xf32>
    %61 = tpu.matmul %36, %60, %cst_19 {dimension_numbers = #tpu.dot_dimension_numbers<[1], [0], [0], [1], [0, 0, 1, 1], [], []>} : vector<16x32xbf16>, vector<32x32xbf16>, vector<16x32xf32> -> vector<16x32xf32>
    %62 = vector.extract_strided_slice %59 {offsets = [0, 32], sizes = [32, 64], strides = [1, 1]} : vector<32x96xbf16> to vector<32x64xbf16>
    %cst_20 = arith.constant dense<0.000000e+00> : vector<16x64xf32>
    %63 = tpu.matmul %57, %62, %cst_20 {dimension_numbers = #tpu.dot_dimension_numbers<[1], [0], [0], [1], [0, 0, 1, 1], [], []>} : vector<16x32xbf16>, vector<32x64xbf16>, vector<16x64xf32> -> vector<16x64xf32>
    %64 = vector.extract_strided_slice %63 {offsets = [0, 0], sizes = [16, 32], strides = [1, 1]} : vector<16x64xf32> to vector<16x32xf32>
    %65 = vector.shape_cast %64 : vector<16x32xf32> to vector<16x8x4xf32>
    %66 = vector.extract_strided_slice %63 {offsets = [0, 32], sizes = [16, 32], strides = [1, 1]} : vector<16x64xf32> to vector<16x32xf32>
    %67 = vector.shape_cast %66 : vector<16x32xf32> to vector<16x8x4xf32>
    %68 = vector.extract_strided_slice %61 {offsets = [0, 0], sizes = [16, 4], strides = [1, 1]} : vector<16x32xf32> to vector<16x4xf32>
    %69 = vector.shape_cast %68 : vector<16x4xf32> to vector<16x1x4xf32>
    %70 = vector.broadcast %69 : vector<16x1x4xf32> to vector<16x8x4xf32>
    %71 = arith.mulf %70, %65 : vector<16x8x4xf32>
    %cst_21 = arith.constant dense<0.000000e+00> : vector<16x8xf32>
    %72 = vector.multi_reduction <add>, %71, %cst_21 [2] : vector<16x8x4xf32> to vector<16x8xf32>
    %cst_22 = arith.constant dense<0xFF800000> : vector<16xf32>
    %73 = vector.multi_reduction <maximumf>, %72, %cst_22 [1] : vector<16x8xf32> to vector<16xf32>
    %74 = vector.shape_cast %73 : vector<16xf32> to vector<16x1xf32>
    %75 = vector.broadcast %74 : vector<16x1xf32> to vector<16x8xf32>
    %76 = arith.subf %72, %75 : vector<16x8xf32>
    %77 = math.exp %76 : vector<16x8xf32>
    %cst_23 = arith.constant dense<0.000000e+00> : vector<16xf32>
    %78 = vector.multi_reduction <add>, %77, %cst_23 [1] : vector<16x8xf32> to vector<16xf32>
    %79 = vector.shape_cast %78 : vector<16xf32> to vector<16x1xf32>
    %80 = vector.broadcast %79 : vector<16x1xf32> to vector<16x8xf32>
    %81 = arith.divf %77, %80 : vector<16x8xf32>
    %82 = vector.shape_cast %81 : vector<16x8xf32> to vector<16x8x1xf32>
    %83 = vector.broadcast %82 : vector<16x8x1xf32> to vector<16x8x4xf32>
    %84 = arith.mulf %83, %67 : vector<16x8x4xf32>
    %cst_24 = arith.constant dense<0.000000e+00> : vector<16x4xf32>
    %85 = vector.multi_reduction <add>, %84, %cst_24 [1] : vector<16x8x4xf32> to vector<16x4xf32>
    %86 = vector.extract_strided_slice %61 {offsets = [0, 4], sizes = [16, 4], strides = [1, 1]} : vector<16x32xf32> to vector<16x4xf32>
    %87 = vector.shape_cast %86 : vector<16x4xf32> to vector<16x1x4xf32>
    %88 = vector.broadcast %87 : vector<16x1x4xf32> to vector<16x8x4xf32>
    %89 = arith.mulf %88, %65 : vector<16x8x4xf32>
    %cst_25 = arith.constant dense<0.000000e+00> : vector<16x8xf32>
    %90 = vector.multi_reduction <add>, %89, %cst_25 [2] : vector<16x8x4xf32> to vector<16x8xf32>
    %cst_26 = arith.constant dense<0xFF800000> : vector<16xf32>
    %91 = vector.multi_reduction <maximumf>, %90, %cst_26 [1] : vector<16x8xf32> to vector<16xf32>
    %92 = vector.shape_cast %91 : vector<16xf32> to vector<16x1xf32>
    %93 = vector.broadcast %92 : vector<16x1xf32> to vector<16x8xf32>
    %94 = arith.subf %90, %93 : vector<16x8xf32>
    %95 = math.exp %94 : vector<16x8xf32>
    %cst_27 = arith.constant dense<0.000000e+00> : vector<16xf32>
    %96 = vector.multi_reduction <add>, %95, %cst_27 [1] : vector<16x8xf32> to vector<16xf32>
    %97 = vector.shape_cast %96 : vector<16xf32> to vector<16x1xf32>
    %98 = vector.broadcast %97 : vector<16x1xf32> to vector<16x8xf32>
    %99 = arith.divf %95, %98 : vector<16x8xf32>
    %100 = vector.shape_cast %99 : vector<16x8xf32> to vector<16x8x1xf32>
    %101 = vector.broadcast %100 : vector<16x8x1xf32> to vector<16x8x4xf32>
    %102 = arith.mulf %101, %67 : vector<16x8x4xf32>
    %cst_28 = arith.constant dense<0.000000e+00> : vector<16x4xf32>
    %103 = vector.multi_reduction <add>, %102, %cst_28 [1] : vector<16x8x4xf32> to vector<16x4xf32>
    %104 = vector.extract_strided_slice %61 {offsets = [0, 8], sizes = [16, 4], strides = [1, 1]} : vector<16x32xf32> to vector<16x4xf32>
    %105 = vector.shape_cast %104 : vector<16x4xf32> to vector<16x1x4xf32>
    %106 = vector.broadcast %105 : vector<16x1x4xf32> to vector<16x8x4xf32>
    %107 = arith.mulf %106, %65 : vector<16x8x4xf32>
    %cst_29 = arith.constant dense<0.000000e+00> : vector<16x8xf32>
    %108 = vector.multi_reduction <add>, %107, %cst_29 [2] : vector<16x8x4xf32> to vector<16x8xf32>
    %cst_30 = arith.constant dense<0xFF800000> : vector<16xf32>
    %109 = vector.multi_reduction <maximumf>, %108, %cst_30 [1] : vector<16x8xf32> to vector<16xf32>
    %110 = vector.shape_cast %109 : vector<16xf32> to vector<16x1xf32>
    %111 = vector.broadcast %110 : vector<16x1xf32> to vector<16x8xf32>
    %112 = arith.subf %108, %111 : vector<16x8xf32>
    %113 = math.exp %112 : vector<16x8xf32>
    %cst_31 = arith.constant dense<0.000000e+00> : vector<16xf32>
    %114 = vector.multi_reduction <add>, %113, %cst_31 [1] : vector<16x8xf32> to vector<16xf32>
    %115 = vector.shape_cast %114 : vector<16xf32> to vector<16x1xf32>
    %116 = vector.broadcast %115 : vector<16x1xf32> to vector<16x8xf32>
    %117 = arith.divf %113, %116 : vector<16x8xf32>
    %118 = vector.shape_cast %117 : vector<16x8xf32> to vector<16x8x1xf32>
    %119 = vector.broadcast %118 : vector<16x8x1xf32> to vector<16x8x4xf32>
    %120 = arith.mulf %119, %67 : vector<16x8x4xf32>
    %cst_32 = arith.constant dense<0.000000e+00> : vector<16x4xf32>
    %121 = vector.multi_reduction <add>, %120, %cst_32 [1] : vector<16x8x4xf32> to vector<16x4xf32>
    %122 = vector.extract_strided_slice %61 {offsets = [0, 12], sizes = [16, 4], strides = [1, 1]} : vector<16x32xf32> to vector<16x4xf32>
    %123 = vector.shape_cast %122 : vector<16x4xf32> to vector<16x1x4xf32>
    %124 = vector.broadcast %123 : vector<16x1x4xf32> to vector<16x8x4xf32>
    %125 = arith.mulf %124, %65 : vector<16x8x4xf32>
    %cst_33 = arith.constant dense<0.000000e+00> : vector<16x8xf32>
    %126 = vector.multi_reduction <add>, %125, %cst_33 [2] : vector<16x8x4xf32> to vector<16x8xf32>
    %cst_34 = arith.constant dense<0xFF800000> : vector<16xf32>
    %127 = vector.multi_reduction <maximumf>, %126, %cst_34 [1] : vector<16x8xf32> to vector<16xf32>
    %128 = vector.shape_cast %127 : vector<16xf32> to vector<16x1xf32>
    %129 = vector.broadcast %128 : vector<16x1xf32> to vector<16x8xf32>
    %130 = arith.subf %126, %129 : vector<16x8xf32>
    %131 = math.exp %130 : vector<16x8xf32>
    %cst_35 = arith.constant dense<0.000000e+00> : vector<16xf32>
    %132 = vector.multi_reduction <add>, %131, %cst_35 [1] : vector<16x8xf32> to vector<16xf32>
    %133 = vector.shape_cast %132 : vector<16xf32> to vector<16x1xf32>
    %134 = vector.broadcast %133 : vector<16x1xf32> to vector<16x8xf32>
    %135 = arith.divf %131, %134 : vector<16x8xf32>
    %136 = vector.shape_cast %135 : vector<16x8xf32> to vector<16x8x1xf32>
    %137 = vector.broadcast %136 : vector<16x8x1xf32> to vector<16x8x4xf32>
    %138 = arith.mulf %137, %67 : vector<16x8x4xf32>
    %cst_36 = arith.constant dense<0.000000e+00> : vector<16x4xf32>
    %139 = vector.multi_reduction <add>, %138, %cst_36 [1] : vector<16x8x4xf32> to vector<16x4xf32>
    %140 = vector.extract_strided_slice %61 {offsets = [0, 16], sizes = [16, 4], strides = [1, 1]} : vector<16x32xf32> to vector<16x4xf32>
    %141 = vector.shape_cast %140 : vector<16x4xf32> to vector<16x1x4xf32>
    %142 = vector.broadcast %141 : vector<16x1x4xf32> to vector<16x8x4xf32>
    %143 = arith.mulf %142, %65 : vector<16x8x4xf32>
    %cst_37 = arith.constant dense<0.000000e+00> : vector<16x8xf32>
    %144 = vector.multi_reduction <add>, %143, %cst_37 [2] : vector<16x8x4xf32> to vector<16x8xf32>
    %cst_38 = arith.constant dense<0xFF800000> : vector<16xf32>
    %145 = vector.multi_reduction <maximumf>, %144, %cst_38 [1] : vector<16x8xf32> to vector<16xf32>
    %146 = vector.shape_cast %145 : vector<16xf32> to vector<16x1xf32>
    %147 = vector.broadcast %146 : vector<16x1xf32> to vector<16x8xf32>
    %148 = arith.subf %144, %147 : vector<16x8xf32>
    %149 = math.exp %148 : vector<16x8xf32>
    %cst_39 = arith.constant dense<0.000000e+00> : vector<16xf32>
    %150 = vector.multi_reduction <add>, %149, %cst_39 [1] : vector<16x8xf32> to vector<16xf32>
    %151 = vector.shape_cast %150 : vector<16xf32> to vector<16x1xf32>
    %152 = vector.broadcast %151 : vector<16x1xf32> to vector<16x8xf32>
    %153 = arith.divf %149, %152 : vector<16x8xf32>
    %154 = vector.shape_cast %153 : vector<16x8xf32> to vector<16x8x1xf32>
    %155 = vector.broadcast %154 : vector<16x8x1xf32> to vector<16x8x4xf32>
    %156 = arith.mulf %155, %67 : vector<16x8x4xf32>
    %cst_40 = arith.constant dense<0.000000e+00> : vector<16x4xf32>
    %157 = vector.multi_reduction <add>, %156, %cst_40 [1] : vector<16x8x4xf32> to vector<16x4xf32>
    %158 = vector.extract_strided_slice %61 {offsets = [0, 20], sizes = [16, 4], strides = [1, 1]} : vector<16x32xf32> to vector<16x4xf32>
    %159 = vector.shape_cast %158 : vector<16x4xf32> to vector<16x1x4xf32>
    %160 = vector.broadcast %159 : vector<16x1x4xf32> to vector<16x8x4xf32>
    %161 = arith.mulf %160, %65 : vector<16x8x4xf32>
    %cst_41 = arith.constant dense<0.000000e+00> : vector<16x8xf32>
    %162 = vector.multi_reduction <add>, %161, %cst_41 [2] : vector<16x8x4xf32> to vector<16x8xf32>
    %cst_42 = arith.constant dense<0xFF800000> : vector<16xf32>
    %163 = vector.multi_reduction <maximumf>, %162, %cst_42 [1] : vector<16x8xf32> to vector<16xf32>
    %164 = vector.shape_cast %163 : vector<16xf32> to vector<16x1xf32>
    %165 = vector.broadcast %164 : vector<16x1xf32> to vector<16x8xf32>
    %166 = arith.subf %162, %165 : vector<16x8xf32>
    %167 = math.exp %166 : vector<16x8xf32>
    %cst_43 = arith.constant dense<0.000000e+00> : vector<16xf32>
    %168 = vector.multi_reduction <add>, %167, %cst_43 [1] : vector<16x8xf32> to vector<16xf32>
    %169 = vector.shape_cast %168 : vector<16xf32> to vector<16x1xf32>
    %170 = vector.broadcast %169 : vector<16x1xf32> to vector<16x8xf32>
    %171 = arith.divf %167, %170 : vector<16x8xf32>
    %172 = vector.shape_cast %171 : vector<16x8xf32> to vector<16x8x1xf32>
    %173 = vector.broadcast %172 : vector<16x8x1xf32> to vector<16x8x4xf32>
    %174 = arith.mulf %173, %67 : vector<16x8x4xf32>
    %cst_44 = arith.constant dense<0.000000e+00> : vector<16x4xf32>
    %175 = vector.multi_reduction <add>, %174, %cst_44 [1] : vector<16x8x4xf32> to vector<16x4xf32>
    %176 = vector.extract_strided_slice %61 {offsets = [0, 24], sizes = [16, 4], strides = [1, 1]} : vector<16x32xf32> to vector<16x4xf32>
    %177 = vector.shape_cast %176 : vector<16x4xf32> to vector<16x1x4xf32>
    %178 = vector.broadcast %177 : vector<16x1x4xf32> to vector<16x8x4xf32>
    %179 = arith.mulf %178, %65 : vector<16x8x4xf32>
    %cst_45 = arith.constant dense<0.000000e+00> : vector<16x8xf32>
    %180 = vector.multi_reduction <add>, %179, %cst_45 [2] : vector<16x8x4xf32> to vector<16x8xf32>
    %cst_46 = arith.constant dense<0xFF800000> : vector<16xf32>
    %181 = vector.multi_reduction <maximumf>, %180, %cst_46 [1] : vector<16x8xf32> to vector<16xf32>
    %182 = vector.shape_cast %181 : vector<16xf32> to vector<16x1xf32>
    %183 = vector.broadcast %182 : vector<16x1xf32> to vector<16x8xf32>
    %184 = arith.subf %180, %183 : vector<16x8xf32>
    %185 = math.exp %184 : vector<16x8xf32>
    %cst_47 = arith.constant dense<0.000000e+00> : vector<16xf32>
    %186 = vector.multi_reduction <add>, %185, %cst_47 [1] : vector<16x8xf32> to vector<16xf32>
    %187 = vector.shape_cast %186 : vector<16xf32> to vector<16x1xf32>
    %188 = vector.broadcast %187 : vector<16x1xf32> to vector<16x8xf32>
    %189 = arith.divf %185, %188 : vector<16x8xf32>
    %190 = vector.shape_cast %189 : vector<16x8xf32> to vector<16x8x1xf32>
    %191 = vector.broadcast %190 : vector<16x8x1xf32> to vector<16x8x4xf32>
    %192 = arith.mulf %191, %67 : vector<16x8x4xf32>
    %cst_48 = arith.constant dense<0.000000e+00> : vector<16x4xf32>
    %193 = vector.multi_reduction <add>, %192, %cst_48 [1] : vector<16x8x4xf32> to vector<16x4xf32>
    %194 = vector.extract_strided_slice %61 {offsets = [0, 28], sizes = [16, 4], strides = [1, 1]} : vector<16x32xf32> to vector<16x4xf32>
    %195 = vector.shape_cast %194 : vector<16x4xf32> to vector<16x1x4xf32>
    %196 = vector.broadcast %195 : vector<16x1x4xf32> to vector<16x8x4xf32>
    %197 = arith.mulf %196, %65 : vector<16x8x4xf32>
    %cst_49 = arith.constant dense<0.000000e+00> : vector<16x8xf32>
    %198 = vector.multi_reduction <add>, %197, %cst_49 [2] : vector<16x8x4xf32> to vector<16x8xf32>
    %cst_50 = arith.constant dense<0xFF800000> : vector<16xf32>
    %199 = vector.multi_reduction <maximumf>, %198, %cst_50 [1] : vector<16x8xf32> to vector<16xf32>
    %200 = vector.shape_cast %199 : vector<16xf32> to vector<16x1xf32>
    %201 = vector.broadcast %200 : vector<16x1xf32> to vector<16x8xf32>
    %202 = arith.subf %198, %201 : vector<16x8xf32>
    %203 = math.exp %202 : vector<16x8xf32>
    %cst_51 = arith.constant dense<0.000000e+00> : vector<16xf32>
    %204 = vector.multi_reduction <add>, %203, %cst_51 [1] : vector<16x8xf32> to vector<16xf32>
    %205 = vector.shape_cast %204 : vector<16xf32> to vector<16x1xf32>
    %206 = vector.broadcast %205 : vector<16x1xf32> to vector<16x8xf32>
    %207 = arith.divf %203, %206 : vector<16x8xf32>
    %208 = vector.shape_cast %207 : vector<16x8xf32> to vector<16x8x1xf32>
    %209 = vector.broadcast %208 : vector<16x8x1xf32> to vector<16x8x4xf32>
    %210 = arith.mulf %209, %67 : vector<16x8x4xf32>
    %cst_52 = arith.constant dense<0.000000e+00> : vector<16x4xf32>
    %211 = vector.multi_reduction <add>, %210, %cst_52 [1] : vector<16x8x4xf32> to vector<16x4xf32>
    %212 = tpu.concatenate %85, %103, %121, %139, %157, %175, %193, %211 in 1 : vector<16x4xf32>, vector<16x4xf32>, vector<16x4xf32>, vector<16x4xf32>, vector<16x4xf32>, vector<16x4xf32>, vector<16x4xf32>, vector<16x4xf32> -> vector<16x32xf32>
    %213 = arith.truncf %212 : vector<16x32xf32> to vector<16x32xbf16>
    %c0_53 = arith.constant 0 : index
    %c0_54 = arith.constant 0 : index
    %c0_55 = arith.constant 0 : index
    %214 = vector.load %arg5[%c0_53, %c0_54, %c0_55] : memref<1x32x32xbf16, #tpu.memory_space<vmem>>, vector<1x32x32xbf16>
    %215 = vector.shape_cast %214 : vector<1x32x32xbf16> to vector<32x32xbf16>
    %cst_56 = arith.constant dense<0.000000e+00> : vector<16x32xf32>
    %216 = tpu.matmul %213, %215, %cst_56 {dimension_numbers = #tpu.dot_dimension_numbers<[1], [0], [0], [1], [0, 0, 1, 1], [], []>} : vector<16x32xbf16>, vector<32x32xbf16>, vector<16x32xf32> -> vector<16x32xf32>
    %217 = vector.broadcast %11 : vector<1x32xf32> to vector<16x32xf32>
    %218 = arith.addf %216, %217 : vector<16x32xf32>
    %219 = arith.addf %3, %218 : vector<16x32xf32>
    %cst_57 = arith.constant dense<0.000000e+00> : vector<16xf32>
    %220 = vector.multi_reduction <add>, %219, %cst_57 [1] : vector<16x32xf32> to vector<16xf32>
    %221 = vector.shape_cast %220 : vector<16xf32> to vector<16x1xf32>
    %cst_58 = arith.constant 3.200000e+01 : f32
    %222 = vector.broadcast %cst_58 : f32 to vector<16x1xf32>
    %223 = arith.divf %221, %222 : vector<16x1xf32>
    %224 = vector.broadcast %223 : vector<16x1xf32> to vector<16x32xf32>
    %225 = arith.subf %219, %224 : vector<16x32xf32>
    %226 = arith.mulf %225, %225 : vector<16x32xf32>
    %cst_59 = arith.constant dense<0.000000e+00> : vector<16xf32>
    %227 = vector.multi_reduction <add>, %226, %cst_59 [1] : vector<16x32xf32> to vector<16xf32>
    %228 = vector.shape_cast %227 : vector<16xf32> to vector<16x1xf32>
    %cst_60 = arith.constant 3.200000e+01 : f32
    %229 = vector.broadcast %cst_60 : f32 to vector<16x1xf32>
    %230 = arith.divf %228, %229 : vector<16x1xf32>
    %cst_61 = arith.constant 9.99999974E-6 : f32
    %231 = vector.broadcast %cst_61 : f32 to vector<16x1xf32>
    %232 = arith.addf %230, %231 : vector<16x1xf32>
    %233 = math.rsqrt %232 : vector<16x1xf32>
    %234 = vector.broadcast %233 : vector<16x1xf32> to vector<16x32xf32>
    %235 = arith.mulf %225, %234 : vector<16x32xf32>
    %236 = vector.broadcast %12 : vector<1x32xf32> to vector<16x32xf32>
    %237 = arith.mulf %235, %236 : vector<16x32xf32>
    %238 = vector.broadcast %13 : vector<1x32xf32> to vector<16x32xf32>
    %239 = arith.addf %237, %238 : vector<16x32xf32>
    %240 = arith.truncf %239 : vector<16x32xf32> to vector<16x32xbf16>
    %c0_62 = arith.constant 0 : index
    %c0_63 = arith.constant 0 : index
    %c0_64 = arith.constant 0 : index
    %241 = vector.load %arg6[%c0_62, %c0_63, %c0_64] : memref<1x32x128xbf16, #tpu.memory_space<vmem>>, vector<1x32x128xbf16>
    %242 = vector.shape_cast %241 : vector<1x32x128xbf16> to vector<32x128xbf16>
    %cst_65 = arith.constant dense<0.000000e+00> : vector<16x128xf32>
    %243 = tpu.matmul %240, %242, %cst_65 {dimension_numbers = #tpu.dot_dimension_numbers<[1], [0], [0], [1], [0, 0, 1, 1], [], []>} : vector<16x32xbf16>, vector<32x128xbf16>, vector<16x128xf32> -> vector<16x128xf32>
    %244 = vector.broadcast %15 : vector<1x128xf32> to vector<16x128xf32>
    %245 = arith.addf %243, %244 : vector<16x128xf32>
    %cst_66 = arith.constant 5.000000e-01 : f32
    %246 = vector.broadcast %cst_66 : f32 to vector<16x128xf32>
    %247 = arith.mulf %246, %245 : vector<16x128xf32>
    %cst_67 = arith.constant 4.471500e-02 : f32
    %248 = vector.broadcast %cst_67 : f32 to vector<16x128xf32>
    %249 = arith.mulf %248, %245 : vector<16x128xf32>
    %250 = arith.mulf %249, %245 : vector<16x128xf32>
    %251 = arith.mulf %250, %245 : vector<16x128xf32>
    %252 = arith.addf %245, %251 : vector<16x128xf32>
    %cst_68 = arith.constant 0.797884583 : f32
    %253 = vector.broadcast %cst_68 : f32 to vector<16x128xf32>
    %254 = arith.mulf %253, %252 : vector<16x128xf32>
    %255 = math.tanh %254 : vector<16x128xf32>
    %cst_69 = arith.constant 1.000000e+00 : f32
    %256 = vector.broadcast %cst_69 : f32 to vector<16x128xf32>
    %257 = arith.addf %256, %255 : vector<16x128xf32>
    %258 = arith.mulf %247, %257 : vector<16x128xf32>
    %259 = arith.truncf %258 : vector<16x128xf32> to vector<16x128xbf16>
    %c0_70 = arith.constant 0 : index
    %c0_71 = arith.constant 0 : index
    %c0_72 = arith.constant 0 : index
    %260 = vector.load %arg7[%c0_70, %c0_71, %c0_72] : memref<1x128x32xbf16, #tpu.memory_space<vmem>>, vector<1x128x32xbf16>
    %261 = vector.shape_cast %260 : vector<1x128x32xbf16> to vector<128x32xbf16>
    %cst_73 = arith.constant dense<0.000000e+00> : vector<16x32xf32>
    %262 = tpu.matmul %259, %261, %cst_73 {dimension_numbers = #tpu.dot_dimension_numbers<[1], [0], [0], [1], [0, 0, 1, 1], [], []>} : vector<16x128xbf16>, vector<128x32xbf16>, vector<16x32xf32> -> vector<16x32xf32>
    %263 = vector.broadcast %14 : vector<1x32xf32> to vector<16x32xf32>
    %264 = arith.addf %262, %263 : vector<16x32xf32>
    %265 = arith.addf %219, %264 : vector<16x32xf32>
    %c0_74 = arith.constant 0 : index
    %c0_75 = arith.constant 0 : index
    %266 = vector.load %arg10[%c0_74, %c0_75] : memref<16x32xf32, #tpu.memory_space<vmem>>, vector<16x32xf32>
    tpu.vector_store %arg10[%c0_74, %c0_75], %265 {strides = array<i32>} : memref<16x32xf32, #tpu.memory_space<vmem>>, vector<16x32xf32>,
    %c1_i32 = arith.constant 1 : i32
    %267 = arith.cmpi eq, %arg1, %c1_i32 : i32
    %268 = arith.extui %267 : i1 to i32
    %c0_i32_76 = arith.constant 0 : i32
    %269 = arith.cmpi ne, %268, %c0_i32_76 : i32
    scf.if %269 {
      %c0_77 = arith.constant 0 : index
      %c0_78 = arith.constant 0 : index
      %270 = vector.load %arg9[%c0_77, %c0_78] : memref<16x32xf32, #tpu.memory_space<vmem>>, vector<16x32xf32>
      tpu.vector_store %arg9[%c0_77, %c0_78], %265 {strides = array<i32>} : memref<16x32xf32, #tpu.memory_space<vmem>>, vector<16x32xf32>,
    } else {
    }
    return
  }
  func.func @transform_0(%arg0: i32, %arg1: i32) -> (i32, i32) {
    %c0_i32 = arith.constant 0 : i32
    %c0_i32_0 = arith.constant 0 : i32
    return %arg0, %c0_i32 : i32, i32
  }
  func.func @transform_1(%arg0: i32, %arg1: i32) -> (i32, i32) {
    %c0_i32 = arith.constant 0 : i32
    %c0_i32_0 = arith.constant 0 : i32
    return %arg0, %c0_i32 : i32, i32
  }
  func.func @transform_2(%arg0: i32, %arg1: i32) -> (i32, i32, i32) {
    %c0_i32 = arith.constant 0 : i32
    %c0_i32_0 = arith.constant 0 : i32
    %c0_i32_1 = arith.constant 0 : i32
    return %arg1, %c0_i32, %c0_i32_0 : i32, i32, i32
  }
  func.func @transform_3(%arg0: i32, %arg1: i32) -> (i32, i32, i32) {
    %c0_i32 = arith.constant 0 : i32
    %c0_i32_0 = arith.constant 0 : i32
    %c0_i32_1 = arith.constant 0 : i32
    return %arg1, %c0_i32, %c0_i32_0 : i32, i32, i32
  }
  func.func @transform_4(%arg0: i32, %arg1: i32) -> (i32, i32, i32) {
    %c0_i32 = arith.constant 0 : i32
    %c0_i32_0 = arith.constant 0 : i32
    %c0_i32_1 = arith.constant 0 : i32
    return %arg1, %c0_i32, %c0_i32_0 : i32, i32, i32
  }
  func.func @transform_5(%arg0: i32, %arg1: i32) -> (i32, i32, i32) {
    %c0_i32 = arith.constant 0 : i32
    %c0_i32_0 = arith.constant 0 : i32
    %c0_i32_1 = arith.constant 0 : i32
    return %arg1, %c0_i32, %c0_i32_0 : i32, i32, i32
  }
  func.func @transform_6(%arg0: i32, %arg1: i32) -> (i32, i32, i32) {
    %c0_i32 = arith.constant 0 : i32
    %c0_i32_0 = arith.constant 0 : i32
    %c0_i32_1 = arith.constant 0 : i32
    return %arg1, %c0_i32, %c0_i32_0 : i32, i32, i32
  }
  func.func @transform_7(%arg0: i32, %arg1: i32) -> (i32, i32) {
    %c0_i32 = arith.constant 0 : i32
    %c0_i32_0 = arith.constant 0 : i32
    return %arg0, %c0_i32 : i32, i32
  }
}

</mosaic_0001>

<llo_original>
// kernel: tpu_custom_call.1
$region0: #{tpu_custom_call.1}
  #allocation0 [shape = 'u32[]', space=smem, size = 0x4, offset = 0x4, fixed_abs, tag = 'smem constant byte address 0x4 - core index']
  #allocation1 [shape = 'u32[144,128]{1,0:T(1,128)}', space=vmem, size = 0x12000, scoped, tag = 'internal scratch']
  #allocation2 [shape = 'f32[16,32]{1,0:T(8,128)}', space=vmem, size = 0x2000, scoped, tag = 'scratch operand']
  %s0 = inlined_call_operand.vmem [shape: f32[16,32], index: 0, kind: input, shape index: {}]
  %s1 = inlined_call_operand.vmem [shape: f32[16,32], index: 1, kind: input, shape index: {}]
  %s2 = inlined_call_operand.vmem [shape: bf16[2,32,96], index: 2, kind: input, shape index: {}]
  %s3 = inlined_call_operand.vmem [shape: bf16[2,32,32], index: 3, kind: input, shape index: {}]
  %s4 = inlined_call_operand.vmem [shape: bf16[2,32,128], index: 4, kind: input, shape index: {}]
  %s5 = inlined_call_operand.vmem [shape: bf16[2,128,32], index: 5, kind: input, shape index: {}]
  %s6 = inlined_call_operand.vmem [shape: f32[2,9,128], index: 6, kind: input, shape index: {}]
  %s7 = inlined_call_operand.hbm [shape: f32[16,32], index: 7, kind: output, shape index: {}]
  %s8 = sld [smem:[#allocation0]]
  $region69: #{tpu_custom_call.1} parent=0
    _
  %s10 = ssub.s32 1, %s8
  %s11 = scalar_select 0, %s10, %s8
  $region1: #{tpu_custom_call.1} parent=0
    #allocation3 [shape = 'u8[8192]{0}', space=vmem, size = 0x2000, scoped, tag = 'output window, operand 0, single buffered']
    #allocation4 [shape = 's32[2]{0}', space=sflag, size = 0x8, scoped, tag = 'scoped memory for tpu_custom_call.1']
    %12 = vsyncpa [#allocation4], 0
    loop: start=0, step=1, limit=4
    $region2: #{tpu_custom_call.1} parent=1 // loop_pre_header
      _
    $region3: #{tpu_custom_call.1} parent=1 // loop_header
      %s14 = sphi 0, %s18
      %p15 = scmp.ge.s32.totalorder %s14, 4
      %s21 = sphi 0, %s33
      %s22 = sphi 0, %s29
      %s23 = sphi 0, %s21
      %s24 = sphi 0, %s22
      %s25 = sphi 0, %s23
      %s26 = sphi 0, %s24
      %s36 = sphi 0, %s38
      %s39 = sphi 0, %s36
      %s40 = sphi 0, %s39
      %s56 = sphi 0, %s40
      %s62 = sphi 0, %s64
      %s65 = sphi 0, %s62
      %s66 = sphi 0, %s65
      %s82 = sphi 0, %s66
      %s88 = sphi 0, %s90
      %s91 = sphi 0, %s88
      %s92 = sphi 0, %s91
      %s108 = sphi 0, %s92
      %s114 = sphi 0, %s116
      %s117 = sphi 0, %s114
      %s118 = sphi 0, %s117
      %s134 = sphi 0, %s118
      %s140 = sphi 0, %s142
      %s143 = sphi 0, %s140
      %s144 = sphi 0, %s143
      %s160 = sphi 0, %s144
      %s166 = sphi 0, %s168
      %s169 = sphi 0, %s166
      %s170 = sphi 0, %s169
      %s186 = sphi 0, %s170
      %s192 = sphi 0, %s194
      %s195 = sphi 0, %s192
      %s196 = sphi 0, %s195
      %s212 = sphi 0, %s196
      %s218 = sphi 0, %s220
      %s221 = sphi 0, %s218
      %s222 = sphi 0, %s221
      %s238 = sphi 0, %s222
    $region4: #{tpu_custom_call.1} parent=1 // loop_header_branch
      %17 = sbr.rel (%p15) target = $region8
    $region5: #{tpu_custom_call.1} parent=1 // loop_body
      %s19 = ssub.s32 %s14, 1
      %s20 = ssub.s32 %s14, 2
      %s27 = sadd.s32 1, %s22
      %p28 = scmp.ge.s32.totalorder %s27, 2
      %s29 = scalar_select %p28, 0, %s27
      %s30 = sadd.s32 1, %s21
      %s31 = scalar_select %p28, %s30, %s21
      %p32 = scmp.ge.s32.totalorder %s31, 1
      %s33 = scalar_select %p32, 0, %s31
      %s34 = ssub.s32 %s21, %s33
      %p35 = scmp.eq.s32.totalorder %s34, 0
      %s37 = sadd.s32 %s36, 1
      %s38 = scalar_select %p35, %s36, %s37
      %p41 = pneg %p35
      %p42 = scmp.eq.s32.totalorder %s14, 1
      %p43 = por %p41, %p42
      %p44 = scmp.ne.s32.totalorder %s36, %s39
      %p45 = scmp.eq.s32.totalorder %s14, 0
      %p46 = por %p44, %p45
      %p47 = scmp.ne.s32.totalorder %s36, %s39
      %p48 = scmp.eq.s32.totalorder %s19, 1
      %p49 = por %p47, %p48
      %p50 = scmp.ne.s32.totalorder %s39, %s40
      %p51 = scmp.eq.s32.totalorder %s19, 0
      %p52 = por %p50, %p51
      %p53 = scmp.ne.s32.totalorder %s39, %s40
      %p54 = scmp.eq.s32.totalorder %s20, 1
      %p55 = por %p53, %p54
      %p57 = scmp.ne.s32.totalorder %s40, %s56
      %p58 = scmp.eq.s32.totalorder %s20, 0
      %p59 = por %p57, %p58
      %s60 = ssub.s32 %s21, %s33
      %p61 = scmp.eq.s32.totalorder %s60, 0
      %s63 = sadd.s32 %s62, 1
      %s64 = scalar_select %p61, %s62, %s63
      %p67 = pneg %p61
      %p68 = scmp.eq.s32.totalorder %s14, 1
      %p69 = por %p67, %p68
      %p70 = scmp.ne.s32.totalorder %s62, %s65
      %p71 = scmp.eq.s32.totalorder %s14, 0
      %p72 = por %p70, %p71
      %p73 = scmp.ne.s32.totalorder %s62, %s65
      %p74 = scmp.eq.s32.totalorder %s19, 1
      %p75 = por %p73, %p74
      %p76 = scmp.ne.s32.totalorder %s65, %s66
      %p77 = scmp.eq.s32.totalorder %s19, 0
      %p78 = por %p76, %p77
      %p79 = scmp.ne.s32.totalorder %s65, %s66
      %p80 = scmp.eq.s32.totalorder %s20, 1
      %p81 = por %p79, %p80
      %p83 = scmp.ne.s32.totalorder %s66, %s82
      %p84 = scmp.eq.s32.totalorder %s20, 0
      %p85 = por %p83, %p84
      %s86 = ssub.s32 %s22, %s29
      %p87 = scmp.eq.s32.totalorder %s86, 0
      %s89 = sadd.s32 %s88, 1
      %s90 = scalar_select %p87, %s88, %s89
      %p93 = pneg %p87
      %p94 = scmp.eq.s32.totalorder %s14, 1
      %p95 = por %p93, %p94
      %p96 = scmp.ne.s32.totalorder %s88, %s91
      %p97 = scmp.eq.s32.totalorder %s14, 0
      %p98 = por %p96, %p97
      %p99 = scmp.ne.s32.totalorder %s88, %s91
      %p100 = scmp.eq.s32.totalorder %s19, 1
      %p101 = por %p99, %p100
      %p102 = scmp.ne.s32.totalorder %s91, %s92
      %p103 = scmp.eq.s32.totalorder %s19, 0
      %p104 = por %p102, %p103
      %p105 = scmp.ne.s32.totalorder %s91, %s92
      %p106 = scmp.eq.s32.totalorder %s20, 1
      %p107 = por %p105, %p106
      %p109 = scmp.ne.s32.totalorder %s92, %s108
      %p110 = scmp.eq.s32.totalorder %s20, 0
      %p111 = por %p109, %p110
      %s112 = ssub.s32 %s22, %s29
      %p113 = scmp.eq.s32.totalorder %s112, 0
      %s115 = sadd.s32 %s114, 1
      %s116 = scalar_select %p113, %s114, %s115
      %p119 = pneg %p113
      %p120 = scmp.eq.s32.totalorder %s14, 1
      %p121 = por %p119, %p120
      %p122 = scmp.ne.s32.totalorder %s114, %s117
      %p123 = scmp.eq.s32.totalorder %s14, 0
      %p124 = por %p122, %p123
      %p125 = scmp.ne.s32.totalorder %s114, %s117
      %p126 = scmp.eq.s32.totalorder %s19, 1
      %p127 = por %p125, %p126
      %p128 = scmp.ne.s32.totalorder %s117, %s118
      %p129 = scmp.eq.s32.totalorder %s19, 0
      %p130 = por %p128, %p129
      %p131 = scmp.ne.s32.totalorder %s117, %s118
      %p132 = scmp.eq.s32.totalorder %s20, 1
      %p133 = por %p131, %p132
      %p135 = scmp.ne.s32.totalorder %s118, %s134
      %p136 = scmp.eq.s32.totalorder %s20, 0
      %p137 = por %p135, %p136
      %s138 = ssub.s32 %s22, %s29
      %p139 = scmp.eq.s32.totalorder %s138, 0
      %s141 = sadd.s32 %s140, 1
      %s142 = scalar_select %p139, %s140, %s141
      %p145 = pneg %p139
      %p146 = scmp.eq.s32.totalorder %s14, 1
      %p147 = por %p145, %p146
      %p148 = scmp.ne.s32.totalorder %s140, %s143
      %p149 = scmp.eq.s32.totalorder %s14, 0
      %p150 = por %p148, %p149
      %p151 = scmp.ne.s32.totalorder %s140, %s143
      %p152 = scmp.eq.s32.totalorder %s19, 1
      %p153 = por %p151, %p152
      %p154 = scmp.ne.s32.totalorder %s143, %s144
      %p155 = scmp.eq.s32.totalorder %s19, 0
      %p156 = por %p154, %p155
      %p157 = scmp.ne.s32.totalorder %s143, %s144
      %p158 = scmp.eq.s32.totalorder %s20, 1
      %p159 = por %p157, %p158
      %p161 = scmp.ne.s32.totalorder %s144, %s160
      %p162 = scmp.eq.s32.totalorder %s20, 0
      %p163 = por %p161, %p162
      %s164 = ssub.s32 %s22, %s29
      %p165 = scmp.eq.s32.totalorder %s164, 0
      %s167 = sadd.s32 %s166, 1
      %s168 = scalar_select %p165, %s166, %s167
      %p171 = pneg %p165
      %p172 = scmp.eq.s32.totalorder %s14, 1
      %p173 = por %p171, %p172
      %p174 = scmp.ne.s32.totalorder %s166, %s169
      %p175 = scmp.eq.s32.totalorder %s14, 0
      %p176 = por %p174, %p175
      %p177 = scmp.ne.s32.totalorder %s166, %s169
      %p178 = scmp.eq.s32.totalorder %s19, 1
      %p179 = por %p177, %p178
      %p180 = scmp.ne.s32.totalorder %s169, %s170
      %p181 = scmp.eq.s32.totalorder %s19, 0
      %p182 = por %p180, %p181
      %p183 = scmp.ne.s32.totalorder %s169, %s170
      %p184 = scmp.eq.s32.totalorder %s20, 1
      %p185 = por %p183, %p184
      %p187 = scmp.ne.s32.totalorder %s170, %s186
      %p188 = scmp.eq.s32.totalorder %s20, 0
      %p189 = por %p187, %p188
      %s190 = ssub.s32 %s22, %s29
      %p191 = scmp.eq.s32.totalorder %s190, 0
      %s193 = sadd.s32 %s192, 1
      %s194 = scalar_select %p191, %s192, %s193
      %p197 = pneg %p191
      %p198 = scmp.eq.s32.totalorder %s14, 1
      %p199 = por %p197, %p198
      %p200 = scmp.ne.s32.totalorder %s192, %s195
      %p201 = scmp.eq.s32.totalorder %s14, 0
      %p202 = por %p200, %p201
      %p203 = scmp.ne.s32.totalorder %s192, %s195
      %p204 = scmp.eq.s32.totalorder %s19, 1
      %p205 = por %p203, %p204
      %p206 = scmp.ne.s32.totalorder %s195, %s196
      %p207 = scmp.eq.s32.totalorder %s19, 0
      %p208 = por %p206, %p207
      %p209 = scmp.ne.s32.totalorder %s195, %s196
      %p210 = scmp.eq.s32.totalorder %s20, 1
      %p211 = por %p209, %p210
      %p213 = scmp.ne.s32.totalorder %s196, %s212
      %p214 = scmp.eq.s32.totalorder %s20, 0
      %p215 = por %p213, %p214
      %s216 = ssub.s32 %s21, %s33
      %p217 = scmp.eq.s32.totalorder %s216, 0
      %s219 = sadd.s32 %s218, 1
      %s220 = scalar_select %p217, %s218, %s219
      %p223 = pneg %p217
      %p224 = scmp.eq.s32.totalorder %s14, 1
      %p225 = por %p223, %p224
      %p226 = scmp.ne.s32.totalorder %s218, %s221
      %p227 = scmp.eq.s32.totalorder %s14, 0
      %p228 = por %p226, %p227
      %p229 = scmp.ne.s32.totalorder %s218, %s221
      %p230 = scmp.eq.s32.totalorder %s19, 1
      %p231 = por %p229, %p230
      %p232 = scmp.ne.s32.totalorder %s221, %s222
      %p233 = scmp.eq.s32.totalorder %s19, 0
      %p234 = por %p232, %p233
      %p235 = scmp.ne.s32.totalorder %s221, %s222
      %p236 = scmp.eq.s32.totalorder %s20, 1
      %p237 = por %p235, %p236
      %p239 = scmp.ne.s32.totalorder %s222, %s238
      %p240 = scmp.eq.s32.totalorder %s20, 0
      %p241 = por %p239, %p240
      %p242 = scmp.le.s32.totalorder 1, %s14
      %p243 = scmp.lt.s32.totalorder %s14, 3
      %p244 = pnand %p242, %p243
      %p245 = pneg %p244
      // Predicated region
      $region9: #{tpu_custom_call.1} parent=5 // pred_check
        _
      $region10: #{tpu_custom_call.1} parent=5 // pred_check_branch
        %247 = sbr.rel (%p244) target = $region12
      $region11: #{tpu_custom_call.1} parent=5 // pred_region
        %s248 = ssub.s32 %s14, 1
        // Predicated region
        $region13: #{tpu_custom_call.1} parent=11 // pred_check
          %p249 = pneg %p52
        $region14: #{tpu_custom_call.1} parent=11 // pred_check_branch
          %251 = sbr.rel (%p249) target = $region16
        $region15: #{tpu_custom_call.1} parent=11 // pred_region
          %s252 = smul.u32 2, %s23
          %p253 = scmp.lt.s32.totalorder %s252, 1
          %s254 = scalar_select %p253, %s252, 1
          %s255 = smul.addr %s254, 8
          %s256 = scalar_lea.vmem %s0, %s255
          %s257 = smul.u32 2, %s23
        $region16: #{tpu_custom_call.1} parent=11 // pred_fallthru
          _
        // Predicated region
        $region17: #{tpu_custom_call.1} parent=11 // pred_check
          %p258 = pneg %p78
        $region18: #{tpu_custom_call.1} parent=11 // pred_check_branch
          %260 = sbr.rel (%p258) target = $region20
        $region19: #{tpu_custom_call.1} parent=11 // pred_region
          %s261 = smul.u32 2, %s23
          %p262 = scmp.lt.s32.totalorder %s261, 1
          %s263 = scalar_select %p262, %s261, 1
          %s264 = smul.addr %s263, 8
          %s265 = scalar_lea.vmem %s1, %s264
          %s266 = smul.u32 2, %s23
        $region20: #{tpu_custom_call.1} parent=11 // pred_fallthru
          _
      $region12: #{tpu_custom_call.1} parent=5 // pred_fallthru
        _
      %p267 = scmp.lt.s32.totalorder %s14, 2
      // Predicated region
      $region21: #{tpu_custom_call.1} parent=5 // pred_check
        %p268 = pneg %p267
      $region22: #{tpu_custom_call.1} parent=5 // pred_check_branch
        %270 = sbr.rel (%p268) target = $region24
      $region23: #{tpu_custom_call.1} parent=5 // pred_region
        // Predicated region
        $region25: #{tpu_custom_call.1} parent=23 // pred_check
          %p271 = pneg %p98
        $region26: #{tpu_custom_call.1} parent=23 // pred_check_branch
          %273 = sbr.rel (%p271) target = $region28
        $region27: #{tpu_custom_call.1} parent=23 // pred_region
          %p274 = scmp.lt.s32.totalorder %s22, 1
          %s275 = scalar_select %p274, %s22, 1
          %s276 = smul.addr %s275, 4
          %s277 = smul.addr %s276, 4
          %s278 = scalar_lea.vmem %s2, %s277
        $region28: #{tpu_custom_call.1} parent=23 // pred_fallthru
          _
        // Predicated region
        $region29: #{tpu_custom_call.1} parent=23 // pred_check
          %p279 = pneg %p124
        $region30: #{tpu_custom_call.1} parent=23 // pred_check_branch
          %281 = sbr.rel (%p279) target = $region32
        $region31: #{tpu_custom_call.1} parent=23 // pred_region
          %p282 = scmp.lt.s32.totalorder %s22, 1
          %s283 = scalar_select %p282, %s22, 1
          %s284 = smul.addr %s283, 4
          %s285 = smul.addr %s284, 4
          %s286 = scalar_lea.vmem %s3, %s285
        $region32: #{tpu_custom_call.1} parent=23 // pred_fallthru
          _
        // Predicated region
        $region33: #{tpu_custom_call.1} parent=23 // pred_check
          %p287 = pneg %p150
        $region34: #{tpu_custom_call.1} parent=23 // pred_check_branch
          %289 = sbr.rel (%p287) target = $region36
        $region35: #{tpu_custom_call.1} parent=23 // pred_region
          %p290 = scmp.lt.s32.totalorder %s22, 1
          %s291 = scalar_select %p290, %s22, 1
          %s292 = smul.addr %s291, 4
          %s293 = smul.addr %s292, 4
          %s294 = scalar_lea.vmem %s4, %s293
        $region36: #{tpu_custom_call.1} parent=23 // pred_fallthru
          _
        // Predicated region
        $region37: #{tpu_custom_call.1} parent=23 // pred_check
          %p295 = pneg %p176
        $region38: #{tpu_custom_call.1} parent=23 // pred_check_branch
          %297 = sbr.rel (%p295) target = $region40
        $region39: #{tpu_custom_call.1} parent=23 // pred_region
          %p298 = scmp.lt.s32.totalorder %s22, 1
          %s299 = scalar_select %p298, %s22, 1
          %s300 = smul.addr %s299, 16
          %s301 = smul.addr %s300, 4
          %s302 = scalar_lea.vmem %s5, %s301
        $region40: #{tpu_custom_call.1} parent=23 // pred_fallthru
          _
        // Predicated region
        $region41: #{tpu_custom_call.1} parent=23 // pred_check
          %p303 = pneg %p202
        $region42: #{tpu_custom_call.1} parent=23 // pred_check_branch
          %305 = sbr.rel (%p303) target = $region44
        $region43: #{tpu_custom_call.1} parent=23 // pred_region
          %p306 = scmp.lt.s32.totalorder %s22, 1
          %s307 = scalar_select %p306, %s22, 1
          %s308 = smul.addr %s307, 2
          %s309 = smul.addr %s308, 8
          %s310 = scalar_lea.vmem %s6, %s309
        $region44: #{tpu_custom_call.1} parent=23 // pred_fallthru
          _
      $region24: #{tpu_custom_call.1} parent=5 // pred_fallthru
        _
      %p311 = scmp.le.s32.totalorder 1, %s14
      %p312 = scmp.lt.s32.totalorder %s14, 3
      %p313 = pnand %p311, %p312
      %p314 = pneg %p313
      // Predicated region
      $region45: #{tpu_custom_call.1} parent=5 // pred_check
        _
      $region46: #{tpu_custom_call.1} parent=5 // pred_check_branch
        %316 = sbr.rel (%p313) target = $region48
      $region47: #{tpu_custom_call.1} parent=5 // pred_region
        %s317 = ssub.s32 %s14, 1
        %s318 = smul.u32 2, %s23
        %p319 = scmp.lt.s32.totalorder %s318, 1
        %s320 = scalar_select %p319, %s318, 1
        %s321 = smul.addr %s320, 8
        %s322 = scalar_lea.vmem %s0, %s321
        %p323 = pneg %p52
        %p324 = pneg %p49
        %s325 = smul.u32 2, %s23
        %p326 = scmp.lt.s32.totalorder %s325, 1
        %s327 = scalar_select %p326, %s325, 1
        %s328 = smul.addr %s327, 8
        %s329 = scalar_lea.vmem %s1, %s328
        %p330 = pneg %p78
        %p331 = pneg %p75
        %p332 = scmp.lt.s32.totalorder %s24, 1
        %s333 = scalar_select %p332, %s24, 1
        %s334 = smul.addr %s333, 4
        %s335 = smul.addr %s334, 4
        %s336 = scalar_lea.vmem %s2, %s335
        %p337 = pneg %p104
        %p338 = pneg %p101
        %p339 = scmp.lt.s32.totalorder %s24, 1
        %s340 = scalar_select %p339, %s24, 1
        %s341 = smul.addr %s340, 4
        %s342 = smul.addr %s341, 4
        %s343 = scalar_lea.vmem %s3, %s342
        %p344 = pneg %p130
        %p345 = pneg %p127
        %p346 = scmp.lt.s32.totalorder %s24, 1
        %s347 = scalar_select %p346, %s24, 1
        %s348 = smul.addr %s347, 4
        %s349 = smul.addr %s348, 4
        %s350 = scalar_lea.vmem %s4, %s349
        %p351 = pneg %p156
        %p352 = pneg %p153
        %p353 = scmp.lt.s32.totalorder %s24, 1
        %s354 = scalar_select %p353, %s24, 1
        %s355 = smul.addr %s354, 16
        %s356 = smul.addr %s355, 4
        %s357 = scalar_lea.vmem %s5, %s356
        %p358 = pneg %p182
        %p359 = pneg %p179
        %p360 = scmp.lt.s32.totalorder %s24, 1
        %s361 = scalar_select %p360, %s24, 1
        %s362 = smul.addr %s361, 2
        %s363 = smul.addr %s362, 8
        %s364 = scalar_lea.vmem %s6, %s363
        %p365 = pneg %p208
        %p366 = pneg %p205
        %p367 = pneg %p234
        %p368 = pneg %p231
        %s369 = smul.u32 2, %s23
        %p370 = scmp.lt.s32.totalorder %s369, 1
        %s371 = scalar_select %p370, %s369, 1
        %s372 = smul.addr %s371, 8
        %s373 = scalar_lea.vmem %s0, %s372
        %s374 = smul.u32 2, %s23
        %s375 = smul.u32 2, %s23
        %p376 = scmp.lt.s32.totalorder %s375, 1
        %s377 = scalar_select %p376, %s375, 1
        %s378 = smul.addr %s377, 8
        %s379 = scalar_lea.vmem %s1, %s378
        %s380 = smul.u32 2, %s23
        %p381 = scmp.lt.s32.totalorder %s24, 1
        %s382 = scalar_select %p381, %s24, 1
        %s383 = smul.addr %s382, 4
        %s384 = smul.addr %s383, 4
        %s385 = scalar_lea.vmem %s2, %s384
        %p386 = scmp.lt.s32.totalorder %s24, 1
        %s387 = scalar_select %p386, %s24, 1
        %s388 = smul.addr %s387, 4
        %s389 = smul.addr %s388, 4
        %s390 = scalar_lea.vmem %s3, %s389
        %p391 = scmp.lt.s32.totalorder %s24, 1
        %s392 = scalar_select %p391, %s24, 1
        %s393 = smul.addr %s392, 4
        %s394 = smul.addr %s393, 4
        %s395 = scalar_lea.vmem %s4, %s394
        %p396 = scmp.lt.s32.totalorder %s24, 1
        %s397 = scalar_select %p396, %s24, 1
        %s398 = smul.addr %s397, 16
        %s399 = smul.addr %s398, 4
        %s400 = scalar_lea.vmem %s5, %s399
        %p401 = scmp.lt.s32.totalorder %s24, 1
        %s402 = scalar_select %p401, %s24, 1
        %s403 = smul.addr %s402, 2
        %s404 = smul.addr %s403, 8
        %s405 = scalar_lea.vmem %s6, %s404
        %s406 = smul.u32 2, %s23
        %p408 = scmp.eq.s32.totalorder %s24, 0
        // Predicated region
        $region49: #{tpu_custom_call.1} parent=47 // pred_check
          %p409 = pneg %p408
        $region50: #{tpu_custom_call.1} parent=47 // pred_check_branch
          %411 = sbr.rel (%p409) target = $region52
        $region51: #{tpu_custom_call.1} parent=47 // pred_region
          %v412 = vld [vmem:[%s379] sm:$0xff]
          %v413 = vld [vmem:[%s379 + $0x8] sm:$0xff]
          %vm414 = vcmask 261120
          %415 = vst.msk [vmem:[#allocation2] sm:$0xff] %vm414, %v412
          %416 = vst.msk [vmem:[#allocation2 + $0x8] sm:$0xff] %vm414, %v413
        $region52: #{tpu_custom_call.1} parent=47 // pred_fallthru
          _
        %v417 = vld [vmem:[#allocation2] sm:$0xff]
        %v418 = vld [vmem:[#allocation2 + $0x8] sm:$0xff]
        %v419 = vld [vmem:[%s373] sm:$0xff]
        %v420 = vld [vmem:[%s373 + $0x8] sm:$0xff]
        %v421 = vld [vmem:[%s405] sm:$0xff]
        %v422 = vld [vmem:[%s405 + $0x8] sm:$0x1]
        %vm423 = vcmask 261120
        %v424 = vsel %vm423, %v419, 0.0
        %425 = vadd.xlane.f32.xlu0 %v424
        %v426 = vpop.xlane.xlu0 %425
        %v427 = vsel %vm423, %v420, 0.0
        %428 = vadd.xlane.f32.xlu0 %v427
        %v429 = vpop.xlane.xlu0 %428
        %v430 = vrcp.pop 32.0
        %v431 = vmul.f32 %v426, %v430
        %v432 = vmul.f32 %v429, %v430
        %v433 = vsub.f32 %v419, %v431
        %v434 = vsub.f32 %v420, %v432
        %v435 = vmul.f32 %v433, %v433
        %v436 = vmul.f32 %v434, %v434
        %v437 = vsel %vm423, %v435, 0.0
        %438 = vadd.xlane.f32.xlu0 %v437
        %v439 = vpop.xlane.xlu0 %438
        %v440 = vsel %vm423, %v436, 0.0
        %441 = vadd.xlane.f32.xlu0 %v440
        %v442 = vpop.xlane.xlu0 %441
        %v443 = vmul.f32 %v439, %v430
        %v444 = vmul.f32 %v442, %v430
        %v445 = vadd.f32 %v443, 1e-05
        %v446 = vadd.f32 %v444, 1e-05
        %v447 = vrsqrt.pop %v445
        %v448 = vrsqrt.pop %v446
        %v449 = vmul.f32 %v433, %v447
        %v450 = vmul.f32 %v434, %v448
        %v451 = vlaneseq
        %v452 = vshrl.u32 %v451, 7
        %v453 = vsub.s32 0, %v452
        %v454 = vrot.slane %v421, %v453
        %v455 = vmul.f32 %v449, %v454
        %v456 = vmul.f32 %v450, %v454
        %v457 = vlaneseq
        %v458 = vshrl.u32 %v457, 7
        %v459 = vsub.s32 1, %v458
        %v460 = vrot.slane %v421, %v459
        %v461 = vadd.f32 %v455, %v460
        %v462 = vadd.f32 %v456, %v460
        %v463 = vpack.c.bf16 %v462, %v461
        %v464 = vsel %vm423, %v417, 0.0
        %465 = vadd.xlane.f32.xlu0 %v464
        %v466 = vpop.xlane.xlu0 %465
        %v467 = vsel %vm423, %v418, 0.0
        %468 = vadd.xlane.f32.xlu0 %v467
        %v469 = vpop.xlane.xlu0 %468
        %v470 = vmul.f32 %v466, %v430
        %v471 = vmul.f32 %v469, %v430
        %v472 = vsub.f32 %v417, %v470
        %v473 = vsub.f32 %v418, %v471
        %v474 = vmul.f32 %v472, %v472
        %v475 = vmul.f32 %v473, %v473
        %v476 = vsel %vm423, %v474, 0.0
        %477 = vadd.xlane.f32.xlu0 %v476
        %v478 = vpop.xlane.xlu0 %477
        %v479 = vsel %vm423, %v475, 0.0
        %480 = vadd.xlane.f32.xlu0 %v479
        %v481 = vpop.xlane.xlu0 %480
        %v482 = vmul.f32 %v478, %v430
        %v483 = vmul.f32 %v481, %v430
        %v484 = vadd.f32 %v482, 1e-05
        %v485 = vadd.f32 %v483, 1e-05
        %v486 = vrsqrt.pop %v484
        %v487 = vrsqrt.pop %v485
        %v488 = vmul.f32 %v472, %v486
        %v489 = vmul.f32 %v473, %v487
        %v490 = vlaneseq
        %v491 = vshrl.u32 %v490, 7
        %v492 = vsub.s32 2, %v491
        %v493 = vrot.slane %v421, %v492
        %v494 = vmul.f32 %v488, %v493
        %v495 = vmul.f32 %v489, %v493
        %v496 = vlaneseq
        %v497 = vshrl.u32 %v496, 7
        %v498 = vsub.s32 3, %v497
        %v499 = vrot.slane %v421, %v498
        %v500 = vadd.f32 %v494, %v499
        %v501 = vadd.f32 %v495, %v499
        %v502 = vpack.c.bf16 %v501, %v500
        %v503 = vld [vmem:[%s385] sm:$0xf]
        %v504 = vld [vmem:[%s385 + $0x4] sm:$0xf]
        %v505 = vld [vmem:[%s385 + $0x8] sm:$0xf]
        %v506 = vld [vmem:[%s385 + $0xc] sm:$0xf]
        %v511 = vunpack.c.l.b16 %v503
        %v512 = vunpack.c.l.b16 %v504
        %v513 = vunpack.c.l.b16 %v505
        %v514 = vunpack.c.l.b16 %v506
        %v515 = vpack.c.b16 %v512, %v511
        %v516 = vpack.c.b16 %v514, %v513
        %v520 = vsel %vm423, %v463, 0
        %522 = vmatprep.subr.bf16.mxu0 0
        %523 = vmatpush1.bf16.msra.mxu0 %v515
        %524 = vmatprep.subr.bf16.mxu0 0
        %525 = vmatpush1.bf16.msra.mxu0 %v516
        %526 = vmatprep.subr.bf16.mxu0 0
        %527 = vmatpush1.bf16.msra.mxu0 0
        %528 = vmatprep.subr.bf16.mxu0 0
        %529 = vmatpush1.bf16.msra.mxu0 0
        %530 = vmatprep.subr.bf16.mxu0 0
        %531 = vmatpush1.bf16.msra.mxu0 0
        %532 = vmatprep.subr.bf16.mxu0 0
        %533 = vmatpush1.bf16.msra.mxu0 0
        %534 = vmatprep.subr.bf16.mxu0 0
        %535 = vmatpush1.bf16.msra.mxu0 0
        %536 = vmatprep.subr.bf16.mxu0 0
        %537 = vmatpush1.bf16.msra.mxu0 0
        %538 = vmatprep.subr.bf16.mxu0 0
        %539 = vmatpush1.bf16.msra.mxu0 0
        %540 = vmatprep.subr.bf16.mxu0 0
        %541 = vmatpush1.bf16.msra.mxu0 0
        %542 = vmatprep.subr.bf16.mxu0 0
        %543 = vmatpush1.bf16.msra.mxu0 0
        %544 = vmatprep.subr.bf16.mxu0 0
        %545 = vmatpush1.bf16.msra.mxu0 0
        %546 = vmatprep.subr.bf16.mxu0 0
        %547 = vmatpush1.bf16.msra.mxu0 0
        %548 = vmatprep.subr.bf16.mxu0 0
        %549 = vmatpush1.bf16.msra.mxu0 0
        %550 = vmatprep.subr.bf16.mxu0 0
        %551 = vmatpush1.bf16.msra.mxu0 0
        %552 = vmatprep.subr.bf16.mxu0 0
        %553 = vmatpush1.bf16.msra.mxu0 0
        %554 = vmatprep.mubr.bf16.mxu0 0
        %555 = vmatmul.mubr.bf16.gmra.mrb[0].mxu0 %v520
        %v556 = vpop.f32.mrb[0].mxu0
        %v557 = vadd.f32 0.0, %v556
        %v558 = vpop.f32.mrb[0].mxu0
        %v559 = vpop.f32.mrb[0].mxu0
        %v560 = vadd.f32 0.0, %v559
        %v561 = vpop.f32.mrb[0].mxu0
        %562 = vdwg.mxu0
        %563 = vrot.lane.b32.xlu0 %v515, 96
        %v564 = vpop.permute.xlu0 %563
        %565 = vrot.lane.b32.xlu0 %v516, 96
        %v566 = vpop.permute.xlu0 %565
        %v570 = vsel %vm423, %v502, 0
        %572 = vmatprep.subr.bf16.mxu0 0
        %573 = vmatpush1.bf16.msra.mxu0 %v564
        %574 = vmatprep.subr.bf16.mxu0 0
        %575 = vmatpush1.bf16.msra.mxu0 %v566
        %576 = vmatprep.subr.bf16.mxu0 0
        %577 = vmatpush1.bf16.msra.mxu0 0
        %578 = vmatprep.subr.bf16.mxu0 0
        %579 = vmatpush1.bf16.msra.mxu0 0
        %580 = vmatprep.subr.bf16.mxu0 0
        %581 = vmatpush1.bf16.msra.mxu0 0
        %582 = vmatprep.subr.bf16.mxu0 0
        %583 = vmatpush1.bf16.msra.mxu0 0
        %584 = vmatprep.subr.bf16.mxu0 0
        %585 = vmatpush1.bf16.msra.mxu0 0
        %586 = vmatprep.subr.bf16.mxu0 0
        %587 = vmatpush1.bf16.msra.mxu0 0
        %588 = vmatprep.subr.bf16.mxu0 0
        %589 = vmatpush1.bf16.msra.mxu0 0
        %590 = vmatprep.subr.bf16.mxu0 0
        %591 = vmatpush1.bf16.msra.mxu0 0
        %592 = vmatprep.subr.bf16.mxu0 0
        %593 = vmatpush1.bf16.msra.mxu0 0
        %594 = vmatprep.subr.bf16.mxu0 0
        %595 = vmatpush1.bf16.msra.mxu0 0
        %596 = vmatprep.subr.bf16.mxu0 0
        %597 = vmatpush1.bf16.msra.mxu0 0
        %598 = vmatprep.subr.bf16.mxu0 0
        %599 = vmatpush1.bf16.msra.mxu0 0
        %600 = vmatprep.subr.bf16.mxu0 0
        %601 = vmatpush1.bf16.msra.mxu0 0
        %602 = vmatprep.subr.bf16.mxu0 0
        %603 = vmatpush1.bf16.msra.mxu0 0
        %604 = vmatprep.mubr.bf16.mxu0 0
        %605 = vmatmul.mubr.bf16.gmra.mrb[0].mxu0 %v570
        %v606 = vpop.f32.mrb[0].mxu0
        %v607 = vadd.f32 0.0, %v606
        %v608 = vpop.f32.mrb[0].mxu0
        %v609 = vpop.f32.mrb[0].mxu0
        %v610 = vadd.f32 0.0, %v609
        %v611 = vpop.f32.mrb[0].mxu0
        %612 = vdwg.mxu0
        %615 = vrot.lane.b32.xlu0 %v607, 124
        %v616 = vpop.permute.xlu0 %615
        %617 = vrot.lane.b32.xlu0 %v610, 124
        %v618 = vpop.permute.xlu0 %617
        %621 = vrot.lane.b32.xlu0 %v607, 120
        %v622 = vpop.permute.xlu0 %621
        %623 = vrot.lane.b32.xlu0 %v610, 120
        %v624 = vpop.permute.xlu0 %623
        %627 = vrot.lane.b32.xlu0 %v607, 116
        %v628 = vpop.permute.xlu0 %627
        %629 = vrot.lane.b32.xlu0 %v610, 116
        %v630 = vpop.permute.xlu0 %629
        %633 = vrot.lane.b32.xlu0 %v607, 112
        %v634 = vpop.permute.xlu0 %633
        %635 = vrot.lane.b32.xlu0 %v610, 112
        %v636 = vpop.permute.xlu0 %635
        %639 = vrot.lane.b32.xlu0 %v607, 108
        %v640 = vpop.permute.xlu0 %639
        %641 = vrot.lane.b32.xlu0 %v610, 108
        %v642 = vpop.permute.xlu0 %641
        %645 = vrot.lane.b32.xlu0 %v607, 104
        %v646 = vpop.permute.xlu0 %645
        %647 = vrot.lane.b32.xlu0 %v610, 104
        %v648 = vpop.permute.xlu0 %647
        %651 = vrot.lane.b32.xlu0 %v607, 100
        %v652 = vpop.permute.xlu0 %651
        %653 = vrot.lane.b32.xlu0 %v610, 100
        %v654 = vpop.permute.xlu0 %653
        %v657 = vcombine.low %v607, %v622
        %v658 = vcombine.high %v607, %v622
        %v660 = vunpack.c.l.s4 1983009808
        %v661 = vunpack.c.0.s8 %v660
        %v662 = vlaneseq
        %v663 = vshrl.u32 %v662, 7
        %v664 = vsub.s32 %v661, %v663
        %v665 = vrot.slane %v657, %v664
        %v667 = vunpack.c.l.s4 1983009808
        %v668 = vunpack.c.0.s8 %v667
        %v669 = vlaneseq
        %v670 = vshrl.u32 %v669, 7
        %v671 = vsub.s32 %v668, %v670
        %v672 = vrot.slane %v658, %v671
        %v673 = vcombine.low %v616, %v628
        %v674 = vcombine.high %v616, %v628
        %v676 = vunpack.c.l.s4 1983009808
        %v677 = vunpack.c.0.s8 %v676
        %v678 = vlaneseq
        %v679 = vshrl.u32 %v678, 7
        %v680 = vsub.s32 %v677, %v679
        %v681 = vrot.slane %v673, %v680
        %v683 = vunpack.c.l.s4 1983009808
        %v684 = vunpack.c.0.s8 %v683
        %v685 = vlaneseq
        %v686 = vshrl.u32 %v685, 7
        %v687 = vsub.s32 %v684, %v686
        %v688 = vrot.slane %v674, %v687
        %v689 = vcombine.low %v634, %v646
        %v690 = vcombine.high %v634, %v646
        %v692 = vunpack.c.l.s4 1983009808
        %v693 = vunpack.c.0.s8 %v692
        %v694 = vlaneseq
        %v695 = vshrl.u32 %v694, 7
        %v696 = vsub.s32 %v693, %v695
        %v697 = vrot.slane %v689, %v696
        %v699 = vunpack.c.l.s4 1983009808
        %v700 = vunpack.c.0.s8 %v699
        %v701 = vlaneseq
        %v702 = vshrl.u32 %v701, 7
        %v703 = vsub.s32 %v700, %v702
        %v704 = vrot.slane %v690, %v703
        %v705 = vcombine.low %v640, %v652
        %v706 = vcombine.high %v640, %v652
        %v708 = vunpack.c.l.s4 1983009808
        %v709 = vunpack.c.0.s8 %v708
        %v710 = vlaneseq
        %v711 = vshrl.u32 %v710, 7
        %v712 = vsub.s32 %v709, %v711
        %v713 = vrot.slane %v705, %v712
        %v715 = vunpack.c.l.s4 1983009808
        %v716 = vunpack.c.0.s8 %v715
        %v717 = vlaneseq
        %v718 = vshrl.u32 %v717, 7
        %v719 = vsub.s32 %v716, %v718
        %v720 = vrot.slane %v706, %v719
        %v721 = vcombine.low %v665, %v681
        %v722 = vcombine.high %v665, %v681
        %v724 = vunpack.c.l.s4 1934713408
        %v725 = vunpack.c.0.s8 %v724
        %v726 = vlaneseq
        %v727 = vshrl.u32 %v726, 7
        %v728 = vsub.s32 %v725, %v727
        %v729 = vrot.slane %v721, %v728
        %v731 = vunpack.c.l.s4 1934713408
        %v732 = vunpack.c.0.s8 %v731
        %v733 = vlaneseq
        %v734 = vshrl.u32 %v733, 7
        %v735 = vsub.s32 %v732, %v734
        %v736 = vrot.slane %v722, %v735
        %v737 = vcombine.low %v672, %v688
        %v738 = vcombine.high %v672, %v688
        %v740 = vunpack.c.l.s4 1934713408
        %v741 = vunpack.c.0.s8 %v740
        %v742 = vlaneseq
        %v743 = vshrl.u32 %v742, 7
        %v744 = vsub.s32 %v741, %v743
        %v745 = vrot.slane %v737, %v744
        %v747 = vunpack.c.l.s4 1934713408
        %v748 = vunpack.c.0.s8 %v747
        %v749 = vlaneseq
        %v750 = vshrl.u32 %v749, 7
        %v751 = vsub.s32 %v748, %v750
        %v752 = vrot.slane %v738, %v751
        %v753 = vcombine.low %v697, %v713
        %v754 = vcombine.high %v697, %v713
        %v756 = vunpack.c.l.s4 1934713408
        %v757 = vunpack.c.0.s8 %v756
        %v758 = vlaneseq
        %v759 = vshrl.u32 %v758, 7
        %v760 = vsub.s32 %v757, %v759
        %v761 = vrot.slane %v753, %v760
        %v763 = vunpack.c.l.s4 1934713408
        %v764 = vunpack.c.0.s8 %v763
        %v765 = vlaneseq
        %v766 = vshrl.u32 %v765, 7
        %v767 = vsub.s32 %v764, %v766
        %v768 = vrot.slane %v754, %v767
        %v769 = vcombine.low %v704, %v720
        %v770 = vcombine.high %v704, %v720
        %v772 = vunpack.c.l.s4 1934713408
        %v773 = vunpack.c.0.s8 %v772
        %v774 = vlaneseq
        %v775 = vshrl.u32 %v774, 7
        %v776 = vsub.s32 %v773, %v775
        %v777 = vrot.slane %v769, %v776
        %v779 = vunpack.c.l.s4 1934713408
        %v780 = vunpack.c.0.s8 %v779
        %v781 = vlaneseq
        %v782 = vshrl.u32 %v781, 7
        %v783 = vsub.s32 %v780, %v782
        %v784 = vrot.slane %v770, %v783
        %v785 = vcombine.low %v729, %v761
        %v786 = vcombine.high %v729, %v761
        %v787 = vcombine.low %v736, %v768
        %v788 = vcombine.high %v736, %v768
        %v789 = vcombine.low %v745, %v777
        %v790 = vcombine.high %v745, %v777
        %v791 = vcombine.low %v752, %v784
        %v792 = vcombine.high %v752, %v784
        %v793 = vcombine.low %v610, %v624
        %v794 = vcombine.high %v610, %v624
        %v796 = vunpack.c.l.s4 1983009808
        %v797 = vunpack.c.0.s8 %v796
        %v798 = vlaneseq
        %v799 = vshrl.u32 %v798, 7
        %v800 = vsub.s32 %v797, %v799
        %v801 = vrot.slane %v793, %v800
        %v803 = vunpack.c.l.s4 1983009808
        %v804 = vunpack.c.0.s8 %v803
        %v805 = vlaneseq
        %v806 = vshrl.u32 %v805, 7
        %v807 = vsub.s32 %v804, %v806
        %v808 = vrot.slane %v794, %v807
        %v809 = vcombine.low %v618, %v630
        %v810 = vcombine.high %v618, %v630
        %v812 = vunpack.c.l.s4 1983009808
        %v813 = vunpack.c.0.s8 %v812
        %v814 = vlaneseq
        %v815 = vshrl.u32 %v814, 7
        %v816 = vsub.s32 %v813, %v815
        %v817 = vrot.slane %v809, %v816
        %v819 = vunpack.c.l.s4 1983009808
        %v820 = vunpack.c.0.s8 %v819
        %v821 = vlaneseq
        %v822 = vshrl.u32 %v821, 7
        %v823 = vsub.s32 %v820, %v822
        %v824 = vrot.slane %v810, %v823
        %v825 = vcombine.low %v636, %v648
        %v826 = vcombine.high %v636, %v648
        %v828 = vunpack.c.l.s4 1983009808
        %v829 = vunpack.c.0.s8 %v828
        %v830 = vlaneseq
        %v831 = vshrl.u32 %v830, 7
        %v832 = vsub.s32 %v829, %v831
        %v833 = vrot.slane %v825, %v832
        %v835 = vunpack.c.l.s4 1983009808
        %v836 = vunpack.c.0.s8 %v835
        %v837 = vlaneseq
        %v838 = vshrl.u32 %v837, 7
        %v839 = vsub.s32 %v836, %v838
        %v840 = vrot.slane %v826, %v839
        %v841 = vcombine.low %v642, %v654
        %v842 = vcombine.high %v642, %v654
        %v844 = vunpack.c.l.s4 1983009808
        %v845 = vunpack.c.0.s8 %v844
        %v846 = vlaneseq
        %v847 = vshrl.u32 %v846, 7
        %v848 = vsub.s32 %v845, %v847
        %v849 = vrot.slane %v841, %v848
        %v851 = vunpack.c.l.s4 1983009808
        %v852 = vunpack.c.0.s8 %v851
        %v853 = vlaneseq
        %v854 = vshrl.u32 %v853, 7
        %v855 = vsub.s32 %v852, %v854
        %v856 = vrot.slane %v842, %v855
        %v857 = vcombine.low %v801, %v817
        %v858 = vcombine.high %v801, %v817
        %v860 = vunpack.c.l.s4 1934713408
        %v861 = vunpack.c.0.s8 %v860
        %v862 = vlaneseq
        %v863 = vshrl.u32 %v862, 7
        %v864 = vsub.s32 %v861, %v863
        %v865 = vrot.slane %v857, %v864
        %v867 = vunpack.c.l.s4 1934713408
        %v868 = vunpack.c.0.s8 %v867
        %v869 = vlaneseq
        %v870 = vshrl.u32 %v869, 7
        %v871 = vsub.s32 %v868, %v870
        %v872 = vrot.slane %v858, %v871
        %v873 = vcombine.low %v808, %v824
        %v874 = vcombine.high %v808, %v824
        %v876 = vunpack.c.l.s4 1934713408
        %v877 = vunpack.c.0.s8 %v876
        %v878 = vlaneseq
        %v879 = vshrl.u32 %v878, 7
        %v880 = vsub.s32 %v877, %v879
        %v881 = vrot.slane %v873, %v880
        %v883 = vunpack.c.l.s4 1934713408
        %v884 = vunpack.c.0.s8 %v883
        %v885 = vlaneseq
        %v886 = vshrl.u32 %v885, 7
        %v887 = vsub.s32 %v884, %v886
        %v888 = vrot.slane %v874, %v887
        %v889 = vcombine.low %v833, %v849
        %v890 = vcombine.high %v833, %v849
        %v892 = vunpack.c.l.s4 1934713408
        %v893 = vunpack.c.0.s8 %v892
        %v894 = vlaneseq
        %v895 = vshrl.u32 %v894, 7
        %v896 = vsub.s32 %v893, %v895
        %v897 = vrot.slane %v889, %v896
        %v899 = vunpack.c.l.s4 1934713408
        %v900 = vunpack.c.0.s8 %v899
        %v901 = vlaneseq
        %v902 = vshrl.u32 %v901, 7
        %v903 = vsub.s32 %v900, %v902
        %v904 = vrot.slane %v890, %v903
        %v905 = vcombine.low %v840, %v856
        %v906 = vcombine.high %v840, %v856
        %v908 = vunpack.c.l.s4 1934713408
        %v909 = vunpack.c.0.s8 %v908
        %v910 = vlaneseq
        %v911 = vshrl.u32 %v910, 7
        %v912 = vsub.s32 %v909, %v911
        %v913 = vrot.slane %v905, %v912
        %v915 = vunpack.c.l.s4 1934713408
        %v916 = vunpack.c.0.s8 %v915
        %v917 = vlaneseq
        %v918 = vshrl.u32 %v917, 7
        %v919 = vsub.s32 %v916, %v918
        %v920 = vrot.slane %v906, %v919
        %v921 = vcombine.low %v865, %v897
        %v922 = vcombine.high %v865, %v897
        %v923 = vcombine.low %v872, %v904
        %v924 = vcombine.high %v872, %v904
        %v925 = vcombine.low %v881, %v913
        %v926 = vcombine.high %v881, %v913
        %v927 = vcombine.low %v888, %v920
        %v928 = vcombine.high %v888, %v920
        %929 = vrot.lane.b32.xlu0 %v607, 96
        %v930 = vpop.permute.xlu0 %929
        %931 = vrot.lane.b32.xlu0 %v610, 96
        %v932 = vpop.permute.xlu0 %931
        %933 = vrot.lane.b32.xlu0 %v616, 96
        %v934 = vpop.permute.xlu0 %933
        %935 = vrot.lane.b32.xlu0 %v618, 96
        %v936 = vpop.permute.xlu0 %935
        %937 = vrot.lane.b32.xlu0 %v622, 96
        %v938 = vpop.permute.xlu0 %937
        %939 = vrot.lane.b32.xlu0 %v624, 96
        %v940 = vpop.permute.xlu0 %939
        %941 = vrot.lane.b32.xlu0 %v628, 96
        %v942 = vpop.permute.xlu0 %941
        %943 = vrot.lane.b32.xlu0 %v630, 96
        %v944 = vpop.permute.xlu0 %943
        %945 = vrot.lane.b32.xlu0 %v634, 96
        %v946 = vpop.permute.xlu0 %945
        %947 = vrot.lane.b32.xlu0 %v636, 96
        %v948 = vpop.permute.xlu0 %947
        %949 = vrot.lane.b32.xlu0 %v640, 96
        %v950 = vpop.permute.xlu0 %949
        %951 = vrot.lane.b32.xlu0 %v642, 96
        %v952 = vpop.permute.xlu0 %951
        %953 = vrot.lane.b32.xlu0 %v646, 96
        %v954 = vpop.permute.xlu0 %953
        %955 = vrot.lane.b32.xlu0 %v648, 96
        %v956 = vpop.permute.xlu0 %955
        %957 = vrot.lane.b32.xlu0 %v652, 96
        %v958 = vpop.permute.xlu0 %957
        %959 = vrot.lane.b32.xlu0 %v654, 96
        %v960 = vpop.permute.xlu0 %959
        %v977 = vcombine.low %v930, %v938
        %v978 = vcombine.high %v930, %v938
        %v980 = vunpack.c.l.s4 1983009808
        %v981 = vunpack.c.0.s8 %v980
        %v982 = vlaneseq
        %v983 = vshrl.u32 %v982, 7
        %v984 = vsub.s32 %v981, %v983
        %v985 = vrot.slane %v977, %v984
        %v987 = vunpack.c.l.s4 1983009808
        %v988 = vunpack.c.0.s8 %v987
        %v989 = vlaneseq
        %v990 = vshrl.u32 %v989, 7
        %v991 = vsub.s32 %v988, %v990
        %v992 = vrot.slane %v978, %v991
        %v993 = vcombine.low %v934, %v942
        %v994 = vcombine.high %v934, %v942
        %v996 = vunpack.c.l.s4 1983009808
        %v997 = vunpack.c.0.s8 %v996
        %v998 = vlaneseq
        %v999 = vshrl.u32 %v998, 7
        %v1000 = vsub.s32 %v997, %v999
        %v1001 = vrot.slane %v993, %v1000
        %v1003 = vunpack.c.l.s4 1983009808
        %v1004 = vunpack.c.0.s8 %v1003
        %v1005 = vlaneseq
        %v1006 = vshrl.u32 %v1005, 7
        %v1007 = vsub.s32 %v1004, %v1006
        %v1008 = vrot.slane %v994, %v1007
        %v1009 = vcombine.low %v946, %v954
        %v1010 = vcombine.high %v946, %v954
        %v1012 = vunpack.c.l.s4 1983009808
        %v1013 = vunpack.c.0.s8 %v1012
        %v1014 = vlaneseq
        %v1015 = vshrl.u32 %v1014, 7
        %v1016 = vsub.s32 %v1013, %v1015
        %v1017 = vrot.slane %v1009, %v1016
        %v1019 = vunpack.c.l.s4 1983009808
        %v1020 = vunpack.c.0.s8 %v1019
        %v1021 = vlaneseq
        %v1022 = vshrl.u32 %v1021, 7
        %v1023 = vsub.s32 %v1020, %v1022
        %v1024 = vrot.slane %v1010, %v1023
        %v1025 = vcombine.low %v950, %v958
        %v1026 = vcombine.high %v950, %v958
        %v1028 = vunpack.c.l.s4 1983009808
        %v1029 = vunpack.c.0.s8 %v1028
        %v1030 = vlaneseq
        %v1031 = vshrl.u32 %v1030, 7
        %v1032 = vsub.s32 %v1029, %v1031
        %v1033 = vrot.slane %v1025, %v1032
        %v1035 = vunpack.c.l.s4 1983009808
        %v1036 = vunpack.c.0.s8 %v1035
        %v1037 = vlaneseq
        %v1038 = vshrl.u32 %v1037, 7
        %v1039 = vsub.s32 %v1036, %v1038
        %v1040 = vrot.slane %v1026, %v1039
        %v1041 = vcombine.low %v985, %v1001
        %v1042 = vcombine.high %v985, %v1001
        %v1044 = vunpack.c.l.s4 1934713408
        %v1045 = vunpack.c.0.s8 %v1044
        %v1046 = vlaneseq
        %v1047 = vshrl.u32 %v1046, 7
        %v1048 = vsub.s32 %v1045, %v1047
        %v1049 = vrot.slane %v1041, %v1048
        %v1051 = vunpack.c.l.s4 1934713408
        %v1052 = vunpack.c.0.s8 %v1051
        %v1053 = vlaneseq
        %v1054 = vshrl.u32 %v1053, 7
        %v1055 = vsub.s32 %v1052, %v1054
        %v1056 = vrot.slane %v1042, %v1055
        %v1057 = vcombine.low %v992, %v1008
        %v1058 = vcombine.high %v992, %v1008
        %v1060 = vunpack.c.l.s4 1934713408
        %v1061 = vunpack.c.0.s8 %v1060
        %v1062 = vlaneseq
        %v1063 = vshrl.u32 %v1062, 7
        %v1064 = vsub.s32 %v1061, %v1063
        %v1065 = vrot.slane %v1057, %v1064
        %v1067 = vunpack.c.l.s4 1934713408
        %v1068 = vunpack.c.0.s8 %v1067
        %v1069 = vlaneseq
        %v1070 = vshrl.u32 %v1069, 7
        %v1071 = vsub.s32 %v1068, %v1070
        %v1072 = vrot.slane %v1058, %v1071
        %v1073 = vcombine.low %v1017, %v1033
        %v1074 = vcombine.high %v1017, %v1033
        %v1076 = vunpack.c.l.s4 1934713408
        %v1077 = vunpack.c.0.s8 %v1076
        %v1078 = vlaneseq
        %v1079 = vshrl.u32 %v1078, 7
        %v1080 = vsub.s32 %v1077, %v1079
        %v1081 = vrot.slane %v1073, %v1080
        %v1083 = vunpack.c.l.s4 1934713408
        %v1084 = vunpack.c.0.s8 %v1083
        %v1085 = vlaneseq
        %v1086 = vshrl.u32 %v1085, 7
        %v1087 = vsub.s32 %v1084, %v1086
        %v1088 = vrot.slane %v1074, %v1087
        %v1089 = vcombine.low %v1024, %v1040
        %v1090 = vcombine.high %v1024, %v1040
        %v1092 = vunpack.c.l.s4 1934713408
        %v1093 = vunpack.c.0.s8 %v1092
        %v1094 = vlaneseq
        %v1095 = vshrl.u32 %v1094, 7
        %v1096 = vsub.s32 %v1093, %v1095
        %v1097 = vrot.slane %v1089, %v1096
        %v1099 = vunpack.c.l.s4 1934713408
        %v1100 = vunpack.c.0.s8 %v1099
        %v1101 = vlaneseq
        %v1102 = vshrl.u32 %v1101, 7
        %v1103 = vsub.s32 %v1100, %v1102
        %v1104 = vrot.slane %v1090, %v1103
        %v1105 = vcombine.low %v1049, %v1081
        %v1106 = vcombine.high %v1049, %v1081
        %v1107 = vcombine.low %v1056, %v1088
        %v1108 = vcombine.high %v1056, %v1088
        %v1109 = vcombine.low %v1065, %v1097
        %v1110 = vcombine.high %v1065, %v1097
        %v1111 = vcombine.low %v1072, %v1104
        %v1112 = vcombine.high %v1072, %v1104
        %v1113 = vcombine.low %v932, %v940
        %v1114 = vcombine.high %v932, %v940
        %v1116 = vunpack.c.l.s4 1983009808
        %v1117 = vunpack.c.0.s8 %v1116
        %v1118 = vlaneseq
        %v1119 = vshrl.u32 %v1118, 7
        %v1120 = vsub.s32 %v1117, %v1119
        %v1121 = vrot.slane %v1113, %v1120
        %v1123 = vunpack.c.l.s4 1983009808
        %v1124 = vunpack.c.0.s8 %v1123
        %v1125 = vlaneseq
        %v1126 = vshrl.u32 %v1125, 7
        %v1127 = vsub.s32 %v1124, %v1126
        %v1128 = vrot.slane %v1114, %v1127
        %v1129 = vcombine.low %v936, %v944
        %v1130 = vcombine.high %v936, %v944
        %v1132 = vunpack.c.l.s4 1983009808
        %v1133 = vunpack.c.0.s8 %v1132
        %v1134 = vlaneseq
        %v1135 = vshrl.u32 %v1134, 7
        %v1136 = vsub.s32 %v1133, %v1135
        %v1137 = vrot.slane %v1129, %v1136
        %v1139 = vunpack.c.l.s4 1983009808
        %v1140 = vunpack.c.0.s8 %v1139
        %v1141 = vlaneseq
        %v1142 = vshrl.u32 %v1141, 7
        %v1143 = vsub.s32 %v1140, %v1142
        %v1144 = vrot.slane %v1130, %v1143
        %v1145 = vcombine.low %v948, %v956
        %v1146 = vcombine.high %v948, %v956
        %v1148 = vunpack.c.l.s4 1983009808
        %v1149 = vunpack.c.0.s8 %v1148
        %v1150 = vlaneseq
        %v1151 = vshrl.u32 %v1150, 7
        %v1152 = vsub.s32 %v1149, %v1151
        %v1153 = vrot.slane %v1145, %v1152
        %v1155 = vunpack.c.l.s4 1983009808
        %v1156 = vunpack.c.0.s8 %v1155
        %v1157 = vlaneseq
        %v1158 = vshrl.u32 %v1157, 7
        %v1159 = vsub.s32 %v1156, %v1158
        %v1160 = vrot.slane %v1146, %v1159
        %v1161 = vcombine.low %v952, %v960
        %v1162 = vcombine.high %v952, %v960
        %v1164 = vunpack.c.l.s4 1983009808
        %v1165 = vunpack.c.0.s8 %v1164
        %v1166 = vlaneseq
        %v1167 = vshrl.u32 %v1166, 7
        %v1168 = vsub.s32 %v1165, %v1167
        %v1169 = vrot.slane %v1161, %v1168
        %v1171 = vunpack.c.l.s4 1983009808
        %v1172 = vunpack.c.0.s8 %v1171
        %v1173 = vlaneseq
        %v1174 = vshrl.u32 %v1173, 7
        %v1175 = vsub.s32 %v1172, %v1174
        %v1176 = vrot.slane %v1162, %v1175
        %v1177 = vcombine.low %v1121, %v1137
        %v1178 = vcombine.high %v1121, %v1137
        %v1180 = vunpack.c.l.s4 1934713408
        %v1181 = vunpack.c.0.s8 %v1180
        %v1182 = vlaneseq
        %v1183 = vshrl.u32 %v1182, 7
        %v1184 = vsub.s32 %v1181, %v1183
        %v1185 = vrot.slane %v1177, %v1184
        %v1187 = vunpack.c.l.s4 1934713408
        %v1188 = vunpack.c.0.s8 %v1187
        %v1189 = vlaneseq
        %v1190 = vshrl.u32 %v1189, 7
        %v1191 = vsub.s32 %v1188, %v1190
        %v1192 = vrot.slane %v1178, %v1191
        %v1193 = vcombine.low %v1128, %v1144
        %v1194 = vcombine.high %v1128, %v1144
        %v1196 = vunpack.c.l.s4 1934713408
        %v1197 = vunpack.c.0.s8 %v1196
        %v1198 = vlaneseq
        %v1199 = vshrl.u32 %v1198, 7
        %v1200 = vsub.s32 %v1197, %v1199
        %v1201 = vrot.slane %v1193, %v1200
        %v1203 = vunpack.c.l.s4 1934713408
        %v1204 = vunpack.c.0.s8 %v1203
        %v1205 = vlaneseq
        %v1206 = vshrl.u32 %v1205, 7
        %v1207 = vsub.s32 %v1204, %v1206
        %v1208 = vrot.slane %v1194, %v1207
        %v1209 = vcombine.low %v1153, %v1169
        %v1210 = vcombine.high %v1153, %v1169
        %v1212 = vunpack.c.l.s4 1934713408
        %v1213 = vunpack.c.0.s8 %v1212
        %v1214 = vlaneseq
        %v1215 = vshrl.u32 %v1214, 7
        %v1216 = vsub.s32 %v1213, %v1215
        %v1217 = vrot.slane %v1209, %v1216
        %v1219 = vunpack.c.l.s4 1934713408
        %v1220 = vunpack.c.0.s8 %v1219
        %v1221 = vlaneseq
        %v1222 = vshrl.u32 %v1221, 7
        %v1223 = vsub.s32 %v1220, %v1222
        %v1224 = vrot.slane %v1210, %v1223
        %v1225 = vcombine.low %v1160, %v1176
        %v1226 = vcombine.high %v1160, %v1176
        %v1228 = vunpack.c.l.s4 1934713408
        %v1229 = vunpack.c.0.s8 %v1228
        %v1230 = vlaneseq
        %v1231 = vshrl.u32 %v1230, 7
        %v1232 = vsub.s32 %v1229, %v1231
        %v1233 = vrot.slane %v1225, %v1232
        %v1235 = vunpack.c.l.s4 1934713408
        %v1236 = vunpack.c.0.s8 %v1235
        %v1237 = vlaneseq
        %v1238 = vshrl.u32 %v1237, 7
        %v1239 = vsub.s32 %v1236, %v1238
        %v1240 = vrot.slane %v1226, %v1239
        %v1241 = vcombine.low %v1185, %v1217
        %v1242 = vcombine.high %v1185, %v1217
        %v1243 = vcombine.low %v1192, %v1224
        %v1244 = vcombine.high %v1192, %v1224
        %v1245 = vcombine.low %v1201, %v1233
        %v1246 = vcombine.high %v1201, %v1233
        %v1247 = vcombine.low %v1208, %v1240
        %v1248 = vcombine.high %v1208, %v1240
        %v1251 = vcombine.high %v557, %v557
        %v1253 = vunpack.c.l.s4 1966171168
        %v1254 = vunpack.c.0.s8 %v1253
        %v1255 = vlaneseq
        %v1256 = vshrl.u32 %v1255, 7
        %v1257 = vsub.s32 %v1254, %v1256
        %v1258 = vrot.slane %v557, %v1257
        %v1260 = vunpack.c.l.s4 1966171168
        %v1261 = vunpack.c.0.s8 %v1260
        %v1262 = vlaneseq
        %v1263 = vshrl.u32 %v1262, 7
        %v1264 = vsub.s32 %v1261, %v1263
        %v1265 = vrot.slane %v1251, %v1264
        %v1266 = vcombine.high %v1258, %v1258
        %v1267 = vcombine.high %v1265, %v1265
        %v1269 = vunpack.c.l.s4 1966171168
        %v1270 = vunpack.c.0.s8 %v1269
        %v1271 = vlaneseq
        %v1272 = vshrl.u32 %v1271, 7
        %v1273 = vsub.s32 %v1270, %v1272
        %v1274 = vrot.slane %v1258, %v1273
        %v1276 = vunpack.c.l.s4 1966171168
        %v1277 = vunpack.c.0.s8 %v1276
        %v1278 = vlaneseq
        %v1279 = vshrl.u32 %v1278, 7
        %v1280 = vsub.s32 %v1277, %v1279
        %v1281 = vrot.slane %v1265, %v1280
        %v1283 = vunpack.c.l.s4 1966171168
        %v1284 = vunpack.c.0.s8 %v1283
        %v1285 = vlaneseq
        %v1286 = vshrl.u32 %v1285, 7
        %v1287 = vsub.s32 %v1284, %v1286
        %v1288 = vrot.slane %v1266, %v1287
        %v1290 = vunpack.c.l.s4 1966171168
        %v1291 = vunpack.c.0.s8 %v1290
        %v1292 = vlaneseq
        %v1293 = vshrl.u32 %v1292, 7
        %v1294 = vsub.s32 %v1291, %v1293
        %v1295 = vrot.slane %v1267, %v1294
        %v1296 = vcombine.high %v1274, %v1274
        %v1297 = vcombine.high %v1281, %v1281
        %v1298 = vcombine.high %v1288, %v1288
        %v1299 = vcombine.high %v1295, %v1295
        %v1300 = vcombine.high %v560, %v560
        %v1302 = vunpack.c.l.s4 1966171168
        %v1303 = vunpack.c.0.s8 %v1302
        %v1304 = vlaneseq
        %v1305 = vshrl.u32 %v1304, 7
        %v1306 = vsub.s32 %v1303, %v1305
        %v1307 = vrot.slane %v560, %v1306
        %v1309 = vunpack.c.l.s4 1966171168
        %v1310 = vunpack.c.0.s8 %v1309
        %v1311 = vlaneseq
        %v1312 = vshrl.u32 %v1311, 7
        %v1313 = vsub.s32 %v1310, %v1312
        %v1314 = vrot.slane %v1300, %v1313
        %v1315 = vcombine.high %v1307, %v1307
        %v1316 = vcombine.high %v1314, %v1314
        %v1318 = vunpack.c.l.s4 1966171168
        %v1319 = vunpack.c.0.s8 %v1318
        %v1320 = vlaneseq
        %v1321 = vshrl.u32 %v1320, 7
        %v1322 = vsub.s32 %v1319, %v1321
        %v1323 = vrot.slane %v1307, %v1322
        %v1325 = vunpack.c.l.s4 1966171168
        %v1326 = vunpack.c.0.s8 %v1325
        %v1327 = vlaneseq
        %v1328 = vshrl.u32 %v1327, 7
        %v1329 = vsub.s32 %v1326, %v1328
        %v1330 = vrot.slane %v1314, %v1329
        %v1332 = vunpack.c.l.s4 1966171168
        %v1333 = vunpack.c.0.s8 %v1332
        %v1334 = vlaneseq
        %v1335 = vshrl.u32 %v1334, 7
        %v1336 = vsub.s32 %v1333, %v1335
        %v1337 = vrot.slane %v1315, %v1336
        %v1339 = vunpack.c.l.s4 1966171168
        %v1340 = vunpack.c.0.s8 %v1339
        %v1341 = vlaneseq
        %v1342 = vshrl.u32 %v1341, 7
        %v1343 = vsub.s32 %v1340, %v1342
        %v1344 = vrot.slane %v1316, %v1343
        %v1345 = vcombine.high %v1323, %v1323
        %v1346 = vcombine.high %v1330, %v1330
        %v1347 = vcombine.high %v1337, %v1337
        %v1348 = vcombine.high %v1344, %v1344
        %v1349 = vlaneseq
        %v1350 = vshrl.u32 %v1349, 7
        %v1351 = vsub.s32 0, %v1350
        %v1352 = vrot.slane %v1274, %v1351
        %v1353 = vlaneseq
        %v1354 = vshrl.u32 %v1353, 7
        %v1355 = vsub.s32 0, %v1354
        %v1356 = vrot.slane %v1288, %v1355
        %v1357 = vlaneseq
        %v1358 = vshrl.u32 %v1357, 7
        %v1359 = vsub.s32 0, %v1358
        %v1360 = vrot.slane %v1296, %v1359
        %v1361 = vlaneseq
        %v1362 = vshrl.u32 %v1361, 7
        %v1363 = vsub.s32 0, %v1362
        %v1364 = vrot.slane %v1298, %v1363
        %v1365 = vlaneseq
        %v1366 = vshrl.u32 %v1365, 7
        %v1367 = vsub.s32 0, %v1366
        %v1368 = vrot.slane %v1281, %v1367
        %v1369 = vlaneseq
        %v1370 = vshrl.u32 %v1369, 7
        %v1371 = vsub.s32 0, %v1370
        %v1372 = vrot.slane %v1295, %v1371
        %v1373 = vlaneseq
        %v1374 = vshrl.u32 %v1373, 7
        %v1375 = vsub.s32 0, %v1374
        %v1376 = vrot.slane %v1297, %v1375
        %v1377 = vlaneseq
        %v1378 = vshrl.u32 %v1377, 7
        %v1379 = vsub.s32 0, %v1378
        %v1380 = vrot.slane %v1299, %v1379
        %v1381 = vlaneseq
        %v1382 = vshrl.u32 %v1381, 7
        %v1383 = vsub.s32 0, %v1382
        %v1384 = vrot.slane %v1323, %v1383
        %v1385 = vlaneseq
        %v1386 = vshrl.u32 %v1385, 7
        %v1387 = vsub.s32 0, %v1386
        %v1388 = vrot.slane %v1337, %v1387
        %v1389 = vlaneseq
        %v1390 = vshrl.u32 %v1389, 7
        %v1391 = vsub.s32 0, %v1390
        %v1392 = vrot.slane %v1345, %v1391
        %v1393 = vlaneseq
        %v1394 = vshrl.u32 %v1393, 7
        %v1395 = vsub.s32 0, %v1394
        %v1396 = vrot.slane %v1347, %v1395
        %v1397 = vlaneseq
        %v1398 = vshrl.u32 %v1397, 7
        %v1399 = vsub.s32 0, %v1398
        %v1400 = vrot.slane %v1330, %v1399
        %v1401 = vlaneseq
        %v1402 = vshrl.u32 %v1401, 7
        %v1403 = vsub.s32 0, %v1402
        %v1404 = vrot.slane %v1344, %v1403
        %v1405 = vlaneseq
        %v1406 = vshrl.u32 %v1405, 7
        %v1407 = vsub.s32 0, %v1406
        %v1408 = vrot.slane %v1346, %v1407
        %v1409 = vlaneseq
        %v1410 = vshrl.u32 %v1409, 7
        %v1411 = vsub.s32 0, %v1410
        %v1412 = vrot.slane %v1348, %v1411
        %v1429 = vmul.f32 %v1352, %v785
        %v1430 = vmul.f32 %v1356, %v786
        %v1431 = vmul.f32 %v1360, %v787
        %v1432 = vmul.f32 %v1364, %v788
        %v1433 = vmul.f32 %v1368, %v789
        %v1434 = vmul.f32 %v1372, %v790
        %v1435 = vmul.f32 %v1376, %v791
        %v1436 = vmul.f32 %v1380, %v792
        %v1437 = vmul.f32 %v1384, %v921
        %v1438 = vmul.f32 %v1388, %v922
        %v1439 = vmul.f32 %v1392, %v923
        %v1440 = vmul.f32 %v1396, %v924
        %v1441 = vmul.f32 %v1400, %v925
        %v1442 = vmul.f32 %v1404, %v926
        %v1443 = vmul.f32 %v1408, %v927
        %v1444 = vmul.f32 %v1412, %v928
        %vm1445 = vcmask 31744
        %v1446 = vsel %vm1445, %v1429, 0.0
        %1447 = vadd.xlane.f32.xlu0 %v1446
        %v1448 = vpop.xlane.xlu0 %1447
        %v1449 = vsel %vm1445, %v1430, 0.0
        %1450 = vadd.xlane.f32.xlu0 %v1449
        %v1451 = vpop.xlane.xlu0 %1450
        %v1452 = vsel %vm1445, %v1431, 0.0
        %1453 = vadd.xlane.f32.xlu0 %v1452
        %v1454 = vpop.xlane.xlu0 %1453
        %v1455 = vsel %vm1445, %v1432, 0.0
        %1456 = vadd.xlane.f32.xlu0 %v1455
        %v1457 = vpop.xlane.xlu0 %1456
        %v1458 = vsel %vm1445, %v1433, 0.0
        %1459 = vadd.xlane.f32.xlu0 %v1458
        %v1460 = vpop.xlane.xlu0 %1459
        %v1461 = vsel %vm1445, %v1434, 0.0
        %1462 = vadd.xlane.f32.xlu0 %v1461
        %v1463 = vpop.xlane.xlu0 %1462
        %v1464 = vsel %vm1445, %v1435, 0.0
        %1465 = vadd.xlane.f32.xlu0 %v1464
        %v1466 = vpop.xlane.xlu0 %1465
        %v1467 = vsel %vm1445, %v1436, 0.0
        %1468 = vadd.xlane.f32.xlu0 %v1467
        %v1469 = vpop.xlane.xlu0 %1468
        %v1470 = vsel %vm1445, %v1437, 0.0
        %1471 = vadd.xlane.f32.xlu0 %v1470
        %v1472 = vpop.xlane.xlu0 %1471
        %v1473 = vsel %vm1445, %v1438, 0.0
        %1474 = vadd.xlane.f32.xlu0 %v1473
        %v1475 = vpop.xlane.xlu0 %1474
        %v1476 = vsel %vm1445, %v1439, 0.0
        %1477 = vadd.xlane.f32.xlu0 %v1476
        %v1478 = vpop.xlane.xlu0 %1477
        %v1479 = vsel %vm1445, %v1440, 0.0
        %1480 = vadd.xlane.f32.xlu0 %v1479
        %v1481 = vpop.xlane.xlu0 %1480
        %v1482 = vsel %vm1445, %v1441, 0.0
        %1483 = vadd.xlane.f32.xlu0 %v1482
        %v1484 = vpop.xlane.xlu0 %1483
        %v1485 = vsel %vm1445, %v1442, 0.0
        %1486 = vadd.xlane.f32.xlu0 %v1485
        %v1487 = vpop.xlane.xlu0 %1486
        %v1488 = vsel %vm1445, %v1443, 0.0
        %1489 = vadd.xlane.f32.xlu0 %v1488
        %v1490 = vpop.xlane.xlu0 %1489
        %v1491 = vsel %vm1445, %v1444, 0.0
        %1492 = vadd.xlane.f32.xlu0 %v1491
        %v1493 = vpop.xlane.xlu0 %1492
        %v1510 = vlaneseq
        %v1511 = vand.u32 %v1510, 127
        %v1512 = vlaneseq
        %v1513 = vshrl.u32 %v1512, 7
        %v1514 = vsub.s32 %v1511, %v1513
        %v1515 = vrot.slane %v1448, %v1514
        %v1516 = vlaneseq
        %v1517 = vshrl.u32 %v1516, 7
        %v1518 = vsub.s32 %v1511, %v1517
        %v1519 = vrot.slane %v1451, %v1518
        %v1520 = vlaneseq
        %v1521 = vshrl.u32 %v1520, 7
        %v1522 = vsub.s32 %v1511, %v1521
        %v1523 = vrot.slane %v1454, %v1522
        %v1524 = vlaneseq
        %v1525 = vshrl.u32 %v1524, 7
        %v1526 = vsub.s32 %v1511, %v1525
        %v1527 = vrot.slane %v1457, %v1526
        %v1528 = vlaneseq
        %v1529 = vshrl.u32 %v1528, 7
        %v1530 = vsub.s32 %v1511, %v1529
        %v1531 = vrot.slane %v1460, %v1530
        %v1532 = vlaneseq
        %v1533 = vshrl.u32 %v1532, 7
        %v1534 = vsub.s32 %v1511, %v1533
        %v1535 = vrot.slane %v1463, %v1534
        %v1536 = vlaneseq
        %v1537 = vshrl.u32 %v1536, 7
        %v1538 = vsub.s32 %v1511, %v1537
        %v1539 = vrot.slane %v1466, %v1538
        %v1540 = vlaneseq
        %v1541 = vshrl.u32 %v1540, 7
        %v1542 = vsub.s32 %v1511, %v1541
        %v1543 = vrot.slane %v1469, %v1542
        %v1544 = vlaneseq
        %v1545 = vshrl.u32 %v1544, 7
        %v1546 = vsub.s32 %v1511, %v1545
        %v1547 = vrot.slane %v1472, %v1546
        %v1548 = vlaneseq
        %v1549 = vshrl.u32 %v1548, 7
        %v1550 = vsub.s32 %v1511, %v1549
        %v1551 = vrot.slane %v1475, %v1550
        %v1552 = vlaneseq
        %v1553 = vshrl.u32 %v1552, 7
        %v1554 = vsub.s32 %v1511, %v1553
        %v1555 = vrot.slane %v1478, %v1554
        %v1556 = vlaneseq
        %v1557 = vshrl.u32 %v1556, 7
        %v1558 = vsub.s32 %v1511, %v1557
        %v1559 = vrot.slane %v1481, %v1558
        %v1560 = vlaneseq
        %v1561 = vshrl.u32 %v1560, 7
        %v1562 = vsub.s32 %v1511, %v1561
        %v1563 = vrot.slane %v1484, %v1562
        %v1564 = vlaneseq
        %v1565 = vshrl.u32 %v1564, 7
        %v1566 = vsub.s32 %v1511, %v1565
        %v1567 = vrot.slane %v1487, %v1566
        %v1568 = vlaneseq
        %v1569 = vshrl.u32 %v1568, 7
        %v1570 = vsub.s32 %v1511, %v1569
        %v1571 = vrot.slane %v1490, %v1570
        %v1572 = vlaneseq
        %v1573 = vshrl.u32 %v1572, 7
        %v1574 = vsub.s32 %v1511, %v1573
        %v1575 = vrot.slane %v1493, %v1574
        %vm1576 = vcmask 1041409
        %v1577 = vsel %vm1576, %v1519, %v1515
        %vm1578 = vcmask 1042434
        %v1579 = vsel %vm1578, %v1523, %v1577
        %vm1580 = vcmask 1043459
        %v1581 = vsel %vm1580, %v1527, %v1579
        %vm1582 = vcmask 1044484
        %v1583 = vsel %vm1582, %v1531, %v1581
        %vm1584 = vcmask 1045509
        %v1585 = vsel %vm1584, %v1535, %v1583
        %vm1586 = vcmask 1046534
        %v1587 = vsel %vm1586, %v1539, %v1585
        %vm1588 = vcmask 1047559
        %v1589 = vsel %vm1588, %v1543, %v1587
        %v1590 = vsel %vm1576, %v1551, %v1547
        %v1591 = vsel %vm1578, %v1555, %v1590
        %v1592 = vsel %vm1580, %v1559, %v1591
        %v1593 = vsel %vm1582, %v1563, %v1592
        %v1594 = vsel %vm1584, %v1567, %v1593
        %v1595 = vsel %vm1586, %v1571, %v1594
        %v1596 = vsel %vm1588, %v1575, %v1595
        %vm1599 = vcmask 64512
        %v1600 = vsel %vm1599, %v1589, -inf
        %1601 = vmax.xlane.f32.xlu0 %v1600
        %v1602 = vpop.xlane.xlu0 %1601
        %v1603 = vsel %vm1599, %v1596, -inf
        %1604 = vmax.xlane.f32.xlu0 %v1603
        %v1605 = vpop.xlane.xlu0 %1604
        %v1608 = vlaneseq
        %v1609 = vshrl.u32 %v1608, 7
        %v1610 = vsub.s32 0, %v1609
        %v1611 = vrot.slane %v1602, %v1610
        %v1612 = vlaneseq
        %v1613 = vshrl.u32 %v1612, 7
        %v1614 = vsub.s32 1, %v1613
        %v1615 = vrot.slane %v1602, %v1614
        %v1616 = vlaneseq
        %v1617 = vshrl.u32 %v1616, 7
        %v1618 = vsub.s32 2, %v1617
        %v1619 = vrot.slane %v1602, %v1618
        %v1620 = vlaneseq
        %v1621 = vshrl.u32 %v1620, 7
        %v1622 = vsub.s32 3, %v1621
        %v1623 = vrot.slane %v1602, %v1622
        %v1624 = vlaneseq
        %v1625 = vshrl.u32 %v1624, 7
        %v1626 = vsub.s32 4, %v1625
        %v1627 = vrot.slane %v1602, %v1626
        %v1628 = vlaneseq
        %v1629 = vshrl.u32 %v1628, 7
        %v1630 = vsub.s32 5, %v1629
        %v1631 = vrot.slane %v1602, %v1630
        %v1632 = vlaneseq
        %v1633 = vshrl.u32 %v1632, 7
        %v1634 = vsub.s32 6, %v1633
        %v1635 = vrot.slane %v1602, %v1634
        %v1636 = vlaneseq
        %v1637 = vshrl.u32 %v1636, 7
        %v1638 = vsub.s32 7, %v1637
        %v1639 = vrot.slane %v1602, %v1638
        %v1640 = vlaneseq
        %v1641 = vshrl.u32 %v1640, 7
        %v1642 = vsub.s32 0, %v1641
        %v1643 = vrot.slane %v1605, %v1642
        %v1644 = vlaneseq
        %v1645 = vshrl.u32 %v1644, 7
        %v1646 = vsub.s32 1, %v1645
        %v1647 = vrot.slane %v1605, %v1646
        %v1648 = vlaneseq
        %v1649 = vshrl.u32 %v1648, 7
        %v1650 = vsub.s32 2, %v1649
        %v1651 = vrot.slane %v1605, %v1650
        %v1652 = vlaneseq
        %v1653 = vshrl.u32 %v1652, 7
        %v1654 = vsub.s32 3, %v1653
        %v1655 = vrot.slane %v1605, %v1654
        %v1656 = vlaneseq
        %v1657 = vshrl.u32 %v1656, 7
        %v1658 = vsub.s32 4, %v1657
        %v1659 = vrot.slane %v1605, %v1658
        %v1660 = vlaneseq
        %v1661 = vshrl.u32 %v1660, 7
        %v1662 = vsub.s32 5, %v1661
        %v1663 = vrot.slane %v1605, %v1662
        %v1664 = vlaneseq
        %v1665 = vshrl.u32 %v1664, 7
        %v1666 = vsub.s32 6, %v1665
        %v1667 = vrot.slane %v1605, %v1666
        %v1668 = vlaneseq
        %v1669 = vshrl.u32 %v1668, 7
        %v1670 = vsub.s32 7, %v1669
        %v1671 = vrot.slane %v1605, %v1670
        %v1688 = vsub.f32 %v1448, %v1611
        %v1689 = vsub.f32 %v1451, %v1615
        %v1690 = vsub.f32 %v1454, %v1619
        %v1691 = vsub.f32 %v1457, %v1623
        %v1692 = vsub.f32 %v1460, %v1627
        %v1693 = vsub.f32 %v1463, %v1631
        %v1694 = vsub.f32 %v1466, %v1635
        %v1695 = vsub.f32 %v1469, %v1639
        %v1696 = vsub.f32 %v1472, %v1643
        %v1697 = vsub.f32 %v1475, %v1647
        %v1698 = vsub.f32 %v1478, %v1651
        %v1699 = vsub.f32 %v1481, %v1655
        %v1700 = vsub.f32 %v1484, %v1659
        %v1701 = vsub.f32 %v1487, %v1663
        %v1702 = vsub.f32 %v1490, %v1667
        %v1703 = vsub.f32 %v1493, %v1671
        %v1704 = vmul.f32 %v1688, 1.442695
        %v1705 = vpow.pop %v1704
        %v1706 = vmul.f32 %v1689, 1.442695
        %v1707 = vpow.pop %v1706
        %v1708 = vmul.f32 %v1690, 1.442695
        %v1709 = vpow.pop %v1708
        %v1710 = vmul.f32 %v1691, 1.442695
        %v1711 = vpow.pop %v1710
        %v1712 = vmul.f32 %v1692, 1.442695
        %v1713 = vpow.pop %v1712
        %v1714 = vmul.f32 %v1693, 1.442695
        %v1715 = vpow.pop %v1714
        %v1716 = vmul.f32 %v1694, 1.442695
        %v1717 = vpow.pop %v1716
        %v1718 = vmul.f32 %v1695, 1.442695
        %v1719 = vpow.pop %v1718
        %v1720 = vmul.f32 %v1696, 1.442695
        %v1721 = vpow.pop %v1720
        %v1722 = vmul.f32 %v1697, 1.442695
        %v1723 = vpow.pop %v1722
        %v1724 = vmul.f32 %v1698, 1.442695
        %v1725 = vpow.pop %v1724
        %v1726 = vmul.f32 %v1699, 1.442695
        %v1727 = vpow.pop %v1726
        %v1728 = vmul.f32 %v1700, 1.442695
        %v1729 = vpow.pop %v1728
        %v1730 = vmul.f32 %v1701, 1.442695
        %v1731 = vpow.pop %v1730
        %v1732 = vmul.f32 %v1702, 1.442695
        %v1733 = vpow.pop %v1732
        %v1734 = vmul.f32 %v1703, 1.442695
        %v1735 = vpow.pop %v1734
        %1752 = vset.pattern.permute.xlu0 0
        %1753 = vperm.xlu0 %1752, %v1705
        %v1754 = vpop.permute.xlu0 %1753
        %1755 = vset.pattern.permute.xlu0 0
        %1756 = vperm.xlu0 %1755, %v1707
        %v1757 = vpop.permute.xlu0 %1756
        %1758 = vset.pattern.permute.xlu0 0
        %1759 = vperm.xlu0 %1758, %v1709
        %v1760 = vpop.permute.xlu0 %1759
        %1761 = vset.pattern.permute.xlu0 0
        %1762 = vperm.xlu0 %1761, %v1711
        %v1763 = vpop.permute.xlu0 %1762
        %1764 = vset.pattern.permute.xlu0 0
        %1765 = vperm.xlu0 %1764, %v1713
        %v1766 = vpop.permute.xlu0 %1765
        %1767 = vset.pattern.permute.xlu0 0
        %1768 = vperm.xlu0 %1767, %v1715
        %v1769 = vpop.permute.xlu0 %1768
        %1770 = vset.pattern.permute.xlu0 0
        %1771 = vperm.xlu0 %1770, %v1717
        %v1772 = vpop.permute.xlu0 %1771
        %1773 = vset.pattern.permute.xlu0 0
        %1774 = vperm.xlu0 %1773, %v1719
        %v1775 = vpop.permute.xlu0 %1774
        %1776 = vset.pattern.permute.xlu0 0
        %1777 = vperm.xlu0 %1776, %v1721
        %v1778 = vpop.permute.xlu0 %1777
        %1779 = vset.pattern.permute.xlu0 0
        %1780 = vperm.xlu0 %1779, %v1723
        %v1781 = vpop.permute.xlu0 %1780
        %1782 = vset.pattern.permute.xlu0 0
        %1783 = vperm.xlu0 %1782, %v1725
        %v1784 = vpop.permute.xlu0 %1783
        %1785 = vset.pattern.permute.xlu0 0
        %1786 = vperm.xlu0 %1785, %v1727
        %v1787 = vpop.permute.xlu0 %1786
        %1788 = vset.pattern.permute.xlu0 0
        %1789 = vperm.xlu0 %1788, %v1729
        %v1790 = vpop.permute.xlu0 %1789
        %1791 = vset.pattern.permute.xlu0 0
        %1792 = vperm.xlu0 %1791, %v1731
        %v1793 = vpop.permute.xlu0 %1792
        %1794 = vset.pattern.permute.xlu0 0
        %1795 = vperm.xlu0 %1794, %v1733
        %v1796 = vpop.permute.xlu0 %1795
        %1797 = vset.pattern.permute.xlu0 0
        %1798 = vperm.xlu0 %1797, %v1735
        %v1799 = vpop.permute.xlu0 %1798
        %v1800 = vlaneseq
        %v1801 = vshrl.u32 %v1800, 7
        %v1802 = vsub.s32 %v1511, %v1801
        %v1803 = vrot.slane %v1754, %v1802
        %v1804 = vlaneseq
        %v1805 = vshrl.u32 %v1804, 7
        %v1806 = vsub.s32 %v1511, %v1805
        %v1807 = vrot.slane %v1757, %v1806
        %v1808 = vlaneseq
        %v1809 = vshrl.u32 %v1808, 7
        %v1810 = vsub.s32 %v1511, %v1809
        %v1811 = vrot.slane %v1760, %v1810
        %v1812 = vlaneseq
        %v1813 = vshrl.u32 %v1812, 7
        %v1814 = vsub.s32 %v1511, %v1813
        %v1815 = vrot.slane %v1763, %v1814
        %v1816 = vlaneseq
        %v1817 = vshrl.u32 %v1816, 7
        %v1818 = vsub.s32 %v1511, %v1817
        %v1819 = vrot.slane %v1766, %v1818
        %v1820 = vlaneseq
        %v1821 = vshrl.u32 %v1820, 7
        %v1822 = vsub.s32 %v1511, %v1821
        %v1823 = vrot.slane %v1769, %v1822
        %v1824 = vlaneseq
        %v1825 = vshrl.u32 %v1824, 7
        %v1826 = vsub.s32 %v1511, %v1825
        %v1827 = vrot.slane %v1772, %v1826
        %v1828 = vlaneseq
        %v1829 = vshrl.u32 %v1828, 7
        %v1830 = vsub.s32 %v1511, %v1829
        %v1831 = vrot.slane %v1775, %v1830
        %v1832 = vlaneseq
        %v1833 = vshrl.u32 %v1832, 7
        %v1834 = vsub.s32 %v1511, %v1833
        %v1835 = vrot.slane %v1778, %v1834
        %v1836 = vlaneseq
        %v1837 = vshrl.u32 %v1836, 7
        %v1838 = vsub.s32 %v1511, %v1837
        %v1839 = vrot.slane %v1781, %v1838
        %v1840 = vlaneseq
        %v1841 = vshrl.u32 %v1840, 7
        %v1842 = vsub.s32 %v1511, %v1841
        %v1843 = vrot.slane %v1784, %v1842
        %v1844 = vlaneseq
        %v1845 = vshrl.u32 %v1844, 7
        %v1846 = vsub.s32 %v1511, %v1845
        %v1847 = vrot.slane %v1787, %v1846
        %v1848 = vlaneseq
        %v1849 = vshrl.u32 %v1848, 7
        %v1850 = vsub.s32 %v1511, %v1849
        %v1851 = vrot.slane %v1790, %v1850
        %v1852 = vlaneseq
        %v1853 = vshrl.u32 %v1852, 7
        %v1854 = vsub.s32 %v1511, %v1853
        %v1855 = vrot.slane %v1793, %v1854
        %v1856 = vlaneseq
        %v1857 = vshrl.u32 %v1856, 7
        %v1858 = vsub.s32 %v1511, %v1857
        %v1859 = vrot.slane %v1796, %v1858
        %v1860 = vlaneseq
        %v1861 = vshrl.u32 %v1860, 7
        %v1862 = vsub.s32 %v1511, %v1861
        %v1863 = vrot.slane %v1799, %v1862
        %v1864 = vsel %vm1576, %v1807, %v1803
        %v1865 = vsel %vm1578, %v1811, %v1864
        %v1866 = vsel %vm1580, %v1815, %v1865
        %v1867 = vsel %vm1582, %v1819, %v1866
        %v1868 = vsel %vm1584, %v1823, %v1867
        %v1869 = vsel %vm1586, %v1827, %v1868
        %v1870 = vsel %vm1588, %v1831, %v1869
        %v1871 = vsel %vm1576, %v1839, %v1835
        %v1872 = vsel %vm1578, %v1843, %v1871
        %v1873 = vsel %vm1580, %v1847, %v1872
        %v1874 = vsel %vm1582, %v1851, %v1873
        %v1875 = vsel %vm1584, %v1855, %v1874
        %v1876 = vsel %vm1586, %v1859, %v1875
        %v1877 = vsel %vm1588, %v1863, %v1876
        %v1880 = vsel %vm1599, %v1870, 0.0
        %1881 = vadd.xlane.f32.xlu0 %v1880
        %v1882 = vpop.xlane.xlu0 %1881
        %v1883 = vsel %vm1599, %v1877, 0.0
        %1884 = vadd.xlane.f32.xlu0 %v1883
        %v1885 = vpop.xlane.xlu0 %1884
        %v1888 = vlaneseq
        %v1889 = vshrl.u32 %v1888, 7
        %v1890 = vsub.s32 0, %v1889
        %v1891 = vrot.slane %v1882, %v1890
        %v1892 = vlaneseq
        %v1893 = vshrl.u32 %v1892, 7
        %v1894 = vsub.s32 1, %v1893
        %v1895 = vrot.slane %v1882, %v1894
        %v1896 = vlaneseq
        %v1897 = vshrl.u32 %v1896, 7
        %v1898 = vsub.s32 2, %v1897
        %v1899 = vrot.slane %v1882, %v1898
        %v1900 = vlaneseq
        %v1901 = vshrl.u32 %v1900, 7
        %v1902 = vsub.s32 3, %v1901
        %v1903 = vrot.slane %v1882, %v1902
        %v1904 = vlaneseq
        %v1905 = vshrl.u32 %v1904, 7
        %v1906 = vsub.s32 4, %v1905
        %v1907 = vrot.slane %v1882, %v1906
        %v1908 = vlaneseq
        %v1909 = vshrl.u32 %v1908, 7
        %v1910 = vsub.s32 5, %v1909
        %v1911 = vrot.slane %v1882, %v1910
        %v1912 = vlaneseq
        %v1913 = vshrl.u32 %v1912, 7
        %v1914 = vsub.s32 6, %v1913
        %v1915 = vrot.slane %v1882, %v1914
        %v1916 = vlaneseq
        %v1917 = vshrl.u32 %v1916, 7
        %v1918 = vsub.s32 7, %v1917
        %v1919 = vrot.slane %v1882, %v1918
        %v1920 = vlaneseq
        %v1921 = vshrl.u32 %v1920, 7
        %v1922 = vsub.s32 0, %v1921
        %v1923 = vrot.slane %v1885, %v1922
        %v1924 = vlaneseq
        %v1925 = vshrl.u32 %v1924, 7
        %v1926 = vsub.s32 1, %v1925
        %v1927 = vrot.slane %v1885, %v1926
        %v1928 = vlaneseq
        %v1929 = vshrl.u32 %v1928, 7
        %v1930 = vsub.s32 2, %v1929
        %v1931 = vrot.slane %v1885, %v1930
        %v1932 = vlaneseq
        %v1933 = vshrl.u32 %v1932, 7
        %v1934 = vsub.s32 3, %v1933
        %v1935 = vrot.slane %v1885, %v1934
        %v1936 = vlaneseq
        %v1937 = vshrl.u32 %v1936, 7
        %v1938 = vsub.s32 4, %v1937
        %v1939 = vrot.slane %v1885, %v1938
        %v1940 = vlaneseq
        %v1941 = vshrl.u32 %v1940, 7
        %v1942 = vsub.s32 5, %v1941
        %v1943 = vrot.slane %v1885, %v1942
        %v1944 = vlaneseq
        %v1945 = vshrl.u32 %v1944, 7
        %v1946 = vsub.s32 6, %v1945
        %v1947 = vrot.slane %v1885, %v1946
        %v1948 = vlaneseq
        %v1949 = vshrl.u32 %v1948, 7
        %v1950 = vsub.s32 7, %v1949
        %v1951 = vrot.slane %v1885, %v1950
        %v1968 = vrcp.pop %v1891
        %v1969 = vmul.f32 %v1705, %v1968
        %v1970 = vrcp.pop %v1895
        %v1971 = vmul.f32 %v1707, %v1970
        %v1972 = vrcp.pop %v1899
        %v1973 = vmul.f32 %v1709, %v1972
        %v1974 = vrcp.pop %v1903
        %v1975 = vmul.f32 %v1711, %v1974
        %v1976 = vrcp.pop %v1907
        %v1977 = vmul.f32 %v1713, %v1976
        %v1978 = vrcp.pop %v1911
        %v1979 = vmul.f32 %v1715, %v1978
        %v1980 = vrcp.pop %v1915
        %v1981 = vmul.f32 %v1717, %v1980
        %v1982 = vrcp.pop %v1919
        %v1983 = vmul.f32 %v1719, %v1982
        %v1984 = vrcp.pop %v1923
        %v1985 = vmul.f32 %v1721, %v1984
        %v1986 = vrcp.pop %v1927
        %v1987 = vmul.f32 %v1723, %v1986
        %v1988 = vrcp.pop %v1931
        %v1989 = vmul.f32 %v1725, %v1988
        %v1990 = vrcp.pop %v1935
        %v1991 = vmul.f32 %v1727, %v1990
        %v1992 = vrcp.pop %v1939
        %v1993 = vmul.f32 %v1729, %v1992
        %v1994 = vrcp.pop %v1943
        %v1995 = vmul.f32 %v1731, %v1994
        %v1996 = vrcp.pop %v1947
        %v1997 = vmul.f32 %v1733, %v1996
        %v1998 = vrcp.pop %v1951
        %v1999 = vmul.f32 %v1735, %v1998
        %2001 = vset.pattern.permute.xlu0 0
        %2002 = vperm.xlu0 %2001, %v1969
        %v2003 = vpop.permute.xlu0 %2002
        %2006 = vset.pattern.permute.xlu0 0
        %2007 = vperm.xlu0 %2006, %v1971
        %v2008 = vpop.permute.xlu0 %2007
        %2011 = vset.pattern.permute.xlu0 0
        %2012 = vperm.xlu0 %2011, %v1973
        %v2013 = vpop.permute.xlu0 %2012
        %2016 = vset.pattern.permute.xlu0 0
        %2017 = vperm.xlu0 %2016, %v1975
        %v2018 = vpop.permute.xlu0 %2017
        %2021 = vset.pattern.permute.xlu0 0
        %2022 = vperm.xlu0 %2021, %v1977
        %v2023 = vpop.permute.xlu0 %2022
        %2026 = vset.pattern.permute.xlu0 0
        %2027 = vperm.xlu0 %2026, %v1979
        %v2028 = vpop.permute.xlu0 %2027
        %2031 = vset.pattern.permute.xlu0 0
        %2032 = vperm.xlu0 %2031, %v1981
        %v2033 = vpop.permute.xlu0 %2032
        %2036 = vset.pattern.permute.xlu0 0
        %2037 = vperm.xlu0 %2036, %v1983
        %v2038 = vpop.permute.xlu0 %2037
        %2041 = vset.pattern.permute.xlu0 0
        %2042 = vperm.xlu0 %2041, %v1985
        %v2043 = vpop.permute.xlu0 %2042
        %2046 = vset.pattern.permute.xlu0 0
        %2047 = vperm.xlu0 %2046, %v1987
        %v2048 = vpop.permute.xlu0 %2047
        %2051 = vset.pattern.permute.xlu0 0
        %2052 = vperm.xlu0 %2051, %v1989
        %v2053 = vpop.permute.xlu0 %2052
        %2056 = vset.pattern.permute.xlu0 0
        %2057 = vperm.xlu0 %2056, %v1991
        %v2058 = vpop.permute.xlu0 %2057
        %2061 = vset.pattern.permute.xlu0 0
        %2062 = vperm.xlu0 %2061, %v1993
        %v2063 = vpop.permute.xlu0 %2062
        %2066 = vset.pattern.permute.xlu0 0
        %2067 = vperm.xlu0 %2066, %v1995
        %v2068 = vpop.permute.xlu0 %2067
        %2071 = vset.pattern.permute.xlu0 0
        %2072 = vperm.xlu0 %2071, %v1997
        %v2073 = vpop.permute.xlu0 %2072
        %2076 = vset.pattern.permute.xlu0 0
        %2077 = vperm.xlu0 %2076, %v1999
        %v2078 = vpop.permute.xlu0 %2077
        %v2080 = vmul.f32 %v2003, %v1105
        %v2081 = vmul.f32 %v2008, %v1106
        %v2082 = vmul.f32 %v2013, %v1107
        %v2083 = vmul.f32 %v2018, %v1108
        %v2084 = vmul.f32 %v2023, %v1109
        %v2085 = vmul.f32 %v2028, %v1110
        %v2086 = vmul.f32 %v2033, %v1111
        %v2087 = vmul.f32 %v2038, %v1112
        %v2088 = vmul.f32 %v2043, %v1241
        %v2089 = vmul.f32 %v2048, %v1242
        %v2090 = vmul.f32 %v2053, %v1243
        %v2091 = vmul.f32 %v2058, %v1244
        %v2092 = vmul.f32 %v2063, %v1245
        %v2093 = vmul.f32 %v2068, %v1246
        %v2094 = vmul.f32 %v2073, %v1247
        %v2095 = vmul.f32 %v2078, %v1248
        %v2096 = vsel %vm1445, %v2080, 0.0
        %v2097 = vrot.slane %v2096, 4
        %v2098 = vadd.f32 %v2096, %v2097
        %v2099 = vrot.slane %v2098, 2
        %v2100 = vadd.f32 %v2098, %v2099
        %v2101 = vrot.slane %v2100, 1
        %v2102 = vadd.f32 %v2100, %v2101
        %v2103 = vsel %vm1445, %v2081, 0.0
        %v2104 = vrot.slane %v2103, 4
        %v2105 = vadd.f32 %v2103, %v2104
        %v2106 = vrot.slane %v2105, 2
        %v2107 = vadd.f32 %v2105, %v2106
        %v2108 = vrot.slane %v2107, 1
        %v2109 = vadd.f32 %v2107, %v2108
        %v2110 = vsel %vm1445, %v2082, 0.0
        %v2111 = vrot.slane %v2110, 4
        %v2112 = vadd.f32 %v2110, %v2111
        %v2113 = vrot.slane %v2112, 2
        %v2114 = vadd.f32 %v2112, %v2113
        %v2115 = vrot.slane %v2114, 1
        %v2116 = vadd.f32 %v2114, %v2115
        %v2117 = vsel %vm1445, %v2083, 0.0
        %v2118 = vrot.slane %v2117, 4
        %v2119 = vadd.f32 %v2117, %v2118
        %v2120 = vrot.slane %v2119, 2
        %v2121 = vadd.f32 %v2119, %v2120
        %v2122 = vrot.slane %v2121, 1
        %v2123 = vadd.f32 %v2121, %v2122
        %v2124 = vsel %vm1445, %v2084, 0.0
        %v2125 = vrot.slane %v2124, 4
        %v2126 = vadd.f32 %v2124, %v2125
        %v2127 = vrot.slane %v2126, 2
        %v2128 = vadd.f32 %v2126, %v2127
        %v2129 = vrot.slane %v2128, 1
        %v2130 = vadd.f32 %v2128, %v2129
        %v2131 = vsel %vm1445, %v2085, 0.0
        %v2132 = vrot.slane %v2131, 4
        %v2133 = vadd.f32 %v2131, %v2132
        %v2134 = vrot.slane %v2133, 2
        %v2135 = vadd.f32 %v2133, %v2134
        %v2136 = vrot.slane %v2135, 1
        %v2137 = vadd.f32 %v2135, %v2136
        %v2138 = vsel %vm1445, %v2086, 0.0
        %v2139 = vrot.slane %v2138, 4
        %v2140 = vadd.f32 %v2138, %v2139
        %v2141 = vrot.slane %v2140, 2
        %v2142 = vadd.f32 %v2140, %v2141
        %v2143 = vrot.slane %v2142, 1
        %v2144 = vadd.f32 %v2142, %v2143
        %v2145 = vsel %vm1445, %v2087, 0.0
        %v2146 = vrot.slane %v2145, 4
        %v2147 = vadd.f32 %v2145, %v2146
        %v2148 = vrot.slane %v2147, 2
        %v2149 = vadd.f32 %v2147, %v2148
        %v2150 = vrot.slane %v2149, 1
        %v2151 = vadd.f32 %v2149, %v2150
        %v2152 = vsel %vm1445, %v2088, 0.0
        %v2153 = vrot.slane %v2152, 4
        %v2154 = vadd.f32 %v2152, %v2153
        %v2155 = vrot.slane %v2154, 2
        %v2156 = vadd.f32 %v2154, %v2155
        %v2157 = vrot.slane %v2156, 1
        %v2158 = vadd.f32 %v2156, %v2157
        %v2159 = vsel %vm1445, %v2089, 0.0
        %v2160 = vrot.slane %v2159, 4
        %v2161 = vadd.f32 %v2159, %v2160
        %v2162 = vrot.slane %v2161, 2
        %v2163 = vadd.f32 %v2161, %v2162
        %v2164 = vrot.slane %v2163, 1
        %v2165 = vadd.f32 %v2163, %v2164
        %v2166 = vsel %vm1445, %v2090, 0.0
        %v2167 = vrot.slane %v2166, 4
        %v2168 = vadd.f32 %v2166, %v2167
        %v2169 = vrot.slane %v2168, 2
        %v2170 = vadd.f32 %v2168, %v2169
        %v2171 = vrot.slane %v2170, 1
        %v2172 = vadd.f32 %v2170, %v2171
        %v2173 = vsel %vm1445, %v2091, 0.0
        %v2174 = vrot.slane %v2173, 4
        %v2175 = vadd.f32 %v2173, %v2174
        %v2176 = vrot.slane %v2175, 2
        %v2177 = vadd.f32 %v2175, %v2176
        %v2178 = vrot.slane %v2177, 1
        %v2179 = vadd.f32 %v2177, %v2178
        %v2180 = vsel %vm1445, %v2092, 0.0
        %v2181 = vrot.slane %v2180, 4
        %v2182 = vadd.f32 %v2180, %v2181
        %v2183 = vrot.slane %v2182, 2
        %v2184 = vadd.f32 %v2182, %v2183
        %v2185 = vrot.slane %v2184, 1
        %v2186 = vadd.f32 %v2184, %v2185
        %v2187 = vsel %vm1445, %v2093, 0.0
        %v2188 = vrot.slane %v2187, 4
        %v2189 = vadd.f32 %v2187, %v2188
        %v2190 = vrot.slane %v2189, 2
        %v2191 = vadd.f32 %v2189, %v2190
        %v2192 = vrot.slane %v2191, 1
        %v2193 = vadd.f32 %v2191, %v2192
        %v2194 = vsel %vm1445, %v2094, 0.0
        %v2195 = vrot.slane %v2194, 4
        %v2196 = vadd.f32 %v2194, %v2195
        %v2197 = vrot.slane %v2196, 2
        %v2198 = vadd.f32 %v2196, %v2197
        %v2199 = vrot.slane %v2198, 1
        %v2200 = vadd.f32 %v2198, %v2199
        %v2201 = vsel %vm1445, %v2095, 0.0
        %v2202 = vrot.slane %v2201, 4
        %v2203 = vadd.f32 %v2201, %v2202
        %v2204 = vrot.slane %v2203, 2
        %v2205 = vadd.f32 %v2203, %v2204
        %v2206 = vrot.slane %v2205, 1
        %v2207 = vadd.f32 %v2205, %v2206
        %2224 = vrot.lane.b32.xlu0 %v785, 4
        %v2225 = vpop.permute.xlu0 %2224
        %2226 = vrot.lane.b32.xlu0 %v786, 4
        %v2227 = vpop.permute.xlu0 %2226
        %2228 = vrot.lane.b32.xlu0 %v787, 4
        %v2229 = vpop.permute.xlu0 %2228
        %2230 = vrot.lane.b32.xlu0 %v788, 4
        %v2231 = vpop.permute.xlu0 %2230
        %2232 = vrot.lane.b32.xlu0 %v789, 4
        %v2233 = vpop.permute.xlu0 %2232
        %2234 = vrot.lane.b32.xlu0 %v790, 4
        %v2235 = vpop.permute.xlu0 %2234
        %2236 = vrot.lane.b32.xlu0 %v791, 4
        %v2237 = vpop.permute.xlu0 %2236
        %2238 = vrot.lane.b32.xlu0 %v792, 4
        %v2239 = vpop.permute.xlu0 %2238
        %2240 = vrot.lane.b32.xlu0 %v921, 4
        %v2241 = vpop.permute.xlu0 %2240
        %2242 = vrot.lane.b32.xlu0 %v922, 4
        %v2243 = vpop.permute.xlu0 %2242
        %2244 = vrot.lane.b32.xlu0 %v923, 4
        %v2245 = vpop.permute.xlu0 %2244
        %2246 = vrot.lane.b32.xlu0 %v924, 4
        %v2247 = vpop.permute.xlu0 %2246
        %2248 = vrot.lane.b32.xlu0 %v925, 4
        %v2249 = vpop.permute.xlu0 %2248
        %2250 = vrot.lane.b32.xlu0 %v926, 4
        %v2251 = vpop.permute.xlu0 %2250
        %2252 = vrot.lane.b32.xlu0 %v927, 4
        %v2253 = vpop.permute.xlu0 %2252
        %2254 = vrot.lane.b32.xlu0 %v928, 4
        %v2255 = vpop.permute.xlu0 %2254
        %v2272 = vmul.f32 %v1352, %v2225
        %v2273 = vmul.f32 %v1356, %v2227
        %v2274 = vmul.f32 %v1360, %v2229
        %v2275 = vmul.f32 %v1364, %v2231
        %v2276 = vmul.f32 %v1368, %v2233
        %v2277 = vmul.f32 %v1372, %v2235
        %v2278 = vmul.f32 %v1376, %v2237
        %v2279 = vmul.f32 %v1380, %v2239
        %v2280 = vmul.f32 %v1384, %v2241
        %v2281 = vmul.f32 %v1388, %v2243
        %v2282 = vmul.f32 %v1392, %v2245
        %v2283 = vmul.f32 %v1396, %v2247
        %v2284 = vmul.f32 %v1400, %v2249
        %v2285 = vmul.f32 %v1404, %v2251
        %v2286 = vmul.f32 %v1408, %v2253
        %v2287 = vmul.f32 %v1412, %v2255
        %2304 = vrot.lane.b32.xlu0 %v2272, 124
        %v2305 = vpop.permute.xlu0 %2304
        %2306 = vrot.lane.b32.xlu0 %v2273, 124
        %v2307 = vpop.permute.xlu0 %2306
        %2308 = vrot.lane.b32.xlu0 %v2274, 124
        %v2309 = vpop.permute.xlu0 %2308
        %2310 = vrot.lane.b32.xlu0 %v2275, 124
        %v2311 = vpop.permute.xlu0 %2310
        %2312 = vrot.lane.b32.xlu0 %v2276, 124
        %v2313 = vpop.permute.xlu0 %2312
        %2314 = vrot.lane.b32.xlu0 %v2277, 124
        %v2315 = vpop.permute.xlu0 %2314
        %2316 = vrot.lane.b32.xlu0 %v2278, 124
        %v2317 = vpop.permute.xlu0 %2316
        %2318 = vrot.lane.b32.xlu0 %v2279, 124
        %v2319 = vpop.permute.xlu0 %2318
        %2320 = vrot.lane.b32.xlu0 %v2280, 124
        %v2321 = vpop.permute.xlu0 %2320
        %2322 = vrot.lane.b32.xlu0 %v2281, 124
        %v2323 = vpop.permute.xlu0 %2322
        %2324 = vrot.lane.b32.xlu0 %v2282, 124
        %v2325 = vpop.permute.xlu0 %2324
        %2326 = vrot.lane.b32.xlu0 %v2283, 124
        %v2327 = vpop.permute.xlu0 %2326
        %2328 = vrot.lane.b32.xlu0 %v2284, 124
        %v2329 = vpop.permute.xlu0 %2328
        %2330 = vrot.lane.b32.xlu0 %v2285, 124
        %v2331 = vpop.permute.xlu0 %2330
        %2332 = vrot.lane.b32.xlu0 %v2286, 124
        %v2333 = vpop.permute.xlu0 %2332
        %2334 = vrot.lane.b32.xlu0 %v2287, 124
        %v2335 = vpop.permute.xlu0 %2334
        %v2352 = vsel %vm1445, %v2305, 0.0
        %2353 = vadd.xlane.f32.xlu0 %v2352
        %v2354 = vpop.xlane.xlu0 %2353
        %v2355 = vsel %vm1445, %v2307, 0.0
        %2356 = vadd.xlane.f32.xlu0 %v2355
        %v2357 = vpop.xlane.xlu0 %2356
        %v2358 = vsel %vm1445, %v2309, 0.0
        %2359 = vadd.xlane.f32.xlu0 %v2358
        %v2360 = vpop.xlane.xlu0 %2359
        %v2361 = vsel %vm1445, %v2311, 0.0
        %2362 = vadd.xlane.f32.xlu0 %v2361
        %v2363 = vpop.xlane.xlu0 %2362
        %v2364 = vsel %vm1445, %v2313, 0.0
        %2365 = vadd.xlane.f32.xlu0 %v2364
        %v2366 = vpop.xlane.xlu0 %2365
        %v2367 = vsel %vm1445, %v2315, 0.0
        %2368 = vadd.xlane.f32.xlu0 %v2367
        %v2369 = vpop.xlane.xlu0 %2368
        %v2370 = vsel %vm1445, %v2317, 0.0
        %2371 = vadd.xlane.f32.xlu0 %v2370
        %v2372 = vpop.xlane.xlu0 %2371
        %v2373 = vsel %vm1445, %v2319, 0.0
        %2374 = vadd.xlane.f32.xlu0 %v2373
        %v2375 = vpop.xlane.xlu0 %2374
        %v2376 = vsel %vm1445, %v2321, 0.0
        %2377 = vadd.xlane.f32.xlu0 %v2376
        %v2378 = vpop.xlane.xlu0 %2377
        %v2379 = vsel %vm1445, %v2323, 0.0
        %2380 = vadd.xlane.f32.xlu0 %v2379
        %v2381 = vpop.xlane.xlu0 %2380
        %v2382 = vsel %vm1445, %v2325, 0.0
        %2383 = vadd.xlane.f32.xlu0 %v2382
        %v2384 = vpop.xlane.xlu0 %2383
        %v2385 = vsel %vm1445, %v2327, 0.0
        %2386 = vadd.xlane.f32.xlu0 %v2385
        %v2387 = vpop.xlane.xlu0 %2386
        %v2388 = vsel %vm1445, %v2329, 0.0
        %2389 = vadd.xlane.f32.xlu0 %v2388
        %v2390 = vpop.xlane.xlu0 %2389
        %v2391 = vsel %vm1445, %v2331, 0.0
        %2392 = vadd.xlane.f32.xlu0 %v2391
        %v2393 = vpop.xlane.xlu0 %2392
        %v2394 = vsel %vm1445, %v2333, 0.0
        %2395 = vadd.xlane.f32.xlu0 %v2394
        %v2396 = vpop.xlane.xlu0 %2395
        %v2397 = vsel %vm1445, %v2335, 0.0
        %2398 = vadd.xlane.f32.xlu0 %v2397
        %v2399 = vpop.xlane.xlu0 %2398
        %v2416 = vlaneseq
        %v2417 = vshrl.u32 %v2416, 7
        %v2418 = vsub.s32 %v1511, %v2417
        %v2419 = vrot.slane %v2354, %v2418
        %v2420 = vlaneseq
        %v2421 = vshrl.u32 %v2420, 7
        %v2422 = vsub.s32 %v1511, %v2421
        %v2423 = vrot.slane %v2357, %v2422
        %v2424 = vlaneseq
        %v2425 = vshrl.u32 %v2424, 7
        %v2426 = vsub.s32 %v1511, %v2425
        %v2427 = vrot.slane %v2360, %v2426
        %v2428 = vlaneseq
        %v2429 = vshrl.u32 %v2428, 7
        %v2430 = vsub.s32 %v1511, %v2429
        %v2431 = vrot.slane %v2363, %v2430
        %v2432 = vlaneseq
        %v2433 = vshrl.u32 %v2432, 7
        %v2434 = vsub.s32 %v1511, %v2433
        %v2435 = vrot.slane %v2366, %v2434
        %v2436 = vlaneseq
        %v2437 = vshrl.u32 %v2436, 7
        %v2438 = vsub.s32 %v1511, %v2437
        %v2439 = vrot.slane %v2369, %v2438
        %v2440 = vlaneseq
        %v2441 = vshrl.u32 %v2440, 7
        %v2442 = vsub.s32 %v1511, %v2441
        %v2443 = vrot.slane %v2372, %v2442
        %v2444 = vlaneseq
        %v2445 = vshrl.u32 %v2444, 7
        %v2446 = vsub.s32 %v1511, %v2445
        %v2447 = vrot.slane %v2375, %v2446
        %v2448 = vlaneseq
        %v2449 = vshrl.u32 %v2448, 7
        %v2450 = vsub.s32 %v1511, %v2449
        %v2451 = vrot.slane %v2378, %v2450
        %v2452 = vlaneseq
        %v2453 = vshrl.u32 %v2452, 7
        %v2454 = vsub.s32 %v1511, %v2453
        %v2455 = vrot.slane %v2381, %v2454
        %v2456 = vlaneseq
        %v2457 = vshrl.u32 %v2456, 7
        %v2458 = vsub.s32 %v1511, %v2457
        %v2459 = vrot.slane %v2384, %v2458
        %v2460 = vlaneseq
        %v2461 = vshrl.u32 %v2460, 7
        %v2462 = vsub.s32 %v1511, %v2461
        %v2463 = vrot.slane %v2387, %v2462
        %v2464 = vlaneseq
        %v2465 = vshrl.u32 %v2464, 7
        %v2466 = vsub.s32 %v1511, %v2465
        %v2467 = vrot.slane %v2390, %v2466
        %v2468 = vlaneseq
        %v2469 = vshrl.u32 %v2468, 7
        %v2470 = vsub.s32 %v1511, %v2469
        %v2471 = vrot.slane %v2393, %v2470
        %v2472 = vlaneseq
        %v2473 = vshrl.u32 %v2472, 7
        %v2474 = vsub.s32 %v1511, %v2473
        %v2475 = vrot.slane %v2396, %v2474
        %v2476 = vlaneseq
        %v2477 = vshrl.u32 %v2476, 7
        %v2478 = vsub.s32 %v1511, %v2477
        %v2479 = vrot.slane %v2399, %v2478
        %v2480 = vsel %vm1576, %v2423, %v2419
        %v2481 = vsel %vm1578, %v2427, %v2480
        %v2482 = vsel %vm1580, %v2431, %v2481
        %v2483 = vsel %vm1582, %v2435, %v2482
        %v2484 = vsel %vm1584, %v2439, %v2483
        %v2485 = vsel %vm1586, %v2443, %v2484
        %v2486 = vsel %vm1588, %v2447, %v2485
        %v2487 = vsel %vm1576, %v2455, %v2451
        %v2488 = vsel %vm1578, %v2459, %v2487
        %v2489 = vsel %vm1580, %v2463, %v2488
        %v2490 = vsel %vm1582, %v2467, %v2489
        %v2491 = vsel %vm1584, %v2471, %v2490
        %v2492 = vsel %vm1586, %v2475, %v2491
        %v2493 = vsel %vm1588, %v2479, %v2492
        %v2496 = vsel %vm1599, %v2486, -inf
        %2497 = vmax.xlane.f32.xlu0 %v2496
        %v2498 = vpop.xlane.xlu0 %2497
        %v2499 = vsel %vm1599, %v2493, -inf
        %2500 = vmax.xlane.f32.xlu0 %v2499
        %v2501 = vpop.xlane.xlu0 %2500
        %v2504 = vlaneseq
        %v2505 = vshrl.u32 %v2504, 7
        %v2506 = vsub.s32 0, %v2505
        %v2507 = vrot.slane %v2498, %v2506
        %v2508 = vlaneseq
        %v2509 = vshrl.u32 %v2508, 7
        %v2510 = vsub.s32 1, %v2509
        %v2511 = vrot.slane %v2498, %v2510
        %v2512 = vlaneseq
        %v2513 = vshrl.u32 %v2512, 7
        %v2514 = vsub.s32 2, %v2513
        %v2515 = vrot.slane %v2498, %v2514
        %v2516 = vlaneseq
        %v2517 = vshrl.u32 %v2516, 7
        %v2518 = vsub.s32 3, %v2517
        %v2519 = vrot.slane %v2498, %v2518
        %v2520 = vlaneseq
        %v2521 = vshrl.u32 %v2520, 7
        %v2522 = vsub.s32 4, %v2521
        %v2523 = vrot.slane %v2498, %v2522
        %v2524 = vlaneseq
        %v2525 = vshrl.u32 %v2524, 7
        %v2526 = vsub.s32 5, %v2525
        %v2527 = vrot.slane %v2498, %v2526
        %v2528 = vlaneseq
        %v2529 = vshrl.u32 %v2528, 7
        %v2530 = vsub.s32 6, %v2529
        %v2531 = vrot.slane %v2498, %v2530
        %v2532 = vlaneseq
        %v2533 = vshrl.u32 %v2532, 7
        %v2534 = vsub.s32 7, %v2533
        %v2535 = vrot.slane %v2498, %v2534
        %v2536 = vlaneseq
        %v2537 = vshrl.u32 %v2536, 7
        %v2538 = vsub.s32 0, %v2537
        %v2539 = vrot.slane %v2501, %v2538
        %v2540 = vlaneseq
        %v2541 = vshrl.u32 %v2540, 7
        %v2542 = vsub.s32 1, %v2541
        %v2543 = vrot.slane %v2501, %v2542
        %v2544 = vlaneseq
        %v2545 = vshrl.u32 %v2544, 7
        %v2546 = vsub.s32 2, %v2545
        %v2547 = vrot.slane %v2501, %v2546
        %v2548 = vlaneseq
        %v2549 = vshrl.u32 %v2548, 7
        %v2550 = vsub.s32 3, %v2549
        %v2551 = vrot.slane %v2501, %v2550
        %v2552 = vlaneseq
        %v2553 = vshrl.u32 %v2552, 7
        %v2554 = vsub.s32 4, %v2553
        %v2555 = vrot.slane %v2501, %v2554
        %v2556 = vlaneseq
        %v2557 = vshrl.u32 %v2556, 7
        %v2558 = vsub.s32 5, %v2557
        %v2559 = vrot.slane %v2501, %v2558
        %v2560 = vlaneseq
        %v2561 = vshrl.u32 %v2560, 7
        %v2562 = vsub.s32 6, %v2561
        %v2563 = vrot.slane %v2501, %v2562
        %v2564 = vlaneseq
        %v2565 = vshrl.u32 %v2564, 7
        %v2566 = vsub.s32 7, %v2565
        %v2567 = vrot.slane %v2501, %v2566
        %v2584 = vsub.f32 %v2354, %v2507
        %v2585 = vsub.f32 %v2357, %v2511
        %v2586 = vsub.f32 %v2360, %v2515
        %v2587 = vsub.f32 %v2363, %v2519
        %v2588 = vsub.f32 %v2366, %v2523
        %v2589 = vsub.f32 %v2369, %v2527
        %v2590 = vsub.f32 %v2372, %v2531
        %v2591 = vsub.f32 %v2375, %v2535
        %v2592 = vsub.f32 %v2378, %v2539
        %v2593 = vsub.f32 %v2381, %v2543
        %v2594 = vsub.f32 %v2384, %v2547
        %v2595 = vsub.f32 %v2387, %v2551
        %v2596 = vsub.f32 %v2390, %v2555
        %v2597 = vsub.f32 %v2393, %v2559
        %v2598 = vsub.f32 %v2396, %v2563
        %v2599 = vsub.f32 %v2399, %v2567
        %v2600 = vmul.f32 %v2584, 1.442695
        %v2601 = vpow.pop %v2600
        %v2602 = vmul.f32 %v2585, 1.442695
        %v2603 = vpow.pop %v2602
        %v2604 = vmul.f32 %v2586, 1.442695
        %v2605 = vpow.pop %v2604
        %v2606 = vmul.f32 %v2587, 1.442695
        %v2607 = vpow.pop %v2606
        %v2608 = vmul.f32 %v2588, 1.442695
        %v2609 = vpow.pop %v2608
        %v2610 = vmul.f32 %v2589, 1.442695
        %v2611 = vpow.pop %v2610
        %v2612 = vmul.f32 %v2590, 1.442695
        %v2613 = vpow.pop %v2612
        %v2614 = vmul.f32 %v2591, 1.442695
        %v2615 = vpow.pop %v2614
        %v2616 = vmul.f32 %v2592, 1.442695
        %v2617 = vpow.pop %v2616
        %v2618 = vmul.f32 %v2593, 1.442695
        %v2619 = vpow.pop %v2618
        %v2620 = vmul.f32 %v2594, 1.442695
        %v2621 = vpow.pop %v2620
        %v2622 = vmul.f32 %v2595, 1.442695
        %v2623 = vpow.pop %v2622
        %v2624 = vmul.f32 %v2596, 1.442695
        %v2625 = vpow.pop %v2624
        %v2626 = vmul.f32 %v2597, 1.442695
        %v2627 = vpow.pop %v2626
        %v2628 = vmul.f32 %v2598, 1.442695
        %v2629 = vpow.pop %v2628
        %v2630 = vmul.f32 %v2599, 1.442695
        %v2631 = vpow.pop %v2630
        %2648 = vset.pattern.permute.xlu0 0
        %2649 = vperm.xlu0 %2648, %v2601
        %v2650 = vpop.permute.xlu0 %2649
        %2651 = vset.pattern.permute.xlu0 0
        %2652 = vperm.xlu0 %2651, %v2603
        %v2653 = vpop.permute.xlu0 %2652
        %2654 = vset.pattern.permute.xlu0 0
        %2655 = vperm.xlu0 %2654, %v2605
        %v2656 = vpop.permute.xlu0 %2655
        %2657 = vset.pattern.permute.xlu0 0
        %2658 = vperm.xlu0 %2657, %v2607
        %v2659 = vpop.permute.xlu0 %2658
        %2660 = vset.pattern.permute.xlu0 0
        %2661 = vperm.xlu0 %2660, %v2609
        %v2662 = vpop.permute.xlu0 %2661
        %2663 = vset.pattern.permute.xlu0 0
        %2664 = vperm.xlu0 %2663, %v2611
        %v2665 = vpop.permute.xlu0 %2664
        %2666 = vset.pattern.permute.xlu0 0
        %2667 = vperm.xlu0 %2666, %v2613
        %v2668 = vpop.permute.xlu0 %2667
        %2669 = vset.pattern.permute.xlu0 0
        %2670 = vperm.xlu0 %2669, %v2615
        %v2671 = vpop.permute.xlu0 %2670
        %2672 = vset.pattern.permute.xlu0 0
        %2673 = vperm.xlu0 %2672, %v2617
        %v2674 = vpop.permute.xlu0 %2673
        %2675 = vset.pattern.permute.xlu0 0
        %2676 = vperm.xlu0 %2675, %v2619
        %v2677 = vpop.permute.xlu0 %2676
        %2678 = vset.pattern.permute.xlu0 0
        %2679 = vperm.xlu0 %2678, %v2621
        %v2680 = vpop.permute.xlu0 %2679
        %2681 = vset.pattern.permute.xlu0 0
        %2682 = vperm.xlu0 %2681, %v2623
        %v2683 = vpop.permute.xlu0 %2682
        %2684 = vset.pattern.permute.xlu0 0
        %2685 = vperm.xlu0 %2684, %v2625
        %v2686 = vpop.permute.xlu0 %2685
        %2687 = vset.pattern.permute.xlu0 0
        %2688 = vperm.xlu0 %2687, %v2627
        %v2689 = vpop.permute.xlu0 %2688
        %2690 = vset.pattern.permute.xlu0 0
        %2691 = vperm.xlu0 %2690, %v2629
        %v2692 = vpop.permute.xlu0 %2691
        %2693 = vset.pattern.permute.xlu0 0
        %2694 = vperm.xlu0 %2693, %v2631
        %v2695 = vpop.permute.xlu0 %2694
        %v2696 = vlaneseq
        %v2697 = vshrl.u32 %v2696, 7
        %v2698 = vsub.s32 %v1511, %v2697
        %v2699 = vrot.slane %v2650, %v2698
        %v2700 = vlaneseq
        %v2701 = vshrl.u32 %v2700, 7
        %v2702 = vsub.s32 %v1511, %v2701
        %v2703 = vrot.slane %v2653, %v2702
        %v2704 = vlaneseq
        %v2705 = vshrl.u32 %v2704, 7
        %v2706 = vsub.s32 %v1511, %v2705
        %v2707 = vrot.slane %v2656, %v2706
        %v2708 = vlaneseq
        %v2709 = vshrl.u32 %v2708, 7
        %v2710 = vsub.s32 %v1511, %v2709
        %v2711 = vrot.slane %v2659, %v2710
        %v2712 = vlaneseq
        %v2713 = vshrl.u32 %v2712, 7
        %v2714 = vsub.s32 %v1511, %v2713
        %v2715 = vrot.slane %v2662, %v2714
        %v2716 = vlaneseq
        %v2717 = vshrl.u32 %v2716, 7
        %v2718 = vsub.s32 %v1511, %v2717
        %v2719 = vrot.slane %v2665, %v2718
        %v2720 = vlaneseq
        %v2721 = vshrl.u32 %v2720, 7
        %v2722 = vsub.s32 %v1511, %v2721
        %v2723 = vrot.slane %v2668, %v2722
        %v2724 = vlaneseq
        %v2725 = vshrl.u32 %v2724, 7
        %v2726 = vsub.s32 %v1511, %v2725
        %v2727 = vrot.slane %v2671, %v2726
        %v2728 = vlaneseq
        %v2729 = vshrl.u32 %v2728, 7
        %v2730 = vsub.s32 %v1511, %v2729
        %v2731 = vrot.slane %v2674, %v2730
        %v2732 = vlaneseq
        %v2733 = vshrl.u32 %v2732, 7
        %v2734 = vsub.s32 %v1511, %v2733
        %v2735 = vrot.slane %v2677, %v2734
        %v2736 = vlaneseq
        %v2737 = vshrl.u32 %v2736, 7
        %v2738 = vsub.s32 %v1511, %v2737
        %v2739 = vrot.slane %v2680, %v2738
        %v2740 = vlaneseq
        %v2741 = vshrl.u32 %v2740, 7
        %v2742 = vsub.s32 %v1511, %v2741
        %v2743 = vrot.slane %v2683, %v2742
        %v2744 = vlaneseq
        %v2745 = vshrl.u32 %v2744, 7
        %v2746 = vsub.s32 %v1511, %v2745
        %v2747 = vrot.slane %v2686, %v2746
        %v2748 = vlaneseq
        %v2749 = vshrl.u32 %v2748, 7
        %v2750 = vsub.s32 %v1511, %v2749
        %v2751 = vrot.slane %v2689, %v2750
        %v2752 = vlaneseq
        %v2753 = vshrl.u32 %v2752, 7
        %v2754 = vsub.s32 %v1511, %v2753
        %v2755 = vrot.slane %v2692, %v2754
        %v2756 = vlaneseq
        %v2757 = vshrl.u32 %v2756, 7
        %v2758 = vsub.s32 %v1511, %v2757
        %v2759 = vrot.slane %v2695, %v2758
        %v2760 = vsel %vm1576, %v2703, %v2699
        %v2761 = vsel %vm1578, %v2707, %v2760
        %v2762 = vsel %vm1580, %v2711, %v2761
        %v2763 = vsel %vm1582, %v2715, %v2762
        %v2764 = vsel %vm1584, %v2719, %v2763
        %v2765 = vsel %vm1586, %v2723, %v2764
        %v2766 = vsel %vm1588, %v2727, %v2765
        %v2767 = vsel %vm1576, %v2735, %v2731
        %v2768 = vsel %vm1578, %v2739, %v2767
        %v2769 = vsel %vm1580, %v2743, %v2768
        %v2770 = vsel %vm1582, %v2747, %v2769
        %v2771 = vsel %vm1584, %v2751, %v2770
        %v2772 = vsel %vm1586, %v2755, %v2771
        %v2773 = vsel %vm1588, %v2759, %v2772
        %v2776 = vsel %vm1599, %v2766, 0.0
        %2777 = vadd.xlane.f32.xlu0 %v2776
        %v2778 = vpop.xlane.xlu0 %2777
        %v2779 = vsel %vm1599, %v2773, 0.0
        %2780 = vadd.xlane.f32.xlu0 %v2779
        %v2781 = vpop.xlane.xlu0 %2780
        %v2784 = vlaneseq
        %v2785 = vshrl.u32 %v2784, 7
        %v2786 = vsub.s32 0, %v2785
        %v2787 = vrot.slane %v2778, %v2786
        %v2788 = vlaneseq
        %v2789 = vshrl.u32 %v2788, 7
        %v2790 = vsub.s32 1, %v2789
        %v2791 = vrot.slane %v2778, %v2790
        %v2792 = vlaneseq
        %v2793 = vshrl.u32 %v2792, 7
        %v2794 = vsub.s32 2, %v2793
        %v2795 = vrot.slane %v2778, %v2794
        %v2796 = vlaneseq
        %v2797 = vshrl.u32 %v2796, 7
        %v2798 = vsub.s32 3, %v2797
        %v2799 = vrot.slane %v2778, %v2798
        %v2800 = vlaneseq
        %v2801 = vshrl.u32 %v2800, 7
        %v2802 = vsub.s32 4, %v2801
        %v2803 = vrot.slane %v2778, %v2802
        %v2804 = vlaneseq
        %v2805 = vshrl.u32 %v2804, 7
        %v2806 = vsub.s32 5, %v2805
        %v2807 = vrot.slane %v2778, %v2806
        %v2808 = vlaneseq
        %v2809 = vshrl.u32 %v2808, 7
        %v2810 = vsub.s32 6, %v2809
        %v2811 = vrot.slane %v2778, %v2810
        %v2812 = vlaneseq
        %v2813 = vshrl.u32 %v2812, 7
        %v2814 = vsub.s32 7, %v2813
        %v2815 = vrot.slane %v2778, %v2814
        %v2816 = vlaneseq
        %v2817 = vshrl.u32 %v2816, 7
        %v2818 = vsub.s32 0, %v2817
        %v2819 = vrot.slane %v2781, %v2818
        %v2820 = vlaneseq
        %v2821 = vshrl.u32 %v2820, 7
        %v2822 = vsub.s32 1, %v2821
        %v2823 = vrot.slane %v2781, %v2822
        %v2824 = vlaneseq
        %v2825 = vshrl.u32 %v2824, 7
        %v2826 = vsub.s32 2, %v2825
        %v2827 = vrot.slane %v2781, %v2826
        %v2828 = vlaneseq
        %v2829 = vshrl.u32 %v2828, 7
        %v2830 = vsub.s32 3, %v2829
        %v2831 = vrot.slane %v2781, %v2830
        %v2832 = vlaneseq
        %v2833 = vshrl.u32 %v2832, 7
        %v2834 = vsub.s32 4, %v2833
        %v2835 = vrot.slane %v2781, %v2834
        %v2836 = vlaneseq
        %v2837 = vshrl.u32 %v2836, 7
        %v2838 = vsub.s32 5, %v2837
        %v2839 = vrot.slane %v2781, %v2838
        %v2840 = vlaneseq
        %v2841 = vshrl.u32 %v2840, 7
        %v2842 = vsub.s32 6, %v2841
        %v2843 = vrot.slane %v2781, %v2842
        %v2844 = vlaneseq
        %v2845 = vshrl.u32 %v2844, 7
        %v2846 = vsub.s32 7, %v2845
        %v2847 = vrot.slane %v2781, %v2846
        %v2864 = vrcp.pop %v2787
        %v2865 = vmul.f32 %v2601, %v2864
        %v2866 = vrcp.pop %v2791
        %v2867 = vmul.f32 %v2603, %v2866
        %v2868 = vrcp.pop %v2795
        %v2869 = vmul.f32 %v2605, %v2868
        %v2870 = vrcp.pop %v2799
        %v2871 = vmul.f32 %v2607, %v2870
        %v2872 = vrcp.pop %v2803
        %v2873 = vmul.f32 %v2609, %v2872
        %v2874 = vrcp.pop %v2807
        %v2875 = vmul.f32 %v2611, %v2874
        %v2876 = vrcp.pop %v2811
        %v2877 = vmul.f32 %v2613, %v2876
        %v2878 = vrcp.pop %v2815
        %v2879 = vmul.f32 %v2615, %v2878
        %v2880 = vrcp.pop %v2819
        %v2881 = vmul.f32 %v2617, %v2880
        %v2882 = vrcp.pop %v2823
        %v2883 = vmul.f32 %v2619, %v2882
        %v2884 = vrcp.pop %v2827
        %v2885 = vmul.f32 %v2621, %v2884
        %v2886 = vrcp.pop %v2831
        %v2887 = vmul.f32 %v2623, %v2886
        %v2888 = vrcp.pop %v2835
        %v2889 = vmul.f32 %v2625, %v2888
        %v2890 = vrcp.pop %v2839
        %v2891 = vmul.f32 %v2627, %v2890
        %v2892 = vrcp.pop %v2843
        %v2893 = vmul.f32 %v2629, %v2892
        %v2894 = vrcp.pop %v2847
        %v2895 = vmul.f32 %v2631, %v2894
        %2897 = vset.pattern.permute.xlu0 0
        %2898 = vperm.xlu0 %2897, %v2865
        %v2899 = vpop.permute.xlu0 %2898
        %2902 = vset.pattern.permute.xlu0 0
        %2903 = vperm.xlu0 %2902, %v2867
        %v2904 = vpop.permute.xlu0 %2903
        %2907 = vset.pattern.permute.xlu0 0
        %2908 = vperm.xlu0 %2907, %v2869
        %v2909 = vpop.permute.xlu0 %2908
        %2912 = vset.pattern.permute.xlu0 0
        %2913 = vperm.xlu0 %2912, %v2871
        %v2914 = vpop.permute.xlu0 %2913
        %2917 = vset.pattern.permute.xlu0 0
        %2918 = vperm.xlu0 %2917, %v2873
        %v2919 = vpop.permute.xlu0 %2918
        %2922 = vset.pattern.permute.xlu0 0
        %2923 = vperm.xlu0 %2922, %v2875
        %v2924 = vpop.permute.xlu0 %2923
        %2927 = vset.pattern.permute.xlu0 0
        %2928 = vperm.xlu0 %2927, %v2877
        %v2929 = vpop.permute.xlu0 %2928
        %2932 = vset.pattern.permute.xlu0 0
        %2933 = vperm.xlu0 %2932, %v2879
        %v2934 = vpop.permute.xlu0 %2933
        %2937 = vset.pattern.permute.xlu0 0
        %2938 = vperm.xlu0 %2937, %v2881
        %v2939 = vpop.permute.xlu0 %2938
        %2942 = vset.pattern.permute.xlu0 0
        %2943 = vperm.xlu0 %2942, %v2883
        %v2944 = vpop.permute.xlu0 %2943
        %2947 = vset.pattern.permute.xlu0 0
        %2948 = vperm.xlu0 %2947, %v2885
        %v2949 = vpop.permute.xlu0 %2948
        %2952 = vset.pattern.permute.xlu0 0
        %2953 = vperm.xlu0 %2952, %v2887
        %v2954 = vpop.permute.xlu0 %2953
        %2957 = vset.pattern.permute.xlu0 0
        %2958 = vperm.xlu0 %2957, %v2889
        %v2959 = vpop.permute.xlu0 %2958
        %2962 = vset.pattern.permute.xlu0 0
        %2963 = vperm.xlu0 %2962, %v2891
        %v2964 = vpop.permute.xlu0 %2963
        %2967 = vset.pattern.permute.xlu0 0
        %2968 = vperm.xlu0 %2967, %v2893
        %v2969 = vpop.permute.xlu0 %2968
        %2972 = vset.pattern.permute.xlu0 0
        %2973 = vperm.xlu0 %2972, %v2895
        %v2974 = vpop.permute.xlu0 %2973
        %v2976 = vmul.f32 %v2899, %v1105
        %v2977 = vmul.f32 %v2904, %v1106
        %v2978 = vmul.f32 %v2909, %v1107
        %v2979 = vmul.f32 %v2914, %v1108
        %v2980 = vmul.f32 %v2919, %v1109
        %v2981 = vmul.f32 %v2924, %v1110
        %v2982 = vmul.f32 %v2929, %v1111
        %v2983 = vmul.f32 %v2934, %v1112
        %v2984 = vmul.f32 %v2939, %v1241
        %v2985 = vmul.f32 %v2944, %v1242
        %v2986 = vmul.f32 %v2949, %v1243
        %v2987 = vmul.f32 %v2954, %v1244
        %v2988 = vmul.f32 %v2959, %v1245
        %v2989 = vmul.f32 %v2964, %v1246
        %v2990 = vmul.f32 %v2969, %v1247
        %v2991 = vmul.f32 %v2974, %v1248
        %v2992 = vsel %vm1445, %v2976, 0.0
        %v2993 = vrot.slane %v2992, 4
        %v2994 = vadd.f32 %v2992, %v2993
        %v2995 = vrot.slane %v2994, 2
        %v2996 = vadd.f32 %v2994, %v2995
        %v2997 = vrot.slane %v2996, 1
        %v2998 = vadd.f32 %v2996, %v2997
        %v2999 = vsel %vm1445, %v2977, 0.0
        %v3000 = vrot.slane %v2999, 4
        %v3001 = vadd.f32 %v2999, %v3000
        %v3002 = vrot.slane %v3001, 2
        %v3003 = vadd.f32 %v3001, %v3002
        %v3004 = vrot.slane %v3003, 1
        %v3005 = vadd.f32 %v3003, %v3004
        %v3006 = vsel %vm1445, %v2978, 0.0
        %v3007 = vrot.slane %v3006, 4
        %v3008 = vadd.f32 %v3006, %v3007
        %v3009 = vrot.slane %v3008, 2
        %v3010 = vadd.f32 %v3008, %v3009
        %v3011 = vrot.slane %v3010, 1
        %v3012 = vadd.f32 %v3010, %v3011
        %v3013 = vsel %vm1445, %v2979, 0.0
        %v3014 = vrot.slane %v3013, 4
        %v3015 = vadd.f32 %v3013, %v3014
        %v3016 = vrot.slane %v3015, 2
        %v3017 = vadd.f32 %v3015, %v3016
        %v3018 = vrot.slane %v3017, 1
        %v3019 = vadd.f32 %v3017, %v3018
        %v3020 = vsel %vm1445, %v2980, 0.0
        %v3021 = vrot.slane %v3020, 4
        %v3022 = vadd.f32 %v3020, %v3021
        %v3023 = vrot.slane %v3022, 2
        %v3024 = vadd.f32 %v3022, %v3023
        %v3025 = vrot.slane %v3024, 1
        %v3026 = vadd.f32 %v3024, %v3025
        %v3027 = vsel %vm1445, %v2981, 0.0
        %v3028 = vrot.slane %v3027, 4
        %v3029 = vadd.f32 %v3027, %v3028
        %v3030 = vrot.slane %v3029, 2
        %v3031 = vadd.f32 %v3029, %v3030
        %v3032 = vrot.slane %v3031, 1
        %v3033 = vadd.f32 %v3031, %v3032
        %v3034 = vsel %vm1445, %v2982, 0.0
        %v3035 = vrot.slane %v3034, 4
        %v3036 = vadd.f32 %v3034, %v3035
        %v3037 = vrot.slane %v3036, 2
        %v3038 = vadd.f32 %v3036, %v3037
        %v3039 = vrot.slane %v3038, 1
        %v3040 = vadd.f32 %v3038, %v3039
        %v3041 = vsel %vm1445, %v2983, 0.0
        %v3042 = vrot.slane %v3041, 4
        %v3043 = vadd.f32 %v3041, %v3042
        %v3044 = vrot.slane %v3043, 2
        %v3045 = vadd.f32 %v3043, %v3044
        %v3046 = vrot.slane %v3045, 1
        %v3047 = vadd.f32 %v3045, %v3046
        %v3048 = vsel %vm1445, %v2984, 0.0
        %v3049 = vrot.slane %v3048, 4
        %v3050 = vadd.f32 %v3048, %v3049
        %v3051 = vrot.slane %v3050, 2
        %v3052 = vadd.f32 %v3050, %v3051
        %v3053 = vrot.slane %v3052, 1
        %v3054 = vadd.f32 %v3052, %v3053
        %v3055 = vsel %vm1445, %v2985, 0.0
        %v3056 = vrot.slane %v3055, 4
        %v3057 = vadd.f32 %v3055, %v3056
        %v3058 = vrot.slane %v3057, 2
        %v3059 = vadd.f32 %v3057, %v3058
        %v3060 = vrot.slane %v3059, 1
        %v3061 = vadd.f32 %v3059, %v3060
        %v3062 = vsel %vm1445, %v2986, 0.0
        %v3063 = vrot.slane %v3062, 4
        %v3064 = vadd.f32 %v3062, %v3063
        %v3065 = vrot.slane %v3064, 2
        %v3066 = vadd.f32 %v3064, %v3065
        %v3067 = vrot.slane %v3066, 1
        %v3068 = vadd.f32 %v3066, %v3067
        %v3069 = vsel %vm1445, %v2987, 0.0
        %v3070 = vrot.slane %v3069, 4
        %v3071 = vadd.f32 %v3069, %v3070
        %v3072 = vrot.slane %v3071, 2
        %v3073 = vadd.f32 %v3071, %v3072
        %v3074 = vrot.slane %v3073, 1
        %v3075 = vadd.f32 %v3073, %v3074
        %v3076 = vsel %vm1445, %v2988, 0.0
        %v3077 = vrot.slane %v3076, 4
        %v3078 = vadd.f32 %v3076, %v3077
        %v3079 = vrot.slane %v3078, 2
        %v3080 = vadd.f32 %v3078, %v3079
        %v3081 = vrot.slane %v3080, 1
        %v3082 = vadd.f32 %v3080, %v3081
        %v3083 = vsel %vm1445, %v2989, 0.0
        %v3084 = vrot.slane %v3083, 4
        %v3085 = vadd.f32 %v3083, %v3084
        %v3086 = vrot.slane %v3085, 2
        %v3087 = vadd.f32 %v3085, %v3086
        %v3088 = vrot.slane %v3087, 1
        %v3089 = vadd.f32 %v3087, %v3088
        %v3090 = vsel %vm1445, %v2990, 0.0
        %v3091 = vrot.slane %v3090, 4
        %v3092 = vadd.f32 %v3090, %v3091
        %v3093 = vrot.slane %v3092, 2
        %v3094 = vadd.f32 %v3092, %v3093
        %v3095 = vrot.slane %v3094, 1
        %v3096 = vadd.f32 %v3094, %v3095
        %v3097 = vsel %vm1445, %v2991, 0.0
        %v3098 = vrot.slane %v3097, 4
        %v3099 = vadd.f32 %v3097, %v3098
        %v3100 = vrot.slane %v3099, 2
        %v3101 = vadd.f32 %v3099, %v3100
        %v3102 = vrot.slane %v3101, 1
        %v3103 = vadd.f32 %v3101, %v3102
        %3104 = vrot.lane.b32.xlu0 %v785, 8
        %v3105 = vpop.permute.xlu0 %3104
        %3106 = vrot.lane.b32.xlu0 %v786, 8
        %v3107 = vpop.permute.xlu0 %3106
        %3108 = vrot.lane.b32.xlu0 %v787, 8
        %v3109 = vpop.permute.xlu0 %3108
        %3110 = vrot.lane.b32.xlu0 %v788, 8
        %v3111 = vpop.permute.xlu0 %3110
        %3112 = vrot.lane.b32.xlu0 %v789, 8
        %v3113 = vpop.permute.xlu0 %3112
        %3114 = vrot.lane.b32.xlu0 %v790, 8
        %v3115 = vpop.permute.xlu0 %3114
        %3116 = vrot.lane.b32.xlu0 %v791, 8
        %v3117 = vpop.permute.xlu0 %3116
        %3118 = vrot.lane.b32.xlu0 %v792, 8
        %v3119 = vpop.permute.xlu0 %3118
        %3120 = vrot.lane.b32.xlu0 %v921, 8
        %v3121 = vpop.permute.xlu0 %3120
        %3122 = vrot.lane.b32.xlu0 %v922, 8
        %v3123 = vpop.permute.xlu0 %3122
        %3124 = vrot.lane.b32.xlu0 %v923, 8
        %v3125 = vpop.permute.xlu0 %3124
        %3126 = vrot.lane.b32.xlu0 %v924, 8
        %v3127 = vpop.permute.xlu0 %3126
        %3128 = vrot.lane.b32.xlu0 %v925, 8
        %v3129 = vpop.permute.xlu0 %3128
        %3130 = vrot.lane.b32.xlu0 %v926, 8
        %v3131 = vpop.permute.xlu0 %3130
        %3132 = vrot.lane.b32.xlu0 %v927, 8
        %v3133 = vpop.permute.xlu0 %3132
        %3134 = vrot.lane.b32.xlu0 %v928, 8
        %v3135 = vpop.permute.xlu0 %3134
        %v3152 = vmul.f32 %v1352, %v3105
        %v3153 = vmul.f32 %v1356, %v3107
        %v3154 = vmul.f32 %v1360, %v3109
        %v3155 = vmul.f32 %v1364, %v3111
        %v3156 = vmul.f32 %v1368, %v3113
        %v3157 = vmul.f32 %v1372, %v3115
        %v3158 = vmul.f32 %v1376, %v3117
        %v3159 = vmul.f32 %v1380, %v3119
        %v3160 = vmul.f32 %v1384, %v3121
        %v3161 = vmul.f32 %v1388, %v3123
        %v3162 = vmul.f32 %v1392, %v3125
        %v3163 = vmul.f32 %v1396, %v3127
        %v3164 = vmul.f32 %v1400, %v3129
        %v3165 = vmul.f32 %v1404, %v3131
        %v3166 = vmul.f32 %v1408, %v3133
        %v3167 = vmul.f32 %v1412, %v3135
        %3184 = vrot.lane.b32.xlu0 %v3152, 120
        %v3185 = vpop.permute.xlu0 %3184
        %3186 = vrot.lane.b32.xlu0 %v3153, 120
        %v3187 = vpop.permute.xlu0 %3186
        %3188 = vrot.lane.b32.xlu0 %v3154, 120
        %v3189 = vpop.permute.xlu0 %3188
        %3190 = vrot.lane.b32.xlu0 %v3155, 120
        %v3191 = vpop.permute.xlu0 %3190
        %3192 = vrot.lane.b32.xlu0 %v3156, 120
        %v3193 = vpop.permute.xlu0 %3192
        %3194 = vrot.lane.b32.xlu0 %v3157, 120
        %v3195 = vpop.permute.xlu0 %3194
        %3196 = vrot.lane.b32.xlu0 %v3158, 120
        %v3197 = vpop.permute.xlu0 %3196
        %3198 = vrot.lane.b32.xlu0 %v3159, 120
        %v3199 = vpop.permute.xlu0 %3198
        %3200 = vrot.lane.b32.xlu0 %v3160, 120
        %v3201 = vpop.permute.xlu0 %3200
        %3202 = vrot.lane.b32.xlu0 %v3161, 120
        %v3203 = vpop.permute.xlu0 %3202
        %3204 = vrot.lane.b32.xlu0 %v3162, 120
        %v3205 = vpop.permute.xlu0 %3204
        %3206 = vrot.lane.b32.xlu0 %v3163, 120
        %v3207 = vpop.permute.xlu0 %3206
        %3208 = vrot.lane.b32.xlu0 %v3164, 120
        %v3209 = vpop.permute.xlu0 %3208
        %3210 = vrot.lane.b32.xlu0 %v3165, 120
        %v3211 = vpop.permute.xlu0 %3210
        %3212 = vrot.lane.b32.xlu0 %v3166, 120
        %v3213 = vpop.permute.xlu0 %3212
        %3214 = vrot.lane.b32.xlu0 %v3167, 120
        %v3215 = vpop.permute.xlu0 %3214
        %v3232 = vsel %vm1445, %v3185, 0.0
        %3233 = vadd.xlane.f32.xlu0 %v3232
        %v3234 = vpop.xlane.xlu0 %3233
        %v3235 = vsel %vm1445, %v3187, 0.0
        %3236 = vadd.xlane.f32.xlu0 %v3235
        %v3237 = vpop.xlane.xlu0 %3236
        %v3238 = vsel %vm1445, %v3189, 0.0
        %3239 = vadd.xlane.f32.xlu0 %v3238
        %v3240 = vpop.xlane.xlu0 %3239
        %v3241 = vsel %vm1445, %v3191, 0.0
        %3242 = vadd.xlane.f32.xlu0 %v3241
        %v3243 = vpop.xlane.xlu0 %3242
        %v3244 = vsel %vm1445, %v3193, 0.0
        %3245 = vadd.xlane.f32.xlu0 %v3244
        %v3246 = vpop.xlane.xlu0 %3245
        %v3247 = vsel %vm1445, %v3195, 0.0
        %3248 = vadd.xlane.f32.xlu0 %v3247
        %v3249 = vpop.xlane.xlu0 %3248
        %v3250 = vsel %vm1445, %v3197, 0.0
        %3251 = vadd.xlane.f32.xlu0 %v3250
        %v3252 = vpop.xlane.xlu0 %3251
        %v3253 = vsel %vm1445, %v3199, 0.0
        %3254 = vadd.xlane.f32.xlu0 %v3253
        %v3255 = vpop.xlane.xlu0 %3254
        %v3256 = vsel %vm1445, %v3201, 0.0
        %3257 = vadd.xlane.f32.xlu0 %v3256
        %v3258 = vpop.xlane.xlu0 %3257
        %v3259 = vsel %vm1445, %v3203, 0.0
        %3260 = vadd.xlane.f32.xlu0 %v3259
        %v3261 = vpop.xlane.xlu0 %3260
        %v3262 = vsel %vm1445, %v3205, 0.0
        %3263 = vadd.xlane.f32.xlu0 %v3262
        %v3264 = vpop.xlane.xlu0 %3263
        %v3265 = vsel %vm1445, %v3207, 0.0
        %3266 = vadd.xlane.f32.xlu0 %v3265
        %v3267 = vpop.xlane.xlu0 %3266
        %v3268 = vsel %vm1445, %v3209, 0.0
        %3269 = vadd.xlane.f32.xlu0 %v3268
        %v3270 = vpop.xlane.xlu0 %3269
        %v3271 = vsel %vm1445, %v3211, 0.0
        %3272 = vadd.xlane.f32.xlu0 %v3271
        %v3273 = vpop.xlane.xlu0 %3272
        %v3274 = vsel %vm1445, %v3213, 0.0
        %3275 = vadd.xlane.f32.xlu0 %v3274
        %v3276 = vpop.xlane.xlu0 %3275
        %v3277 = vsel %vm1445, %v3215, 0.0
        %3278 = vadd.xlane.f32.xlu0 %v3277
        %v3279 = vpop.xlane.xlu0 %3278
        %v3296 = vlaneseq
        %v3297 = vshrl.u32 %v3296, 7
        %v3298 = vsub.s32 %v1511, %v3297
        %v3299 = vrot.slane %v3234, %v3298
        %v3300 = vlaneseq
        %v3301 = vshrl.u32 %v3300, 7
        %v3302 = vsub.s32 %v1511, %v3301
        %v3303 = vrot.slane %v3237, %v3302
        %v3304 = vlaneseq
        %v3305 = vshrl.u32 %v3304, 7
        %v3306 = vsub.s32 %v1511, %v3305
        %v3307 = vrot.slane %v3240, %v3306
        %v3308 = vlaneseq
        %v3309 = vshrl.u32 %v3308, 7
        %v3310 = vsub.s32 %v1511, %v3309
        %v3311 = vrot.slane %v3243, %v3310
        %v3312 = vlaneseq
        %v3313 = vshrl.u32 %v3312, 7
        %v3314 = vsub.s32 %v1511, %v3313
        %v3315 = vrot.slane %v3246, %v3314
        %v3316 = vlaneseq
        %v3317 = vshrl.u32 %v3316, 7
        %v3318 = vsub.s32 %v1511, %v3317
        %v3319 = vrot.slane %v3249, %v3318
        %v3320 = vlaneseq
        %v3321 = vshrl.u32 %v3320, 7
        %v3322 = vsub.s32 %v1511, %v3321
        %v3323 = vrot.slane %v3252, %v3322
        %v3324 = vlaneseq
        %v3325 = vshrl.u32 %v3324, 7
        %v3326 = vsub.s32 %v1511, %v3325
        %v3327 = vrot.slane %v3255, %v3326
        %v3328 = vlaneseq
        %v3329 = vshrl.u32 %v3328, 7
        %v3330 = vsub.s32 %v1511, %v3329
        %v3331 = vrot.slane %v3258, %v3330
        %v3332 = vlaneseq
        %v3333 = vshrl.u32 %v3332, 7
        %v3334 = vsub.s32 %v1511, %v3333
        %v3335 = vrot.slane %v3261, %v3334
        %v3336 = vlaneseq
        %v3337 = vshrl.u32 %v3336, 7
        %v3338 = vsub.s32 %v1511, %v3337
        %v3339 = vrot.slane %v3264, %v3338
        %v3340 = vlaneseq
        %v3341 = vshrl.u32 %v3340, 7
        %v3342 = vsub.s32 %v1511, %v3341
        %v3343 = vrot.slane %v3267, %v3342
        %v3344 = vlaneseq
        %v3345 = vshrl.u32 %v3344, 7
        %v3346 = vsub.s32 %v1511, %v3345
        %v3347 = vrot.slane %v3270, %v3346
        %v3348 = vlaneseq
        %v3349 = vshrl.u32 %v3348, 7
        %v3350 = vsub.s32 %v1511, %v3349
        %v3351 = vrot.slane %v3273, %v3350
        %v3352 = vlaneseq
        %v3353 = vshrl.u32 %v3352, 7
        %v3354 = vsub.s32 %v1511, %v3353
        %v3355 = vrot.slane %v3276, %v3354
        %v3356 = vlaneseq
        %v3357 = vshrl.u32 %v3356, 7
        %v3358 = vsub.s32 %v1511, %v3357
        %v3359 = vrot.slane %v3279, %v3358
        %v3360 = vsel %vm1576, %v3303, %v3299
        %v3361 = vsel %vm1578, %v3307, %v3360
        %v3362 = vsel %vm1580, %v3311, %v3361
        %v3363 = vsel %vm1582, %v3315, %v3362
        %v3364 = vsel %vm1584, %v3319, %v3363
        %v3365 = vsel %vm1586, %v3323, %v3364
        %v3366 = vsel %vm1588, %v3327, %v3365
        %v3367 = vsel %vm1576, %v3335, %v3331
        %v3368 = vsel %vm1578, %v3339, %v3367
        %v3369 = vsel %vm1580, %v3343, %v3368
        %v3370 = vsel %vm1582, %v3347, %v3369
        %v3371 = vsel %vm1584, %v3351, %v3370
        %v3372 = vsel %vm1586, %v3355, %v3371
        %v3373 = vsel %vm1588, %v3359, %v3372
        %v3376 = vsel %vm1599, %v3366, -inf
        %3377 = vmax.xlane.f32.xlu0 %v3376
        %v3378 = vpop.xlane.xlu0 %3377
        %v3379 = vsel %vm1599, %v3373, -inf
        %3380 = vmax.xlane.f32.xlu0 %v3379
        %v3381 = vpop.xlane.xlu0 %3380
        %v3384 = vlaneseq
        %v3385 = vshrl.u32 %v3384, 7
        %v3386 = vsub.s32 0, %v3385
        %v3387 = vrot.slane %v3378, %v3386
        %v3388 = vlaneseq
        %v3389 = vshrl.u32 %v3388, 7
        %v3390 = vsub.s32 1, %v3389
        %v3391 = vrot.slane %v3378, %v3390
        %v3392 = vlaneseq
        %v3393 = vshrl.u32 %v3392, 7
        %v3394 = vsub.s32 2, %v3393
        %v3395 = vrot.slane %v3378, %v3394
        %v3396 = vlaneseq
        %v3397 = vshrl.u32 %v3396, 7
        %v3398 = vsub.s32 3, %v3397
        %v3399 = vrot.slane %v3378, %v3398
        %v3400 = vlaneseq
        %v3401 = vshrl.u32 %v3400, 7
        %v3402 = vsub.s32 4, %v3401
        %v3403 = vrot.slane %v3378, %v3402
        %v3404 = vlaneseq
        %v3405 = vshrl.u32 %v3404, 7
        %v3406 = vsub.s32 5, %v3405
        %v3407 = vrot.slane %v3378, %v3406
        %v3408 = vlaneseq
        %v3409 = vshrl.u32 %v3408, 7
        %v3410 = vsub.s32 6, %v3409
        %v3411 = vrot.slane %v3378, %v3410
        %v3412 = vlaneseq
        %v3413 = vshrl.u32 %v3412, 7
        %v3414 = vsub.s32 7, %v3413
        %v3415 = vrot.slane %v3378, %v3414
        %v3416 = vlaneseq
        %v3417 = vshrl.u32 %v3416, 7
        %v3418 = vsub.s32 0, %v3417
        %v3419 = vrot.slane %v3381, %v3418
        %v3420 = vlaneseq
        %v3421 = vshrl.u32 %v3420, 7
        %v3422 = vsub.s32 1, %v3421
        %v3423 = vrot.slane %v3381, %v3422
        %v3424 = vlaneseq
        %v3425 = vshrl.u32 %v3424, 7
        %v3426 = vsub.s32 2, %v3425
        %v3427 = vrot.slane %v3381, %v3426
        %v3428 = vlaneseq
        %v3429 = vshrl.u32 %v3428, 7
        %v3430 = vsub.s32 3, %v3429
        %v3431 = vrot.slane %v3381, %v3430
        %v3432 = vlaneseq
        %v3433 = vshrl.u32 %v3432, 7
        %v3434 = vsub.s32 4, %v3433
        %v3435 = vrot.slane %v3381, %v3434
        %v3436 = vlaneseq
        %v3437 = vshrl.u32 %v3436, 7
        %v3438 = vsub.s32 5, %v3437
        %v3439 = vrot.slane %v3381, %v3438
        %v3440 = vlaneseq
        %v3441 = vshrl.u32 %v3440, 7
        %v3442 = vsub.s32 6, %v3441
        %v3443 = vrot.slane %v3381, %v3442
        %v3444 = vlaneseq
        %v3445 = vshrl.u32 %v3444, 7
        %v3446 = vsub.s32 7, %v3445
        %v3447 = vrot.slane %v3381, %v3446
        %v3464 = vsub.f32 %v3234, %v3387
        %v3465 = vsub.f32 %v3237, %v3391
        %v3466 = vsub.f32 %v3240, %v3395
        %v3467 = vsub.f32 %v3243, %v3399
        %v3468 = vsub.f32 %v3246, %v3403
        %v3469 = vsub.f32 %v3249, %v3407
        %v3470 = vsub.f32 %v3252, %v3411
        %v3471 = vsub.f32 %v3255, %v3415
        %v3472 = vsub.f32 %v3258, %v3419
        %v3473 = vsub.f32 %v3261, %v3423
        %v3474 = vsub.f32 %v3264, %v3427
        %v3475 = vsub.f32 %v3267, %v3431
        %v3476 = vsub.f32 %v3270, %v3435
        %v3477 = vsub.f32 %v3273, %v3439
        %v3478 = vsub.f32 %v3276, %v3443
        %v3479 = vsub.f32 %v3279, %v3447
        %v3480 = vmul.f32 %v3464, 1.442695
        %v3481 = vpow.pop %v3480
        %v3482 = vmul.f32 %v3465, 1.442695
        %v3483 = vpow.pop %v3482
        %v3484 = vmul.f32 %v3466, 1.442695
        %v3485 = vpow.pop %v3484
        %v3486 = vmul.f32 %v3467, 1.442695
        %v3487 = vpow.pop %v3486
        %v3488 = vmul.f32 %v3468, 1.442695
        %v3489 = vpow.pop %v3488
        %v3490 = vmul.f32 %v3469, 1.442695
        %v3491 = vpow.pop %v3490
        %v3492 = vmul.f32 %v3470, 1.442695
        %v3493 = vpow.pop %v3492
        %v3494 = vmul.f32 %v3471, 1.442695
        %v3495 = vpow.pop %v3494
        %v3496 = vmul.f32 %v3472, 1.442695
        %v3497 = vpow.pop %v3496
        %v3498 = vmul.f32 %v3473, 1.442695
        %v3499 = vpow.pop %v3498
        %v3500 = vmul.f32 %v3474, 1.442695
        %v3501 = vpow.pop %v3500
        %v3502 = vmul.f32 %v3475, 1.442695
        %v3503 = vpow.pop %v3502
        %v3504 = vmul.f32 %v3476, 1.442695
        %v3505 = vpow.pop %v3504
        %v3506 = vmul.f32 %v3477, 1.442695
        %v3507 = vpow.pop %v3506
        %v3508 = vmul.f32 %v3478, 1.442695
        %v3509 = vpow.pop %v3508
        %v3510 = vmul.f32 %v3479, 1.442695
        %v3511 = vpow.pop %v3510
        %3528 = vset.pattern.permute.xlu0 0
        %3529 = vperm.xlu0 %3528, %v3481
        %v3530 = vpop.permute.xlu0 %3529
        %3531 = vset.pattern.permute.xlu0 0
        %3532 = vperm.xlu0 %3531, %v3483
        %v3533 = vpop.permute.xlu0 %3532
        %3534 = vset.pattern.permute.xlu0 0
        %3535 = vperm.xlu0 %3534, %v3485
        %v3536 = vpop.permute.xlu0 %3535
        %3537 = vset.pattern.permute.xlu0 0
        %3538 = vperm.xlu0 %3537, %v3487
        %v3539 = vpop.permute.xlu0 %3538
        %3540 = vset.pattern.permute.xlu0 0
        %3541 = vperm.xlu0 %3540, %v3489
        %v3542 = vpop.permute.xlu0 %3541
        %3543 = vset.pattern.permute.xlu0 0
        %3544 = vperm.xlu0 %3543, %v3491
        %v3545 = vpop.permute.xlu0 %3544
        %3546 = vset.pattern.permute.xlu0 0
        %3547 = vperm.xlu0 %3546, %v3493
        %v3548 = vpop.permute.xlu0 %3547
        %3549 = vset.pattern.permute.xlu0 0
        %3550 = vperm.xlu0 %3549, %v3495
        %v3551 = vpop.permute.xlu0 %3550
        %3552 = vset.pattern.permute.xlu0 0
        %3553 = vperm.xlu0 %3552, %v3497
        %v3554 = vpop.permute.xlu0 %3553
        %3555 = vset.pattern.permute.xlu0 0
        %3556 = vperm.xlu0 %3555, %v3499
        %v3557 = vpop.permute.xlu0 %3556
        %3558 = vset.pattern.permute.xlu0 0
        %3559 = vperm.xlu0 %3558, %v3501
        %v3560 = vpop.permute.xlu0 %3559
        %3561 = vset.pattern.permute.xlu0 0
        %3562 = vperm.xlu0 %3561, %v3503
        %v3563 = vpop.permute.xlu0 %3562
        %3564 = vset.pattern.permute.xlu0 0
        %3565 = vperm.xlu0 %3564, %v3505
        %v3566 = vpop.permute.xlu0 %3565
        %3567 = vset.pattern.permute.xlu0 0
        %3568 = vperm.xlu0 %3567, %v3507
        %v3569 = vpop.permute.xlu0 %3568
        %3570 = vset.pattern.permute.xlu0 0
        %3571 = vperm.xlu0 %3570, %v3509
        %v3572 = vpop.permute.xlu0 %3571
        %3573 = vset.pattern.permute.xlu0 0
        %3574 = vperm.xlu0 %3573, %v3511
        %v3575 = vpop.permute.xlu0 %3574
        %v3576 = vlaneseq
        %v3577 = vshrl.u32 %v3576, 7
        %v3578 = vsub.s32 %v1511, %v3577
        %v3579 = vrot.slane %v3530, %v3578
        %v3580 = vlaneseq
        %v3581 = vshrl.u32 %v3580, 7
        %v3582 = vsub.s32 %v1511, %v3581
        %v3583 = vrot.slane %v3533, %v3582
        %v3584 = vlaneseq
        %v3585 = vshrl.u32 %v3584, 7
        %v3586 = vsub.s32 %v1511, %v3585
        %v3587 = vrot.slane %v3536, %v3586
        %v3588 = vlaneseq
        %v3589 = vshrl.u32 %v3588, 7
        %v3590 = vsub.s32 %v1511, %v3589
        %v3591 = vrot.slane %v3539, %v3590
        %v3592 = vlaneseq
        %v3593 = vshrl.u32 %v3592, 7
        %v3594 = vsub.s32 %v1511, %v3593
        %v3595 = vrot.slane %v3542, %v3594
        %v3596 = vlaneseq
        %v3597 = vshrl.u32 %v3596, 7
        %v3598 = vsub.s32 %v1511, %v3597
        %v3599 = vrot.slane %v3545, %v3598
        %v3600 = vlaneseq
        %v3601 = vshrl.u32 %v3600, 7
        %v3602 = vsub.s32 %v1511, %v3601
        %v3603 = vrot.slane %v3548, %v3602
        %v3604 = vlaneseq
        %v3605 = vshrl.u32 %v3604, 7
        %v3606 = vsub.s32 %v1511, %v3605
        %v3607 = vrot.slane %v3551, %v3606
        %v3608 = vlaneseq
        %v3609 = vshrl.u32 %v3608, 7
        %v3610 = vsub.s32 %v1511, %v3609
        %v3611 = vrot.slane %v3554, %v3610
        %v3612 = vlaneseq
        %v3613 = vshrl.u32 %v3612, 7
        %v3614 = vsub.s32 %v1511, %v3613
        %v3615 = vrot.slane %v3557, %v3614
        %v3616 = vlaneseq
        %v3617 = vshrl.u32 %v3616, 7
        %v3618 = vsub.s32 %v1511, %v3617
        %v3619 = vrot.slane %v3560, %v3618
        %v3620 = vlaneseq
        %v3621 = vshrl.u32 %v3620, 7
        %v3622 = vsub.s32 %v1511, %v3621
        %v3623 = vrot.slane %v3563, %v3622
        %v3624 = vlaneseq
        %v3625 = vshrl.u32 %v3624, 7
        %v3626 = vsub.s32 %v1511, %v3625
        %v3627 = vrot.slane %v3566, %v3626
        %v3628 = vlaneseq
        %v3629 = vshrl.u32 %v3628, 7
        %v3630 = vsub.s32 %v1511, %v3629
        %v3631 = vrot.slane %v3569, %v3630
        %v3632 = vlaneseq
        %v3633 = vshrl.u32 %v3632, 7
        %v3634 = vsub.s32 %v1511, %v3633
        %v3635 = vrot.slane %v3572, %v3634
        %v3636 = vlaneseq
        %v3637 = vshrl.u32 %v3636, 7
        %v3638 = vsub.s32 %v1511, %v3637
        %v3639 = vrot.slane %v3575, %v3638
        %v3640 = vsel %vm1576, %v3583, %v3579
        %v3641 = vsel %vm1578, %v3587, %v3640
        %v3642 = vsel %vm1580, %v3591, %v3641
        %v3643 = vsel %vm1582, %v3595, %v3642
        %v3644 = vsel %vm1584, %v3599, %v3643
        %v3645 = vsel %vm1586, %v3603, %v3644
        %v3646 = vsel %vm1588, %v3607, %v3645
        %v3647 = vsel %vm1576, %v3615, %v3611
        %v3648 = vsel %vm1578, %v3619, %v3647
        %v3649 = vsel %vm1580, %v3623, %v3648
        %v3650 = vsel %vm1582, %v3627, %v3649
        %v3651 = vsel %vm1584, %v3631, %v3650
        %v3652 = vsel %vm1586, %v3635, %v3651
        %v3653 = vsel %vm1588, %v3639, %v3652
        %v3656 = vsel %vm1599, %v3646, 0.0
        %3657 = vadd.xlane.f32.xlu0 %v3656
        %v3658 = vpop.xlane.xlu0 %3657
        %v3659 = vsel %vm1599, %v3653, 0.0
        %3660 = vadd.xlane.f32.xlu0 %v3659
        %v3661 = vpop.xlane.xlu0 %3660
        %v3664 = vlaneseq
        %v3665 = vshrl.u32 %v3664, 7
        %v3666 = vsub.s32 0, %v3665
        %v3667 = vrot.slane %v3658, %v3666
        %v3668 = vlaneseq
        %v3669 = vshrl.u32 %v3668, 7
        %v3670 = vsub.s32 1, %v3669
        %v3671 = vrot.slane %v3658, %v3670
        %v3672 = vlaneseq
        %v3673 = vshrl.u32 %v3672, 7
        %v3674 = vsub.s32 2, %v3673
        %v3675 = vrot.slane %v3658, %v3674
        %v3676 = vlaneseq
        %v3677 = vshrl.u32 %v3676, 7
        %v3678 = vsub.s32 3, %v3677
        %v3679 = vrot.slane %v3658, %v3678
        %v3680 = vlaneseq
        %v3681 = vshrl.u32 %v3680, 7
        %v3682 = vsub.s32 4, %v3681
        %v3683 = vrot.slane %v3658, %v3682
        %v3684 = vlaneseq
        %v3685 = vshrl.u32 %v3684, 7
        %v3686 = vsub.s32 5, %v3685
        %v3687 = vrot.slane %v3658, %v3686
        %v3688 = vlaneseq
        %v3689 = vshrl.u32 %v3688, 7
        %v3690 = vsub.s32 6, %v3689
        %v3691 = vrot.slane %v3658, %v3690
        %v3692 = vlaneseq
        %v3693 = vshrl.u32 %v3692, 7
        %v3694 = vsub.s32 7, %v3693
        %v3695 = vrot.slane %v3658, %v3694
        %v3696 = vlaneseq
        %v3697 = vshrl.u32 %v3696, 7
        %v3698 = vsub.s32 0, %v3697
        %v3699 = vrot.slane %v3661, %v3698
        %v3700 = vlaneseq
        %v3701 = vshrl.u32 %v3700, 7
        %v3702 = vsub.s32 1, %v3701
        %v3703 = vrot.slane %v3661, %v3702
        %v3704 = vlaneseq
        %v3705 = vshrl.u32 %v3704, 7
        %v3706 = vsub.s32 2, %v3705
        %v3707 = vrot.slane %v3661, %v3706
        %v3708 = vlaneseq
        %v3709 = vshrl.u32 %v3708, 7
        %v3710 = vsub.s32 3, %v3709
        %v3711 = vrot.slane %v3661, %v3710
        %v3712 = vlaneseq
        %v3713 = vshrl.u32 %v3712, 7
        %v3714 = vsub.s32 4, %v3713
        %v3715 = vrot.slane %v3661, %v3714
        %v3716 = vlaneseq
        %v3717 = vshrl.u32 %v3716, 7
        %v3718 = vsub.s32 5, %v3717
        %v3719 = vrot.slane %v3661, %v3718
        %v3720 = vlaneseq
        %v3721 = vshrl.u32 %v3720, 7
        %v3722 = vsub.s32 6, %v3721
        %v3723 = vrot.slane %v3661, %v3722
        %v3724 = vlaneseq
        %v3725 = vshrl.u32 %v3724, 7
        %v3726 = vsub.s32 7, %v3725
        %v3727 = vrot.slane %v3661, %v3726
        %v3744 = vrcp.pop %v3667
        %v3745 = vmul.f32 %v3481, %v3744
        %v3746 = vrcp.pop %v3671
        %v3747 = vmul.f32 %v3483, %v3746
        %v3748 = vrcp.pop %v3675
        %v3749 = vmul.f32 %v3485, %v3748
        %v3750 = vrcp.pop %v3679
        %v3751 = vmul.f32 %v3487, %v3750
        %v3752 = vrcp.pop %v3683
        %v3753 = vmul.f32 %v3489, %v3752
        %v3754 = vrcp.pop %v3687
        %v3755 = vmul.f32 %v3491, %v3754
        %v3756 = vrcp.pop %v3691
        %v3757 = vmul.f32 %v3493, %v3756
        %v3758 = vrcp.pop %v3695
        %v3759 = vmul.f32 %v3495, %v3758
        %v3760 = vrcp.pop %v3699
        %v3761 = vmul.f32 %v3497, %v3760
        %v3762 = vrcp.pop %v3703
        %v3763 = vmul.f32 %v3499, %v3762
        %v3764 = vrcp.pop %v3707
        %v3765 = vmul.f32 %v3501, %v3764
        %v3766 = vrcp.pop %v3711
        %v3767 = vmul.f32 %v3503, %v3766
        %v3768 = vrcp.pop %v3715
        %v3769 = vmul.f32 %v3505, %v3768
        %v3770 = vrcp.pop %v3719
        %v3771 = vmul.f32 %v3507, %v3770
        %v3772 = vrcp.pop %v3723
        %v3773 = vmul.f32 %v3509, %v3772
        %v3774 = vrcp.pop %v3727
        %v3775 = vmul.f32 %v3511, %v3774
        %3777 = vset.pattern.permute.xlu0 0
        %3778 = vperm.xlu0 %3777, %v3745
        %v3779 = vpop.permute.xlu0 %3778
        %3782 = vset.pattern.permute.xlu0 0
        %3783 = vperm.xlu0 %3782, %v3747
        %v3784 = vpop.permute.xlu0 %3783
        %3787 = vset.pattern.permute.xlu0 0
        %3788 = vperm.xlu0 %3787, %v3749
        %v3789 = vpop.permute.xlu0 %3788
        %3792 = vset.pattern.permute.xlu0 0
        %3793 = vperm.xlu0 %3792, %v3751
        %v3794 = vpop.permute.xlu0 %3793
        %3797 = vset.pattern.permute.xlu0 0
        %3798 = vperm.xlu0 %3797, %v3753
        %v3799 = vpop.permute.xlu0 %3798
        %3802 = vset.pattern.permute.xlu0 0
        %3803 = vperm.xlu0 %3802, %v3755
        %v3804 = vpop.permute.xlu0 %3803
        %3807 = vset.pattern.permute.xlu0 0
        %3808 = vperm.xlu0 %3807, %v3757
        %v3809 = vpop.permute.xlu0 %3808
        %3812 = vset.pattern.permute.xlu0 0
        %3813 = vperm.xlu0 %3812, %v3759
        %v3814 = vpop.permute.xlu0 %3813
        %3817 = vset.pattern.permute.xlu0 0
        %3818 = vperm.xlu0 %3817, %v3761
        %v3819 = vpop.permute.xlu0 %3818
        %3822 = vset.pattern.permute.xlu0 0
        %3823 = vperm.xlu0 %3822, %v3763
        %v3824 = vpop.permute.xlu0 %3823
        %3827 = vset.pattern.permute.xlu0 0
        %3828 = vperm.xlu0 %3827, %v3765
        %v3829 = vpop.permute.xlu0 %3828
        %3832 = vset.pattern.permute.xlu0 0
        %3833 = vperm.xlu0 %3832, %v3767
        %v3834 = vpop.permute.xlu0 %3833
        %3837 = vset.pattern.permute.xlu0 0
        %3838 = vperm.xlu0 %3837, %v3769
        %v3839 = vpop.permute.xlu0 %3838
        %3842 = vset.pattern.permute.xlu0 0
        %3843 = vperm.xlu0 %3842, %v3771
        %v3844 = vpop.permute.xlu0 %3843
        %3847 = vset.pattern.permute.xlu0 0
        %3848 = vperm.xlu0 %3847, %v3773
        %v3849 = vpop.permute.xlu0 %3848
        %3852 = vset.pattern.permute.xlu0 0
        %3853 = vperm.xlu0 %3852, %v3775
        %v3854 = vpop.permute.xlu0 %3853
        %v3856 = vmul.f32 %v3779, %v1105
        %v3857 = vmul.f32 %v3784, %v1106
        %v3858 = vmul.f32 %v3789, %v1107
        %v3859 = vmul.f32 %v3794, %v1108
        %v3860 = vmul.f32 %v3799, %v1109
        %v3861 = vmul.f32 %v3804, %v1110
        %v3862 = vmul.f32 %v3809, %v1111
        %v3863 = vmul.f32 %v3814, %v1112
        %v3864 = vmul.f32 %v3819, %v1241
        %v3865 = vmul.f32 %v3824, %v1242
        %v3866 = vmul.f32 %v3829, %v1243
        %v3867 = vmul.f32 %v3834, %v1244
        %v3868 = vmul.f32 %v3839, %v1245
        %v3869 = vmul.f32 %v3844, %v1246
        %v3870 = vmul.f32 %v3849, %v1247
        %v3871 = vmul.f32 %v3854, %v1248
        %v3872 = vsel %vm1445, %v3856, 0.0
        %v3873 = vrot.slane %v3872, 4
        %v3874 = vadd.f32 %v3872, %v3873
        %v3875 = vrot.slane %v3874, 2
        %v3876 = vadd.f32 %v3874, %v3875
        %v3877 = vrot.slane %v3876, 1
        %v3878 = vadd.f32 %v3876, %v3877
        %v3879 = vsel %vm1445, %v3857, 0.0
        %v3880 = vrot.slane %v3879, 4
        %v3881 = vadd.f32 %v3879, %v3880
        %v3882 = vrot.slane %v3881, 2
        %v3883 = vadd.f32 %v3881, %v3882
        %v3884 = vrot.slane %v3883, 1
        %v3885 = vadd.f32 %v3883, %v3884
        %v3886 = vsel %vm1445, %v3858, 0.0
        %v3887 = vrot.slane %v3886, 4
        %v3888 = vadd.f32 %v3886, %v3887
        %v3889 = vrot.slane %v3888, 2
        %v3890 = vadd.f32 %v3888, %v3889
        %v3891 = vrot.slane %v3890, 1
        %v3892 = vadd.f32 %v3890, %v3891
        %v3893 = vsel %vm1445, %v3859, 0.0
        %v3894 = vrot.slane %v3893, 4
        %v3895 = vadd.f32 %v3893, %v3894
        %v3896 = vrot.slane %v3895, 2
        %v3897 = vadd.f32 %v3895, %v3896
        %v3898 = vrot.slane %v3897, 1
        %v3899 = vadd.f32 %v3897, %v3898
        %v3900 = vsel %vm1445, %v3860, 0.0
        %v3901 = vrot.slane %v3900, 4
        %v3902 = vadd.f32 %v3900, %v3901
        %v3903 = vrot.slane %v3902, 2
        %v3904 = vadd.f32 %v3902, %v3903
        %v3905 = vrot.slane %v3904, 1
        %v3906 = vadd.f32 %v3904, %v3905
        %v3907 = vsel %vm1445, %v3861, 0.0
        %v3908 = vrot.slane %v3907, 4
        %v3909 = vadd.f32 %v3907, %v3908
        %v3910 = vrot.slane %v3909, 2
        %v3911 = vadd.f32 %v3909, %v3910
        %v3912 = vrot.slane %v3911, 1
        %v3913 = vadd.f32 %v3911, %v3912
        %v3914 = vsel %vm1445, %v3862, 0.0
        %v3915 = vrot.slane %v3914, 4
        %v3916 = vadd.f32 %v3914, %v3915
        %v3917 = vrot.slane %v3916, 2
        %v3918 = vadd.f32 %v3916, %v3917
        %v3919 = vrot.slane %v3918, 1
        %v3920 = vadd.f32 %v3918, %v3919
        %v3921 = vsel %vm1445, %v3863, 0.0
        %v3922 = vrot.slane %v3921, 4
        %v3923 = vadd.f32 %v3921, %v3922
        %v3924 = vrot.slane %v3923, 2
        %v3925 = vadd.f32 %v3923, %v3924
        %v3926 = vrot.slane %v3925, 1
        %v3927 = vadd.f32 %v3925, %v3926
        %v3928 = vsel %vm1445, %v3864, 0.0
        %v3929 = vrot.slane %v3928, 4
        %v3930 = vadd.f32 %v3928, %v3929
        %v3931 = vrot.slane %v3930, 2
        %v3932 = vadd.f32 %v3930, %v3931
        %v3933 = vrot.slane %v3932, 1
        %v3934 = vadd.f32 %v3932, %v3933
        %v3935 = vsel %vm1445, %v3865, 0.0
        %v3936 = vrot.slane %v3935, 4
        %v3937 = vadd.f32 %v3935, %v3936
        %v3938 = vrot.slane %v3937, 2
        %v3939 = vadd.f32 %v3937, %v3938
        %v3940 = vrot.slane %v3939, 1
        %v3941 = vadd.f32 %v3939, %v3940
        %v3942 = vsel %vm1445, %v3866, 0.0
        %v3943 = vrot.slane %v3942, 4
        %v3944 = vadd.f32 %v3942, %v3943
        %v3945 = vrot.slane %v3944, 2
        %v3946 = vadd.f32 %v3944, %v3945
        %v3947 = vrot.slane %v3946, 1
        %v3948 = vadd.f32 %v3946, %v3947
        %v3949 = vsel %vm1445, %v3867, 0.0
        %v3950 = vrot.slane %v3949, 4
        %v3951 = vadd.f32 %v3949, %v3950
        %v3952 = vrot.slane %v3951, 2
        %v3953 = vadd.f32 %v3951, %v3952
        %v3954 = vrot.slane %v3953, 1
        %v3955 = vadd.f32 %v3953, %v3954
        %v3956 = vsel %vm1445, %v3868, 0.0
        %v3957 = vrot.slane %v3956, 4
        %v3958 = vadd.f32 %v3956, %v3957
        %v3959 = vrot.slane %v3958, 2
        %v3960 = vadd.f32 %v3958, %v3959
        %v3961 = vrot.slane %v3960, 1
        %v3962 = vadd.f32 %v3960, %v3961
        %v3963 = vsel %vm1445, %v3869, 0.0
        %v3964 = vrot.slane %v3963, 4
        %v3965 = vadd.f32 %v3963, %v3964
        %v3966 = vrot.slane %v3965, 2
        %v3967 = vadd.f32 %v3965, %v3966
        %v3968 = vrot.slane %v3967, 1
        %v3969 = vadd.f32 %v3967, %v3968
        %v3970 = vsel %vm1445, %v3870, 0.0
        %v3971 = vrot.slane %v3970, 4
        %v3972 = vadd.f32 %v3970, %v3971
        %v3973 = vrot.slane %v3972, 2
        %v3974 = vadd.f32 %v3972, %v3973
        %v3975 = vrot.slane %v3974, 1
        %v3976 = vadd.f32 %v3974, %v3975
        %v3977 = vsel %vm1445, %v3871, 0.0
        %v3978 = vrot.slane %v3977, 4
        %v3979 = vadd.f32 %v3977, %v3978
        %v3980 = vrot.slane %v3979, 2
        %v3981 = vadd.f32 %v3979, %v3980
        %v3982 = vrot.slane %v3981, 1
        %v3983 = vadd.f32 %v3981, %v3982
        %3984 = vrot.lane.b32.xlu0 %v785, 12
        %v3985 = vpop.permute.xlu0 %3984
        %3986 = vrot.lane.b32.xlu0 %v786, 12
        %v3987 = vpop.permute.xlu0 %3986
        %3988 = vrot.lane.b32.xlu0 %v787, 12
        %v3989 = vpop.permute.xlu0 %3988
        %3990 = vrot.lane.b32.xlu0 %v788, 12
        %v3991 = vpop.permute.xlu0 %3990
        %3992 = vrot.lane.b32.xlu0 %v789, 12
        %v3993 = vpop.permute.xlu0 %3992
        %3994 = vrot.lane.b32.xlu0 %v790, 12
        %v3995 = vpop.permute.xlu0 %3994
        %3996 = vrot.lane.b32.xlu0 %v791, 12
        %v3997 = vpop.permute.xlu0 %3996
        %3998 = vrot.lane.b32.xlu0 %v792, 12
        %v3999 = vpop.permute.xlu0 %3998
        %4000 = vrot.lane.b32.xlu0 %v921, 12
        %v4001 = vpop.permute.xlu0 %4000
        %4002 = vrot.lane.b32.xlu0 %v922, 12
        %v4003 = vpop.permute.xlu0 %4002
        %4004 = vrot.lane.b32.xlu0 %v923, 12
        %v4005 = vpop.permute.xlu0 %4004
        %4006 = vrot.lane.b32.xlu0 %v924, 12
        %v4007 = vpop.permute.xlu0 %4006
        %4008 = vrot.lane.b32.xlu0 %v925, 12
        %v4009 = vpop.permute.xlu0 %4008
        %4010 = vrot.lane.b32.xlu0 %v926, 12
        %v4011 = vpop.permute.xlu0 %4010
        %4012 = vrot.lane.b32.xlu0 %v927, 12
        %v4013 = vpop.permute.xlu0 %4012
        %4014 = vrot.lane.b32.xlu0 %v928, 12
        %v4015 = vpop.permute.xlu0 %4014
        %v4032 = vmul.f32 %v1352, %v3985
        %v4033 = vmul.f32 %v1356, %v3987
        %v4034 = vmul.f32 %v1360, %v3989
        %v4035 = vmul.f32 %v1364, %v3991
        %v4036 = vmul.f32 %v1368, %v3993
        %v4037 = vmul.f32 %v1372, %v3995
        %v4038 = vmul.f32 %v1376, %v3997
        %v4039 = vmul.f32 %v1380, %v3999
        %v4040 = vmul.f32 %v1384, %v4001
        %v4041 = vmul.f32 %v1388, %v4003
        %v4042 = vmul.f32 %v1392, %v4005
        %v4043 = vmul.f32 %v1396, %v4007
        %v4044 = vmul.f32 %v1400, %v4009
        %v4045 = vmul.f32 %v1404, %v4011
        %v4046 = vmul.f32 %v1408, %v4013
        %v4047 = vmul.f32 %v1412, %v4015
        %4064 = vrot.lane.b32.xlu0 %v4032, 116
        %v4065 = vpop.permute.xlu0 %4064
        %4066 = vrot.lane.b32.xlu0 %v4033, 116
        %v4067 = vpop.permute.xlu0 %4066
        %4068 = vrot.lane.b32.xlu0 %v4034, 116
        %v4069 = vpop.permute.xlu0 %4068
        %4070 = vrot.lane.b32.xlu0 %v4035, 116
        %v4071 = vpop.permute.xlu0 %4070
        %4072 = vrot.lane.b32.xlu0 %v4036, 116
        %v4073 = vpop.permute.xlu0 %4072
        %4074 = vrot.lane.b32.xlu0 %v4037, 116
        %v4075 = vpop.permute.xlu0 %4074
        %4076 = vrot.lane.b32.xlu0 %v4038, 116
        %v4077 = vpop.permute.xlu0 %4076
        %4078 = vrot.lane.b32.xlu0 %v4039, 116
        %v4079 = vpop.permute.xlu0 %4078
        %4080 = vrot.lane.b32.xlu0 %v4040, 116
        %v4081 = vpop.permute.xlu0 %4080
        %4082 = vrot.lane.b32.xlu0 %v4041, 116
        %v4083 = vpop.permute.xlu0 %4082
        %4084 = vrot.lane.b32.xlu0 %v4042, 116
        %v4085 = vpop.permute.xlu0 %4084
        %4086 = vrot.lane.b32.xlu0 %v4043, 116
        %v4087 = vpop.permute.xlu0 %4086
        %4088 = vrot.lane.b32.xlu0 %v4044, 116
        %v4089 = vpop.permute.xlu0 %4088
        %4090 = vrot.lane.b32.xlu0 %v4045, 116
        %v4091 = vpop.permute.xlu0 %4090
        %4092 = vrot.lane.b32.xlu0 %v4046, 116
        %v4093 = vpop.permute.xlu0 %4092
        %4094 = vrot.lane.b32.xlu0 %v4047, 116
        %v4095 = vpop.permute.xlu0 %4094
        %v4112 = vsel %vm1445, %v4065, 0.0
        %4113 = vadd.xlane.f32.xlu0 %v4112
        %v4114 = vpop.xlane.xlu0 %4113
        %v4115 = vsel %vm1445, %v4067, 0.0
        %4116 = vadd.xlane.f32.xlu0 %v4115
        %v4117 = vpop.xlane.xlu0 %4116
        %v4118 = vsel %vm1445, %v4069, 0.0
        %4119 = vadd.xlane.f32.xlu0 %v4118
        %v4120 = vpop.xlane.xlu0 %4119
        %v4121 = vsel %vm1445, %v4071, 0.0
        %4122 = vadd.xlane.f32.xlu0 %v4121
        %v4123 = vpop.xlane.xlu0 %4122
        %v4124 = vsel %vm1445, %v4073, 0.0
        %4125 = vadd.xlane.f32.xlu0 %v4124
        %v4126 = vpop.xlane.xlu0 %4125
        %v4127 = vsel %vm1445, %v4075, 0.0
        %4128 = vadd.xlane.f32.xlu0 %v4127
        %v4129 = vpop.xlane.xlu0 %4128
        %v4130 = vsel %vm1445, %v4077, 0.0
        %4131 = vadd.xlane.f32.xlu0 %v4130
        %v4132 = vpop.xlane.xlu0 %4131
        %v4133 = vsel %vm1445, %v4079, 0.0
        %4134 = vadd.xlane.f32.xlu0 %v4133
        %v4135 = vpop.xlane.xlu0 %4134
        %v4136 = vsel %vm1445, %v4081, 0.0
        %4137 = vadd.xlane.f32.xlu0 %v4136
        %v4138 = vpop.xlane.xlu0 %4137
        %v4139 = vsel %vm1445, %v4083, 0.0
        %4140 = vadd.xlane.f32.xlu0 %v4139
        %v4141 = vpop.xlane.xlu0 %4140
        %v4142 = vsel %vm1445, %v4085, 0.0
        %4143 = vadd.xlane.f32.xlu0 %v4142
        %v4144 = vpop.xlane.xlu0 %4143
        %v4145 = vsel %vm1445, %v4087, 0.0
        %4146 = vadd.xlane.f32.xlu0 %v4145
        %v4147 = vpop.xlane.xlu0 %4146
        %v4148 = vsel %vm1445, %v4089, 0.0
        %4149 = vadd.xlane.f32.xlu0 %v4148
        %v4150 = vpop.xlane.xlu0 %4149
        %v4151 = vsel %vm1445, %v4091, 0.0
        %4152 = vadd.xlane.f32.xlu0 %v4151
        %v4153 = vpop.xlane.xlu0 %4152
        %v4154 = vsel %vm1445, %v4093, 0.0
        %4155 = vadd.xlane.f32.xlu0 %v4154
        %v4156 = vpop.xlane.xlu0 %4155
        %v4157 = vsel %vm1445, %v4095, 0.0
        %4158 = vadd.xlane.f32.xlu0 %v4157
        %v4159 = vpop.xlane.xlu0 %4158
        %v4176 = vlaneseq
        %v4177 = vshrl.u32 %v4176, 7
        %v4178 = vsub.s32 %v1511, %v4177
        %v4179 = vrot.slane %v4114, %v4178
        %v4180 = vlaneseq
        %v4181 = vshrl.u32 %v4180, 7
        %v4182 = vsub.s32 %v1511, %v4181
        %v4183 = vrot.slane %v4117, %v4182
        %v4184 = vlaneseq
        %v4185 = vshrl.u32 %v4184, 7
        %v4186 = vsub.s32 %v1511, %v4185
        %v4187 = vrot.slane %v4120, %v4186
        %v4188 = vlaneseq
        %v4189 = vshrl.u32 %v4188, 7
        %v4190 = vsub.s32 %v1511, %v4189
        %v4191 = vrot.slane %v4123, %v4190
        %v4192 = vlaneseq
        %v4193 = vshrl.u32 %v4192, 7
        %v4194 = vsub.s32 %v1511, %v4193
        %v4195 = vrot.slane %v4126, %v4194
        %v4196 = vlaneseq
        %v4197 = vshrl.u32 %v4196, 7
        %v4198 = vsub.s32 %v1511, %v4197
        %v4199 = vrot.slane %v4129, %v4198
        %v4200 = vlaneseq
        %v4201 = vshrl.u32 %v4200, 7
        %v4202 = vsub.s32 %v1511, %v4201
        %v4203 = vrot.slane %v4132, %v4202
        %v4204 = vlaneseq
        %v4205 = vshrl.u32 %v4204, 7
        %v4206 = vsub.s32 %v1511, %v4205
        %v4207 = vrot.slane %v4135, %v4206
        %v4208 = vlaneseq
        %v4209 = vshrl.u32 %v4208, 7
        %v4210 = vsub.s32 %v1511, %v4209
        %v4211 = vrot.slane %v4138, %v4210
        %v4212 = vlaneseq
        %v4213 = vshrl.u32 %v4212, 7
        %v4214 = vsub.s32 %v1511, %v4213
        %v4215 = vrot.slane %v4141, %v4214
        %v4216 = vlaneseq
        %v4217 = vshrl.u32 %v4216, 7
        %v4218 = vsub.s32 %v1511, %v4217
        %v4219 = vrot.slane %v4144, %v4218
        %v4220 = vlaneseq
        %v4221 = vshrl.u32 %v4220, 7
        %v4222 = vsub.s32 %v1511, %v4221
        %v4223 = vrot.slane %v4147, %v4222
        %v4224 = vlaneseq
        %v4225 = vshrl.u32 %v4224, 7
        %v4226 = vsub.s32 %v1511, %v4225
        %v4227 = vrot.slane %v4150, %v4226
        %v4228 = vlaneseq
        %v4229 = vshrl.u32 %v4228, 7
        %v4230 = vsub.s32 %v1511, %v4229
        %v4231 = vrot.slane %v4153, %v4230
        %v4232 = vlaneseq
        %v4233 = vshrl.u32 %v4232, 7
        %v4234 = vsub.s32 %v1511, %v4233
        %v4235 = vrot.slane %v4156, %v4234
        %v4236 = vlaneseq
        %v4237 = vshrl.u32 %v4236, 7
        %v4238 = vsub.s32 %v1511, %v4237
        %v4239 = vrot.slane %v4159, %v4238
        %v4240 = vsel %vm1576, %v4183, %v4179
        %v4241 = vsel %vm1578, %v4187, %v4240
        %v4242 = vsel %vm1580, %v4191, %v4241
        %v4243 = vsel %vm1582, %v4195, %v4242
        %v4244 = vsel %vm1584, %v4199, %v4243
        %v4245 = vsel %vm1586, %v4203, %v4244
        %v4246 = vsel %vm1588, %v4207, %v4245
        %v4247 = vsel %vm1576, %v4215, %v4211
        %v4248 = vsel %vm1578, %v4219, %v4247
        %v4249 = vsel %vm1580, %v4223, %v4248
        %v4250 = vsel %vm1582, %v4227, %v4249
        %v4251 = vsel %vm1584, %v4231, %v4250
        %v4252 = vsel %vm1586, %v4235, %v4251
        %v4253 = vsel %vm1588, %v4239, %v4252
        %v4256 = vsel %vm1599, %v4246, -inf
        %4257 = vmax.xlane.f32.xlu0 %v4256
        %v4258 = vpop.xlane.xlu0 %4257
        %v4259 = vsel %vm1599, %v4253, -inf
        %4260 = vmax.xlane.f32.xlu0 %v4259
        %v4261 = vpop.xlane.xlu0 %4260
        %v4264 = vlaneseq
        %v4265 = vshrl.u32 %v4264, 7
        %v4266 = vsub.s32 0, %v4265
        %v4267 = vrot.slane %v4258, %v4266
        %v4268 = vlaneseq
        %v4269 = vshrl.u32 %v4268, 7
        %v4270 = vsub.s32 1, %v4269
        %v4271 = vrot.slane %v4258, %v4270
        %v4272 = vlaneseq
        %v4273 = vshrl.u32 %v4272, 7
        %v4274 = vsub.s32 2, %v4273
        %v4275 = vrot.slane %v4258, %v4274
        %v4276 = vlaneseq
        %v4277 = vshrl.u32 %v4276, 7
        %v4278 = vsub.s32 3, %v4277
        %v4279 = vrot.slane %v4258, %v4278
        %v4280 = vlaneseq
        %v4281 = vshrl.u32 %v4280, 7
        %v4282 = vsub.s32 4, %v4281
        %v4283 = vrot.slane %v4258, %v4282
        %v4284 = vlaneseq
        %v4285 = vshrl.u32 %v4284, 7
        %v4286 = vsub.s32 5, %v4285
        %v4287 = vrot.slane %v4258, %v4286
        %v4288 = vlaneseq
        %v4289 = vshrl.u32 %v4288, 7
        %v4290 = vsub.s32 6, %v4289
        %v4291 = vrot.slane %v4258, %v4290
        %v4292 = vlaneseq
        %v4293 = vshrl.u32 %v4292, 7
        %v4294 = vsub.s32 7, %v4293
        %v4295 = vrot.slane %v4258, %v4294
        %v4296 = vlaneseq
        %v4297 = vshrl.u32 %v4296, 7
        %v4298 = vsub.s32 0, %v4297
        %v4299 = vrot.slane %v4261, %v4298
        %v4300 = vlaneseq
        %v4301 = vshrl.u32 %v4300, 7
        %v4302 = vsub.s32 1, %v4301
        %v4303 = vrot.slane %v4261, %v4302
        %v4304 = vlaneseq
        %v4305 = vshrl.u32 %v4304, 7
        %v4306 = vsub.s32 2, %v4305
        %v4307 = vrot.slane %v4261, %v4306
        %v4308 = vlaneseq
        %v4309 = vshrl.u32 %v4308, 7
        %v4310 = vsub.s32 3, %v4309
        %v4311 = vrot.slane %v4261, %v4310
        %v4312 = vlaneseq
        %v4313 = vshrl.u32 %v4312, 7
        %v4314 = vsub.s32 4, %v4313
        %v4315 = vrot.slane %v4261, %v4314
        %v4316 = vlaneseq
        %v4317 = vshrl.u32 %v4316, 7
        %v4318 = vsub.s32 5, %v4317
        %v4319 = vrot.slane %v4261, %v4318
        %v4320 = vlaneseq
        %v4321 = vshrl.u32 %v4320, 7
        %v4322 = vsub.s32 6, %v4321
        %v4323 = vrot.slane %v4261, %v4322
        %v4324 = vlaneseq
        %v4325 = vshrl.u32 %v4324, 7
        %v4326 = vsub.s32 7, %v4325
        %v4327 = vrot.slane %v4261, %v4326
        %v4344 = vsub.f32 %v4114, %v4267
        %v4345 = vsub.f32 %v4117, %v4271
        %v4346 = vsub.f32 %v4120, %v4275
        %v4347 = vsub.f32 %v4123, %v4279
        %v4348 = vsub.f32 %v4126, %v4283
        %v4349 = vsub.f32 %v4129, %v4287
        %v4350 = vsub.f32 %v4132, %v4291
        %v4351 = vsub.f32 %v4135, %v4295
        %v4352 = vsub.f32 %v4138, %v4299
        %v4353 = vsub.f32 %v4141, %v4303
        %v4354 = vsub.f32 %v4144, %v4307
        %v4355 = vsub.f32 %v4147, %v4311
        %v4356 = vsub.f32 %v4150, %v4315
        %v4357 = vsub.f32 %v4153, %v4319
        %v4358 = vsub.f32 %v4156, %v4323
        %v4359 = vsub.f32 %v4159, %v4327
        %v4360 = vmul.f32 %v4344, 1.442695
        %v4361 = vpow.pop %v4360
        %v4362 = vmul.f32 %v4345, 1.442695
        %v4363 = vpow.pop %v4362
        %v4364 = vmul.f32 %v4346, 1.442695
        %v4365 = vpow.pop %v4364
        %v4366 = vmul.f32 %v4347, 1.442695
        %v4367 = vpow.pop %v4366
        %v4368 = vmul.f32 %v4348, 1.442695
        %v4369 = vpow.pop %v4368
        %v4370 = vmul.f32 %v4349, 1.442695
        %v4371 = vpow.pop %v4370
        %v4372 = vmul.f32 %v4350, 1.442695
        %v4373 = vpow.pop %v4372
        %v4374 = vmul.f32 %v4351, 1.442695
        %v4375 = vpow.pop %v4374
        %v4376 = vmul.f32 %v4352, 1.442695
        %v4377 = vpow.pop %v4376
        %v4378 = vmul.f32 %v4353, 1.442695
        %v4379 = vpow.pop %v4378
        %v4380 = vmul.f32 %v4354, 1.442695
        %v4381 = vpow.pop %v4380
        %v4382 = vmul.f32 %v4355, 1.442695
        %v4383 = vpow.pop %v4382
        %v4384 = vmul.f32 %v4356, 1.442695
        %v4385 = vpow.pop %v4384
        %v4386 = vmul.f32 %v4357, 1.442695
        %v4387 = vpow.pop %v4386
        %v4388 = vmul.f32 %v4358, 1.442695
        %v4389 = vpow.pop %v4388
        %v4390 = vmul.f32 %v4359, 1.442695
        %v4391 = vpow.pop %v4390
        %4408 = vset.pattern.permute.xlu0 0
        %4409 = vperm.xlu0 %4408, %v4361
        %v4410 = vpop.permute.xlu0 %4409
        %4411 = vset.pattern.permute.xlu0 0
        %4412 = vperm.xlu0 %4411, %v4363
        %v4413 = vpop.permute.xlu0 %4412
        %4414 = vset.pattern.permute.xlu0 0
        %4415 = vperm.xlu0 %4414, %v4365
        %v4416 = vpop.permute.xlu0 %4415
        %4417 = vset.pattern.permute.xlu0 0
        %4418 = vperm.xlu0 %4417, %v4367
        %v4419 = vpop.permute.xlu0 %4418
        %4420 = vset.pattern.permute.xlu0 0
        %4421 = vperm.xlu0 %4420, %v4369
        %v4422 = vpop.permute.xlu0 %4421
        %4423 = vset.pattern.permute.xlu0 0
        %4424 = vperm.xlu0 %4423, %v4371
        %v4425 = vpop.permute.xlu0 %4424
        %4426 = vset.pattern.permute.xlu0 0
        %4427 = vperm.xlu0 %4426, %v4373
        %v4428 = vpop.permute.xlu0 %4427
        %4429 = vset.pattern.permute.xlu0 0
        %4430 = vperm.xlu0 %4429, %v4375
        %v4431 = vpop.permute.xlu0 %4430
        %4432 = vset.pattern.permute.xlu0 0
        %4433 = vperm.xlu0 %4432, %v4377
        %v4434 = vpop.permute.xlu0 %4433
        %4435 = vset.pattern.permute.xlu0 0
        %4436 = vperm.xlu0 %4435, %v4379
        %v4437 = vpop.permute.xlu0 %4436
        %4438 = vset.pattern.permute.xlu0 0
        %4439 = vperm.xlu0 %4438, %v4381
        %v4440 = vpop.permute.xlu0 %4439
        %4441 = vset.pattern.permute.xlu0 0
        %4442 = vperm.xlu0 %4441, %v4383
        %v4443 = vpop.permute.xlu0 %4442
        %4444 = vset.pattern.permute.xlu0 0
        %4445 = vperm.xlu0 %4444, %v4385
        %v4446 = vpop.permute.xlu0 %4445
        %4447 = vset.pattern.permute.xlu0 0
        %4448 = vperm.xlu0 %4447, %v4387
        %v4449 = vpop.permute.xlu0 %4448
        %4450 = vset.pattern.permute.xlu0 0
        %4451 = vperm.xlu0 %4450, %v4389
        %v4452 = vpop.permute.xlu0 %4451
        %4453 = vset.pattern.permute.xlu0 0
        %4454 = vperm.xlu0 %4453, %v4391
        %v4455 = vpop.permute.xlu0 %4454
        %v4456 = vlaneseq
        %v4457 = vshrl.u32 %v4456, 7
        %v4458 = vsub.s32 %v1511, %v4457
        %v4459 = vrot.slane %v4410, %v4458
        %v4460 = vlaneseq
        %v4461 = vshrl.u32 %v4460, 7
        %v4462 = vsub.s32 %v1511, %v4461
        %v4463 = vrot.slane %v4413, %v4462
        %v4464 = vlaneseq
        %v4465 = vshrl.u32 %v4464, 7
        %v4466 = vsub.s32 %v1511, %v4465
        %v4467 = vrot.slane %v4416, %v4466
        %v4468 = vlaneseq
        %v4469 = vshrl.u32 %v4468, 7
        %v4470 = vsub.s32 %v1511, %v4469
        %v4471 = vrot.slane %v4419, %v4470
        %v4472 = vlaneseq
        %v4473 = vshrl.u32 %v4472, 7
        %v4474 = vsub.s32 %v1511, %v4473
        %v4475 = vrot.slane %v4422, %v4474
        %v4476 = vlaneseq
        %v4477 = vshrl.u32 %v4476, 7
        %v4478 = vsub.s32 %v1511, %v4477
        %v4479 = vrot.slane %v4425, %v4478
        %v4480 = vlaneseq
        %v4481 = vshrl.u32 %v4480, 7
        %v4482 = vsub.s32 %v1511, %v4481
        %v4483 = vrot.slane %v4428, %v4482
        %v4484 = vlaneseq
        %v4485 = vshrl.u32 %v4484, 7
        %v4486 = vsub.s32 %v1511, %v4485
        %v4487 = vrot.slane %v4431, %v4486
        %v4488 = vlaneseq
        %v4489 = vshrl.u32 %v4488, 7
        %v4490 = vsub.s32 %v1511, %v4489
        %v4491 = vrot.slane %v4434, %v4490
        %v4492 = vlaneseq
        %v4493 = vshrl.u32 %v4492, 7
        %v4494 = vsub.s32 %v1511, %v4493
        %v4495 = vrot.slane %v4437, %v4494
        %v4496 = vlaneseq
        %v4497 = vshrl.u32 %v4496, 7
        %v4498 = vsub.s32 %v1511, %v4497
        %v4499 = vrot.slane %v4440, %v4498
        %v4500 = vlaneseq
        %v4501 = vshrl.u32 %v4500, 7
        %v4502 = vsub.s32 %v1511, %v4501
        %v4503 = vrot.slane %v4443, %v4502
        %v4504 = vlaneseq
        %v4505 = vshrl.u32 %v4504, 7
        %v4506 = vsub.s32 %v1511, %v4505
        %v4507 = vrot.slane %v4446, %v4506
        %v4508 = vlaneseq
        %v4509 = vshrl.u32 %v4508, 7
        %v4510 = vsub.s32 %v1511, %v4509
        %v4511 = vrot.slane %v4449, %v4510
        %v4512 = vlaneseq
        %v4513 = vshrl.u32 %v4512, 7
        %v4514 = vsub.s32 %v1511, %v4513
        %v4515 = vrot.slane %v4452, %v4514
        %v4516 = vlaneseq
        %v4517 = vshrl.u32 %v4516, 7
        %v4518 = vsub.s32 %v1511, %v4517
        %v4519 = vrot.slane %v4455, %v4518
        %v4520 = vsel %vm1576, %v4463, %v4459
        %v4521 = vsel %vm1578, %v4467, %v4520
        %v4522 = vsel %vm1580, %v4471, %v4521
        %v4523 = vsel %vm1582, %v4475, %v4522
        %v4524 = vsel %vm1584, %v4479, %v4523
        %v4525 = vsel %vm1586, %v4483, %v4524
        %v4526 = vsel %vm1588, %v4487, %v4525
        %v4527 = vsel %vm1576, %v4495, %v4491
        %v4528 = vsel %vm1578, %v4499, %v4527
        %v4529 = vsel %vm1580, %v4503, %v4528
        %v4530 = vsel %vm1582, %v4507, %v4529
        %v4531 = vsel %vm1584, %v4511, %v4530
        %v4532 = vsel %vm1586, %v4515, %v4531
        %v4533 = vsel %vm1588, %v4519, %v4532
        %v4536 = vsel %vm1599, %v4526, 0.0
        %4537 = vadd.xlane.f32.xlu0 %v4536
        %v4538 = vpop.xlane.xlu0 %4537
        %v4539 = vsel %vm1599, %v4533, 0.0
        %4540 = vadd.xlane.f32.xlu0 %v4539
        %v4541 = vpop.xlane.xlu0 %4540
        %v4544 = vlaneseq
        %v4545 = vshrl.u32 %v4544, 7
        %v4546 = vsub.s32 0, %v4545
        %v4547 = vrot.slane %v4538, %v4546
        %v4548 = vlaneseq
        %v4549 = vshrl.u32 %v4548, 7
        %v4550 = vsub.s32 1, %v4549
        %v4551 = vrot.slane %v4538, %v4550
        %v4552 = vlaneseq
        %v4553 = vshrl.u32 %v4552, 7
        %v4554 = vsub.s32 2, %v4553
        %v4555 = vrot.slane %v4538, %v4554
        %v4556 = vlaneseq
        %v4557 = vshrl.u32 %v4556, 7
        %v4558 = vsub.s32 3, %v4557
        %v4559 = vrot.slane %v4538, %v4558
        %v4560 = vlaneseq
        %v4561 = vshrl.u32 %v4560, 7
        %v4562 = vsub.s32 4, %v4561
        %v4563 = vrot.slane %v4538, %v4562
        %v4564 = vlaneseq
        %v4565 = vshrl.u32 %v4564, 7
        %v4566 = vsub.s32 5, %v4565
        %v4567 = vrot.slane %v4538, %v4566
        %v4568 = vlaneseq
        %v4569 = vshrl.u32 %v4568, 7
        %v4570 = vsub.s32 6, %v4569
        %v4571 = vrot.slane %v4538, %v4570
        %v4572 = vlaneseq
        %v4573 = vshrl.u32 %v4572, 7
        %v4574 = vsub.s32 7, %v4573
        %v4575 = vrot.slane %v4538, %v4574
        %v4576 = vlaneseq
        %v4577 = vshrl.u32 %v4576, 7
        %v4578 = vsub.s32 0, %v4577
        %v4579 = vrot.slane %v4541, %v4578
        %v4580 = vlaneseq
        %v4581 = vshrl.u32 %v4580, 7
        %v4582 = vsub.s32 1, %v4581
        %v4583 = vrot.slane %v4541, %v4582
        %v4584 = vlaneseq
        %v4585 = vshrl.u32 %v4584, 7
        %v4586 = vsub.s32 2, %v4585
        %v4587 = vrot.slane %v4541, %v4586
        %v4588 = vlaneseq
        %v4589 = vshrl.u32 %v4588, 7
        %v4590 = vsub.s32 3, %v4589
        %v4591 = vrot.slane %v4541, %v4590
        %v4592 = vlaneseq
        %v4593 = vshrl.u32 %v4592, 7
        %v4594 = vsub.s32 4, %v4593
        %v4595 = vrot.slane %v4541, %v4594
        %v4596 = vlaneseq
        %v4597 = vshrl.u32 %v4596, 7
        %v4598 = vsub.s32 5, %v4597
        %v4599 = vrot.slane %v4541, %v4598
        %v4600 = vlaneseq
        %v4601 = vshrl.u32 %v4600, 7
        %v4602 = vsub.s32 6, %v4601
        %v4603 = vrot.slane %v4541, %v4602
        %v4604 = vlaneseq
        %v4605 = vshrl.u32 %v4604, 7
        %v4606 = vsub.s32 7, %v4605
        %v4607 = vrot.slane %v4541, %v4606
        %v4624 = vrcp.pop %v4547
        %v4625 = vmul.f32 %v4361, %v4624
        %v4626 = vrcp.pop %v4551
        %v4627 = vmul.f32 %v4363, %v4626
        %v4628 = vrcp.pop %v4555
        %v4629 = vmul.f32 %v4365, %v4628
        %v4630 = vrcp.pop %v4559
        %v4631 = vmul.f32 %v4367, %v4630
        %v4632 = vrcp.pop %v4563
        %v4633 = vmul.f32 %v4369, %v4632
        %v4634 = vrcp.pop %v4567
        %v4635 = vmul.f32 %v4371, %v4634
        %v4636 = vrcp.pop %v4571
        %v4637 = vmul.f32 %v4373, %v4636
        %v4638 = vrcp.pop %v4575
        %v4639 = vmul.f32 %v4375, %v4638
        %v4640 = vrcp.pop %v4579
        %v4641 = vmul.f32 %v4377, %v4640
        %v4642 = vrcp.pop %v4583
        %v4643 = vmul.f32 %v4379, %v4642
        %v4644 = vrcp.pop %v4587
        %v4645 = vmul.f32 %v4381, %v4644
        %v4646 = vrcp.pop %v4591
        %v4647 = vmul.f32 %v4383, %v4646
        %v4648 = vrcp.pop %v4595
        %v4649 = vmul.f32 %v4385, %v4648
        %v4650 = vrcp.pop %v4599
        %v4651 = vmul.f32 %v4387, %v4650
        %v4652 = vrcp.pop %v4603
        %v4653 = vmul.f32 %v4389, %v4652
        %v4654 = vrcp.pop %v4607
        %v4655 = vmul.f32 %v4391, %v4654
        %4657 = vset.pattern.permute.xlu0 0
        %4658 = vperm.xlu0 %4657, %v4625
        %v4659 = vpop.permute.xlu0 %4658
        %4662 = vset.pattern.permute.xlu0 0
        %4663 = vperm.xlu0 %4662, %v4627
        %v4664 = vpop.permute.xlu0 %4663
        %4667 = vset.pattern.permute.xlu0 0
        %4668 = vperm.xlu0 %4667, %v4629
        %v4669 = vpop.permute.xlu0 %4668
        %4672 = vset.pattern.permute.xlu0 0
        %4673 = vperm.xlu0 %4672, %v4631
        %v4674 = vpop.permute.xlu0 %4673
        %4677 = vset.pattern.permute.xlu0 0
        %4678 = vperm.xlu0 %4677, %v4633
        %v4679 = vpop.permute.xlu0 %4678
        %4682 = vset.pattern.permute.xlu0 0
        %4683 = vperm.xlu0 %4682, %v4635
        %v4684 = vpop.permute.xlu0 %4683
        %4687 = vset.pattern.permute.xlu0 0
        %4688 = vperm.xlu0 %4687, %v4637
        %v4689 = vpop.permute.xlu0 %4688
        %4692 = vset.pattern.permute.xlu0 0
        %4693 = vperm.xlu0 %4692, %v4639
        %v4694 = vpop.permute.xlu0 %4693
        %4697 = vset.pattern.permute.xlu0 0
        %4698 = vperm.xlu0 %4697, %v4641
        %v4699 = vpop.permute.xlu0 %4698
        %4702 = vset.pattern.permute.xlu0 0
        %4703 = vperm.xlu0 %4702, %v4643
        %v4704 = vpop.permute.xlu0 %4703
        %4707 = vset.pattern.permute.xlu0 0
        %4708 = vperm.xlu0 %4707, %v4645
        %v4709 = vpop.permute.xlu0 %4708
        %4712 = vset.pattern.permute.xlu0 0
        %4713 = vperm.xlu0 %4712, %v4647
        %v4714 = vpop.permute.xlu0 %4713
        %4717 = vset.pattern.permute.xlu0 0
        %4718 = vperm.xlu0 %4717, %v4649
        %v4719 = vpop.permute.xlu0 %4718
        %4722 = vset.pattern.permute.xlu0 0
        %4723 = vperm.xlu0 %4722, %v4651
        %v4724 = vpop.permute.xlu0 %4723
        %4727 = vset.pattern.permute.xlu0 0
        %4728 = vperm.xlu0 %4727, %v4653
        %v4729 = vpop.permute.xlu0 %4728
        %4732 = vset.pattern.permute.xlu0 0
        %4733 = vperm.xlu0 %4732, %v4655
        %v4734 = vpop.permute.xlu0 %4733
        %v4736 = vmul.f32 %v4659, %v1105
        %v4737 = vmul.f32 %v4664, %v1106
        %v4738 = vmul.f32 %v4669, %v1107
        %v4739 = vmul.f32 %v4674, %v1108
        %v4740 = vmul.f32 %v4679, %v1109
        %v4741 = vmul.f32 %v4684, %v1110
        %v4742 = vmul.f32 %v4689, %v1111
        %v4743 = vmul.f32 %v4694, %v1112
        %v4744 = vmul.f32 %v4699, %v1241
        %v4745 = vmul.f32 %v4704, %v1242
        %v4746 = vmul.f32 %v4709, %v1243
        %v4747 = vmul.f32 %v4714, %v1244
        %v4748 = vmul.f32 %v4719, %v1245
        %v4749 = vmul.f32 %v4724, %v1246
        %v4750 = vmul.f32 %v4729, %v1247
        %v4751 = vmul.f32 %v4734, %v1248
        %v4752 = vsel %vm1445, %v4736, 0.0
        %v4753 = vrot.slane %v4752, 4
        %v4754 = vadd.f32 %v4752, %v4753
        %v4755 = vrot.slane %v4754, 2
        %v4756 = vadd.f32 %v4754, %v4755
        %v4757 = vrot.slane %v4756, 1
        %v4758 = vadd.f32 %v4756, %v4757
        %v4759 = vsel %vm1445, %v4737, 0.0
        %v4760 = vrot.slane %v4759, 4
        %v4761 = vadd.f32 %v4759, %v4760
        %v4762 = vrot.slane %v4761, 2
        %v4763 = vadd.f32 %v4761, %v4762
        %v4764 = vrot.slane %v4763, 1
        %v4765 = vadd.f32 %v4763, %v4764
        %v4766 = vsel %vm1445, %v4738, 0.0
        %v4767 = vrot.slane %v4766, 4
        %v4768 = vadd.f32 %v4766, %v4767
        %v4769 = vrot.slane %v4768, 2
        %v4770 = vadd.f32 %v4768, %v4769
        %v4771 = vrot.slane %v4770, 1
        %v4772 = vadd.f32 %v4770, %v4771
        %v4773 = vsel %vm1445, %v4739, 0.0
        %v4774 = vrot.slane %v4773, 4
        %v4775 = vadd.f32 %v4773, %v4774
        %v4776 = vrot.slane %v4775, 2
        %v4777 = vadd.f32 %v4775, %v4776
        %v4778 = vrot.slane %v4777, 1
        %v4779 = vadd.f32 %v4777, %v4778
        %v4780 = vsel %vm1445, %v4740, 0.0
        %v4781 = vrot.slane %v4780, 4
        %v4782 = vadd.f32 %v4780, %v4781
        %v4783 = vrot.slane %v4782, 2
        %v4784 = vadd.f32 %v4782, %v4783
        %v4785 = vrot.slane %v4784, 1
        %v4786 = vadd.f32 %v4784, %v4785
        %v4787 = vsel %vm1445, %v4741, 0.0
        %v4788 = vrot.slane %v4787, 4
        %v4789 = vadd.f32 %v4787, %v4788
        %v4790 = vrot.slane %v4789, 2
        %v4791 = vadd.f32 %v4789, %v4790
        %v4792 = vrot.slane %v4791, 1
        %v4793 = vadd.f32 %v4791, %v4792
        %v4794 = vsel %vm1445, %v4742, 0.0
        %v4795 = vrot.slane %v4794, 4
        %v4796 = vadd.f32 %v4794, %v4795
        %v4797 = vrot.slane %v4796, 2
        %v4798 = vadd.f32 %v4796, %v4797
        %v4799 = vrot.slane %v4798, 1
        %v4800 = vadd.f32 %v4798, %v4799
        %v4801 = vsel %vm1445, %v4743, 0.0
        %v4802 = vrot.slane %v4801, 4
        %v4803 = vadd.f32 %v4801, %v4802
        %v4804 = vrot.slane %v4803, 2
        %v4805 = vadd.f32 %v4803, %v4804
        %v4806 = vrot.slane %v4805, 1
        %v4807 = vadd.f32 %v4805, %v4806
        %v4808 = vsel %vm1445, %v4744, 0.0
        %v4809 = vrot.slane %v4808, 4
        %v4810 = vadd.f32 %v4808, %v4809
        %v4811 = vrot.slane %v4810, 2
        %v4812 = vadd.f32 %v4810, %v4811
        %v4813 = vrot.slane %v4812, 1
        %v4814 = vadd.f32 %v4812, %v4813
        %v4815 = vsel %vm1445, %v4745, 0.0
        %v4816 = vrot.slane %v4815, 4
        %v4817 = vadd.f32 %v4815, %v4816
        %v4818 = vrot.slane %v4817, 2
        %v4819 = vadd.f32 %v4817, %v4818
        %v4820 = vrot.slane %v4819, 1
        %v4821 = vadd.f32 %v4819, %v4820
        %v4822 = vsel %vm1445, %v4746, 0.0
        %v4823 = vrot.slane %v4822, 4
        %v4824 = vadd.f32 %v4822, %v4823
        %v4825 = vrot.slane %v4824, 2
        %v4826 = vadd.f32 %v4824, %v4825
        %v4827 = vrot.slane %v4826, 1
        %v4828 = vadd.f32 %v4826, %v4827
        %v4829 = vsel %vm1445, %v4747, 0.0
        %v4830 = vrot.slane %v4829, 4
        %v4831 = vadd.f32 %v4829, %v4830
        %v4832 = vrot.slane %v4831, 2
        %v4833 = vadd.f32 %v4831, %v4832
        %v4834 = vrot.slane %v4833, 1
        %v4835 = vadd.f32 %v4833, %v4834
        %v4836 = vsel %vm1445, %v4748, 0.0
        %v4837 = vrot.slane %v4836, 4
        %v4838 = vadd.f32 %v4836, %v4837
        %v4839 = vrot.slane %v4838, 2
        %v4840 = vadd.f32 %v4838, %v4839
        %v4841 = vrot.slane %v4840, 1
        %v4842 = vadd.f32 %v4840, %v4841
        %v4843 = vsel %vm1445, %v4749, 0.0
        %v4844 = vrot.slane %v4843, 4
        %v4845 = vadd.f32 %v4843, %v4844
        %v4846 = vrot.slane %v4845, 2
        %v4847 = vadd.f32 %v4845, %v4846
        %v4848 = vrot.slane %v4847, 1
        %v4849 = vadd.f32 %v4847, %v4848
        %v4850 = vsel %vm1445, %v4750, 0.0
        %v4851 = vrot.slane %v4850, 4
        %v4852 = vadd.f32 %v4850, %v4851
        %v4853 = vrot.slane %v4852, 2
        %v4854 = vadd.f32 %v4852, %v4853
        %v4855 = vrot.slane %v4854, 1
        %v4856 = vadd.f32 %v4854, %v4855
        %v4857 = vsel %vm1445, %v4751, 0.0
        %v4858 = vrot.slane %v4857, 4
        %v4859 = vadd.f32 %v4857, %v4858
        %v4860 = vrot.slane %v4859, 2
        %v4861 = vadd.f32 %v4859, %v4860
        %v4862 = vrot.slane %v4861, 1
        %v4863 = vadd.f32 %v4861, %v4862
        %4864 = vrot.lane.b32.xlu0 %v785, 16
        %v4865 = vpop.permute.xlu0 %4864
        %4866 = vrot.lane.b32.xlu0 %v786, 16
        %v4867 = vpop.permute.xlu0 %4866
        %4868 = vrot.lane.b32.xlu0 %v787, 16
        %v4869 = vpop.permute.xlu0 %4868
        %4870 = vrot.lane.b32.xlu0 %v788, 16
        %v4871 = vpop.permute.xlu0 %4870
        %4872 = vrot.lane.b32.xlu0 %v789, 16
        %v4873 = vpop.permute.xlu0 %4872
        %4874 = vrot.lane.b32.xlu0 %v790, 16
        %v4875 = vpop.permute.xlu0 %4874
        %4876 = vrot.lane.b32.xlu0 %v791, 16
        %v4877 = vpop.permute.xlu0 %4876
        %4878 = vrot.lane.b32.xlu0 %v792, 16
        %v4879 = vpop.permute.xlu0 %4878
        %4880 = vrot.lane.b32.xlu0 %v921, 16
        %v4881 = vpop.permute.xlu0 %4880
        %4882 = vrot.lane.b32.xlu0 %v922, 16
        %v4883 = vpop.permute.xlu0 %4882
        %4884 = vrot.lane.b32.xlu0 %v923, 16
        %v4885 = vpop.permute.xlu0 %4884
        %4886 = vrot.lane.b32.xlu0 %v924, 16
        %v4887 = vpop.permute.xlu0 %4886
        %4888 = vrot.lane.b32.xlu0 %v925, 16
        %v4889 = vpop.permute.xlu0 %4888
        %4890 = vrot.lane.b32.xlu0 %v926, 16
        %v4891 = vpop.permute.xlu0 %4890
        %4892 = vrot.lane.b32.xlu0 %v927, 16
        %v4893 = vpop.permute.xlu0 %4892
        %4894 = vrot.lane.b32.xlu0 %v928, 16
        %v4895 = vpop.permute.xlu0 %4894
        %v4912 = vmul.f32 %v1352, %v4865
        %v4913 = vmul.f32 %v1356, %v4867
        %v4914 = vmul.f32 %v1360, %v4869
        %v4915 = vmul.f32 %v1364, %v4871
        %v4916 = vmul.f32 %v1368, %v4873
        %v4917 = vmul.f32 %v1372, %v4875
        %v4918 = vmul.f32 %v1376, %v4877
        %v4919 = vmul.f32 %v1380, %v4879
        %v4920 = vmul.f32 %v1384, %v4881
        %v4921 = vmul.f32 %v1388, %v4883
        %v4922 = vmul.f32 %v1392, %v4885
        %v4923 = vmul.f32 %v1396, %v4887
        %v4924 = vmul.f32 %v1400, %v4889
        %v4925 = vmul.f32 %v1404, %v4891
        %v4926 = vmul.f32 %v1408, %v4893
        %v4927 = vmul.f32 %v1412, %v4895
        %4944 = vrot.lane.b32.xlu0 %v4912, 112
        %v4945 = vpop.permute.xlu0 %4944
        %4946 = vrot.lane.b32.xlu0 %v4913, 112
        %v4947 = vpop.permute.xlu0 %4946
        %4948 = vrot.lane.b32.xlu0 %v4914, 112
        %v4949 = vpop.permute.xlu0 %4948
        %4950 = vrot.lane.b32.xlu0 %v4915, 112
        %v4951 = vpop.permute.xlu0 %4950
        %4952 = vrot.lane.b32.xlu0 %v4916, 112
        %v4953 = vpop.permute.xlu0 %4952
        %4954 = vrot.lane.b32.xlu0 %v4917, 112
        %v4955 = vpop.permute.xlu0 %4954
        %4956 = vrot.lane.b32.xlu0 %v4918, 112
        %v4957 = vpop.permute.xlu0 %4956
        %4958 = vrot.lane.b32.xlu0 %v4919, 112
        %v4959 = vpop.permute.xlu0 %4958
        %4960 = vrot.lane.b32.xlu0 %v4920, 112
        %v4961 = vpop.permute.xlu0 %4960
        %4962 = vrot.lane.b32.xlu0 %v4921, 112
        %v4963 = vpop.permute.xlu0 %4962
        %4964 = vrot.lane.b32.xlu0 %v4922, 112
        %v4965 = vpop.permute.xlu0 %4964
        %4966 = vrot.lane.b32.xlu0 %v4923, 112
        %v4967 = vpop.permute.xlu0 %4966
        %4968 = vrot.lane.b32.xlu0 %v4924, 112
        %v4969 = vpop.permute.xlu0 %4968
        %4970 = vrot.lane.b32.xlu0 %v4925, 112
        %v4971 = vpop.permute.xlu0 %4970
        %4972 = vrot.lane.b32.xlu0 %v4926, 112
        %v4973 = vpop.permute.xlu0 %4972
        %4974 = vrot.lane.b32.xlu0 %v4927, 112
        %v4975 = vpop.permute.xlu0 %4974
        %v4992 = vsel %vm1445, %v4945, 0.0
        %4993 = vadd.xlane.f32.xlu0 %v4992
        %v4994 = vpop.xlane.xlu0 %4993
        %v4995 = vsel %vm1445, %v4947, 0.0
        %4996 = vadd.xlane.f32.xlu0 %v4995
        %v4997 = vpop.xlane.xlu0 %4996
        %v4998 = vsel %vm1445, %v4949, 0.0
        %4999 = vadd.xlane.f32.xlu0 %v4998
        %v5000 = vpop.xlane.xlu0 %4999
        %v5001 = vsel %vm1445, %v4951, 0.0
        %5002 = vadd.xlane.f32.xlu0 %v5001
        %v5003 = vpop.xlane.xlu0 %5002
        %v5004 = vsel %vm1445, %v4953, 0.0
        %5005 = vadd.xlane.f32.xlu0 %v5004
        %v5006 = vpop.xlane.xlu0 %5005
        %v5007 = vsel %vm1445, %v4955, 0.0
        %5008 = vadd.xlane.f32.xlu0 %v5007
        %v5009 = vpop.xlane.xlu0 %5008
        %v5010 = vsel %vm1445, %v4957, 0.0
        %5011 = vadd.xlane.f32.xlu0 %v5010
        %v5012 = vpop.xlane.xlu0 %5011
        %v5013 = vsel %vm1445, %v4959, 0.0
        %5014 = vadd.xlane.f32.xlu0 %v5013
        %v5015 = vpop.xlane.xlu0 %5014
        %v5016 = vsel %vm1445, %v4961, 0.0
        %5017 = vadd.xlane.f32.xlu0 %v5016
        %v5018 = vpop.xlane.xlu0 %5017
        %v5019 = vsel %vm1445, %v4963, 0.0
        %5020 = vadd.xlane.f32.xlu0 %v5019
        %v5021 = vpop.xlane.xlu0 %5020
        %v5022 = vsel %vm1445, %v4965, 0.0
        %5023 = vadd.xlane.f32.xlu0 %v5022
        %v5024 = vpop.xlane.xlu0 %5023
        %v5025 = vsel %vm1445, %v4967, 0.0
        %5026 = vadd.xlane.f32.xlu0 %v5025
        %v5027 = vpop.xlane.xlu0 %5026
        %v5028 = vsel %vm1445, %v4969, 0.0
        %5029 = vadd.xlane.f32.xlu0 %v5028
        %v5030 = vpop.xlane.xlu0 %5029
        %v5031 = vsel %vm1445, %v4971, 0.0
        %5032 = vadd.xlane.f32.xlu0 %v5031
        %v5033 = vpop.xlane.xlu0 %5032
        %v5034 = vsel %vm1445, %v4973, 0.0
        %5035 = vadd.xlane.f32.xlu0 %v5034
        %v5036 = vpop.xlane.xlu0 %5035
        %v5037 = vsel %vm1445, %v4975, 0.0
        %5038 = vadd.xlane.f32.xlu0 %v5037
        %v5039 = vpop.xlane.xlu0 %5038
        %v5056 = vlaneseq
        %v5057 = vshrl.u32 %v5056, 7
        %v5058 = vsub.s32 %v1511, %v5057
        %v5059 = vrot.slane %v4994, %v5058
        %v5060 = vlaneseq
        %v5061 = vshrl.u32 %v5060, 7
        %v5062 = vsub.s32 %v1511, %v5061
        %v5063 = vrot.slane %v4997, %v5062
        %v5064 = vlaneseq
        %v5065 = vshrl.u32 %v5064, 7
        %v5066 = vsub.s32 %v1511, %v5065
        %v5067 = vrot.slane %v5000, %v5066
        %v5068 = vlaneseq
        %v5069 = vshrl.u32 %v5068, 7
        %v5070 = vsub.s32 %v1511, %v5069
        %v5071 = vrot.slane %v5003, %v5070
        %v5072 = vlaneseq
        %v5073 = vshrl.u32 %v5072, 7
        %v5074 = vsub.s32 %v1511, %v5073
        %v5075 = vrot.slane %v5006, %v5074
        %v5076 = vlaneseq
        %v5077 = vshrl.u32 %v5076, 7
        %v5078 = vsub.s32 %v1511, %v5077
        %v5079 = vrot.slane %v5009, %v5078
        %v5080 = vlaneseq
        %v5081 = vshrl.u32 %v5080, 7
        %v5082 = vsub.s32 %v1511, %v5081
        %v5083 = vrot.slane %v5012, %v5082
        %v5084 = vlaneseq
        %v5085 = vshrl.u32 %v5084, 7
        %v5086 = vsub.s32 %v1511, %v5085
        %v5087 = vrot.slane %v5015, %v5086
        %v5088 = vlaneseq
        %v5089 = vshrl.u32 %v5088, 7
        %v5090 = vsub.s32 %v1511, %v5089
        %v5091 = vrot.slane %v5018, %v5090
        %v5092 = vlaneseq
        %v5093 = vshrl.u32 %v5092, 7
        %v5094 = vsub.s32 %v1511, %v5093
        %v5095 = vrot.slane %v5021, %v5094
        %v5096 = vlaneseq
        %v5097 = vshrl.u32 %v5096, 7
        %v5098 = vsub.s32 %v1511, %v5097
        %v5099 = vrot.slane %v5024, %v5098
        %v5100 = vlaneseq
        %v5101 = vshrl.u32 %v5100, 7
        %v5102 = vsub.s32 %v1511, %v5101
        %v5103 = vrot.slane %v5027, %v5102
        %v5104 = vlaneseq
        %v5105 = vshrl.u32 %v5104, 7
        %v5106 = vsub.s32 %v1511, %v5105
        %v5107 = vrot.slane %v5030, %v5106
        %v5108 = vlaneseq
        %v5109 = vshrl.u32 %v5108, 7
        %v5110 = vsub.s32 %v1511, %v5109
        %v5111 = vrot.slane %v5033, %v5110
        %v5112 = vlaneseq
        %v5113 = vshrl.u32 %v5112, 7
        %v5114 = vsub.s32 %v1511, %v5113
        %v5115 = vrot.slane %v5036, %v5114
        %v5116 = vlaneseq
        %v5117 = vshrl.u32 %v5116, 7
        %v5118 = vsub.s32 %v1511, %v5117
        %v5119 = vrot.slane %v5039, %v5118
        %v5120 = vsel %vm1576, %v5063, %v5059
        %v5121 = vsel %vm1578, %v5067, %v5120
        %v5122 = vsel %vm1580, %v5071, %v5121
        %v5123 = vsel %vm1582, %v5075, %v5122
        %v5124 = vsel %vm1584, %v5079, %v5123
        %v5125 = vsel %vm1586, %v5083, %v5124
        %v5126 = vsel %vm1588, %v5087, %v5125
        %v5127 = vsel %vm1576, %v5095, %v5091
        %v5128 = vsel %vm1578, %v5099, %v5127
        %v5129 = vsel %vm1580, %v5103, %v5128
        %v5130 = vsel %vm1582, %v5107, %v5129
        %v5131 = vsel %vm1584, %v5111, %v5130
        %v5132 = vsel %vm1586, %v5115, %v5131
        %v5133 = vsel %vm1588, %v5119, %v5132
        %v5136 = vsel %vm1599, %v5126, -inf
        %5137 = vmax.xlane.f32.xlu0 %v5136
        %v5138 = vpop.xlane.xlu0 %5137
        %v5139 = vsel %vm1599, %v5133, -inf
        %5140 = vmax.xlane.f32.xlu0 %v5139
        %v5141 = vpop.xlane.xlu0 %5140
        %v5144 = vlaneseq
        %v5145 = vshrl.u32 %v5144, 7
        %v5146 = vsub.s32 0, %v5145
        %v5147 = vrot.slane %v5138, %v5146
        %v5148 = vlaneseq
        %v5149 = vshrl.u32 %v5148, 7
        %v5150 = vsub.s32 1, %v5149
        %v5151 = vrot.slane %v5138, %v5150
        %v5152 = vlaneseq
        %v5153 = vshrl.u32 %v5152, 7
        %v5154 = vsub.s32 2, %v5153
        %v5155 = vrot.slane %v5138, %v5154
        %v5156 = vlaneseq
        %v5157 = vshrl.u32 %v5156, 7
        %v5158 = vsub.s32 3, %v5157
        %v5159 = vrot.slane %v5138, %v5158
        %v5160 = vlaneseq
        %v5161 = vshrl.u32 %v5160, 7
        %v5162 = vsub.s32 4, %v5161
        %v5163 = vrot.slane %v5138, %v5162
        %v5164 = vlaneseq
        %v5165 = vshrl.u32 %v5164, 7
        %v5166 = vsub.s32 5, %v5165
        %v5167 = vrot.slane %v5138, %v5166
        %v5168 = vlaneseq
        %v5169 = vshrl.u32 %v5168, 7
        %v5170 = vsub.s32 6, %v5169
        %v5171 = vrot.slane %v5138, %v5170
        %v5172 = vlaneseq
        %v5173 = vshrl.u32 %v5172, 7
        %v5174 = vsub.s32 7, %v5173
        %v5175 = vrot.slane %v5138, %v5174
        %v5176 = vlaneseq
        %v5177 = vshrl.u32 %v5176, 7
        %v5178 = vsub.s32 0, %v5177
        %v5179 = vrot.slane %v5141, %v5178
        %v5180 = vlaneseq
        %v5181 = vshrl.u32 %v5180, 7
        %v5182 = vsub.s32 1, %v5181
        %v5183 = vrot.slane %v5141, %v5182
        %v5184 = vlaneseq
        %v5185 = vshrl.u32 %v5184, 7
        %v5186 = vsub.s32 2, %v5185
        %v5187 = vrot.slane %v5141, %v5186
        %v5188 = vlaneseq
        %v5189 = vshrl.u32 %v5188, 7
        %v5190 = vsub.s32 3, %v5189
        %v5191 = vrot.slane %v5141, %v5190
        %v5192 = vlaneseq
        %v5193 = vshrl.u32 %v5192, 7
        %v5194 = vsub.s32 4, %v5193
        %v5195 = vrot.slane %v5141, %v5194
        %v5196 = vlaneseq
        %v5197 = vshrl.u32 %v5196, 7
        %v5198 = vsub.s32 5, %v5197
        %v5199 = vrot.slane %v5141, %v5198
        %v5200 = vlaneseq
        %v5201 = vshrl.u32 %v5200, 7
        %v5202 = vsub.s32 6, %v5201
        %v5203 = vrot.slane %v5141, %v5202
        %v5204 = vlaneseq
        %v5205 = vshrl.u32 %v5204, 7
        %v5206 = vsub.s32 7, %v5205
        %v5207 = vrot.slane %v5141, %v5206
        %v5224 = vsub.f32 %v4994, %v5147
        %v5225 = vsub.f32 %v4997, %v5151
        %v5226 = vsub.f32 %v5000, %v5155
        %v5227 = vsub.f32 %v5003, %v5159
        %v5228 = vsub.f32 %v5006, %v5163
        %v5229 = vsub.f32 %v5009, %v5167
        %v5230 = vsub.f32 %v5012, %v5171
        %v5231 = vsub.f32 %v5015, %v5175
        %v5232 = vsub.f32 %v5018, %v5179
        %v5233 = vsub.f32 %v5021, %v5183
        %v5234 = vsub.f32 %v5024, %v5187
        %v5235 = vsub.f32 %v5027, %v5191
        %v5236 = vsub.f32 %v5030, %v5195
        %v5237 = vsub.f32 %v5033, %v5199
        %v5238 = vsub.f32 %v5036, %v5203
        %v5239 = vsub.f32 %v5039, %v5207
        %v5240 = vmul.f32 %v5224, 1.442695
        %v5241 = vpow.pop %v5240
        %v5242 = vmul.f32 %v5225, 1.442695
        %v5243 = vpow.pop %v5242
        %v5244 = vmul.f32 %v5226, 1.442695
        %v5245 = vpow.pop %v5244
        %v5246 = vmul.f32 %v5227, 1.442695
        %v5247 = vpow.pop %v5246
        %v5248 = vmul.f32 %v5228, 1.442695
        %v5249 = vpow.pop %v5248
        %v5250 = vmul.f32 %v5229, 1.442695
        %v5251 = vpow.pop %v5250
        %v5252 = vmul.f32 %v5230, 1.442695
        %v5253 = vpow.pop %v5252
        %v5254 = vmul.f32 %v5231, 1.442695
        %v5255 = vpow.pop %v5254
        %v5256 = vmul.f32 %v5232, 1.442695
        %v5257 = vpow.pop %v5256
        %v5258 = vmul.f32 %v5233, 1.442695
        %v5259 = vpow.pop %v5258
        %v5260 = vmul.f32 %v5234, 1.442695
        %v5261 = vpow.pop %v5260
        %v5262 = vmul.f32 %v5235, 1.442695
        %v5263 = vpow.pop %v5262
        %v5264 = vmul.f32 %v5236, 1.442695
        %v5265 = vpow.pop %v5264
        %v5266 = vmul.f32 %v5237, 1.442695
        %v5267 = vpow.pop %v5266
        %v5268 = vmul.f32 %v5238, 1.442695
        %v5269 = vpow.pop %v5268
        %v5270 = vmul.f32 %v5239, 1.442695
        %v5271 = vpow.pop %v5270
        %5288 = vset.pattern.permute.xlu0 0
        %5289 = vperm.xlu0 %5288, %v5241
        %v5290 = vpop.permute.xlu0 %5289
        %5291 = vset.pattern.permute.xlu0 0
        %5292 = vperm.xlu0 %5291, %v5243
        %v5293 = vpop.permute.xlu0 %5292
        %5294 = vset.pattern.permute.xlu0 0
        %5295 = vperm.xlu0 %5294, %v5245
        %v5296 = vpop.permute.xlu0 %5295
        %5297 = vset.pattern.permute.xlu0 0
        %5298 = vperm.xlu0 %5297, %v5247
        %v5299 = vpop.permute.xlu0 %5298
        %5300 = vset.pattern.permute.xlu0 0
        %5301 = vperm.xlu0 %5300, %v5249
        %v5302 = vpop.permute.xlu0 %5301
        %5303 = vset.pattern.permute.xlu0 0
        %5304 = vperm.xlu0 %5303, %v5251
        %v5305 = vpop.permute.xlu0 %5304
        %5306 = vset.pattern.permute.xlu0 0
        %5307 = vperm.xlu0 %5306, %v5253
        %v5308 = vpop.permute.xlu0 %5307
        %5309 = vset.pattern.permute.xlu0 0
        %5310 = vperm.xlu0 %5309, %v5255
        %v5311 = vpop.permute.xlu0 %5310
        %5312 = vset.pattern.permute.xlu0 0
        %5313 = vperm.xlu0 %5312, %v5257
        %v5314 = vpop.permute.xlu0 %5313
        %5315 = vset.pattern.permute.xlu0 0
        %5316 = vperm.xlu0 %5315, %v5259
        %v5317 = vpop.permute.xlu0 %5316
        %5318 = vset.pattern.permute.xlu0 0
        %5319 = vperm.xlu0 %5318, %v5261
        %v5320 = vpop.permute.xlu0 %5319
        %5321 = vset.pattern.permute.xlu0 0
        %5322 = vperm.xlu0 %5321, %v5263
        %v5323 = vpop.permute.xlu0 %5322
        %5324 = vset.pattern.permute.xlu0 0
        %5325 = vperm.xlu0 %5324, %v5265
        %v5326 = vpop.permute.xlu0 %5325
        %5327 = vset.pattern.permute.xlu0 0
        %5328 = vperm.xlu0 %5327, %v5267
        %v5329 = vpop.permute.xlu0 %5328
        %5330 = vset.pattern.permute.xlu0 0
        %5331 = vperm.xlu0 %5330, %v5269
        %v5332 = vpop.permute.xlu0 %5331
        %5333 = vset.pattern.permute.xlu0 0
        %5334 = vperm.xlu0 %5333, %v5271
        %v5335 = vpop.permute.xlu0 %5334
        %v5336 = vlaneseq
        %v5337 = vshrl.u32 %v5336, 7
        %v5338 = vsub.s32 %v1511, %v5337
        %v5339 = vrot.slane %v5290, %v5338
        %v5340 = vlaneseq
        %v5341 = vshrl.u32 %v5340, 7
        %v5342 = vsub.s32 %v1511, %v5341
        %v5343 = vrot.slane %v5293, %v5342
        %v5344 = vlaneseq
        %v5345 = vshrl.u32 %v5344, 7
        %v5346 = vsub.s32 %v1511, %v5345
        %v5347 = vrot.slane %v5296, %v5346
        %v5348 = vlaneseq
        %v5349 = vshrl.u32 %v5348, 7
        %v5350 = vsub.s32 %v1511, %v5349
        %v5351 = vrot.slane %v5299, %v5350
        %v5352 = vlaneseq
        %v5353 = vshrl.u32 %v5352, 7
        %v5354 = vsub.s32 %v1511, %v5353
        %v5355 = vrot.slane %v5302, %v5354
        %v5356 = vlaneseq
        %v5357 = vshrl.u32 %v5356, 7
        %v5358 = vsub.s32 %v1511, %v5357
        %v5359 = vrot.slane %v5305, %v5358
        %v5360 = vlaneseq
        %v5361 = vshrl.u32 %v5360, 7
        %v5362 = vsub.s32 %v1511, %v5361
        %v5363 = vrot.slane %v5308, %v5362
        %v5364 = vlaneseq
        %v5365 = vshrl.u32 %v5364, 7
        %v5366 = vsub.s32 %v1511, %v5365
        %v5367 = vrot.slane %v5311, %v5366
        %v5368 = vlaneseq
        %v5369 = vshrl.u32 %v5368, 7
        %v5370 = vsub.s32 %v1511, %v5369
        %v5371 = vrot.slane %v5314, %v5370
        %v5372 = vlaneseq
        %v5373 = vshrl.u32 %v5372, 7
        %v5374 = vsub.s32 %v1511, %v5373
        %v5375 = vrot.slane %v5317, %v5374
        %v5376 = vlaneseq
        %v5377 = vshrl.u32 %v5376, 7
        %v5378 = vsub.s32 %v1511, %v5377
        %v5379 = vrot.slane %v5320, %v5378
        %v5380 = vlaneseq
        %v5381 = vshrl.u32 %v5380, 7
        %v5382 = vsub.s32 %v1511, %v5381
        %v5383 = vrot.slane %v5323, %v5382
        %v5384 = vlaneseq
        %v5385 = vshrl.u32 %v5384, 7
        %v5386 = vsub.s32 %v1511, %v5385
        %v5387 = vrot.slane %v5326, %v5386
        %v5388 = vlaneseq
        %v5389 = vshrl.u32 %v5388, 7
        %v5390 = vsub.s32 %v1511, %v5389
        %v5391 = vrot.slane %v5329, %v5390
        %v5392 = vlaneseq
        %v5393 = vshrl.u32 %v5392, 7
        %v5394 = vsub.s32 %v1511, %v5393
        %v5395 = vrot.slane %v5332, %v5394
        %v5396 = vlaneseq
        %v5397 = vshrl.u32 %v5396, 7
        %v5398 = vsub.s32 %v1511, %v5397
        %v5399 = vrot.slane %v5335, %v5398
        %v5400 = vsel %vm1576, %v5343, %v5339
        %v5401 = vsel %vm1578, %v5347, %v5400
        %v5402 = vsel %vm1580, %v5351, %v5401
        %v5403 = vsel %vm1582, %v5355, %v5402
        %v5404 = vsel %vm1584, %v5359, %v5403
        %v5405 = vsel %vm1586, %v5363, %v5404
        %v5406 = vsel %vm1588, %v5367, %v5405
        %v5407 = vsel %vm1576, %v5375, %v5371
        %v5408 = vsel %vm1578, %v5379, %v5407
        %v5409 = vsel %vm1580, %v5383, %v5408
        %v5410 = vsel %vm1582, %v5387, %v5409
        %v5411 = vsel %vm1584, %v5391, %v5410
        %v5412 = vsel %vm1586, %v5395, %v5411
        %v5413 = vsel %vm1588, %v5399, %v5412
        %v5416 = vsel %vm1599, %v5406, 0.0
        %5417 = vadd.xlane.f32.xlu0 %v5416
        %v5418 = vpop.xlane.xlu0 %5417
        %v5419 = vsel %vm1599, %v5413, 0.0
        %5420 = vadd.xlane.f32.xlu0 %v5419
        %v5421 = vpop.xlane.xlu0 %5420
        %v5424 = vlaneseq
        %v5425 = vshrl.u32 %v5424, 7
        %v5426 = vsub.s32 0, %v5425
        %v5427 = vrot.slane %v5418, %v5426
        %v5428 = vlaneseq
        %v5429 = vshrl.u32 %v5428, 7
        %v5430 = vsub.s32 1, %v5429
        %v5431 = vrot.slane %v5418, %v5430
        %v5432 = vlaneseq
        %v5433 = vshrl.u32 %v5432, 7
        %v5434 = vsub.s32 2, %v5433
        %v5435 = vrot.slane %v5418, %v5434
        %v5436 = vlaneseq
        %v5437 = vshrl.u32 %v5436, 7
        %v5438 = vsub.s32 3, %v5437
        %v5439 = vrot.slane %v5418, %v5438
        %v5440 = vlaneseq
        %v5441 = vshrl.u32 %v5440, 7
        %v5442 = vsub.s32 4, %v5441
        %v5443 = vrot.slane %v5418, %v5442
        %v5444 = vlaneseq
        %v5445 = vshrl.u32 %v5444, 7
        %v5446 = vsub.s32 5, %v5445
        %v5447 = vrot.slane %v5418, %v5446
        %v5448 = vlaneseq
        %v5449 = vshrl.u32 %v5448, 7
        %v5450 = vsub.s32 6, %v5449
        %v5451 = vrot.slane %v5418, %v5450
        %v5452 = vlaneseq
        %v5453 = vshrl.u32 %v5452, 7
        %v5454 = vsub.s32 7, %v5453
        %v5455 = vrot.slane %v5418, %v5454
        %v5456 = vlaneseq
        %v5457 = vshrl.u32 %v5456, 7
        %v5458 = vsub.s32 0, %v5457
        %v5459 = vrot.slane %v5421, %v5458
        %v5460 = vlaneseq
        %v5461 = vshrl.u32 %v5460, 7
        %v5462 = vsub.s32 1, %v5461
        %v5463 = vrot.slane %v5421, %v5462
        %v5464 = vlaneseq
        %v5465 = vshrl.u32 %v5464, 7
        %v5466 = vsub.s32 2, %v5465
        %v5467 = vrot.slane %v5421, %v5466
        %v5468 = vlaneseq
        %v5469 = vshrl.u32 %v5468, 7
        %v5470 = vsub.s32 3, %v5469
        %v5471 = vrot.slane %v5421, %v5470
        %v5472 = vlaneseq
        %v5473 = vshrl.u32 %v5472, 7
        %v5474 = vsub.s32 4, %v5473
        %v5475 = vrot.slane %v5421, %v5474
        %v5476 = vlaneseq
        %v5477 = vshrl.u32 %v5476, 7
        %v5478 = vsub.s32 5, %v5477
        %v5479 = vrot.slane %v5421, %v5478
        %v5480 = vlaneseq
        %v5481 = vshrl.u32 %v5480, 7
        %v5482 = vsub.s32 6, %v5481
        %v5483 = vrot.slane %v5421, %v5482
        %v5484 = vlaneseq
        %v5485 = vshrl.u32 %v5484, 7
        %v5486 = vsub.s32 7, %v5485
        %v5487 = vrot.slane %v5421, %v5486
        %v5504 = vrcp.pop %v5427
        %v5505 = vmul.f32 %v5241, %v5504
        %v5506 = vrcp.pop %v5431
        %v5507 = vmul.f32 %v5243, %v5506
        %v5508 = vrcp.pop %v5435
        %v5509 = vmul.f32 %v5245, %v5508
        %v5510 = vrcp.pop %v5439
        %v5511 = vmul.f32 %v5247, %v5510
        %v5512 = vrcp.pop %v5443
        %v5513 = vmul.f32 %v5249, %v5512
        %v5514 = vrcp.pop %v5447
        %v5515 = vmul.f32 %v5251, %v5514
        %v5516 = vrcp.pop %v5451
        %v5517 = vmul.f32 %v5253, %v5516
        %v5518 = vrcp.pop %v5455
        %v5519 = vmul.f32 %v5255, %v5518
        %v5520 = vrcp.pop %v5459
        %v5521 = vmul.f32 %v5257, %v5520
        %v5522 = vrcp.pop %v5463
        %v5523 = vmul.f32 %v5259, %v5522
        %v5524 = vrcp.pop %v5467
        %v5525 = vmul.f32 %v5261, %v5524
        %v5526 = vrcp.pop %v5471
        %v5527 = vmul.f32 %v5263, %v5526
        %v5528 = vrcp.pop %v5475
        %v5529 = vmul.f32 %v5265, %v5528
        %v5530 = vrcp.pop %v5479
        %v5531 = vmul.f32 %v5267, %v5530
        %v5532 = vrcp.pop %v5483
        %v5533 = vmul.f32 %v5269, %v5532
        %v5534 = vrcp.pop %v5487
        %v5535 = vmul.f32 %v5271, %v5534
        %5537 = vset.pattern.permute.xlu0 0
        %5538 = vperm.xlu0 %5537, %v5505
        %v5539 = vpop.permute.xlu0 %5538
        %5542 = vset.pattern.permute.xlu0 0
        %5543 = vperm.xlu0 %5542, %v5507
        %v5544 = vpop.permute.xlu0 %5543
        %5547 = vset.pattern.permute.xlu0 0
        %5548 = vperm.xlu0 %5547, %v5509
        %v5549 = vpop.permute.xlu0 %5548
        %5552 = vset.pattern.permute.xlu0 0
        %5553 = vperm.xlu0 %5552, %v5511
        %v5554 = vpop.permute.xlu0 %5553
        %5557 = vset.pattern.permute.xlu0 0
        %5558 = vperm.xlu0 %5557, %v5513
        %v5559 = vpop.permute.xlu0 %5558
        %5562 = vset.pattern.permute.xlu0 0
        %5563 = vperm.xlu0 %5562, %v5515
        %v5564 = vpop.permute.xlu0 %5563
        %5567 = vset.pattern.permute.xlu0 0
        %5568 = vperm.xlu0 %5567, %v5517
        %v5569 = vpop.permute.xlu0 %5568
        %5572 = vset.pattern.permute.xlu0 0
        %5573 = vperm.xlu0 %5572, %v5519
        %v5574 = vpop.permute.xlu0 %5573
        %5577 = vset.pattern.permute.xlu0 0
        %5578 = vperm.xlu0 %5577, %v5521
        %v5579 = vpop.permute.xlu0 %5578
        %5582 = vset.pattern.permute.xlu0 0
        %5583 = vperm.xlu0 %5582, %v5523
        %v5584 = vpop.permute.xlu0 %5583
        %5587 = vset.pattern.permute.xlu0 0
        %5588 = vperm.xlu0 %5587, %v5525
        %v5589 = vpop.permute.xlu0 %5588
        %5592 = vset.pattern.permute.xlu0 0
        %5593 = vperm.xlu0 %5592, %v5527
        %v5594 = vpop.permute.xlu0 %5593
        %5597 = vset.pattern.permute.xlu0 0
        %5598 = vperm.xlu0 %5597, %v5529
        %v5599 = vpop.permute.xlu0 %5598
        %5602 = vset.pattern.permute.xlu0 0
        %5603 = vperm.xlu0 %5602, %v5531
        %v5604 = vpop.permute.xlu0 %5603
        %5607 = vset.pattern.permute.xlu0 0
        %5608 = vperm.xlu0 %5607, %v5533
        %v5609 = vpop.permute.xlu0 %5608
        %5612 = vset.pattern.permute.xlu0 0
        %5613 = vperm.xlu0 %5612, %v5535
        %v5614 = vpop.permute.xlu0 %5613
        %v5616 = vmul.f32 %v5539, %v1105
        %v5617 = vmul.f32 %v5544, %v1106
        %v5618 = vmul.f32 %v5549, %v1107
        %v5619 = vmul.f32 %v5554, %v1108
        %v5620 = vmul.f32 %v5559, %v1109
        %v5621 = vmul.f32 %v5564, %v1110
        %v5622 = vmul.f32 %v5569, %v1111
        %v5623 = vmul.f32 %v5574, %v1112
        %v5624 = vmul.f32 %v5579, %v1241
        %v5625 = vmul.f32 %v5584, %v1242
        %v5626 = vmul.f32 %v5589, %v1243
        %v5627 = vmul.f32 %v5594, %v1244
        %v5628 = vmul.f32 %v5599, %v1245
        %v5629 = vmul.f32 %v5604, %v1246
        %v5630 = vmul.f32 %v5609, %v1247
        %v5631 = vmul.f32 %v5614, %v1248
        %v5632 = vsel %vm1445, %v5616, 0.0
        %v5633 = vrot.slane %v5632, 4
        %v5634 = vadd.f32 %v5632, %v5633
        %v5635 = vrot.slane %v5634, 2
        %v5636 = vadd.f32 %v5634, %v5635
        %v5637 = vrot.slane %v5636, 1
        %v5638 = vadd.f32 %v5636, %v5637
        %v5639 = vsel %vm1445, %v5617, 0.0
        %v5640 = vrot.slane %v5639, 4
        %v5641 = vadd.f32 %v5639, %v5640
        %v5642 = vrot.slane %v5641, 2
        %v5643 = vadd.f32 %v5641, %v5642
        %v5644 = vrot.slane %v5643, 1
        %v5645 = vadd.f32 %v5643, %v5644
        %v5646 = vsel %vm1445, %v5618, 0.0
        %v5647 = vrot.slane %v5646, 4
        %v5648 = vadd.f32 %v5646, %v5647
        %v5649 = vrot.slane %v5648, 2
        %v5650 = vadd.f32 %v5648, %v5649
        %v5651 = vrot.slane %v5650, 1
        %v5652 = vadd.f32 %v5650, %v5651
        %v5653 = vsel %vm1445, %v5619, 0.0
        %v5654 = vrot.slane %v5653, 4
        %v5655 = vadd.f32 %v5653, %v5654
        %v5656 = vrot.slane %v5655, 2
        %v5657 = vadd.f32 %v5655, %v5656
        %v5658 = vrot.slane %v5657, 1
        %v5659 = vadd.f32 %v5657, %v5658
        %v5660 = vsel %vm1445, %v5620, 0.0
        %v5661 = vrot.slane %v5660, 4
        %v5662 = vadd.f32 %v5660, %v5661
        %v5663 = vrot.slane %v5662, 2
        %v5664 = vadd.f32 %v5662, %v5663
        %v5665 = vrot.slane %v5664, 1
        %v5666 = vadd.f32 %v5664, %v5665
        %v5667 = vsel %vm1445, %v5621, 0.0
        %v5668 = vrot.slane %v5667, 4
        %v5669 = vadd.f32 %v5667, %v5668
        %v5670 = vrot.slane %v5669, 2
        %v5671 = vadd.f32 %v5669, %v5670
        %v5672 = vrot.slane %v5671, 1
        %v5673 = vadd.f32 %v5671, %v5672
        %v5674 = vsel %vm1445, %v5622, 0.0
        %v5675 = vrot.slane %v5674, 4
        %v5676 = vadd.f32 %v5674, %v5675
        %v5677 = vrot.slane %v5676, 2
        %v5678 = vadd.f32 %v5676, %v5677
        %v5679 = vrot.slane %v5678, 1
        %v5680 = vadd.f32 %v5678, %v5679
        %v5681 = vsel %vm1445, %v5623, 0.0
        %v5682 = vrot.slane %v5681, 4
        %v5683 = vadd.f32 %v5681, %v5682
        %v5684 = vrot.slane %v5683, 2
        %v5685 = vadd.f32 %v5683, %v5684
        %v5686 = vrot.slane %v5685, 1
        %v5687 = vadd.f32 %v5685, %v5686
        %v5688 = vsel %vm1445, %v5624, 0.0
        %v5689 = vrot.slane %v5688, 4
        %v5690 = vadd.f32 %v5688, %v5689
        %v5691 = vrot.slane %v5690, 2
        %v5692 = vadd.f32 %v5690, %v5691
        %v5693 = vrot.slane %v5692, 1
        %v5694 = vadd.f32 %v5692, %v5693
        %v5695 = vsel %vm1445, %v5625, 0.0
        %v5696 = vrot.slane %v5695, 4
        %v5697 = vadd.f32 %v5695, %v5696
        %v5698 = vrot.slane %v5697, 2
        %v5699 = vadd.f32 %v5697, %v5698
        %v5700 = vrot.slane %v5699, 1
        %v5701 = vadd.f32 %v5699, %v5700
        %v5702 = vsel %vm1445, %v5626, 0.0
        %v5703 = vrot.slane %v5702, 4
        %v5704 = vadd.f32 %v5702, %v5703
        %v5705 = vrot.slane %v5704, 2
        %v5706 = vadd.f32 %v5704, %v5705
        %v5707 = vrot.slane %v5706, 1
        %v5708 = vadd.f32 %v5706, %v5707
        %v5709 = vsel %vm1445, %v5627, 0.0
        %v5710 = vrot.slane %v5709, 4
        %v5711 = vadd.f32 %v5709, %v5710
        %v5712 = vrot.slane %v5711, 2
        %v5713 = vadd.f32 %v5711, %v5712
        %v5714 = vrot.slane %v5713, 1
        %v5715 = vadd.f32 %v5713, %v5714
        %v5716 = vsel %vm1445, %v5628, 0.0
        %v5717 = vrot.slane %v5716, 4
        %v5718 = vadd.f32 %v5716, %v5717
        %v5719 = vrot.slane %v5718, 2
        %v5720 = vadd.f32 %v5718, %v5719
        %v5721 = vrot.slane %v5720, 1
        %v5722 = vadd.f32 %v5720, %v5721
        %v5723 = vsel %vm1445, %v5629, 0.0
        %v5724 = vrot.slane %v5723, 4
        %v5725 = vadd.f32 %v5723, %v5724
        %v5726 = vrot.slane %v5725, 2
        %v5727 = vadd.f32 %v5725, %v5726
        %v5728 = vrot.slane %v5727, 1
        %v5729 = vadd.f32 %v5727, %v5728
        %v5730 = vsel %vm1445, %v5630, 0.0
        %v5731 = vrot.slane %v5730, 4
        %v5732 = vadd.f32 %v5730, %v5731
        %v5733 = vrot.slane %v5732, 2
        %v5734 = vadd.f32 %v5732, %v5733
        %v5735 = vrot.slane %v5734, 1
        %v5736 = vadd.f32 %v5734, %v5735
        %v5737 = vsel %vm1445, %v5631, 0.0
        %v5738 = vrot.slane %v5737, 4
        %v5739 = vadd.f32 %v5737, %v5738
        %v5740 = vrot.slane %v5739, 2
        %v5741 = vadd.f32 %v5739, %v5740
        %v5742 = vrot.slane %v5741, 1
        %v5743 = vadd.f32 %v5741, %v5742
        %5744 = vrot.lane.b32.xlu0 %v785, 20
        %v5745 = vpop.permute.xlu0 %5744
        %5746 = vrot.lane.b32.xlu0 %v786, 20
        %v5747 = vpop.permute.xlu0 %5746
        %5748 = vrot.lane.b32.xlu0 %v787, 20
        %v5749 = vpop.permute.xlu0 %5748
        %5750 = vrot.lane.b32.xlu0 %v788, 20
        %v5751 = vpop.permute.xlu0 %5750
        %5752 = vrot.lane.b32.xlu0 %v789, 20
        %v5753 = vpop.permute.xlu0 %5752
        %5754 = vrot.lane.b32.xlu0 %v790, 20
        %v5755 = vpop.permute.xlu0 %5754
        %5756 = vrot.lane.b32.xlu0 %v791, 20
        %v5757 = vpop.permute.xlu0 %5756
        %5758 = vrot.lane.b32.xlu0 %v792, 20
        %v5759 = vpop.permute.xlu0 %5758
        %5760 = vrot.lane.b32.xlu0 %v921, 20
        %v5761 = vpop.permute.xlu0 %5760
        %5762 = vrot.lane.b32.xlu0 %v922, 20
        %v5763 = vpop.permute.xlu0 %5762
        %5764 = vrot.lane.b32.xlu0 %v923, 20
        %v5765 = vpop.permute.xlu0 %5764
        %5766 = vrot.lane.b32.xlu0 %v924, 20
        %v5767 = vpop.permute.xlu0 %5766
        %5768 = vrot.lane.b32.xlu0 %v925, 20
        %v5769 = vpop.permute.xlu0 %5768
        %5770 = vrot.lane.b32.xlu0 %v926, 20
        %v5771 = vpop.permute.xlu0 %5770
        %5772 = vrot.lane.b32.xlu0 %v927, 20
        %v5773 = vpop.permute.xlu0 %5772
        %5774 = vrot.lane.b32.xlu0 %v928, 20
        %v5775 = vpop.permute.xlu0 %5774
        %v5792 = vmul.f32 %v1352, %v5745
        %v5793 = vmul.f32 %v1356, %v5747
        %v5794 = vmul.f32 %v1360, %v5749
        %v5795 = vmul.f32 %v1364, %v5751
        %v5796 = vmul.f32 %v1368, %v5753
        %v5797 = vmul.f32 %v1372, %v5755
        %v5798 = vmul.f32 %v1376, %v5757
        %v5799 = vmul.f32 %v1380, %v5759
        %v5800 = vmul.f32 %v1384, %v5761
        %v5801 = vmul.f32 %v1388, %v5763
        %v5802 = vmul.f32 %v1392, %v5765
        %v5803 = vmul.f32 %v1396, %v5767
        %v5804 = vmul.f32 %v1400, %v5769
        %v5805 = vmul.f32 %v1404, %v5771
        %v5806 = vmul.f32 %v1408, %v5773
        %v5807 = vmul.f32 %v1412, %v5775
        %5824 = vrot.lane.b32.xlu0 %v5792, 108
        %v5825 = vpop.permute.xlu0 %5824
        %5826 = vrot.lane.b32.xlu0 %v5793, 108
        %v5827 = vpop.permute.xlu0 %5826
        %5828 = vrot.lane.b32.xlu0 %v5794, 108
        %v5829 = vpop.permute.xlu0 %5828
        %5830 = vrot.lane.b32.xlu0 %v5795, 108
        %v5831 = vpop.permute.xlu0 %5830
        %5832 = vrot.lane.b32.xlu0 %v5796, 108
        %v5833 = vpop.permute.xlu0 %5832
        %5834 = vrot.lane.b32.xlu0 %v5797, 108
        %v5835 = vpop.permute.xlu0 %5834
        %5836 = vrot.lane.b32.xlu0 %v5798, 108
        %v5837 = vpop.permute.xlu0 %5836
        %5838 = vrot.lane.b32.xlu0 %v5799, 108
        %v5839 = vpop.permute.xlu0 %5838
        %5840 = vrot.lane.b32.xlu0 %v5800, 108
        %v5841 = vpop.permute.xlu0 %5840
        %5842 = vrot.lane.b32.xlu0 %v5801, 108
        %v5843 = vpop.permute.xlu0 %5842
        %5844 = vrot.lane.b32.xlu0 %v5802, 108
        %v5845 = vpop.permute.xlu0 %5844
        %5846 = vrot.lane.b32.xlu0 %v5803, 108
        %v5847 = vpop.permute.xlu0 %5846
        %5848 = vrot.lane.b32.xlu0 %v5804, 108
        %v5849 = vpop.permute.xlu0 %5848
        %5850 = vrot.lane.b32.xlu0 %v5805, 108
        %v5851 = vpop.permute.xlu0 %5850
        %5852 = vrot.lane.b32.xlu0 %v5806, 108
        %v5853 = vpop.permute.xlu0 %5852
        %5854 = vrot.lane.b32.xlu0 %v5807, 108
        %v5855 = vpop.permute.xlu0 %5854
        %v5872 = vsel %vm1445, %v5825, 0.0
        %5873 = vadd.xlane.f32.xlu0 %v5872
        %v5874 = vpop.xlane.xlu0 %5873
        %v5875 = vsel %vm1445, %v5827, 0.0
        %5876 = vadd.xlane.f32.xlu0 %v5875
        %v5877 = vpop.xlane.xlu0 %5876
        %v5878 = vsel %vm1445, %v5829, 0.0
        %5879 = vadd.xlane.f32.xlu0 %v5878
        %v5880 = vpop.xlane.xlu0 %5879
        %v5881 = vsel %vm1445, %v5831, 0.0
        %5882 = vadd.xlane.f32.xlu0 %v5881
        %v5883 = vpop.xlane.xlu0 %5882
        %v5884 = vsel %vm1445, %v5833, 0.0
        %5885 = vadd.xlane.f32.xlu0 %v5884
        %v5886 = vpop.xlane.xlu0 %5885
        %v5887 = vsel %vm1445, %v5835, 0.0
        %5888 = vadd.xlane.f32.xlu0 %v5887
        %v5889 = vpop.xlane.xlu0 %5888
        %v5890 = vsel %vm1445, %v5837, 0.0
        %5891 = vadd.xlane.f32.xlu0 %v5890
        %v5892 = vpop.xlane.xlu0 %5891
        %v5893 = vsel %vm1445, %v5839, 0.0
        %5894 = vadd.xlane.f32.xlu0 %v5893
        %v5895 = vpop.xlane.xlu0 %5894
        %v5896 = vsel %vm1445, %v5841, 0.0
        %5897 = vadd.xlane.f32.xlu0 %v5896
        %v5898 = vpop.xlane.xlu0 %5897
        %v5899 = vsel %vm1445, %v5843, 0.0
        %5900 = vadd.xlane.f32.xlu0 %v5899
        %v5901 = vpop.xlane.xlu0 %5900
        %v5902 = vsel %vm1445, %v5845, 0.0
        %5903 = vadd.xlane.f32.xlu0 %v5902
        %v5904 = vpop.xlane.xlu0 %5903
        %v5905 = vsel %vm1445, %v5847, 0.0
        %5906 = vadd.xlane.f32.xlu0 %v5905
        %v5907 = vpop.xlane.xlu0 %5906
        %v5908 = vsel %vm1445, %v5849, 0.0
        %5909 = vadd.xlane.f32.xlu0 %v5908
        %v5910 = vpop.xlane.xlu0 %5909
        %v5911 = vsel %vm1445, %v5851, 0.0
        %5912 = vadd.xlane.f32.xlu0 %v5911
        %v5913 = vpop.xlane.xlu0 %5912
        %v5914 = vsel %vm1445, %v5853, 0.0
        %5915 = vadd.xlane.f32.xlu0 %v5914
        %v5916 = vpop.xlane.xlu0 %5915
        %v5917 = vsel %vm1445, %v5855, 0.0
        %5918 = vadd.xlane.f32.xlu0 %v5917
        %v5919 = vpop.xlane.xlu0 %5918
        %v5936 = vlaneseq
        %v5937 = vshrl.u32 %v5936, 7
        %v5938 = vsub.s32 %v1511, %v5937
        %v5939 = vrot.slane %v5874, %v5938
        %v5940 = vlaneseq
        %v5941 = vshrl.u32 %v5940, 7
        %v5942 = vsub.s32 %v1511, %v5941
        %v5943 = vrot.slane %v5877, %v5942
        %v5944 = vlaneseq
        %v5945 = vshrl.u32 %v5944, 7
        %v5946 = vsub.s32 %v1511, %v5945
        %v5947 = vrot.slane %v5880, %v5946
        %v5948 = vlaneseq
        %v5949 = vshrl.u32 %v5948, 7
        %v5950 = vsub.s32 %v1511, %v5949
        %v5951 = vrot.slane %v5883, %v5950
        %v5952 = vlaneseq
        %v5953 = vshrl.u32 %v5952, 7
        %v5954 = vsub.s32 %v1511, %v5953
        %v5955 = vrot.slane %v5886, %v5954
        %v5956 = vlaneseq
        %v5957 = vshrl.u32 %v5956, 7
        %v5958 = vsub.s32 %v1511, %v5957
        %v5959 = vrot.slane %v5889, %v5958
        %v5960 = vlaneseq
        %v5961 = vshrl.u32 %v5960, 7
        %v5962 = vsub.s32 %v1511, %v5961
        %v5963 = vrot.slane %v5892, %v5962
        %v5964 = vlaneseq
        %v5965 = vshrl.u32 %v5964, 7
        %v5966 = vsub.s32 %v1511, %v5965
        %v5967 = vrot.slane %v5895, %v5966
        %v5968 = vlaneseq
        %v5969 = vshrl.u32 %v5968, 7
        %v5970 = vsub.s32 %v1511, %v5969
        %v5971 = vrot.slane %v5898, %v5970
        %v5972 = vlaneseq
        %v5973 = vshrl.u32 %v5972, 7
        %v5974 = vsub.s32 %v1511, %v5973
        %v5975 = vrot.slane %v5901, %v5974
        %v5976 = vlaneseq
        %v5977 = vshrl.u32 %v5976, 7
        %v5978 = vsub.s32 %v1511, %v5977
        %v5979 = vrot.slane %v5904, %v5978
        %v5980 = vlaneseq
        %v5981 = vshrl.u32 %v5980, 7
        %v5982 = vsub.s32 %v1511, %v5981
        %v5983 = vrot.slane %v5907, %v5982
        %v5984 = vlaneseq
        %v5985 = vshrl.u32 %v5984, 7
        %v5986 = vsub.s32 %v1511, %v5985
        %v5987 = vrot.slane %v5910, %v5986
        %v5988 = vlaneseq
        %v5989 = vshrl.u32 %v5988, 7
        %v5990 = vsub.s32 %v1511, %v5989
        %v5991 = vrot.slane %v5913, %v5990
        %v5992 = vlaneseq
        %v5993 = vshrl.u32 %v5992, 7
        %v5994 = vsub.s32 %v1511, %v5993
        %v5995 = vrot.slane %v5916, %v5994
        %v5996 = vlaneseq
        %v5997 = vshrl.u32 %v5996, 7
        %v5998 = vsub.s32 %v1511, %v5997
        %v5999 = vrot.slane %v5919, %v5998
        %v6000 = vsel %vm1576, %v5943, %v5939
        %v6001 = vsel %vm1578, %v5947, %v6000
        %v6002 = vsel %vm1580, %v5951, %v6001
        %v6003 = vsel %vm1582, %v5955, %v6002
        %v6004 = vsel %vm1584, %v5959, %v6003
        %v6005 = vsel %vm1586, %v5963, %v6004
        %v6006 = vsel %vm1588, %v5967, %v6005
        %v6007 = vsel %vm1576, %v5975, %v5971
        %v6008 = vsel %vm1578, %v5979, %v6007
        %v6009 = vsel %vm1580, %v5983, %v6008
        %v6010 = vsel %vm1582, %v5987, %v6009
        %v6011 = vsel %vm1584, %v5991, %v6010
        %v6012 = vsel %vm1586, %v5995, %v6011
        %v6013 = vsel %vm1588, %v5999, %v6012
        %v6016 = vsel %vm1599, %v6006, -inf
        %6017 = vmax.xlane.f32.xlu0 %v6016
        %v6018 = vpop.xlane.xlu0 %6017
        %v6019 = vsel %vm1599, %v6013, -inf
        %6020 = vmax.xlane.f32.xlu0 %v6019
        %v6021 = vpop.xlane.xlu0 %6020
        %v6024 = vlaneseq
        %v6025 = vshrl.u32 %v6024, 7
        %v6026 = vsub.s32 0, %v6025
        %v6027 = vrot.slane %v6018, %v6026
        %v6028 = vlaneseq
        %v6029 = vshrl.u32 %v6028, 7
        %v6030 = vsub.s32 1, %v6029
        %v6031 = vrot.slane %v6018, %v6030
        %v6032 = vlaneseq
        %v6033 = vshrl.u32 %v6032, 7
        %v6034 = vsub.s32 2, %v6033
        %v6035 = vrot.slane %v6018, %v6034
        %v6036 = vlaneseq
        %v6037 = vshrl.u32 %v6036, 7
        %v6038 = vsub.s32 3, %v6037
        %v6039 = vrot.slane %v6018, %v6038
        %v6040 = vlaneseq
        %v6041 = vshrl.u32 %v6040, 7
        %v6042 = vsub.s32 4, %v6041
        %v6043 = vrot.slane %v6018, %v6042
        %v6044 = vlaneseq
        %v6045 = vshrl.u32 %v6044, 7
        %v6046 = vsub.s32 5, %v6045
        %v6047 = vrot.slane %v6018, %v6046
        %v6048 = vlaneseq
        %v6049 = vshrl.u32 %v6048, 7
        %v6050 = vsub.s32 6, %v6049
        %v6051 = vrot.slane %v6018, %v6050
        %v6052 = vlaneseq
        %v6053 = vshrl.u32 %v6052, 7
        %v6054 = vsub.s32 7, %v6053
        %v6055 = vrot.slane %v6018, %v6054
        %v6056 = vlaneseq
        %v6057 = vshrl.u32 %v6056, 7
        %v6058 = vsub.s32 0, %v6057
        %v6059 = vrot.slane %v6021, %v6058
        %v6060 = vlaneseq
        %v6061 = vshrl.u32 %v6060, 7
        %v6062 = vsub.s32 1, %v6061
        %v6063 = vrot.slane %v6021, %v6062
        %v6064 = vlaneseq
        %v6065 = vshrl.u32 %v6064, 7
        %v6066 = vsub.s32 2, %v6065
        %v6067 = vrot.slane %v6021, %v6066
        %v6068 = vlaneseq
        %v6069 = vshrl.u32 %v6068, 7
        %v6070 = vsub.s32 3, %v6069
        %v6071 = vrot.slane %v6021, %v6070
        %v6072 = vlaneseq
        %v6073 = vshrl.u32 %v6072, 7
        %v6074 = vsub.s32 4, %v6073
        %v6075 = vrot.slane %v6021, %v6074
        %v6076 = vlaneseq
        %v6077 = vshrl.u32 %v6076, 7
        %v6078 = vsub.s32 5, %v6077
        %v6079 = vrot.slane %v6021, %v6078
        %v6080 = vlaneseq
        %v6081 = vshrl.u32 %v6080, 7
        %v6082 = vsub.s32 6, %v6081
        %v6083 = vrot.slane %v6021, %v6082
        %v6084 = vlaneseq
        %v6085 = vshrl.u32 %v6084, 7
        %v6086 = vsub.s32 7, %v6085
        %v6087 = vrot.slane %v6021, %v6086
        %v6104 = vsub.f32 %v5874, %v6027
        %v6105 = vsub.f32 %v5877, %v6031
        %v6106 = vsub.f32 %v5880, %v6035
        %v6107 = vsub.f32 %v5883, %v6039
        %v6108 = vsub.f32 %v5886, %v6043
        %v6109 = vsub.f32 %v5889, %v6047
        %v6110 = vsub.f32 %v5892, %v6051
        %v6111 = vsub.f32 %v5895, %v6055
        %v6112 = vsub.f32 %v5898, %v6059
        %v6113 = vsub.f32 %v5901, %v6063
        %v6114 = vsub.f32 %v5904, %v6067
        %v6115 = vsub.f32 %v5907, %v6071
        %v6116 = vsub.f32 %v5910, %v6075
        %v6117 = vsub.f32 %v5913, %v6079
        %v6118 = vsub.f32 %v5916, %v6083
        %v6119 = vsub.f32 %v5919, %v6087
        %v6120 = vmul.f32 %v6104, 1.442695
        %v6121 = vpow.pop %v6120
        %v6122 = vmul.f32 %v6105, 1.442695
        %v6123 = vpow.pop %v6122
        %v6124 = vmul.f32 %v6106, 1.442695
        %v6125 = vpow.pop %v6124
        %v6126 = vmul.f32 %v6107, 1.442695
        %v6127 = vpow.pop %v6126
        %v6128 = vmul.f32 %v6108, 1.442695
        %v6129 = vpow.pop %v6128
        %v6130 = vmul.f32 %v6109, 1.442695
        %v6131 = vpow.pop %v6130
        %v6132 = vmul.f32 %v6110, 1.442695
        %v6133 = vpow.pop %v6132
        %v6134 = vmul.f32 %v6111, 1.442695
        %v6135 = vpow.pop %v6134
        %v6136 = vmul.f32 %v6112, 1.442695
        %v6137 = vpow.pop %v6136
        %v6138 = vmul.f32 %v6113, 1.442695
        %v6139 = vpow.pop %v6138
        %v6140 = vmul.f32 %v6114, 1.442695
        %v6141 = vpow.pop %v6140
        %v6142 = vmul.f32 %v6115, 1.442695
        %v6143 = vpow.pop %v6142
        %v6144 = vmul.f32 %v6116, 1.442695
        %v6145 = vpow.pop %v6144
        %v6146 = vmul.f32 %v6117, 1.442695
        %v6147 = vpow.pop %v6146
        %v6148 = vmul.f32 %v6118, 1.442695
        %v6149 = vpow.pop %v6148
        %v6150 = vmul.f32 %v6119, 1.442695
        %v6151 = vpow.pop %v6150
        %6168 = vset.pattern.permute.xlu0 0
        %6169 = vperm.xlu0 %6168, %v6121
        %v6170 = vpop.permute.xlu0 %6169
        %6171 = vset.pattern.permute.xlu0 0
        %6172 = vperm.xlu0 %6171, %v6123
        %v6173 = vpop.permute.xlu0 %6172
        %6174 = vset.pattern.permute.xlu0 0
        %6175 = vperm.xlu0 %6174, %v6125
        %v6176 = vpop.permute.xlu0 %6175
        %6177 = vset.pattern.permute.xlu0 0
        %6178 = vperm.xlu0 %6177, %v6127
        %v6179 = vpop.permute.xlu0 %6178
        %6180 = vset.pattern.permute.xlu0 0
        %6181 = vperm.xlu0 %6180, %v6129
        %v6182 = vpop.permute.xlu0 %6181
        %6183 = vset.pattern.permute.xlu0 0
        %6184 = vperm.xlu0 %6183, %v6131
        %v6185 = vpop.permute.xlu0 %6184
        %6186 = vset.pattern.permute.xlu0 0
        %6187 = vperm.xlu0 %6186, %v6133
        %v6188 = vpop.permute.xlu0 %6187
        %6189 = vset.pattern.permute.xlu0 0
        %6190 = vperm.xlu0 %6189, %v6135
        %v6191 = vpop.permute.xlu0 %6190
        %6192 = vset.pattern.permute.xlu0 0
        %6193 = vperm.xlu0 %6192, %v6137
        %v6194 = vpop.permute.xlu0 %6193
        %6195 = vset.pattern.permute.xlu0 0
        %6196 = vperm.xlu0 %6195, %v6139
        %v6197 = vpop.permute.xlu0 %6196
        %6198 = vset.pattern.permute.xlu0 0
        %6199 = vperm.xlu0 %6198, %v6141
        %v6200 = vpop.permute.xlu0 %6199
        %6201 = vset.pattern.permute.xlu0 0
        %6202 = vperm.xlu0 %6201, %v6143
        %v6203 = vpop.permute.xlu0 %6202
        %6204 = vset.pattern.permute.xlu0 0
        %6205 = vperm.xlu0 %6204, %v6145
        %v6206 = vpop.permute.xlu0 %6205
        %6207 = vset.pattern.permute.xlu0 0
        %6208 = vperm.xlu0 %6207, %v6147
        %v6209 = vpop.permute.xlu0 %6208
        %6210 = vset.pattern.permute.xlu0 0
        %6211 = vperm.xlu0 %6210, %v6149
        %v6212 = vpop.permute.xlu0 %6211
        %6213 = vset.pattern.permute.xlu0 0
        %6214 = vperm.xlu0 %6213, %v6151
        %v6215 = vpop.permute.xlu0 %6214
        %v6216 = vlaneseq
        %v6217 = vshrl.u32 %v6216, 7
        %v6218 = vsub.s32 %v1511, %v6217
        %v6219 = vrot.slane %v6170, %v6218
        %v6220 = vlaneseq
        %v6221 = vshrl.u32 %v6220, 7
        %v6222 = vsub.s32 %v1511, %v6221
        %v6223 = vrot.slane %v6173, %v6222
        %v6224 = vlaneseq
        %v6225 = vshrl.u32 %v6224, 7
        %v6226 = vsub.s32 %v1511, %v6225
        %v6227 = vrot.slane %v6176, %v6226
        %v6228 = vlaneseq
        %v6229 = vshrl.u32 %v6228, 7
        %v6230 = vsub.s32 %v1511, %v6229
        %v6231 = vrot.slane %v6179, %v6230
        %v6232 = vlaneseq
        %v6233 = vshrl.u32 %v6232, 7
        %v6234 = vsub.s32 %v1511, %v6233
        %v6235 = vrot.slane %v6182, %v6234
        %v6236 = vlaneseq
        %v6237 = vshrl.u32 %v6236, 7
        %v6238 = vsub.s32 %v1511, %v6237
        %v6239 = vrot.slane %v6185, %v6238
        %v6240 = vlaneseq
        %v6241 = vshrl.u32 %v6240, 7
        %v6242 = vsub.s32 %v1511, %v6241
        %v6243 = vrot.slane %v6188, %v6242
        %v6244 = vlaneseq
        %v6245 = vshrl.u32 %v6244, 7
        %v6246 = vsub.s32 %v1511, %v6245
        %v6247 = vrot.slane %v6191, %v6246
        %v6248 = vlaneseq
        %v6249 = vshrl.u32 %v6248, 7
        %v6250 = vsub.s32 %v1511, %v6249
        %v6251 = vrot.slane %v6194, %v6250
        %v6252 = vlaneseq
        %v6253 = vshrl.u32 %v6252, 7
        %v6254 = vsub.s32 %v1511, %v6253
        %v6255 = vrot.slane %v6197, %v6254
        %v6256 = vlaneseq
        %v6257 = vshrl.u32 %v6256, 7
        %v6258 = vsub.s32 %v1511, %v6257
        %v6259 = vrot.slane %v6200, %v6258
        %v6260 = vlaneseq
        %v6261 = vshrl.u32 %v6260, 7
        %v6262 = vsub.s32 %v1511, %v6261
        %v6263 = vrot.slane %v6203, %v6262
        %v6264 = vlaneseq
        %v6265 = vshrl.u32 %v6264, 7
        %v6266 = vsub.s32 %v1511, %v6265
        %v6267 = vrot.slane %v6206, %v6266
        %v6268 = vlaneseq
        %v6269 = vshrl.u32 %v6268, 7
        %v6270 = vsub.s32 %v1511, %v6269
        %v6271 = vrot.slane %v6209, %v6270
        %v6272 = vlaneseq
        %v6273 = vshrl.u32 %v6272, 7
        %v6274 = vsub.s32 %v1511, %v6273
        %v6275 = vrot.slane %v6212, %v6274
        %v6276 = vlaneseq
        %v6277 = vshrl.u32 %v6276, 7
        %v6278 = vsub.s32 %v1511, %v6277
        %v6279 = vrot.slane %v6215, %v6278
        %v6280 = vsel %vm1576, %v6223, %v6219
        %v6281 = vsel %vm1578, %v6227, %v6280
        %v6282 = vsel %vm1580, %v6231, %v6281
        %v6283 = vsel %vm1582, %v6235, %v6282
        %v6284 = vsel %vm1584, %v6239, %v6283
        %v6285 = vsel %vm1586, %v6243, %v6284
        %v6286 = vsel %vm1588, %v6247, %v6285
        %v6287 = vsel %vm1576, %v6255, %v6251
        %v6288 = vsel %vm1578, %v6259, %v6287
        %v6289 = vsel %vm1580, %v6263, %v6288
        %v6290 = vsel %vm1582, %v6267, %v6289
        %v6291 = vsel %vm1584, %v6271, %v6290
        %v6292 = vsel %vm1586, %v6275, %v6291
        %v6293 = vsel %vm1588, %v6279, %v6292
        %v6296 = vsel %vm1599, %v6286, 0.0
        %6297 = vadd.xlane.f32.xlu0 %v6296
        %v6298 = vpop.xlane.xlu0 %6297
        %v6299 = vsel %vm1599, %v6293, 0.0
        %6300 = vadd.xlane.f32.xlu0 %v6299
        %v6301 = vpop.xlane.xlu0 %6300
        %v6304 = vlaneseq
        %v6305 = vshrl.u32 %v6304, 7
        %v6306 = vsub.s32 0, %v6305
        %v6307 = vrot.slane %v6298, %v6306
        %v6308 = vlaneseq
        %v6309 = vshrl.u32 %v6308, 7
        %v6310 = vsub.s32 1, %v6309
        %v6311 = vrot.slane %v6298, %v6310
        %v6312 = vlaneseq
        %v6313 = vshrl.u32 %v6312, 7
        %v6314 = vsub.s32 2, %v6313
        %v6315 = vrot.slane %v6298, %v6314
        %v6316 = vlaneseq
        %v6317 = vshrl.u32 %v6316, 7
        %v6318 = vsub.s32 3, %v6317
        %v6319 = vrot.slane %v6298, %v6318
        %v6320 = vlaneseq
        %v6321 = vshrl.u32 %v6320, 7
        %v6322 = vsub.s32 4, %v6321
        %v6323 = vrot.slane %v6298, %v6322
        %v6324 = vlaneseq
        %v6325 = vshrl.u32 %v6324, 7
        %v6326 = vsub.s32 5, %v6325
        %v6327 = vrot.slane %v6298, %v6326
        %v6328 = vlaneseq
        %v6329 = vshrl.u32 %v6328, 7
        %v6330 = vsub.s32 6, %v6329
        %v6331 = vrot.slane %v6298, %v6330
        %v6332 = vlaneseq
        %v6333 = vshrl.u32 %v6332, 7
        %v6334 = vsub.s32 7, %v6333
        %v6335 = vrot.slane %v6298, %v6334
        %v6336 = vlaneseq
        %v6337 = vshrl.u32 %v6336, 7
        %v6338 = vsub.s32 0, %v6337
        %v6339 = vrot.slane %v6301, %v6338
        %v6340 = vlaneseq
        %v6341 = vshrl.u32 %v6340, 7
        %v6342 = vsub.s32 1, %v6341
        %v6343 = vrot.slane %v6301, %v6342
        %v6344 = vlaneseq
        %v6345 = vshrl.u32 %v6344, 7
        %v6346 = vsub.s32 2, %v6345
        %v6347 = vrot.slane %v6301, %v6346
        %v6348 = vlaneseq
        %v6349 = vshrl.u32 %v6348, 7
        %v6350 = vsub.s32 3, %v6349
        %v6351 = vrot.slane %v6301, %v6350
        %v6352 = vlaneseq
        %v6353 = vshrl.u32 %v6352, 7
        %v6354 = vsub.s32 4, %v6353
        %v6355 = vrot.slane %v6301, %v6354
        %v6356 = vlaneseq
        %v6357 = vshrl.u32 %v6356, 7
        %v6358 = vsub.s32 5, %v6357
        %v6359 = vrot.slane %v6301, %v6358
        %v6360 = vlaneseq
        %v6361 = vshrl.u32 %v6360, 7
        %v6362 = vsub.s32 6, %v6361
        %v6363 = vrot.slane %v6301, %v6362
        %v6364 = vlaneseq
        %v6365 = vshrl.u32 %v6364, 7
        %v6366 = vsub.s32 7, %v6365
        %v6367 = vrot.slane %v6301, %v6366
        %v6384 = vrcp.pop %v6307
        %v6385 = vmul.f32 %v6121, %v6384
        %v6386 = vrcp.pop %v6311
        %v6387 = vmul.f32 %v6123, %v6386
        %v6388 = vrcp.pop %v6315
        %v6389 = vmul.f32 %v6125, %v6388
        %v6390 = vrcp.pop %v6319
        %v6391 = vmul.f32 %v6127, %v6390
        %v6392 = vrcp.pop %v6323
        %v6393 = vmul.f32 %v6129, %v6392
        %v6394 = vrcp.pop %v6327
        %v6395 = vmul.f32 %v6131, %v6394
        %v6396 = vrcp.pop %v6331
        %v6397 = vmul.f32 %v6133, %v6396
        %v6398 = vrcp.pop %v6335
        %v6399 = vmul.f32 %v6135, %v6398
        %v6400 = vrcp.pop %v6339
        %v6401 = vmul.f32 %v6137, %v6400
        %v6402 = vrcp.pop %v6343
        %v6403 = vmul.f32 %v6139, %v6402
        %v6404 = vrcp.pop %v6347
        %v6405 = vmul.f32 %v6141, %v6404
        %v6406 = vrcp.pop %v6351
        %v6407 = vmul.f32 %v6143, %v6406
        %v6408 = vrcp.pop %v6355
        %v6409 = vmul.f32 %v6145, %v6408
        %v6410 = vrcp.pop %v6359
        %v6411 = vmul.f32 %v6147, %v6410
        %v6412 = vrcp.pop %v6363
        %v6413 = vmul.f32 %v6149, %v6412
        %v6414 = vrcp.pop %v6367
        %v6415 = vmul.f32 %v6151, %v6414
        %6417 = vset.pattern.permute.xlu0 0
        %6418 = vperm.xlu0 %6417, %v6385
        %v6419 = vpop.permute.xlu0 %6418
        %6422 = vset.pattern.permute.xlu0 0
        %6423 = vperm.xlu0 %6422, %v6387
        %v6424 = vpop.permute.xlu0 %6423
        %6427 = vset.pattern.permute.xlu0 0
        %6428 = vperm.xlu0 %6427, %v6389
        %v6429 = vpop.permute.xlu0 %6428
        %6432 = vset.pattern.permute.xlu0 0
        %6433 = vperm.xlu0 %6432, %v6391
        %v6434 = vpop.permute.xlu0 %6433
        %6437 = vset.pattern.permute.xlu0 0
        %6438 = vperm.xlu0 %6437, %v6393
        %v6439 = vpop.permute.xlu0 %6438
        %6442 = vset.pattern.permute.xlu0 0
        %6443 = vperm.xlu0 %6442, %v6395
        %v6444 = vpop.permute.xlu0 %6443
        %6447 = vset.pattern.permute.xlu0 0
        %6448 = vperm.xlu0 %6447, %v6397
        %v6449 = vpop.permute.xlu0 %6448
        %6452 = vset.pattern.permute.xlu0 0
        %6453 = vperm.xlu0 %6452, %v6399
        %v6454 = vpop.permute.xlu0 %6453
        %6457 = vset.pattern.permute.xlu0 0
        %6458 = vperm.xlu0 %6457, %v6401
        %v6459 = vpop.permute.xlu0 %6458
        %6462 = vset.pattern.permute.xlu0 0
        %6463 = vperm.xlu0 %6462, %v6403
        %v6464 = vpop.permute.xlu0 %6463
        %6467 = vset.pattern.permute.xlu0 0
        %6468 = vperm.xlu0 %6467, %v6405
        %v6469 = vpop.permute.xlu0 %6468
        %6472 = vset.pattern.permute.xlu0 0
        %6473 = vperm.xlu0 %6472, %v6407
        %v6474 = vpop.permute.xlu0 %6473
        %6477 = vset.pattern.permute.xlu0 0
        %6478 = vperm.xlu0 %6477, %v6409
        %v6479 = vpop.permute.xlu0 %6478
        %6482 = vset.pattern.permute.xlu0 0
        %6483 = vperm.xlu0 %6482, %v6411
        %v6484 = vpop.permute.xlu0 %6483
        %6487 = vset.pattern.permute.xlu0 0
        %6488 = vperm.xlu0 %6487, %v6413
        %v6489 = vpop.permute.xlu0 %6488
        %6492 = vset.pattern.permute.xlu0 0
        %6493 = vperm.xlu0 %6492, %v6415
        %v6494 = vpop.permute.xlu0 %6493
        %v6496 = vmul.f32 %v6419, %v1105
        %v6497 = vmul.f32 %v6424, %v1106
        %v6498 = vmul.f32 %v6429, %v1107
        %v6499 = vmul.f32 %v6434, %v1108
        %v6500 = vmul.f32 %v6439, %v1109
        %v6501 = vmul.f32 %v6444, %v1110
        %v6502 = vmul.f32 %v6449, %v1111
        %v6503 = vmul.f32 %v6454, %v1112
        %v6504 = vmul.f32 %v6459, %v1241
        %v6505 = vmul.f32 %v6464, %v1242
        %v6506 = vmul.f32 %v6469, %v1243
        %v6507 = vmul.f32 %v6474, %v1244
        %v6508 = vmul.f32 %v6479, %v1245
        %v6509 = vmul.f32 %v6484, %v1246
        %v6510 = vmul.f32 %v6489, %v1247
        %v6511 = vmul.f32 %v6494, %v1248
        %v6512 = vsel %vm1445, %v6496, 0.0
        %v6513 = vrot.slane %v6512, 4
        %v6514 = vadd.f32 %v6512, %v6513
        %v6515 = vrot.slane %v6514, 2
        %v6516 = vadd.f32 %v6514, %v6515
        %v6517 = vrot.slane %v6516, 1
        %v6518 = vadd.f32 %v6516, %v6517
        %v6519 = vsel %vm1445, %v6497, 0.0
        %v6520 = vrot.slane %v6519, 4
        %v6521 = vadd.f32 %v6519, %v6520
        %v6522 = vrot.slane %v6521, 2
        %v6523 = vadd.f32 %v6521, %v6522
        %v6524 = vrot.slane %v6523, 1
        %v6525 = vadd.f32 %v6523, %v6524
        %v6526 = vsel %vm1445, %v6498, 0.0
        %v6527 = vrot.slane %v6526, 4
        %v6528 = vadd.f32 %v6526, %v6527
        %v6529 = vrot.slane %v6528, 2
        %v6530 = vadd.f32 %v6528, %v6529
        %v6531 = vrot.slane %v6530, 1
        %v6532 = vadd.f32 %v6530, %v6531
        %v6533 = vsel %vm1445, %v6499, 0.0
        %v6534 = vrot.slane %v6533, 4
        %v6535 = vadd.f32 %v6533, %v6534
        %v6536 = vrot.slane %v6535, 2
        %v6537 = vadd.f32 %v6535, %v6536
        %v6538 = vrot.slane %v6537, 1
        %v6539 = vadd.f32 %v6537, %v6538
        %v6540 = vsel %vm1445, %v6500, 0.0
        %v6541 = vrot.slane %v6540, 4
        %v6542 = vadd.f32 %v6540, %v6541
        %v6543 = vrot.slane %v6542, 2
        %v6544 = vadd.f32 %v6542, %v6543
        %v6545 = vrot.slane %v6544, 1
        %v6546 = vadd.f32 %v6544, %v6545
        %v6547 = vsel %vm1445, %v6501, 0.0
        %v6548 = vrot.slane %v6547, 4
        %v6549 = vadd.f32 %v6547, %v6548
        %v6550 = vrot.slane %v6549, 2
        %v6551 = vadd.f32 %v6549, %v6550
        %v6552 = vrot.slane %v6551, 1
        %v6553 = vadd.f32 %v6551, %v6552
        %v6554 = vsel %vm1445, %v6502, 0.0
        %v6555 = vrot.slane %v6554, 4
        %v6556 = vadd.f32 %v6554, %v6555
        %v6557 = vrot.slane %v6556, 2
        %v6558 = vadd.f32 %v6556, %v6557
        %v6559 = vrot.slane %v6558, 1
        %v6560 = vadd.f32 %v6558, %v6559
        %v6561 = vsel %vm1445, %v6503, 0.0
        %v6562 = vrot.slane %v6561, 4
        %v6563 = vadd.f32 %v6561, %v6562
        %v6564 = vrot.slane %v6563, 2
        %v6565 = vadd.f32 %v6563, %v6564
        %v6566 = vrot.slane %v6565, 1
        %v6567 = vadd.f32 %v6565, %v6566
        %v6568 = vsel %vm1445, %v6504, 0.0
        %v6569 = vrot.slane %v6568, 4
        %v6570 = vadd.f32 %v6568, %v6569
        %v6571 = vrot.slane %v6570, 2
        %v6572 = vadd.f32 %v6570, %v6571
        %v6573 = vrot.slane %v6572, 1
        %v6574 = vadd.f32 %v6572, %v6573
        %v6575 = vsel %vm1445, %v6505, 0.0
        %v6576 = vrot.slane %v6575, 4
        %v6577 = vadd.f32 %v6575, %v6576
        %v6578 = vrot.slane %v6577, 2
        %v6579 = vadd.f32 %v6577, %v6578
        %v6580 = vrot.slane %v6579, 1
        %v6581 = vadd.f32 %v6579, %v6580
        %v6582 = vsel %vm1445, %v6506, 0.0
        %v6583 = vrot.slane %v6582, 4
        %v6584 = vadd.f32 %v6582, %v6583
        %v6585 = vrot.slane %v6584, 2
        %v6586 = vadd.f32 %v6584, %v6585
        %v6587 = vrot.slane %v6586, 1
        %v6588 = vadd.f32 %v6586, %v6587
        %v6589 = vsel %vm1445, %v6507, 0.0
        %v6590 = vrot.slane %v6589, 4
        %v6591 = vadd.f32 %v6589, %v6590
        %v6592 = vrot.slane %v6591, 2
        %v6593 = vadd.f32 %v6591, %v6592
        %v6594 = vrot.slane %v6593, 1
        %v6595 = vadd.f32 %v6593, %v6594
        %v6596 = vsel %vm1445, %v6508, 0.0
        %v6597 = vrot.slane %v6596, 4
        %v6598 = vadd.f32 %v6596, %v6597
        %v6599 = vrot.slane %v6598, 2
        %v6600 = vadd.f32 %v6598, %v6599
        %v6601 = vrot.slane %v6600, 1
        %v6602 = vadd.f32 %v6600, %v6601
        %v6603 = vsel %vm1445, %v6509, 0.0
        %v6604 = vrot.slane %v6603, 4
        %v6605 = vadd.f32 %v6603, %v6604
        %v6606 = vrot.slane %v6605, 2
        %v6607 = vadd.f32 %v6605, %v6606
        %v6608 = vrot.slane %v6607, 1
        %v6609 = vadd.f32 %v6607, %v6608
        %v6610 = vsel %vm1445, %v6510, 0.0
        %v6611 = vrot.slane %v6610, 4
        %v6612 = vadd.f32 %v6610, %v6611
        %v6613 = vrot.slane %v6612, 2
        %v6614 = vadd.f32 %v6612, %v6613
        %v6615 = vrot.slane %v6614, 1
        %v6616 = vadd.f32 %v6614, %v6615
        %v6617 = vsel %vm1445, %v6511, 0.0
        %v6618 = vrot.slane %v6617, 4
        %v6619 = vadd.f32 %v6617, %v6618
        %v6620 = vrot.slane %v6619, 2
        %v6621 = vadd.f32 %v6619, %v6620
        %v6622 = vrot.slane %v6621, 1
        %v6623 = vadd.f32 %v6621, %v6622
        %6624 = vrot.lane.b32.xlu0 %v785, 24
        %v6625 = vpop.permute.xlu0 %6624
        %6626 = vrot.lane.b32.xlu0 %v786, 24
        %v6627 = vpop.permute.xlu0 %6626
        %6628 = vrot.lane.b32.xlu0 %v787, 24
        %v6629 = vpop.permute.xlu0 %6628
        %6630 = vrot.lane.b32.xlu0 %v788, 24
        %v6631 = vpop.permute.xlu0 %6630
        %6632 = vrot.lane.b32.xlu0 %v789, 24
        %v6633 = vpop.permute.xlu0 %6632
        %6634 = vrot.lane.b32.xlu0 %v790, 24
        %v6635 = vpop.permute.xlu0 %6634
        %6636 = vrot.lane.b32.xlu0 %v791, 24
        %v6637 = vpop.permute.xlu0 %6636
        %6638 = vrot.lane.b32.xlu0 %v792, 24
        %v6639 = vpop.permute.xlu0 %6638
        %6640 = vrot.lane.b32.xlu0 %v921, 24
        %v6641 = vpop.permute.xlu0 %6640
        %6642 = vrot.lane.b32.xlu0 %v922, 24
        %v6643 = vpop.permute.xlu0 %6642
        %6644 = vrot.lane.b32.xlu0 %v923, 24
        %v6645 = vpop.permute.xlu0 %6644
        %6646 = vrot.lane.b32.xlu0 %v924, 24
        %v6647 = vpop.permute.xlu0 %6646
        %6648 = vrot.lane.b32.xlu0 %v925, 24
        %v6649 = vpop.permute.xlu0 %6648
        %6650 = vrot.lane.b32.xlu0 %v926, 24
        %v6651 = vpop.permute.xlu0 %6650
        %6652 = vrot.lane.b32.xlu0 %v927, 24
        %v6653 = vpop.permute.xlu0 %6652
        %6654 = vrot.lane.b32.xlu0 %v928, 24
        %v6655 = vpop.permute.xlu0 %6654
        %v6672 = vmul.f32 %v1352, %v6625
        %v6673 = vmul.f32 %v1356, %v6627
        %v6674 = vmul.f32 %v1360, %v6629
        %v6675 = vmul.f32 %v1364, %v6631
        %v6676 = vmul.f32 %v1368, %v6633
        %v6677 = vmul.f32 %v1372, %v6635
        %v6678 = vmul.f32 %v1376, %v6637
        %v6679 = vmul.f32 %v1380, %v6639
        %v6680 = vmul.f32 %v1384, %v6641
        %v6681 = vmul.f32 %v1388, %v6643
        %v6682 = vmul.f32 %v1392, %v6645
        %v6683 = vmul.f32 %v1396, %v6647
        %v6684 = vmul.f32 %v1400, %v6649
        %v6685 = vmul.f32 %v1404, %v6651
        %v6686 = vmul.f32 %v1408, %v6653
        %v6687 = vmul.f32 %v1412, %v6655
        %6704 = vrot.lane.b32.xlu0 %v6672, 104
        %v6705 = vpop.permute.xlu0 %6704
        %6706 = vrot.lane.b32.xlu0 %v6673, 104
        %v6707 = vpop.permute.xlu0 %6706
        %6708 = vrot.lane.b32.xlu0 %v6674, 104
        %v6709 = vpop.permute.xlu0 %6708
        %6710 = vrot.lane.b32.xlu0 %v6675, 104
        %v6711 = vpop.permute.xlu0 %6710
        %6712 = vrot.lane.b32.xlu0 %v6676, 104
        %v6713 = vpop.permute.xlu0 %6712
        %6714 = vrot.lane.b32.xlu0 %v6677, 104
        %v6715 = vpop.permute.xlu0 %6714
        %6716 = vrot.lane.b32.xlu0 %v6678, 104
        %v6717 = vpop.permute.xlu0 %6716
        %6718 = vrot.lane.b32.xlu0 %v6679, 104
        %v6719 = vpop.permute.xlu0 %6718
        %6720 = vrot.lane.b32.xlu0 %v6680, 104
        %v6721 = vpop.permute.xlu0 %6720
        %6722 = vrot.lane.b32.xlu0 %v6681, 104
        %v6723 = vpop.permute.xlu0 %6722
        %6724 = vrot.lane.b32.xlu0 %v6682, 104
        %v6725 = vpop.permute.xlu0 %6724
        %6726 = vrot.lane.b32.xlu0 %v6683, 104
        %v6727 = vpop.permute.xlu0 %6726
        %6728 = vrot.lane.b32.xlu0 %v6684, 104
        %v6729 = vpop.permute.xlu0 %6728
        %6730 = vrot.lane.b32.xlu0 %v6685, 104
        %v6731 = vpop.permute.xlu0 %6730
        %6732 = vrot.lane.b32.xlu0 %v6686, 104
        %v6733 = vpop.permute.xlu0 %6732
        %6734 = vrot.lane.b32.xlu0 %v6687, 104
        %v6735 = vpop.permute.xlu0 %6734
        %v6752 = vsel %vm1445, %v6705, 0.0
        %6753 = vadd.xlane.f32.xlu0 %v6752
        %v6754 = vpop.xlane.xlu0 %6753
        %v6755 = vsel %vm1445, %v6707, 0.0
        %6756 = vadd.xlane.f32.xlu0 %v6755
        %v6757 = vpop.xlane.xlu0 %6756
        %v6758 = vsel %vm1445, %v6709, 0.0
        %6759 = vadd.xlane.f32.xlu0 %v6758
        %v6760 = vpop.xlane.xlu0 %6759
        %v6761 = vsel %vm1445, %v6711, 0.0
        %6762 = vadd.xlane.f32.xlu0 %v6761
        %v6763 = vpop.xlane.xlu0 %6762
        %v6764 = vsel %vm1445, %v6713, 0.0
        %6765 = vadd.xlane.f32.xlu0 %v6764
        %v6766 = vpop.xlane.xlu0 %6765
        %v6767 = vsel %vm1445, %v6715, 0.0
        %6768 = vadd.xlane.f32.xlu0 %v6767
        %v6769 = vpop.xlane.xlu0 %6768
        %v6770 = vsel %vm1445, %v6717, 0.0
        %6771 = vadd.xlane.f32.xlu0 %v6770
        %v6772 = vpop.xlane.xlu0 %6771
        %v6773 = vsel %vm1445, %v6719, 0.0
        %6774 = vadd.xlane.f32.xlu0 %v6773
        %v6775 = vpop.xlane.xlu0 %6774
        %v6776 = vsel %vm1445, %v6721, 0.0
        %6777 = vadd.xlane.f32.xlu0 %v6776
        %v6778 = vpop.xlane.xlu0 %6777
        %v6779 = vsel %vm1445, %v6723, 0.0
        %6780 = vadd.xlane.f32.xlu0 %v6779
        %v6781 = vpop.xlane.xlu0 %6780
        %v6782 = vsel %vm1445, %v6725, 0.0
        %6783 = vadd.xlane.f32.xlu0 %v6782
        %v6784 = vpop.xlane.xlu0 %6783
        %v6785 = vsel %vm1445, %v6727, 0.0
        %6786 = vadd.xlane.f32.xlu0 %v6785
        %v6787 = vpop.xlane.xlu0 %6786
        %v6788 = vsel %vm1445, %v6729, 0.0
        %6789 = vadd.xlane.f32.xlu0 %v6788
        %v6790 = vpop.xlane.xlu0 %6789
        %v6791 = vsel %vm1445, %v6731, 0.0
        %6792 = vadd.xlane.f32.xlu0 %v6791
        %v6793 = vpop.xlane.xlu0 %6792
        %v6794 = vsel %vm1445, %v6733, 0.0
        %6795 = vadd.xlane.f32.xlu0 %v6794
        %v6796 = vpop.xlane.xlu0 %6795
        %v6797 = vsel %vm1445, %v6735, 0.0
        %6798 = vadd.xlane.f32.xlu0 %v6797
        %v6799 = vpop.xlane.xlu0 %6798
        %v6816 = vlaneseq
        %v6817 = vshrl.u32 %v6816, 7
        %v6818 = vsub.s32 %v1511, %v6817
        %v6819 = vrot.slane %v6754, %v6818
        %v6820 = vlaneseq
        %v6821 = vshrl.u32 %v6820, 7
        %v6822 = vsub.s32 %v1511, %v6821
        %v6823 = vrot.slane %v6757, %v6822
        %v6824 = vlaneseq
        %v6825 = vshrl.u32 %v6824, 7
        %v6826 = vsub.s32 %v1511, %v6825
        %v6827 = vrot.slane %v6760, %v6826
        %v6828 = vlaneseq
        %v6829 = vshrl.u32 %v6828, 7
        %v6830 = vsub.s32 %v1511, %v6829
        %v6831 = vrot.slane %v6763, %v6830
        %v6832 = vlaneseq
        %v6833 = vshrl.u32 %v6832, 7
        %v6834 = vsub.s32 %v1511, %v6833
        %v6835 = vrot.slane %v6766, %v6834
        %v6836 = vlaneseq
        %v6837 = vshrl.u32 %v6836, 7
        %v6838 = vsub.s32 %v1511, %v6837
        %v6839 = vrot.slane %v6769, %v6838
        %v6840 = vlaneseq
        %v6841 = vshrl.u32 %v6840, 7
        %v6842 = vsub.s32 %v1511, %v6841
        %v6843 = vrot.slane %v6772, %v6842
        %v6844 = vlaneseq
        %v6845 = vshrl.u32 %v6844, 7
        %v6846 = vsub.s32 %v1511, %v6845
        %v6847 = vrot.slane %v6775, %v6846
        %v6848 = vlaneseq
        %v6849 = vshrl.u32 %v6848, 7
        %v6850 = vsub.s32 %v1511, %v6849
        %v6851 = vrot.slane %v6778, %v6850
        %v6852 = vlaneseq
        %v6853 = vshrl.u32 %v6852, 7
        %v6854 = vsub.s32 %v1511, %v6853
        %v6855 = vrot.slane %v6781, %v6854
        %v6856 = vlaneseq
        %v6857 = vshrl.u32 %v6856, 7
        %v6858 = vsub.s32 %v1511, %v6857
        %v6859 = vrot.slane %v6784, %v6858
        %v6860 = vlaneseq
        %v6861 = vshrl.u32 %v6860, 7
        %v6862 = vsub.s32 %v1511, %v6861
        %v6863 = vrot.slane %v6787, %v6862
        %v6864 = vlaneseq
        %v6865 = vshrl.u32 %v6864, 7
        %v6866 = vsub.s32 %v1511, %v6865
        %v6867 = vrot.slane %v6790, %v6866
        %v6868 = vlaneseq
        %v6869 = vshrl.u32 %v6868, 7
        %v6870 = vsub.s32 %v1511, %v6869
        %v6871 = vrot.slane %v6793, %v6870
        %v6872 = vlaneseq
        %v6873 = vshrl.u32 %v6872, 7
        %v6874 = vsub.s32 %v1511, %v6873
        %v6875 = vrot.slane %v6796, %v6874
        %v6876 = vlaneseq
        %v6877 = vshrl.u32 %v6876, 7
        %v6878 = vsub.s32 %v1511, %v6877
        %v6879 = vrot.slane %v6799, %v6878
        %v6880 = vsel %vm1576, %v6823, %v6819
        %v6881 = vsel %vm1578, %v6827, %v6880
        %v6882 = vsel %vm1580, %v6831, %v6881
        %v6883 = vsel %vm1582, %v6835, %v6882
        %v6884 = vsel %vm1584, %v6839, %v6883
        %v6885 = vsel %vm1586, %v6843, %v6884
        %v6886 = vsel %vm1588, %v6847, %v6885
        %v6887 = vsel %vm1576, %v6855, %v6851
        %v6888 = vsel %vm1578, %v6859, %v6887
        %v6889 = vsel %vm1580, %v6863, %v6888
        %v6890 = vsel %vm1582, %v6867, %v6889
        %v6891 = vsel %vm1584, %v6871, %v6890
        %v6892 = vsel %vm1586, %v6875, %v6891
        %v6893 = vsel %vm1588, %v6879, %v6892
        %v6896 = vsel %vm1599, %v6886, -inf
        %6897 = vmax.xlane.f32.xlu0 %v6896
        %v6898 = vpop.xlane.xlu0 %6897
        %v6899 = vsel %vm1599, %v6893, -inf
        %6900 = vmax.xlane.f32.xlu0 %v6899
        %v6901 = vpop.xlane.xlu0 %6900
        %v6904 = vlaneseq
        %v6905 = vshrl.u32 %v6904, 7
        %v6906 = vsub.s32 0, %v6905
        %v6907 = vrot.slane %v6898, %v6906
        %v6908 = vlaneseq
        %v6909 = vshrl.u32 %v6908, 7
        %v6910 = vsub.s32 1, %v6909
        %v6911 = vrot.slane %v6898, %v6910
        %v6912 = vlaneseq
        %v6913 = vshrl.u32 %v6912, 7
        %v6914 = vsub.s32 2, %v6913
        %v6915 = vrot.slane %v6898, %v6914
        %v6916 = vlaneseq
        %v6917 = vshrl.u32 %v6916, 7
        %v6918 = vsub.s32 3, %v6917
        %v6919 = vrot.slane %v6898, %v6918
        %v6920 = vlaneseq
        %v6921 = vshrl.u32 %v6920, 7
        %v6922 = vsub.s32 4, %v6921
        %v6923 = vrot.slane %v6898, %v6922
        %v6924 = vlaneseq
        %v6925 = vshrl.u32 %v6924, 7
        %v6926 = vsub.s32 5, %v6925
        %v6927 = vrot.slane %v6898, %v6926
        %v6928 = vlaneseq
        %v6929 = vshrl.u32 %v6928, 7
        %v6930 = vsub.s32 6, %v6929
        %v6931 = vrot.slane %v6898, %v6930
        %v6932 = vlaneseq
        %v6933 = vshrl.u32 %v6932, 7
        %v6934 = vsub.s32 7, %v6933
        %v6935 = vrot.slane %v6898, %v6934
        %v6936 = vlaneseq
        %v6937 = vshrl.u32 %v6936, 7
        %v6938 = vsub.s32 0, %v6937
        %v6939 = vrot.slane %v6901, %v6938
        %v6940 = vlaneseq
        %v6941 = vshrl.u32 %v6940, 7
        %v6942 = vsub.s32 1, %v6941
        %v6943 = vrot.slane %v6901, %v6942
        %v6944 = vlaneseq
        %v6945 = vshrl.u32 %v6944, 7
        %v6946 = vsub.s32 2, %v6945
        %v6947 = vrot.slane %v6901, %v6946
        %v6948 = vlaneseq
        %v6949 = vshrl.u32 %v6948, 7
        %v6950 = vsub.s32 3, %v6949
        %v6951 = vrot.slane %v6901, %v6950
        %v6952 = vlaneseq
        %v6953 = vshrl.u32 %v6952, 7
        %v6954 = vsub.s32 4, %v6953
        %v6955 = vrot.slane %v6901, %v6954
        %v6956 = vlaneseq
        %v6957 = vshrl.u32 %v6956, 7
        %v6958 = vsub.s32 5, %v6957
        %v6959 = vrot.slane %v6901, %v6958
        %v6960 = vlaneseq
        %v6961 = vshrl.u32 %v6960, 7
        %v6962 = vsub.s32 6, %v6961
        %v6963 = vrot.slane %v6901, %v6962
        %v6964 = vlaneseq
        %v6965 = vshrl.u32 %v6964, 7
        %v6966 = vsub.s32 7, %v6965
        %v6967 = vrot.slane %v6901, %v6966
        %v6984 = vsub.f32 %v6754, %v6907
        %v6985 = vsub.f32 %v6757, %v6911
        %v6986 = vsub.f32 %v6760, %v6915
        %v6987 = vsub.f32 %v6763, %v6919
        %v6988 = vsub.f32 %v6766, %v6923
        %v6989 = vsub.f32 %v6769, %v6927
        %v6990 = vsub.f32 %v6772, %v6931
        %v6991 = vsub.f32 %v6775, %v6935
        %v6992 = vsub.f32 %v6778, %v6939
        %v6993 = vsub.f32 %v6781, %v6943
        %v6994 = vsub.f32 %v6784, %v6947
        %v6995 = vsub.f32 %v6787, %v6951
        %v6996 = vsub.f32 %v6790, %v6955
        %v6997 = vsub.f32 %v6793, %v6959
        %v6998 = vsub.f32 %v6796, %v6963
        %v6999 = vsub.f32 %v6799, %v6967
        %v7000 = vmul.f32 %v6984, 1.442695
        %v7001 = vpow.pop %v7000
        %v7002 = vmul.f32 %v6985, 1.442695
        %v7003 = vpow.pop %v7002
        %v7004 = vmul.f32 %v6986, 1.442695
        %v7005 = vpow.pop %v7004
        %v7006 = vmul.f32 %v6987, 1.442695
        %v7007 = vpow.pop %v7006
        %v7008 = vmul.f32 %v6988, 1.442695
        %v7009 = vpow.pop %v7008
        %v7010 = vmul.f32 %v6989, 1.442695
        %v7011 = vpow.pop %v7010
        %v7012 = vmul.f32 %v6990, 1.442695
        %v7013 = vpow.pop %v7012
        %v7014 = vmul.f32 %v6991, 1.442695
        %v7015 = vpow.pop %v7014
        %v7016 = vmul.f32 %v6992, 1.442695
        %v7017 = vpow.pop %v7016
        %v7018 = vmul.f32 %v6993, 1.442695
        %v7019 = vpow.pop %v7018
        %v7020 = vmul.f32 %v6994, 1.442695
        %v7021 = vpow.pop %v7020
        %v7022 = vmul.f32 %v6995, 1.442695
        %v7023 = vpow.pop %v7022
        %v7024 = vmul.f32 %v6996, 1.442695
        %v7025 = vpow.pop %v7024
        %v7026 = vmul.f32 %v6997, 1.442695
        %v7027 = vpow.pop %v7026
        %v7028 = vmul.f32 %v6998, 1.442695
        %v7029 = vpow.pop %v7028
        %v7030 = vmul.f32 %v6999, 1.442695
        %v7031 = vpow.pop %v7030
        %7048 = vset.pattern.permute.xlu0 0
        %7049 = vperm.xlu0 %7048, %v7001
        %v7050 = vpop.permute.xlu0 %7049
        %7051 = vset.pattern.permute.xlu0 0
        %7052 = vperm.xlu0 %7051, %v7003
        %v7053 = vpop.permute.xlu0 %7052
        %7054 = vset.pattern.permute.xlu0 0
        %7055 = vperm.xlu0 %7054, %v7005
        %v7056 = vpop.permute.xlu0 %7055
        %7057 = vset.pattern.permute.xlu0 0
        %7058 = vperm.xlu0 %7057, %v7007
        %v7059 = vpop.permute.xlu0 %7058
        %7060 = vset.pattern.permute.xlu0 0
        %7061 = vperm.xlu0 %7060, %v7009
        %v7062 = vpop.permute.xlu0 %7061
        %7063 = vset.pattern.permute.xlu0 0
        %7064 = vperm.xlu0 %7063, %v7011
        %v7065 = vpop.permute.xlu0 %7064
        %7066 = vset.pattern.permute.xlu0 0
        %7067 = vperm.xlu0 %7066, %v7013
        %v7068 = vpop.permute.xlu0 %7067
        %7069 = vset.pattern.permute.xlu0 0
        %7070 = vperm.xlu0 %7069, %v7015
        %v7071 = vpop.permute.xlu0 %7070
        %7072 = vset.pattern.permute.xlu0 0
        %7073 = vperm.xlu0 %7072, %v7017
        %v7074 = vpop.permute.xlu0 %7073
        %7075 = vset.pattern.permute.xlu0 0
        %7076 = vperm.xlu0 %7075, %v7019
        %v7077 = vpop.permute.xlu0 %7076
        %7078 = vset.pattern.permute.xlu0 0
        %7079 = vperm.xlu0 %7078, %v7021
        %v7080 = vpop.permute.xlu0 %7079
        %7081 = vset.pattern.permute.xlu0 0
        %7082 = vperm.xlu0 %7081, %v7023
        %v7083 = vpop.permute.xlu0 %7082
        %7084 = vset.pattern.permute.xlu0 0
        %7085 = vperm.xlu0 %7084, %v7025
        %v7086 = vpop.permute.xlu0 %7085
        %7087 = vset.pattern.permute.xlu0 0
        %7088 = vperm.xlu0 %7087, %v7027
        %v7089 = vpop.permute.xlu0 %7088
        %7090 = vset.pattern.permute.xlu0 0
        %7091 = vperm.xlu0 %7090, %v7029
        %v7092 = vpop.permute.xlu0 %7091
        %7093 = vset.pattern.permute.xlu0 0
        %7094 = vperm.xlu0 %7093, %v7031
        %v7095 = vpop.permute.xlu0 %7094
        %v7096 = vlaneseq
        %v7097 = vshrl.u32 %v7096, 7
        %v7098 = vsub.s32 %v1511, %v7097
        %v7099 = vrot.slane %v7050, %v7098
        %v7100 = vlaneseq
        %v7101 = vshrl.u32 %v7100, 7
        %v7102 = vsub.s32 %v1511, %v7101
        %v7103 = vrot.slane %v7053, %v7102
        %v7104 = vlaneseq
        %v7105 = vshrl.u32 %v7104, 7
        %v7106 = vsub.s32 %v1511, %v7105
        %v7107 = vrot.slane %v7056, %v7106
        %v7108 = vlaneseq
        %v7109 = vshrl.u32 %v7108, 7
        %v7110 = vsub.s32 %v1511, %v7109
        %v7111 = vrot.slane %v7059, %v7110
        %v7112 = vlaneseq
        %v7113 = vshrl.u32 %v7112, 7
        %v7114 = vsub.s32 %v1511, %v7113
        %v7115 = vrot.slane %v7062, %v7114
        %v7116 = vlaneseq
        %v7117 = vshrl.u32 %v7116, 7
        %v7118 = vsub.s32 %v1511, %v7117
        %v7119 = vrot.slane %v7065, %v7118
        %v7120 = vlaneseq
        %v7121 = vshrl.u32 %v7120, 7
        %v7122 = vsub.s32 %v1511, %v7121
        %v7123 = vrot.slane %v7068, %v7122
        %v7124 = vlaneseq
        %v7125 = vshrl.u32 %v7124, 7
        %v7126 = vsub.s32 %v1511, %v7125
        %v7127 = vrot.slane %v7071, %v7126
        %v7128 = vlaneseq
        %v7129 = vshrl.u32 %v7128, 7
        %v7130 = vsub.s32 %v1511, %v7129
        %v7131 = vrot.slane %v7074, %v7130
        %v7132 = vlaneseq
        %v7133 = vshrl.u32 %v7132, 7
        %v7134 = vsub.s32 %v1511, %v7133
        %v7135 = vrot.slane %v7077, %v7134
        %v7136 = vlaneseq
        %v7137 = vshrl.u32 %v7136, 7
        %v7138 = vsub.s32 %v1511, %v7137
        %v7139 = vrot.slane %v7080, %v7138
        %v7140 = vlaneseq
        %v7141 = vshrl.u32 %v7140, 7
        %v7142 = vsub.s32 %v1511, %v7141
        %v7143 = vrot.slane %v7083, %v7142
        %v7144 = vlaneseq
        %v7145 = vshrl.u32 %v7144, 7
        %v7146 = vsub.s32 %v1511, %v7145
        %v7147 = vrot.slane %v7086, %v7146
        %v7148 = vlaneseq
        %v7149 = vshrl.u32 %v7148, 7
        %v7150 = vsub.s32 %v1511, %v7149
        %v7151 = vrot.slane %v7089, %v7150
        %v7152 = vlaneseq
        %v7153 = vshrl.u32 %v7152, 7
        %v7154 = vsub.s32 %v1511, %v7153
        %v7155 = vrot.slane %v7092, %v7154
        %v7156 = vlaneseq
        %v7157 = vshrl.u32 %v7156, 7
        %v7158 = vsub.s32 %v1511, %v7157
        %v7159 = vrot.slane %v7095, %v7158
        %v7160 = vsel %vm1576, %v7103, %v7099
        %v7161 = vsel %vm1578, %v7107, %v7160
        %v7162 = vsel %vm1580, %v7111, %v7161
        %v7163 = vsel %vm1582, %v7115, %v7162
        %v7164 = vsel %vm1584, %v7119, %v7163
        %v7165 = vsel %vm1586, %v7123, %v7164
        %v7166 = vsel %vm1588, %v7127, %v7165
        %v7167 = vsel %vm1576, %v7135, %v7131
        %v7168 = vsel %vm1578, %v7139, %v7167
        %v7169 = vsel %vm1580, %v7143, %v7168
        %v7170 = vsel %vm1582, %v7147, %v7169
        %v7171 = vsel %vm1584, %v7151, %v7170
        %v7172 = vsel %vm1586, %v7155, %v7171
        %v7173 = vsel %vm1588, %v7159, %v7172
        %v7176 = vsel %vm1599, %v7166, 0.0
        %7177 = vadd.xlane.f32.xlu0 %v7176
        %v7178 = vpop.xlane.xlu0 %7177
        %v7179 = vsel %vm1599, %v7173, 0.0
        %7180 = vadd.xlane.f32.xlu0 %v7179
        %v7181 = vpop.xlane.xlu0 %7180
        %v7184 = vlaneseq
        %v7185 = vshrl.u32 %v7184, 7
        %v7186 = vsub.s32 0, %v7185
        %v7187 = vrot.slane %v7178, %v7186
        %v7188 = vlaneseq
        %v7189 = vshrl.u32 %v7188, 7
        %v7190 = vsub.s32 1, %v7189
        %v7191 = vrot.slane %v7178, %v7190
        %v7192 = vlaneseq
        %v7193 = vshrl.u32 %v7192, 7
        %v7194 = vsub.s32 2, %v7193
        %v7195 = vrot.slane %v7178, %v7194
        %v7196 = vlaneseq
        %v7197 = vshrl.u32 %v7196, 7
        %v7198 = vsub.s32 3, %v7197
        %v7199 = vrot.slane %v7178, %v7198
        %v7200 = vlaneseq
        %v7201 = vshrl.u32 %v7200, 7
        %v7202 = vsub.s32 4, %v7201
        %v7203 = vrot.slane %v7178, %v7202
        %v7204 = vlaneseq
        %v7205 = vshrl.u32 %v7204, 7
        %v7206 = vsub.s32 5, %v7205
        %v7207 = vrot.slane %v7178, %v7206
        %v7208 = vlaneseq
        %v7209 = vshrl.u32 %v7208, 7
        %v7210 = vsub.s32 6, %v7209
        %v7211 = vrot.slane %v7178, %v7210
        %v7212 = vlaneseq
        %v7213 = vshrl.u32 %v7212, 7
        %v7214 = vsub.s32 7, %v7213
        %v7215 = vrot.slane %v7178, %v7214
        %v7216 = vlaneseq
        %v7217 = vshrl.u32 %v7216, 7
        %v7218 = vsub.s32 0, %v7217
        %v7219 = vrot.slane %v7181, %v7218
        %v7220 = vlaneseq
        %v7221 = vshrl.u32 %v7220, 7
        %v7222 = vsub.s32 1, %v7221
        %v7223 = vrot.slane %v7181, %v7222
        %v7224 = vlaneseq
        %v7225 = vshrl.u32 %v7224, 7
        %v7226 = vsub.s32 2, %v7225
        %v7227 = vrot.slane %v7181, %v7226
        %v7228 = vlaneseq
        %v7229 = vshrl.u32 %v7228, 7
        %v7230 = vsub.s32 3, %v7229
        %v7231 = vrot.slane %v7181, %v7230
        %v7232 = vlaneseq
        %v7233 = vshrl.u32 %v7232, 7
        %v7234 = vsub.s32 4, %v7233
        %v7235 = vrot.slane %v7181, %v7234
        %v7236 = vlaneseq
        %v7237 = vshrl.u32 %v7236, 7
        %v7238 = vsub.s32 5, %v7237
        %v7239 = vrot.slane %v7181, %v7238
        %v7240 = vlaneseq
        %v7241 = vshrl.u32 %v7240, 7
        %v7242 = vsub.s32 6, %v7241
        %v7243 = vrot.slane %v7181, %v7242
        %v7244 = vlaneseq
        %v7245 = vshrl.u32 %v7244, 7
        %v7246 = vsub.s32 7, %v7245
        %v7247 = vrot.slane %v7181, %v7246
        %v7264 = vrcp.pop %v7187
        %v7265 = vmul.f32 %v7001, %v7264
        %v7266 = vrcp.pop %v7191
        %v7267 = vmul.f32 %v7003, %v7266
        %v7268 = vrcp.pop %v7195
        %v7269 = vmul.f32 %v7005, %v7268
        %v7270 = vrcp.pop %v7199
        %v7271 = vmul.f32 %v7007, %v7270
        %v7272 = vrcp.pop %v7203
        %v7273 = vmul.f32 %v7009, %v7272
        %v7274 = vrcp.pop %v7207
        %v7275 = vmul.f32 %v7011, %v7274
        %v7276 = vrcp.pop %v7211
        %v7277 = vmul.f32 %v7013, %v7276
        %v7278 = vrcp.pop %v7215
        %v7279 = vmul.f32 %v7015, %v7278
        %v7280 = vrcp.pop %v7219
        %v7281 = vmul.f32 %v7017, %v7280
        %v7282 = vrcp.pop %v7223
        %v7283 = vmul.f32 %v7019, %v7282
        %v7284 = vrcp.pop %v7227
        %v7285 = vmul.f32 %v7021, %v7284
        %v7286 = vrcp.pop %v7231
        %v7287 = vmul.f32 %v7023, %v7286
        %v7288 = vrcp.pop %v7235
        %v7289 = vmul.f32 %v7025, %v7288
        %v7290 = vrcp.pop %v7239
        %v7291 = vmul.f32 %v7027, %v7290
        %v7292 = vrcp.pop %v7243
        %v7293 = vmul.f32 %v7029, %v7292
        %v7294 = vrcp.pop %v7247
        %v7295 = vmul.f32 %v7031, %v7294
        %7297 = vset.pattern.permute.xlu0 0
        %7298 = vperm.xlu0 %7297, %v7265
        %v7299 = vpop.permute.xlu0 %7298
        %7302 = vset.pattern.permute.xlu0 0
        %7303 = vperm.xlu0 %7302, %v7267
        %v7304 = vpop.permute.xlu0 %7303
        %7307 = vset.pattern.permute.xlu0 0
        %7308 = vperm.xlu0 %7307, %v7269
        %v7309 = vpop.permute.xlu0 %7308
        %7312 = vset.pattern.permute.xlu0 0
        %7313 = vperm.xlu0 %7312, %v7271
        %v7314 = vpop.permute.xlu0 %7313
        %7317 = vset.pattern.permute.xlu0 0
        %7318 = vperm.xlu0 %7317, %v7273
        %v7319 = vpop.permute.xlu0 %7318
        %7322 = vset.pattern.permute.xlu0 0
        %7323 = vperm.xlu0 %7322, %v7275
        %v7324 = vpop.permute.xlu0 %7323
        %7327 = vset.pattern.permute.xlu0 0
        %7328 = vperm.xlu0 %7327, %v7277
        %v7329 = vpop.permute.xlu0 %7328
        %7332 = vset.pattern.permute.xlu0 0
        %7333 = vperm.xlu0 %7332, %v7279
        %v7334 = vpop.permute.xlu0 %7333
        %7337 = vset.pattern.permute.xlu0 0
        %7338 = vperm.xlu0 %7337, %v7281
        %v7339 = vpop.permute.xlu0 %7338
        %7342 = vset.pattern.permute.xlu0 0
        %7343 = vperm.xlu0 %7342, %v7283
        %v7344 = vpop.permute.xlu0 %7343
        %7347 = vset.pattern.permute.xlu0 0
        %7348 = vperm.xlu0 %7347, %v7285
        %v7349 = vpop.permute.xlu0 %7348
        %7352 = vset.pattern.permute.xlu0 0
        %7353 = vperm.xlu0 %7352, %v7287
        %v7354 = vpop.permute.xlu0 %7353
        %7357 = vset.pattern.permute.xlu0 0
        %7358 = vperm.xlu0 %7357, %v7289
        %v7359 = vpop.permute.xlu0 %7358
        %7362 = vset.pattern.permute.xlu0 0
        %7363 = vperm.xlu0 %7362, %v7291
        %v7364 = vpop.permute.xlu0 %7363
        %7367 = vset.pattern.permute.xlu0 0
        %7368 = vperm.xlu0 %7367, %v7293
        %v7369 = vpop.permute.xlu0 %7368
        %7372 = vset.pattern.permute.xlu0 0
        %7373 = vperm.xlu0 %7372, %v7295
        %v7374 = vpop.permute.xlu0 %7373
        %v7376 = vmul.f32 %v7299, %v1105
        %v7377 = vmul.f32 %v7304, %v1106
        %v7378 = vmul.f32 %v7309, %v1107
        %v7379 = vmul.f32 %v7314, %v1108
        %v7380 = vmul.f32 %v7319, %v1109
        %v7381 = vmul.f32 %v7324, %v1110
        %v7382 = vmul.f32 %v7329, %v1111
        %v7383 = vmul.f32 %v7334, %v1112
        %v7384 = vmul.f32 %v7339, %v1241
        %v7385 = vmul.f32 %v7344, %v1242
        %v7386 = vmul.f32 %v7349, %v1243
        %v7387 = vmul.f32 %v7354, %v1244
        %v7388 = vmul.f32 %v7359, %v1245
        %v7389 = vmul.f32 %v7364, %v1246
        %v7390 = vmul.f32 %v7369, %v1247
        %v7391 = vmul.f32 %v7374, %v1248
        %v7392 = vsel %vm1445, %v7376, 0.0
        %v7393 = vrot.slane %v7392, 4
        %v7394 = vadd.f32 %v7392, %v7393
        %v7395 = vrot.slane %v7394, 2
        %v7396 = vadd.f32 %v7394, %v7395
        %v7397 = vrot.slane %v7396, 1
        %v7398 = vadd.f32 %v7396, %v7397
        %v7399 = vsel %vm1445, %v7377, 0.0
        %v7400 = vrot.slane %v7399, 4
        %v7401 = vadd.f32 %v7399, %v7400
        %v7402 = vrot.slane %v7401, 2
        %v7403 = vadd.f32 %v7401, %v7402
        %v7404 = vrot.slane %v7403, 1
        %v7405 = vadd.f32 %v7403, %v7404
        %v7406 = vsel %vm1445, %v7378, 0.0
        %v7407 = vrot.slane %v7406, 4
        %v7408 = vadd.f32 %v7406, %v7407
        %v7409 = vrot.slane %v7408, 2
        %v7410 = vadd.f32 %v7408, %v7409
        %v7411 = vrot.slane %v7410, 1
        %v7412 = vadd.f32 %v7410, %v7411
        %v7413 = vsel %vm1445, %v7379, 0.0
        %v7414 = vrot.slane %v7413, 4
        %v7415 = vadd.f32 %v7413, %v7414
        %v7416 = vrot.slane %v7415, 2
        %v7417 = vadd.f32 %v7415, %v7416
        %v7418 = vrot.slane %v7417, 1
        %v7419 = vadd.f32 %v7417, %v7418
        %v7420 = vsel %vm1445, %v7380, 0.0
        %v7421 = vrot.slane %v7420, 4
        %v7422 = vadd.f32 %v7420, %v7421
        %v7423 = vrot.slane %v7422, 2
        %v7424 = vadd.f32 %v7422, %v7423
        %v7425 = vrot.slane %v7424, 1
        %v7426 = vadd.f32 %v7424, %v7425
        %v7427 = vsel %vm1445, %v7381, 0.0
        %v7428 = vrot.slane %v7427, 4
        %v7429 = vadd.f32 %v7427, %v7428
        %v7430 = vrot.slane %v7429, 2
        %v7431 = vadd.f32 %v7429, %v7430
        %v7432 = vrot.slane %v7431, 1
        %v7433 = vadd.f32 %v7431, %v7432
        %v7434 = vsel %vm1445, %v7382, 0.0
        %v7435 = vrot.slane %v7434, 4
        %v7436 = vadd.f32 %v7434, %v7435
        %v7437 = vrot.slane %v7436, 2
        %v7438 = vadd.f32 %v7436, %v7437
        %v7439 = vrot.slane %v7438, 1
        %v7440 = vadd.f32 %v7438, %v7439
        %v7441 = vsel %vm1445, %v7383, 0.0
        %v7442 = vrot.slane %v7441, 4
        %v7443 = vadd.f32 %v7441, %v7442
        %v7444 = vrot.slane %v7443, 2
        %v7445 = vadd.f32 %v7443, %v7444
        %v7446 = vrot.slane %v7445, 1
        %v7447 = vadd.f32 %v7445, %v7446
        %v7448 = vsel %vm1445, %v7384, 0.0
        %v7449 = vrot.slane %v7448, 4
        %v7450 = vadd.f32 %v7448, %v7449
        %v7451 = vrot.slane %v7450, 2
        %v7452 = vadd.f32 %v7450, %v7451
        %v7453 = vrot.slane %v7452, 1
        %v7454 = vadd.f32 %v7452, %v7453
        %v7455 = vsel %vm1445, %v7385, 0.0
        %v7456 = vrot.slane %v7455, 4
        %v7457 = vadd.f32 %v7455, %v7456
        %v7458 = vrot.slane %v7457, 2
        %v7459 = vadd.f32 %v7457, %v7458
        %v7460 = vrot.slane %v7459, 1
        %v7461 = vadd.f32 %v7459, %v7460
        %v7462 = vsel %vm1445, %v7386, 0.0
        %v7463 = vrot.slane %v7462, 4
        %v7464 = vadd.f32 %v7462, %v7463
        %v7465 = vrot.slane %v7464, 2
        %v7466 = vadd.f32 %v7464, %v7465
        %v7467 = vrot.slane %v7466, 1
        %v7468 = vadd.f32 %v7466, %v7467
        %v7469 = vsel %vm1445, %v7387, 0.0
        %v7470 = vrot.slane %v7469, 4
        %v7471 = vadd.f32 %v7469, %v7470
        %v7472 = vrot.slane %v7471, 2
        %v7473 = vadd.f32 %v7471, %v7472
        %v7474 = vrot.slane %v7473, 1
        %v7475 = vadd.f32 %v7473, %v7474
        %v7476 = vsel %vm1445, %v7388, 0.0
        %v7477 = vrot.slane %v7476, 4
        %v7478 = vadd.f32 %v7476, %v7477
        %v7479 = vrot.slane %v7478, 2
        %v7480 = vadd.f32 %v7478, %v7479
        %v7481 = vrot.slane %v7480, 1
        %v7482 = vadd.f32 %v7480, %v7481
        %v7483 = vsel %vm1445, %v7389, 0.0
        %v7484 = vrot.slane %v7483, 4
        %v7485 = vadd.f32 %v7483, %v7484
        %v7486 = vrot.slane %v7485, 2
        %v7487 = vadd.f32 %v7485, %v7486
        %v7488 = vrot.slane %v7487, 1
        %v7489 = vadd.f32 %v7487, %v7488
        %v7490 = vsel %vm1445, %v7390, 0.0
        %v7491 = vrot.slane %v7490, 4
        %v7492 = vadd.f32 %v7490, %v7491
        %v7493 = vrot.slane %v7492, 2
        %v7494 = vadd.f32 %v7492, %v7493
        %v7495 = vrot.slane %v7494, 1
        %v7496 = vadd.f32 %v7494, %v7495
        %v7497 = vsel %vm1445, %v7391, 0.0
        %v7498 = vrot.slane %v7497, 4
        %v7499 = vadd.f32 %v7497, %v7498
        %v7500 = vrot.slane %v7499, 2
        %v7501 = vadd.f32 %v7499, %v7500
        %v7502 = vrot.slane %v7501, 1
        %v7503 = vadd.f32 %v7501, %v7502
        %7504 = vrot.lane.b32.xlu0 %v785, 28
        %v7505 = vpop.permute.xlu0 %7504
        %7506 = vrot.lane.b32.xlu0 %v786, 28
        %v7507 = vpop.permute.xlu0 %7506
        %7508 = vrot.lane.b32.xlu0 %v787, 28
        %v7509 = vpop.permute.xlu0 %7508
        %7510 = vrot.lane.b32.xlu0 %v788, 28
        %v7511 = vpop.permute.xlu0 %7510
        %7512 = vrot.lane.b32.xlu0 %v789, 28
        %v7513 = vpop.permute.xlu0 %7512
        %7514 = vrot.lane.b32.xlu0 %v790, 28
        %v7515 = vpop.permute.xlu0 %7514
        %7516 = vrot.lane.b32.xlu0 %v791, 28
        %v7517 = vpop.permute.xlu0 %7516
        %7518 = vrot.lane.b32.xlu0 %v792, 28
        %v7519 = vpop.permute.xlu0 %7518
        %7520 = vrot.lane.b32.xlu0 %v921, 28
        %v7521 = vpop.permute.xlu0 %7520
        %7522 = vrot.lane.b32.xlu0 %v922, 28
        %v7523 = vpop.permute.xlu0 %7522
        %7524 = vrot.lane.b32.xlu0 %v923, 28
        %v7525 = vpop.permute.xlu0 %7524
        %7526 = vrot.lane.b32.xlu0 %v924, 28
        %v7527 = vpop.permute.xlu0 %7526
        %7528 = vrot.lane.b32.xlu0 %v925, 28
        %v7529 = vpop.permute.xlu0 %7528
        %7530 = vrot.lane.b32.xlu0 %v926, 28
        %v7531 = vpop.permute.xlu0 %7530
        %7532 = vrot.lane.b32.xlu0 %v927, 28
        %v7533 = vpop.permute.xlu0 %7532
        %7534 = vrot.lane.b32.xlu0 %v928, 28
        %v7535 = vpop.permute.xlu0 %7534
        %v7552 = vmul.f32 %v1352, %v7505
        %v7553 = vmul.f32 %v1356, %v7507
        %v7554 = vmul.f32 %v1360, %v7509
        %v7555 = vmul.f32 %v1364, %v7511
        %v7556 = vmul.f32 %v1368, %v7513
        %v7557 = vmul.f32 %v1372, %v7515
        %v7558 = vmul.f32 %v1376, %v7517
        %v7559 = vmul.f32 %v1380, %v7519
        %v7560 = vmul.f32 %v1384, %v7521
        %v7561 = vmul.f32 %v1388, %v7523
        %v7562 = vmul.f32 %v1392, %v7525
        %v7563 = vmul.f32 %v1396, %v7527
        %v7564 = vmul.f32 %v1400, %v7529
        %v7565 = vmul.f32 %v1404, %v7531
        %v7566 = vmul.f32 %v1408, %v7533
        %v7567 = vmul.f32 %v1412, %v7535
        %7584 = vrot.lane.b32.xlu0 %v7552, 100
        %v7585 = vpop.permute.xlu0 %7584
        %7586 = vrot.lane.b32.xlu0 %v7553, 100
        %v7587 = vpop.permute.xlu0 %7586
        %7588 = vrot.lane.b32.xlu0 %v7554, 100
        %v7589 = vpop.permute.xlu0 %7588
        %7590 = vrot.lane.b32.xlu0 %v7555, 100
        %v7591 = vpop.permute.xlu0 %7590
        %7592 = vrot.lane.b32.xlu0 %v7556, 100
        %v7593 = vpop.permute.xlu0 %7592
        %7594 = vrot.lane.b32.xlu0 %v7557, 100
        %v7595 = vpop.permute.xlu0 %7594
        %7596 = vrot.lane.b32.xlu0 %v7558, 100
        %v7597 = vpop.permute.xlu0 %7596
        %7598 = vrot.lane.b32.xlu0 %v7559, 100
        %v7599 = vpop.permute.xlu0 %7598
        %7600 = vrot.lane.b32.xlu0 %v7560, 100
        %v7601 = vpop.permute.xlu0 %7600
        %7602 = vrot.lane.b32.xlu0 %v7561, 100
        %v7603 = vpop.permute.xlu0 %7602
        %7604 = vrot.lane.b32.xlu0 %v7562, 100
        %v7605 = vpop.permute.xlu0 %7604
        %7606 = vrot.lane.b32.xlu0 %v7563, 100
        %v7607 = vpop.permute.xlu0 %7606
        %7608 = vrot.lane.b32.xlu0 %v7564, 100
        %v7609 = vpop.permute.xlu0 %7608
        %7610 = vrot.lane.b32.xlu0 %v7565, 100
        %v7611 = vpop.permute.xlu0 %7610
        %7612 = vrot.lane.b32.xlu0 %v7566, 100
        %v7613 = vpop.permute.xlu0 %7612
        %7614 = vrot.lane.b32.xlu0 %v7567, 100
        %v7615 = vpop.permute.xlu0 %7614
        %v7632 = vsel %vm1445, %v7585, 0.0
        %7633 = vadd.xlane.f32.xlu0 %v7632
        %v7634 = vpop.xlane.xlu0 %7633
        %v7635 = vsel %vm1445, %v7587, 0.0
        %7636 = vadd.xlane.f32.xlu0 %v7635
        %v7637 = vpop.xlane.xlu0 %7636
        %v7638 = vsel %vm1445, %v7589, 0.0
        %7639 = vadd.xlane.f32.xlu0 %v7638
        %v7640 = vpop.xlane.xlu0 %7639
        %v7641 = vsel %vm1445, %v7591, 0.0
        %7642 = vadd.xlane.f32.xlu0 %v7641
        %v7643 = vpop.xlane.xlu0 %7642
        %v7644 = vsel %vm1445, %v7593, 0.0
        %7645 = vadd.xlane.f32.xlu0 %v7644
        %v7646 = vpop.xlane.xlu0 %7645
        %v7647 = vsel %vm1445, %v7595, 0.0
        %7648 = vadd.xlane.f32.xlu0 %v7647
        %v7649 = vpop.xlane.xlu0 %7648
        %v7650 = vsel %vm1445, %v7597, 0.0
        %7651 = vadd.xlane.f32.xlu0 %v7650
        %v7652 = vpop.xlane.xlu0 %7651
        %v7653 = vsel %vm1445, %v7599, 0.0
        %7654 = vadd.xlane.f32.xlu0 %v7653
        %v7655 = vpop.xlane.xlu0 %7654
        %v7656 = vsel %vm1445, %v7601, 0.0
        %7657 = vadd.xlane.f32.xlu0 %v7656
        %v7658 = vpop.xlane.xlu0 %7657
        %v7659 = vsel %vm1445, %v7603, 0.0
        %7660 = vadd.xlane.f32.xlu0 %v7659
        %v7661 = vpop.xlane.xlu0 %7660
        %v7662 = vsel %vm1445, %v7605, 0.0
        %7663 = vadd.xlane.f32.xlu0 %v7662
        %v7664 = vpop.xlane.xlu0 %7663
        %v7665 = vsel %vm1445, %v7607, 0.0
        %7666 = vadd.xlane.f32.xlu0 %v7665
        %v7667 = vpop.xlane.xlu0 %7666
        %v7668 = vsel %vm1445, %v7609, 0.0
        %7669 = vadd.xlane.f32.xlu0 %v7668
        %v7670 = vpop.xlane.xlu0 %7669
        %v7671 = vsel %vm1445, %v7611, 0.0
        %7672 = vadd.xlane.f32.xlu0 %v7671
        %v7673 = vpop.xlane.xlu0 %7672
        %v7674 = vsel %vm1445, %v7613, 0.0
        %7675 = vadd.xlane.f32.xlu0 %v7674
        %v7676 = vpop.xlane.xlu0 %7675
        %v7677 = vsel %vm1445, %v7615, 0.0
        %7678 = vadd.xlane.f32.xlu0 %v7677
        %v7679 = vpop.xlane.xlu0 %7678
        %v7696 = vlaneseq
        %v7697 = vshrl.u32 %v7696, 7
        %v7698 = vsub.s32 %v1511, %v7697
        %v7699 = vrot.slane %v7634, %v7698
        %v7700 = vlaneseq
        %v7701 = vshrl.u32 %v7700, 7
        %v7702 = vsub.s32 %v1511, %v7701
        %v7703 = vrot.slane %v7637, %v7702
        %v7704 = vlaneseq
        %v7705 = vshrl.u32 %v7704, 7
        %v7706 = vsub.s32 %v1511, %v7705
        %v7707 = vrot.slane %v7640, %v7706
        %v7708 = vlaneseq
        %v7709 = vshrl.u32 %v7708, 7
        %v7710 = vsub.s32 %v1511, %v7709
        %v7711 = vrot.slane %v7643, %v7710
        %v7712 = vlaneseq
        %v7713 = vshrl.u32 %v7712, 7
        %v7714 = vsub.s32 %v1511, %v7713
        %v7715 = vrot.slane %v7646, %v7714
        %v7716 = vlaneseq
        %v7717 = vshrl.u32 %v7716, 7
        %v7718 = vsub.s32 %v1511, %v7717
        %v7719 = vrot.slane %v7649, %v7718
        %v7720 = vlaneseq
        %v7721 = vshrl.u32 %v7720, 7
        %v7722 = vsub.s32 %v1511, %v7721
        %v7723 = vrot.slane %v7652, %v7722
        %v7724 = vlaneseq
        %v7725 = vshrl.u32 %v7724, 7
        %v7726 = vsub.s32 %v1511, %v7725
        %v7727 = vrot.slane %v7655, %v7726
        %v7728 = vlaneseq
        %v7729 = vshrl.u32 %v7728, 7
        %v7730 = vsub.s32 %v1511, %v7729
        %v7731 = vrot.slane %v7658, %v7730
        %v7732 = vlaneseq
        %v7733 = vshrl.u32 %v7732, 7
        %v7734 = vsub.s32 %v1511, %v7733
        %v7735 = vrot.slane %v7661, %v7734
        %v7736 = vlaneseq
        %v7737 = vshrl.u32 %v7736, 7
        %v7738 = vsub.s32 %v1511, %v7737
        %v7739 = vrot.slane %v7664, %v7738
        %v7740 = vlaneseq
        %v7741 = vshrl.u32 %v7740, 7
        %v7742 = vsub.s32 %v1511, %v7741
        %v7743 = vrot.slane %v7667, %v7742
        %v7744 = vlaneseq
        %v7745 = vshrl.u32 %v7744, 7
        %v7746 = vsub.s32 %v1511, %v7745
        %v7747 = vrot.slane %v7670, %v7746
        %v7748 = vlaneseq
        %v7749 = vshrl.u32 %v7748, 7
        %v7750 = vsub.s32 %v1511, %v7749
        %v7751 = vrot.slane %v7673, %v7750
        %v7752 = vlaneseq
        %v7753 = vshrl.u32 %v7752, 7
        %v7754 = vsub.s32 %v1511, %v7753
        %v7755 = vrot.slane %v7676, %v7754
        %v7756 = vlaneseq
        %v7757 = vshrl.u32 %v7756, 7
        %v7758 = vsub.s32 %v1511, %v7757
        %v7759 = vrot.slane %v7679, %v7758
        %v7760 = vsel %vm1576, %v7703, %v7699
        %v7761 = vsel %vm1578, %v7707, %v7760
        %v7762 = vsel %vm1580, %v7711, %v7761
        %v7763 = vsel %vm1582, %v7715, %v7762
        %v7764 = vsel %vm1584, %v7719, %v7763
        %v7765 = vsel %vm1586, %v7723, %v7764
        %v7766 = vsel %vm1588, %v7727, %v7765
        %v7767 = vsel %vm1576, %v7735, %v7731
        %v7768 = vsel %vm1578, %v7739, %v7767
        %v7769 = vsel %vm1580, %v7743, %v7768
        %v7770 = vsel %vm1582, %v7747, %v7769
        %v7771 = vsel %vm1584, %v7751, %v7770
        %v7772 = vsel %vm1586, %v7755, %v7771
        %v7773 = vsel %vm1588, %v7759, %v7772
        %v7776 = vsel %vm1599, %v7766, -inf
        %7777 = vmax.xlane.f32.xlu0 %v7776
        %v7778 = vpop.xlane.xlu0 %7777
        %v7779 = vsel %vm1599, %v7773, -inf
        %7780 = vmax.xlane.f32.xlu0 %v7779
        %v7781 = vpop.xlane.xlu0 %7780
        %v7784 = vlaneseq
        %v7785 = vshrl.u32 %v7784, 7
        %v7786 = vsub.s32 0, %v7785
        %v7787 = vrot.slane %v7778, %v7786
        %v7788 = vlaneseq
        %v7789 = vshrl.u32 %v7788, 7
        %v7790 = vsub.s32 1, %v7789
        %v7791 = vrot.slane %v7778, %v7790
        %v7792 = vlaneseq
        %v7793 = vshrl.u32 %v7792, 7
        %v7794 = vsub.s32 2, %v7793
        %v7795 = vrot.slane %v7778, %v7794
        %v7796 = vlaneseq
        %v7797 = vshrl.u32 %v7796, 7
        %v7798 = vsub.s32 3, %v7797
        %v7799 = vrot.slane %v7778, %v7798
        %v7800 = vlaneseq
        %v7801 = vshrl.u32 %v7800, 7
        %v7802 = vsub.s32 4, %v7801
        %v7803 = vrot.slane %v7778, %v7802
        %v7804 = vlaneseq
        %v7805 = vshrl.u32 %v7804, 7
        %v7806 = vsub.s32 5, %v7805
        %v7807 = vrot.slane %v7778, %v7806
        %v7808 = vlaneseq
        %v7809 = vshrl.u32 %v7808, 7
        %v7810 = vsub.s32 6, %v7809
        %v7811 = vrot.slane %v7778, %v7810
        %v7812 = vlaneseq
        %v7813 = vshrl.u32 %v7812, 7
        %v7814 = vsub.s32 7, %v7813
        %v7815 = vrot.slane %v7778, %v7814
        %v7816 = vlaneseq
        %v7817 = vshrl.u32 %v7816, 7
        %v7818 = vsub.s32 0, %v7817
        %v7819 = vrot.slane %v7781, %v7818
        %v7820 = vlaneseq
        %v7821 = vshrl.u32 %v7820, 7
        %v7822 = vsub.s32 1, %v7821
        %v7823 = vrot.slane %v7781, %v7822
        %v7824 = vlaneseq
        %v7825 = vshrl.u32 %v7824, 7
        %v7826 = vsub.s32 2, %v7825
        %v7827 = vrot.slane %v7781, %v7826
        %v7828 = vlaneseq
        %v7829 = vshrl.u32 %v7828, 7
        %v7830 = vsub.s32 3, %v7829
        %v7831 = vrot.slane %v7781, %v7830
        %v7832 = vlaneseq
        %v7833 = vshrl.u32 %v7832, 7
        %v7834 = vsub.s32 4, %v7833
        %v7835 = vrot.slane %v7781, %v7834
        %v7836 = vlaneseq
        %v7837 = vshrl.u32 %v7836, 7
        %v7838 = vsub.s32 5, %v7837
        %v7839 = vrot.slane %v7781, %v7838
        %v7840 = vlaneseq
        %v7841 = vshrl.u32 %v7840, 7
        %v7842 = vsub.s32 6, %v7841
        %v7843 = vrot.slane %v7781, %v7842
        %v7844 = vlaneseq
        %v7845 = vshrl.u32 %v7844, 7
        %v7846 = vsub.s32 7, %v7845
        %v7847 = vrot.slane %v7781, %v7846
        %v7864 = vsub.f32 %v7634, %v7787
        %v7865 = vsub.f32 %v7637, %v7791
        %v7866 = vsub.f32 %v7640, %v7795
        %v7867 = vsub.f32 %v7643, %v7799
        %v7868 = vsub.f32 %v7646, %v7803
        %v7869 = vsub.f32 %v7649, %v7807
        %v7870 = vsub.f32 %v7652, %v7811
        %v7871 = vsub.f32 %v7655, %v7815
        %v7872 = vsub.f32 %v7658, %v7819
        %v7873 = vsub.f32 %v7661, %v7823
        %v7874 = vsub.f32 %v7664, %v7827
        %v7875 = vsub.f32 %v7667, %v7831
        %v7876 = vsub.f32 %v7670, %v7835
        %v7877 = vsub.f32 %v7673, %v7839
        %v7878 = vsub.f32 %v7676, %v7843
        %v7879 = vsub.f32 %v7679, %v7847
        %v7880 = vmul.f32 %v7864, 1.442695
        %v7881 = vpow.pop %v7880
        %v7882 = vmul.f32 %v7865, 1.442695
        %v7883 = vpow.pop %v7882
        %v7884 = vmul.f32 %v7866, 1.442695
        %v7885 = vpow.pop %v7884
        %v7886 = vmul.f32 %v7867, 1.442695
        %v7887 = vpow.pop %v7886
        %v7888 = vmul.f32 %v7868, 1.442695
        %v7889 = vpow.pop %v7888
        %v7890 = vmul.f32 %v7869, 1.442695
        %v7891 = vpow.pop %v7890
        %v7892 = vmul.f32 %v7870, 1.442695
        %v7893 = vpow.pop %v7892
        %v7894 = vmul.f32 %v7871, 1.442695
        %v7895 = vpow.pop %v7894
        %v7896 = vmul.f32 %v7872, 1.442695
        %v7897 = vpow.pop %v7896
        %v7898 = vmul.f32 %v7873, 1.442695
        %v7899 = vpow.pop %v7898
        %v7900 = vmul.f32 %v7874, 1.442695
        %v7901 = vpow.pop %v7900
        %v7902 = vmul.f32 %v7875, 1.442695
        %v7903 = vpow.pop %v7902
        %v7904 = vmul.f32 %v7876, 1.442695
        %v7905 = vpow.pop %v7904
        %v7906 = vmul.f32 %v7877, 1.442695
        %v7907 = vpow.pop %v7906
        %v7908 = vmul.f32 %v7878, 1.442695
        %v7909 = vpow.pop %v7908
        %v7910 = vmul.f32 %v7879, 1.442695
        %v7911 = vpow.pop %v7910
        %7928 = vset.pattern.permute.xlu0 0
        %7929 = vperm.xlu0 %7928, %v7881
        %v7930 = vpop.permute.xlu0 %7929
        %7931 = vset.pattern.permute.xlu0 0
        %7932 = vperm.xlu0 %7931, %v7883
        %v7933 = vpop.permute.xlu0 %7932
        %7934 = vset.pattern.permute.xlu0 0
        %7935 = vperm.xlu0 %7934, %v7885
        %v7936 = vpop.permute.xlu0 %7935
        %7937 = vset.pattern.permute.xlu0 0
        %7938 = vperm.xlu0 %7937, %v7887
        %v7939 = vpop.permute.xlu0 %7938
        %7940 = vset.pattern.permute.xlu0 0
        %7941 = vperm.xlu0 %7940, %v7889
        %v7942 = vpop.permute.xlu0 %7941
        %7943 = vset.pattern.permute.xlu0 0
        %7944 = vperm.xlu0 %7943, %v7891
        %v7945 = vpop.permute.xlu0 %7944
        %7946 = vset.pattern.permute.xlu0 0
        %7947 = vperm.xlu0 %7946, %v7893
        %v7948 = vpop.permute.xlu0 %7947
        %7949 = vset.pattern.permute.xlu0 0
        %7950 = vperm.xlu0 %7949, %v7895
        %v7951 = vpop.permute.xlu0 %7950
        %7952 = vset.pattern.permute.xlu0 0
        %7953 = vperm.xlu0 %7952, %v7897
        %v7954 = vpop.permute.xlu0 %7953
        %7955 = vset.pattern.permute.xlu0 0
        %7956 = vperm.xlu0 %7955, %v7899
        %v7957 = vpop.permute.xlu0 %7956
        %7958 = vset.pattern.permute.xlu0 0
        %7959 = vperm.xlu0 %7958, %v7901
        %v7960 = vpop.permute.xlu0 %7959
        %7961 = vset.pattern.permute.xlu0 0
        %7962 = vperm.xlu0 %7961, %v7903
        %v7963 = vpop.permute.xlu0 %7962
        %7964 = vset.pattern.permute.xlu0 0
        %7965 = vperm.xlu0 %7964, %v7905
        %v7966 = vpop.permute.xlu0 %7965
        %7967 = vset.pattern.permute.xlu0 0
        %7968 = vperm.xlu0 %7967, %v7907
        %v7969 = vpop.permute.xlu0 %7968
        %7970 = vset.pattern.permute.xlu0 0
        %7971 = vperm.xlu0 %7970, %v7909
        %v7972 = vpop.permute.xlu0 %7971
        %7973 = vset.pattern.permute.xlu0 0
        %7974 = vperm.xlu0 %7973, %v7911
        %v7975 = vpop.permute.xlu0 %7974
        %v7976 = vlaneseq
        %v7977 = vshrl.u32 %v7976, 7
        %v7978 = vsub.s32 %v1511, %v7977
        %v7979 = vrot.slane %v7930, %v7978
        %v7980 = vlaneseq
        %v7981 = vshrl.u32 %v7980, 7
        %v7982 = vsub.s32 %v1511, %v7981
        %v7983 = vrot.slane %v7933, %v7982
        %v7984 = vlaneseq
        %v7985 = vshrl.u32 %v7984, 7
        %v7986 = vsub.s32 %v1511, %v7985
        %v7987 = vrot.slane %v7936, %v7986
        %v7988 = vlaneseq
        %v7989 = vshrl.u32 %v7988, 7
        %v7990 = vsub.s32 %v1511, %v7989
        %v7991 = vrot.slane %v7939, %v7990
        %v7992 = vlaneseq
        %v7993 = vshrl.u32 %v7992, 7
        %v7994 = vsub.s32 %v1511, %v7993
        %v7995 = vrot.slane %v7942, %v7994
        %v7996 = vlaneseq
        %v7997 = vshrl.u32 %v7996, 7
        %v7998 = vsub.s32 %v1511, %v7997
        %v7999 = vrot.slane %v7945, %v7998
        %v8000 = vlaneseq
        %v8001 = vshrl.u32 %v8000, 7
        %v8002 = vsub.s32 %v1511, %v8001
        %v8003 = vrot.slane %v7948, %v8002
        %v8004 = vlaneseq
        %v8005 = vshrl.u32 %v8004, 7
        %v8006 = vsub.s32 %v1511, %v8005
        %v8007 = vrot.slane %v7951, %v8006
        %v8008 = vlaneseq
        %v8009 = vshrl.u32 %v8008, 7
        %v8010 = vsub.s32 %v1511, %v8009
        %v8011 = vrot.slane %v7954, %v8010
        %v8012 = vlaneseq
        %v8013 = vshrl.u32 %v8012, 7
        %v8014 = vsub.s32 %v1511, %v8013
        %v8015 = vrot.slane %v7957, %v8014
        %v8016 = vlaneseq
        %v8017 = vshrl.u32 %v8016, 7
        %v8018 = vsub.s32 %v1511, %v8017
        %v8019 = vrot.slane %v7960, %v8018
        %v8020 = vlaneseq
        %v8021 = vshrl.u32 %v8020, 7
        %v8022 = vsub.s32 %v1511, %v8021
        %v8023 = vrot.slane %v7963, %v8022
        %v8024 = vlaneseq
        %v8025 = vshrl.u32 %v8024, 7
        %v8026 = vsub.s32 %v1511, %v8025
        %v8027 = vrot.slane %v7966, %v8026
        %v8028 = vlaneseq
        %v8029 = vshrl.u32 %v8028, 7
        %v8030 = vsub.s32 %v1511, %v8029
        %v8031 = vrot.slane %v7969, %v8030
        %v8032 = vlaneseq
        %v8033 = vshrl.u32 %v8032, 7
        %v8034 = vsub.s32 %v1511, %v8033
        %v8035 = vrot.slane %v7972, %v8034
        %v8036 = vlaneseq
        %v8037 = vshrl.u32 %v8036, 7
        %v8038 = vsub.s32 %v1511, %v8037
        %v8039 = vrot.slane %v7975, %v8038
        %v8040 = vsel %vm1576, %v7983, %v7979
        %v8041 = vsel %vm1578, %v7987, %v8040
        %v8042 = vsel %vm1580, %v7991, %v8041
        %v8043 = vsel %vm1582, %v7995, %v8042
        %v8044 = vsel %vm1584, %v7999, %v8043
        %v8045 = vsel %vm1586, %v8003, %v8044
        %v8046 = vsel %vm1588, %v8007, %v8045
        %v8047 = vsel %vm1576, %v8015, %v8011
        %v8048 = vsel %vm1578, %v8019, %v8047
        %v8049 = vsel %vm1580, %v8023, %v8048
        %v8050 = vsel %vm1582, %v8027, %v8049
        %v8051 = vsel %vm1584, %v8031, %v8050
        %v8052 = vsel %vm1586, %v8035, %v8051
        %v8053 = vsel %vm1588, %v8039, %v8052
        %v8056 = vsel %vm1599, %v8046, 0.0
        %8057 = vadd.xlane.f32.xlu0 %v8056
        %v8058 = vpop.xlane.xlu0 %8057
        %v8059 = vsel %vm1599, %v8053, 0.0
        %8060 = vadd.xlane.f32.xlu0 %v8059
        %v8061 = vpop.xlane.xlu0 %8060
        %v8064 = vlaneseq
        %v8065 = vshrl.u32 %v8064, 7
        %v8066 = vsub.s32 0, %v8065
        %v8067 = vrot.slane %v8058, %v8066
        %v8068 = vlaneseq
        %v8069 = vshrl.u32 %v8068, 7
        %v8070 = vsub.s32 1, %v8069
        %v8071 = vrot.slane %v8058, %v8070
        %v8072 = vlaneseq
        %v8073 = vshrl.u32 %v8072, 7
        %v8074 = vsub.s32 2, %v8073
        %v8075 = vrot.slane %v8058, %v8074
        %v8076 = vlaneseq
        %v8077 = vshrl.u32 %v8076, 7
        %v8078 = vsub.s32 3, %v8077
        %v8079 = vrot.slane %v8058, %v8078
        %v8080 = vlaneseq
        %v8081 = vshrl.u32 %v8080, 7
        %v8082 = vsub.s32 4, %v8081
        %v8083 = vrot.slane %v8058, %v8082
        %v8084 = vlaneseq
        %v8085 = vshrl.u32 %v8084, 7
        %v8086 = vsub.s32 5, %v8085
        %v8087 = vrot.slane %v8058, %v8086
        %v8088 = vlaneseq
        %v8089 = vshrl.u32 %v8088, 7
        %v8090 = vsub.s32 6, %v8089
        %v8091 = vrot.slane %v8058, %v8090
        %v8092 = vlaneseq
        %v8093 = vshrl.u32 %v8092, 7
        %v8094 = vsub.s32 7, %v8093
        %v8095 = vrot.slane %v8058, %v8094
        %v8096 = vlaneseq
        %v8097 = vshrl.u32 %v8096, 7
        %v8098 = vsub.s32 0, %v8097
        %v8099 = vrot.slane %v8061, %v8098
        %v8100 = vlaneseq
        %v8101 = vshrl.u32 %v8100, 7
        %v8102 = vsub.s32 1, %v8101
        %v8103 = vrot.slane %v8061, %v8102
        %v8104 = vlaneseq
        %v8105 = vshrl.u32 %v8104, 7
        %v8106 = vsub.s32 2, %v8105
        %v8107 = vrot.slane %v8061, %v8106
        %v8108 = vlaneseq
        %v8109 = vshrl.u32 %v8108, 7
        %v8110 = vsub.s32 3, %v8109
        %v8111 = vrot.slane %v8061, %v8110
        %v8112 = vlaneseq
        %v8113 = vshrl.u32 %v8112, 7
        %v8114 = vsub.s32 4, %v8113
        %v8115 = vrot.slane %v8061, %v8114
        %v8116 = vlaneseq
        %v8117 = vshrl.u32 %v8116, 7
        %v8118 = vsub.s32 5, %v8117
        %v8119 = vrot.slane %v8061, %v8118
        %v8120 = vlaneseq
        %v8121 = vshrl.u32 %v8120, 7
        %v8122 = vsub.s32 6, %v8121
        %v8123 = vrot.slane %v8061, %v8122
        %v8124 = vlaneseq
        %v8125 = vshrl.u32 %v8124, 7
        %v8126 = vsub.s32 7, %v8125
        %v8127 = vrot.slane %v8061, %v8126
        %v8144 = vrcp.pop %v8067
        %v8145 = vmul.f32 %v7881, %v8144
        %v8146 = vrcp.pop %v8071
        %v8147 = vmul.f32 %v7883, %v8146
        %v8148 = vrcp.pop %v8075
        %v8149 = vmul.f32 %v7885, %v8148
        %v8150 = vrcp.pop %v8079
        %v8151 = vmul.f32 %v7887, %v8150
        %v8152 = vrcp.pop %v8083
        %v8153 = vmul.f32 %v7889, %v8152
        %v8154 = vrcp.pop %v8087
        %v8155 = vmul.f32 %v7891, %v8154
        %v8156 = vrcp.pop %v8091
        %v8157 = vmul.f32 %v7893, %v8156
        %v8158 = vrcp.pop %v8095
        %v8159 = vmul.f32 %v7895, %v8158
        %v8160 = vrcp.pop %v8099
        %v8161 = vmul.f32 %v7897, %v8160
        %v8162 = vrcp.pop %v8103
        %v8163 = vmul.f32 %v7899, %v8162
        %v8164 = vrcp.pop %v8107
        %v8165 = vmul.f32 %v7901, %v8164
        %v8166 = vrcp.pop %v8111
        %v8167 = vmul.f32 %v7903, %v8166
        %v8168 = vrcp.pop %v8115
        %v8169 = vmul.f32 %v7905, %v8168
        %v8170 = vrcp.pop %v8119
        %v8171 = vmul.f32 %v7907, %v8170
        %v8172 = vrcp.pop %v8123
        %v8173 = vmul.f32 %v7909, %v8172
        %v8174 = vrcp.pop %v8127
        %v8175 = vmul.f32 %v7911, %v8174
        %8177 = vset.pattern.permute.xlu0 0
        %8178 = vperm.xlu0 %8177, %v8145
        %v8179 = vpop.permute.xlu0 %8178
        %8182 = vset.pattern.permute.xlu0 0
        %8183 = vperm.xlu0 %8182, %v8147
        %v8184 = vpop.permute.xlu0 %8183
        %8187 = vset.pattern.permute.xlu0 0
        %8188 = vperm.xlu0 %8187, %v8149
        %v8189 = vpop.permute.xlu0 %8188
        %8192 = vset.pattern.permute.xlu0 0
        %8193 = vperm.xlu0 %8192, %v8151
        %v8194 = vpop.permute.xlu0 %8193
        %8197 = vset.pattern.permute.xlu0 0
        %8198 = vperm.xlu0 %8197, %v8153
        %v8199 = vpop.permute.xlu0 %8198
        %8202 = vset.pattern.permute.xlu0 0
        %8203 = vperm.xlu0 %8202, %v8155
        %v8204 = vpop.permute.xlu0 %8203
        %8207 = vset.pattern.permute.xlu0 0
        %8208 = vperm.xlu0 %8207, %v8157
        %v8209 = vpop.permute.xlu0 %8208
        %8212 = vset.pattern.permute.xlu0 0
        %8213 = vperm.xlu0 %8212, %v8159
        %v8214 = vpop.permute.xlu0 %8213
        %8217 = vset.pattern.permute.xlu0 0
        %8218 = vperm.xlu0 %8217, %v8161
        %v8219 = vpop.permute.xlu0 %8218
        %8222 = vset.pattern.permute.xlu0 0
        %8223 = vperm.xlu0 %8222, %v8163
        %v8224 = vpop.permute.xlu0 %8223
        %8227 = vset.pattern.permute.xlu0 0
        %8228 = vperm.xlu0 %8227, %v8165
        %v8229 = vpop.permute.xlu0 %8228
        %8232 = vset.pattern.permute.xlu0 0
        %8233 = vperm.xlu0 %8232, %v8167
        %v8234 = vpop.permute.xlu0 %8233
        %8237 = vset.pattern.permute.xlu0 0
        %8238 = vperm.xlu0 %8237, %v8169
        %v8239 = vpop.permute.xlu0 %8238
        %8242 = vset.pattern.permute.xlu0 0
        %8243 = vperm.xlu0 %8242, %v8171
        %v8244 = vpop.permute.xlu0 %8243
        %8247 = vset.pattern.permute.xlu0 0
        %8248 = vperm.xlu0 %8247, %v8173
        %v8249 = vpop.permute.xlu0 %8248
        %8252 = vset.pattern.permute.xlu0 0
        %8253 = vperm.xlu0 %8252, %v8175
        %v8254 = vpop.permute.xlu0 %8253
        %v8256 = vmul.f32 %v8179, %v1105
        %v8257 = vmul.f32 %v8184, %v1106
        %v8258 = vmul.f32 %v8189, %v1107
        %v8259 = vmul.f32 %v8194, %v1108
        %v8260 = vmul.f32 %v8199, %v1109
        %v8261 = vmul.f32 %v8204, %v1110
        %v8262 = vmul.f32 %v8209, %v1111
        %v8263 = vmul.f32 %v8214, %v1112
        %v8264 = vmul.f32 %v8219, %v1241
        %v8265 = vmul.f32 %v8224, %v1242
        %v8266 = vmul.f32 %v8229, %v1243
        %v8267 = vmul.f32 %v8234, %v1244
        %v8268 = vmul.f32 %v8239, %v1245
        %v8269 = vmul.f32 %v8244, %v1246
        %v8270 = vmul.f32 %v8249, %v1247
        %v8271 = vmul.f32 %v8254, %v1248
        %v8272 = vsel %vm1445, %v8256, 0.0
        %v8273 = vrot.slane %v8272, 4
        %v8274 = vadd.f32 %v8272, %v8273
        %v8275 = vrot.slane %v8274, 2
        %v8276 = vadd.f32 %v8274, %v8275
        %v8277 = vrot.slane %v8276, 1
        %v8278 = vadd.f32 %v8276, %v8277
        %v8279 = vsel %vm1445, %v8257, 0.0
        %v8280 = vrot.slane %v8279, 4
        %v8281 = vadd.f32 %v8279, %v8280
        %v8282 = vrot.slane %v8281, 2
        %v8283 = vadd.f32 %v8281, %v8282
        %v8284 = vrot.slane %v8283, 1
        %v8285 = vadd.f32 %v8283, %v8284
        %v8286 = vsel %vm1445, %v8258, 0.0
        %v8287 = vrot.slane %v8286, 4
        %v8288 = vadd.f32 %v8286, %v8287
        %v8289 = vrot.slane %v8288, 2
        %v8290 = vadd.f32 %v8288, %v8289
        %v8291 = vrot.slane %v8290, 1
        %v8292 = vadd.f32 %v8290, %v8291
        %v8293 = vsel %vm1445, %v8259, 0.0
        %v8294 = vrot.slane %v8293, 4
        %v8295 = vadd.f32 %v8293, %v8294
        %v8296 = vrot.slane %v8295, 2
        %v8297 = vadd.f32 %v8295, %v8296
        %v8298 = vrot.slane %v8297, 1
        %v8299 = vadd.f32 %v8297, %v8298
        %v8300 = vsel %vm1445, %v8260, 0.0
        %v8301 = vrot.slane %v8300, 4
        %v8302 = vadd.f32 %v8300, %v8301
        %v8303 = vrot.slane %v8302, 2
        %v8304 = vadd.f32 %v8302, %v8303
        %v8305 = vrot.slane %v8304, 1
        %v8306 = vadd.f32 %v8304, %v8305
        %v8307 = vsel %vm1445, %v8261, 0.0
        %v8308 = vrot.slane %v8307, 4
        %v8309 = vadd.f32 %v8307, %v8308
        %v8310 = vrot.slane %v8309, 2
        %v8311 = vadd.f32 %v8309, %v8310
        %v8312 = vrot.slane %v8311, 1
        %v8313 = vadd.f32 %v8311, %v8312
        %v8314 = vsel %vm1445, %v8262, 0.0
        %v8315 = vrot.slane %v8314, 4
        %v8316 = vadd.f32 %v8314, %v8315
        %v8317 = vrot.slane %v8316, 2
        %v8318 = vadd.f32 %v8316, %v8317
        %v8319 = vrot.slane %v8318, 1
        %v8320 = vadd.f32 %v8318, %v8319
        %v8321 = vsel %vm1445, %v8263, 0.0
        %v8322 = vrot.slane %v8321, 4
        %v8323 = vadd.f32 %v8321, %v8322
        %v8324 = vrot.slane %v8323, 2
        %v8325 = vadd.f32 %v8323, %v8324
        %v8326 = vrot.slane %v8325, 1
        %v8327 = vadd.f32 %v8325, %v8326
        %v8328 = vsel %vm1445, %v8264, 0.0
        %v8329 = vrot.slane %v8328, 4
        %v8330 = vadd.f32 %v8328, %v8329
        %v8331 = vrot.slane %v8330, 2
        %v8332 = vadd.f32 %v8330, %v8331
        %v8333 = vrot.slane %v8332, 1
        %v8334 = vadd.f32 %v8332, %v8333
        %v8335 = vsel %vm1445, %v8265, 0.0
        %v8336 = vrot.slane %v8335, 4
        %v8337 = vadd.f32 %v8335, %v8336
        %v8338 = vrot.slane %v8337, 2
        %v8339 = vadd.f32 %v8337, %v8338
        %v8340 = vrot.slane %v8339, 1
        %v8341 = vadd.f32 %v8339, %v8340
        %v8342 = vsel %vm1445, %v8266, 0.0
        %v8343 = vrot.slane %v8342, 4
        %v8344 = vadd.f32 %v8342, %v8343
        %v8345 = vrot.slane %v8344, 2
        %v8346 = vadd.f32 %v8344, %v8345
        %v8347 = vrot.slane %v8346, 1
        %v8348 = vadd.f32 %v8346, %v8347
        %v8349 = vsel %vm1445, %v8267, 0.0
        %v8350 = vrot.slane %v8349, 4
        %v8351 = vadd.f32 %v8349, %v8350
        %v8352 = vrot.slane %v8351, 2
        %v8353 = vadd.f32 %v8351, %v8352
        %v8354 = vrot.slane %v8353, 1
        %v8355 = vadd.f32 %v8353, %v8354
        %v8356 = vsel %vm1445, %v8268, 0.0
        %v8357 = vrot.slane %v8356, 4
        %v8358 = vadd.f32 %v8356, %v8357
        %v8359 = vrot.slane %v8358, 2
        %v8360 = vadd.f32 %v8358, %v8359
        %v8361 = vrot.slane %v8360, 1
        %v8362 = vadd.f32 %v8360, %v8361
        %v8363 = vsel %vm1445, %v8269, 0.0
        %v8364 = vrot.slane %v8363, 4
        %v8365 = vadd.f32 %v8363, %v8364
        %v8366 = vrot.slane %v8365, 2
        %v8367 = vadd.f32 %v8365, %v8366
        %v8368 = vrot.slane %v8367, 1
        %v8369 = vadd.f32 %v8367, %v8368
        %v8370 = vsel %vm1445, %v8270, 0.0
        %v8371 = vrot.slane %v8370, 4
        %v8372 = vadd.f32 %v8370, %v8371
        %v8373 = vrot.slane %v8372, 2
        %v8374 = vadd.f32 %v8372, %v8373
        %v8375 = vrot.slane %v8374, 1
        %v8376 = vadd.f32 %v8374, %v8375
        %v8377 = vsel %vm1445, %v8271, 0.0
        %v8378 = vrot.slane %v8377, 4
        %v8379 = vadd.f32 %v8377, %v8378
        %v8380 = vrot.slane %v8379, 2
        %v8381 = vadd.f32 %v8379, %v8380
        %v8382 = vrot.slane %v8381, 1
        %v8383 = vadd.f32 %v8381, %v8382
        %v8400 = vsel %vm1576, %v2109, %v2102
        %v8401 = vsel %vm1578, %v2116, %v8400
        %v8402 = vsel %vm1580, %v2123, %v8401
        %v8403 = vsel %vm1582, %v2130, %v8402
        %v8404 = vsel %vm1584, %v2137, %v8403
        %v8405 = vsel %vm1586, %v2144, %v8404
        %v8406 = vsel %vm1588, %v2151, %v8405
        %v8407 = vsel %vm1576, %v2165, %v2158
        %v8408 = vsel %vm1578, %v2172, %v8407
        %v8409 = vsel %vm1580, %v2179, %v8408
        %v8410 = vsel %vm1582, %v2186, %v8409
        %v8411 = vsel %vm1584, %v2193, %v8410
        %v8412 = vsel %vm1586, %v2200, %v8411
        %v8413 = vsel %vm1588, %v2207, %v8412
        %v8432 = vsel %vm1576, %v3005, %v2998
        %v8433 = vsel %vm1578, %v3012, %v8432
        %v8434 = vsel %vm1580, %v3019, %v8433
        %v8435 = vsel %vm1582, %v3026, %v8434
        %v8436 = vsel %vm1584, %v3033, %v8435
        %v8437 = vsel %vm1586, %v3040, %v8436
        %v8438 = vsel %vm1588, %v3047, %v8437
        %v8439 = vsel %vm1576, %v3061, %v3054
        %v8440 = vsel %vm1578, %v3068, %v8439
        %v8441 = vsel %vm1580, %v3075, %v8440
        %v8442 = vsel %vm1582, %v3082, %v8441
        %v8443 = vsel %vm1584, %v3089, %v8442
        %v8444 = vsel %vm1586, %v3096, %v8443
        %v8445 = vsel %vm1588, %v3103, %v8444
        %8446 = vrot.lane.b32.xlu0 %v8438, 4
        %v8447 = vpop.permute.xlu0 %8446
        %8448 = vrot.lane.b32.xlu0 %v8445, 4
        %v8449 = vpop.permute.xlu0 %8448
        %v8468 = vsel %vm1576, %v3885, %v3878
        %v8469 = vsel %vm1578, %v3892, %v8468
        %v8470 = vsel %vm1580, %v3899, %v8469
        %v8471 = vsel %vm1582, %v3906, %v8470
        %v8472 = vsel %vm1584, %v3913, %v8471
        %v8473 = vsel %vm1586, %v3920, %v8472
        %v8474 = vsel %vm1588, %v3927, %v8473
        %v8475 = vsel %vm1576, %v3941, %v3934
        %v8476 = vsel %vm1578, %v3948, %v8475
        %v8477 = vsel %vm1580, %v3955, %v8476
        %v8478 = vsel %vm1582, %v3962, %v8477
        %v8479 = vsel %vm1584, %v3969, %v8478
        %v8480 = vsel %vm1586, %v3976, %v8479
        %v8481 = vsel %vm1588, %v3983, %v8480
        %8482 = vrot.lane.b32.xlu0 %v8474, 8
        %v8483 = vpop.permute.xlu0 %8482
        %8484 = vrot.lane.b32.xlu0 %v8481, 8
        %v8485 = vpop.permute.xlu0 %8484
        %v8504 = vsel %vm1576, %v4765, %v4758
        %v8505 = vsel %vm1578, %v4772, %v8504
        %v8506 = vsel %vm1580, %v4779, %v8505
        %v8507 = vsel %vm1582, %v4786, %v8506
        %v8508 = vsel %vm1584, %v4793, %v8507
        %v8509 = vsel %vm1586, %v4800, %v8508
        %v8510 = vsel %vm1588, %v4807, %v8509
        %v8511 = vsel %vm1576, %v4821, %v4814
        %v8512 = vsel %vm1578, %v4828, %v8511
        %v8513 = vsel %vm1580, %v4835, %v8512
        %v8514 = vsel %vm1582, %v4842, %v8513
        %v8515 = vsel %vm1584, %v4849, %v8514
        %v8516 = vsel %vm1586, %v4856, %v8515
        %v8517 = vsel %vm1588, %v4863, %v8516
        %8518 = vrot.lane.b32.xlu0 %v8510, 12
        %v8519 = vpop.permute.xlu0 %8518
        %8520 = vrot.lane.b32.xlu0 %v8517, 12
        %v8521 = vpop.permute.xlu0 %8520
        %v8540 = vsel %vm1576, %v5645, %v5638
        %v8541 = vsel %vm1578, %v5652, %v8540
        %v8542 = vsel %vm1580, %v5659, %v8541
        %v8543 = vsel %vm1582, %v5666, %v8542
        %v8544 = vsel %vm1584, %v5673, %v8543
        %v8545 = vsel %vm1586, %v5680, %v8544
        %v8546 = vsel %vm1588, %v5687, %v8545
        %v8547 = vsel %vm1576, %v5701, %v5694
        %v8548 = vsel %vm1578, %v5708, %v8547
        %v8549 = vsel %vm1580, %v5715, %v8548
        %v8550 = vsel %vm1582, %v5722, %v8549
        %v8551 = vsel %vm1584, %v5729, %v8550
        %v8552 = vsel %vm1586, %v5736, %v8551
        %v8553 = vsel %vm1588, %v5743, %v8552
        %8554 = vrot.lane.b32.xlu0 %v8546, 16
        %v8555 = vpop.permute.xlu0 %8554
        %8556 = vrot.lane.b32.xlu0 %v8553, 16
        %v8557 = vpop.permute.xlu0 %8556
        %v8576 = vsel %vm1576, %v6525, %v6518
        %v8577 = vsel %vm1578, %v6532, %v8576
        %v8578 = vsel %vm1580, %v6539, %v8577
        %v8579 = vsel %vm1582, %v6546, %v8578
        %v8580 = vsel %vm1584, %v6553, %v8579
        %v8581 = vsel %vm1586, %v6560, %v8580
        %v8582 = vsel %vm1588, %v6567, %v8581
        %v8583 = vsel %vm1576, %v6581, %v6574
        %v8584 = vsel %vm1578, %v6588, %v8583
        %v8585 = vsel %vm1580, %v6595, %v8584
        %v8586 = vsel %vm1582, %v6602, %v8585
        %v8587 = vsel %vm1584, %v6609, %v8586
        %v8588 = vsel %vm1586, %v6616, %v8587
        %v8589 = vsel %vm1588, %v6623, %v8588
        %8590 = vrot.lane.b32.xlu0 %v8582, 20
        %v8591 = vpop.permute.xlu0 %8590
        %8592 = vrot.lane.b32.xlu0 %v8589, 20
        %v8593 = vpop.permute.xlu0 %8592
        %v8612 = vsel %vm1576, %v7405, %v7398
        %v8613 = vsel %vm1578, %v7412, %v8612
        %v8614 = vsel %vm1580, %v7419, %v8613
        %v8615 = vsel %vm1582, %v7426, %v8614
        %v8616 = vsel %vm1584, %v7433, %v8615
        %v8617 = vsel %vm1586, %v7440, %v8616
        %v8618 = vsel %vm1588, %v7447, %v8617
        %v8619 = vsel %vm1576, %v7461, %v7454
        %v8620 = vsel %vm1578, %v7468, %v8619
        %v8621 = vsel %vm1580, %v7475, %v8620
        %v8622 = vsel %vm1582, %v7482, %v8621
        %v8623 = vsel %vm1584, %v7489, %v8622
        %v8624 = vsel %vm1586, %v7496, %v8623
        %v8625 = vsel %vm1588, %v7503, %v8624
        %8626 = vrot.lane.b32.xlu0 %v8618, 24
        %v8627 = vpop.permute.xlu0 %8626
        %8628 = vrot.lane.b32.xlu0 %v8625, 24
        %v8629 = vpop.permute.xlu0 %8628
        %v8648 = vsel %vm1576, %v8285, %v8278
        %v8649 = vsel %vm1578, %v8292, %v8648
        %v8650 = vsel %vm1580, %v8299, %v8649
        %v8651 = vsel %vm1582, %v8306, %v8650
        %v8652 = vsel %vm1584, %v8313, %v8651
        %v8653 = vsel %vm1586, %v8320, %v8652
        %v8654 = vsel %vm1588, %v8327, %v8653
        %v8655 = vsel %vm1576, %v8341, %v8334
        %v8656 = vsel %vm1578, %v8348, %v8655
        %v8657 = vsel %vm1580, %v8355, %v8656
        %v8658 = vsel %vm1582, %v8362, %v8657
        %v8659 = vsel %vm1584, %v8369, %v8658
        %v8660 = vsel %vm1586, %v8376, %v8659
        %v8661 = vsel %vm1588, %v8383, %v8660
        %8662 = vrot.lane.b32.xlu0 %v8654, 28
        %v8663 = vpop.permute.xlu0 %8662
        %8664 = vrot.lane.b32.xlu0 %v8661, 28
        %v8665 = vpop.permute.xlu0 %8664
        %v8668 = vsel %vm1445, %v8406, %v8447
        %v8669 = vsel %vm1445, %v8413, %v8449
        %v8670 = vsel %vm1599, %v8668, %v8483
        %v8671 = vsel %vm1599, %v8669, %v8485
        %vm8672 = vcmask 97280
        %v8673 = vsel %vm8672, %v8670, %v8519
        %v8674 = vsel %vm8672, %v8671, %v8521
        %vm8675 = vcmask 130048
        %v8676 = vsel %vm8675, %v8673, %v8555
        %v8677 = vsel %vm8675, %v8674, %v8557
        %vm8678 = vcmask 162816
        %v8679 = vsel %vm8678, %v8676, %v8591
        %v8680 = vsel %vm8678, %v8677, %v8593
        %vm8681 = vcmask 195584
        %v8682 = vsel %vm8681, %v8679, %v8627
        %v8683 = vsel %vm8681, %v8680, %v8629
        %vm8684 = vcmask 228352
        %v8685 = vsel %vm8684, %v8682, %v8663
        %v8686 = vsel %vm8684, %v8683, %v8665
        %v8687 = vpack.c.bf16 %v8686, %v8685
        %v8688 = vld [vmem:[%s390] sm:$0xf]
        %v8689 = vld [vmem:[%s390 + $0x4] sm:$0xf]
        %v8690 = vld [vmem:[%s390 + $0x8] sm:$0xf]
        %v8691 = vld [vmem:[%s390 + $0xc] sm:$0xf]
        %v8692 = vlaneseq
        %v8693 = vshrl.u32 %v8692, 7
        %v8694 = vsub.s32 4, %v8693
        %v8695 = vrot.slane %v421, %v8694
        %v8700 = vunpack.c.l.b16 %v8688
        %v8701 = vunpack.c.l.b16 %v8689
        %v8702 = vunpack.c.l.b16 %v8690
        %v8703 = vunpack.c.l.b16 %v8691
        %v8704 = vpack.c.b16 %v8701, %v8700
        %v8705 = vpack.c.b16 %v8703, %v8702
        %v8709 = vsel %vm423, %v8687, 0
        %8711 = vmatprep.subr.bf16.mxu0 0
        %8712 = vmatpush1.bf16.msra.mxu0 %v8704
        %8713 = vmatprep.subr.bf16.mxu0 0
        %8714 = vmatpush1.bf16.msra.mxu0 %v8705
        %8715 = vmatprep.subr.bf16.mxu0 0
        %8716 = vmatpush1.bf16.msra.mxu0 0
        %8717 = vmatprep.subr.bf16.mxu0 0
        %8718 = vmatpush1.bf16.msra.mxu0 0
        %8719 = vmatprep.subr.bf16.mxu0 0
        %8720 = vmatpush1.bf16.msra.mxu0 0
        %8721 = vmatprep.subr.bf16.mxu0 0
        %8722 = vmatpush1.bf16.msra.mxu0 0
        %8723 = vmatprep.subr.bf16.mxu0 0
        %8724 = vmatpush1.bf16.msra.mxu0 0
        %8725 = vmatprep.subr.bf16.mxu0 0
        %8726 = vmatpush1.bf16.msra.mxu0 0
        %8727 = vmatprep.subr.bf16.mxu0 0
        %8728 = vmatpush1.bf16.msra.mxu0 0
        %8729 = vmatprep.subr.bf16.mxu0 0
        %8730 = vmatpush1.bf16.msra.mxu0 0
        %8731 = vmatprep.subr.bf16.mxu0 0
        %8732 = vmatpush1.bf16.msra.mxu0 0
        %8733 = vmatprep.subr.bf16.mxu0 0
        %8734 = vmatpush1.bf16.msra.mxu0 0
        %8735 = vmatprep.subr.bf16.mxu0 0
        %8736 = vmatpush1.bf16.msra.mxu0 0
        %8737 = vmatprep.subr.bf16.mxu0 0
        %8738 = vmatpush1.bf16.msra.mxu0 0
        %8739 = vmatprep.subr.bf16.mxu0 0
        %8740 = vmatpush1.bf16.msra.mxu0 0
        %8741 = vmatprep.subr.bf16.mxu0 0
        %8742 = vmatpush1.bf16.msra.mxu0 0
        %8743 = vmatprep.mubr.bf16.mxu0 0
        %8744 = vmatmul.mubr.bf16.gmra.mrb[0].mxu0 %v8709
        %v8745 = vpop.f32.mrb[0].mxu0
        %v8746 = vadd.f32 %v8695, %v8745
        %v8747 = vpop.f32.mrb[0].mxu0
        %v8748 = vpop.f32.mrb[0].mxu0
        %v8749 = vadd.f32 %v8695, %v8748
        %v8750 = vpop.f32.mrb[0].mxu0
        %8751 = vdwg.mxu0
        %v8752 = vadd.f32 %v417, %v8746
        %v8753 = vadd.f32 %v418, %v8749
        %v8754 = vsel %vm423, %v8752, 0.0
        %8755 = vadd.xlane.f32.xlu0 %v8754
        %v8756 = vpop.xlane.xlu0 %8755
        %v8757 = vsel %vm423, %v8753, 0.0
        %8758 = vadd.xlane.f32.xlu0 %v8757
        %v8759 = vpop.xlane.xlu0 %8758
        %v8760 = vmul.f32 %v8756, %v430
        %v8761 = vmul.f32 %v8759, %v430
        %v8762 = vsub.f32 %v8752, %v8760
        %v8763 = vsub.f32 %v8753, %v8761
        %v8764 = vmul.f32 %v8762, %v8762
        %v8765 = vmul.f32 %v8763, %v8763
        %v8766 = vsel %vm423, %v8764, 0.0
        %8767 = vadd.xlane.f32.xlu0 %v8766
        %v8768 = vpop.xlane.xlu0 %8767
        %v8769 = vsel %vm423, %v8765, 0.0
        %8770 = vadd.xlane.f32.xlu0 %v8769
        %v8771 = vpop.xlane.xlu0 %8770
        %v8772 = vmul.f32 %v8768, %v430
        %v8773 = vmul.f32 %v8771, %v430
        %v8774 = vadd.f32 %v8772, 1e-05
        %v8775 = vadd.f32 %v8773, 1e-05
        %v8776 = vrsqrt.pop %v8774
        %v8777 = vrsqrt.pop %v8775
        %v8778 = vmul.f32 %v8762, %v8776
        %v8779 = vmul.f32 %v8763, %v8777
        %v8780 = vlaneseq
        %v8781 = vshrl.u32 %v8780, 7
        %v8782 = vsub.s32 5, %v8781
        %v8783 = vrot.slane %v421, %v8782
        %v8784 = vmul.f32 %v8778, %v8783
        %v8785 = vmul.f32 %v8779, %v8783
        %v8786 = vlaneseq
        %v8787 = vshrl.u32 %v8786, 7
        %v8788 = vsub.s32 6, %v8787
        %v8789 = vrot.slane %v421, %v8788
        %v8790 = vadd.f32 %v8784, %v8789
        %v8791 = vadd.f32 %v8785, %v8789
        %v8792 = vpack.c.bf16 %v8791, %v8790
        %v8793 = vld [vmem:[%s395] sm:$0xf]
        %v8794 = vld [vmem:[%s395 + $0x4] sm:$0xf]
        %v8795 = vld [vmem:[%s395 + $0x8] sm:$0xf]
        %v8796 = vld [vmem:[%s395 + $0xc] sm:$0xf]
        %v8797 = vlaneseq
        %v8798 = vshrl.u32 %v8797, 7
        %v8799 = vsub.s32 0, %v8798
        %v8800 = vrot.slane %v422, %v8799
        %v8805 = vunpack.c.l.b16 %v8793
        %v8806 = vunpack.c.l.b16 %v8794
        %v8807 = vunpack.c.l.b16 %v8795
        %v8808 = vunpack.c.l.b16 %v8796
        %v8809 = vpack.c.b16 %v8806, %v8805
        %v8810 = vpack.c.b16 %v8808, %v8807
        %v8814 = vsel %vm423, %v8792, 0
        %8816 = vmatprep.subr.bf16.mxu0 0
        %8817 = vmatpush1.bf16.msra.mxu0 %v8809
        %8818 = vmatprep.subr.bf16.mxu0 0
        %8819 = vmatpush1.bf16.msra.mxu0 %v8810
        %8820 = vmatprep.subr.bf16.mxu0 0
        %8821 = vmatpush1.bf16.msra.mxu0 0
        %8822 = vmatprep.subr.bf16.mxu0 0
        %8823 = vmatpush1.bf16.msra.mxu0 0
        %8824 = vmatprep.subr.bf16.mxu0 0
        %8825 = vmatpush1.bf16.msra.mxu0 0
        %8826 = vmatprep.subr.bf16.mxu0 0
        %8827 = vmatpush1.bf16.msra.mxu0 0
        %8828 = vmatprep.subr.bf16.mxu0 0
        %8829 = vmatpush1.bf16.msra.mxu0 0
        %8830 = vmatprep.subr.bf16.mxu0 0
        %8831 = vmatpush1.bf16.msra.mxu0 0
        %8832 = vmatprep.subr.bf16.mxu0 0
        %8833 = vmatpush1.bf16.msra.mxu0 0
        %8834 = vmatprep.subr.bf16.mxu0 0
        %8835 = vmatpush1.bf16.msra.mxu0 0
        %8836 = vmatprep.subr.bf16.mxu0 0
        %8837 = vmatpush1.bf16.msra.mxu0 0
        %8838 = vmatprep.subr.bf16.mxu0 0
        %8839 = vmatpush1.bf16.msra.mxu0 0
        %8840 = vmatprep.subr.bf16.mxu0 0
        %8841 = vmatpush1.bf16.msra.mxu0 0
        %8842 = vmatprep.subr.bf16.mxu0 0
        %8843 = vmatpush1.bf16.msra.mxu0 0
        %8844 = vmatprep.subr.bf16.mxu0 0
        %8845 = vmatpush1.bf16.msra.mxu0 0
        %8846 = vmatprep.subr.bf16.mxu0 0
        %8847 = vmatpush1.bf16.msra.mxu0 0
        %8848 = vmatprep.mubr.bf16.mxu0 0
        %8849 = vmatmul.mubr.bf16.gmra.mrb[0].mxu0 %v8814
        %v8850 = vpop.f32.mrb[0].mxu0
        %v8851 = vadd.f32 %v8800, %v8850
        %v8852 = vpop.f32.mrb[0].mxu0
        %v8853 = vpop.f32.mrb[0].mxu0
        %v8854 = vadd.f32 %v8800, %v8853
        %v8855 = vpop.f32.mrb[0].mxu0
        %8856 = vdwg.mxu0
        %v8857 = vmul.f32 %v8851, 0.5
        %v8858 = vmul.f32 %v8854, 0.5
        %v8859 = vmul.f32 %v8851, 0.044715
        %v8860 = vmul.f32 %v8854, 0.044715
        %v8861 = vmul.f32 %v8859, %v8851
        %v8862 = vmul.f32 %v8860, %v8854
        %v8863 = vmul.f32 %v8861, %v8851
        %v8864 = vmul.f32 %v8862, %v8854
        %v8865 = vadd.f32 %v8851, %v8863
        %v8866 = vadd.f32 %v8854, %v8864
        %v8867 = vmul.f32 %v8865, 0.7978846
        %v8868 = vmul.f32 %v8866, 0.7978846
        %v8869 = vtanh.pop %v8867
        %v8870 = vtanh.pop %v8868
        %v8871 = vadd.f32 %v8869, 1.0
        %v8872 = vadd.f32 %v8870, 1.0
        %v8873 = vmul.f32 %v8857, %v8871
        %v8874 = vmul.f32 %v8858, %v8872
        %v8875 = vpack.c.bf16 %v8874, %v8873
        %v8876 = vld [vmem:[%s400] sm:$0xf]
        %v8877 = vld [vmem:[%s400 + $0x4] sm:$0xf]
        %v8878 = vld [vmem:[%s400 + $0x8] sm:$0xf]
        %v8879 = vld [vmem:[%s400 + $0xc] sm:$0xf]
        %v8880 = vld [vmem:[%s400 + $0x10] sm:$0xf]
        %v8881 = vld [vmem:[%s400 + $0x14] sm:$0xf]
        %v8882 = vld [vmem:[%s400 + $0x18] sm:$0xf]
        %v8883 = vld [vmem:[%s400 + $0x1c] sm:$0xf]
        %v8884 = vld [vmem:[%s400 + $0x20] sm:$0xf]
        %v8885 = vld [vmem:[%s400 + $0x24] sm:$0xf]
        %v8886 = vld [vmem:[%s400 + $0x28] sm:$0xf]
        %v8887 = vld [vmem:[%s400 + $0x2c] sm:$0xf]
        %v8888 = vld [vmem:[%s400 + $0x30] sm:$0xf]
        %v8889 = vld [vmem:[%s400 + $0x34] sm:$0xf]
        %v8890 = vld [vmem:[%s400 + $0x38] sm:$0xf]
        %v8891 = vld [vmem:[%s400 + $0x3c] sm:$0xf]
        %v8892 = vlaneseq
        %v8893 = vshrl.u32 %v8892, 7
        %v8894 = vsub.s32 7, %v8893
        %v8895 = vrot.slane %v421, %v8894
        %v8912 = vunpack.c.l.b16 %v8876
        %v8913 = vunpack.c.l.b16 %v8877
        %v8914 = vunpack.c.l.b16 %v8878
        %v8915 = vunpack.c.l.b16 %v8879
        %v8916 = vunpack.c.l.b16 %v8880
        %v8917 = vunpack.c.l.b16 %v8881
        %v8918 = vunpack.c.l.b16 %v8882
        %v8919 = vunpack.c.l.b16 %v8883
        %v8920 = vunpack.c.l.b16 %v8884
        %v8921 = vunpack.c.l.b16 %v8885
        %v8922 = vunpack.c.l.b16 %v8886
        %v8923 = vunpack.c.l.b16 %v8887
        %v8924 = vunpack.c.l.b16 %v8888
        %v8925 = vunpack.c.l.b16 %v8889
        %v8926 = vunpack.c.l.b16 %v8890
        %v8927 = vunpack.c.l.b16 %v8891
        %v8928 = vpack.c.b16 %v8913, %v8912
        %v8929 = vpack.c.b16 %v8915, %v8914
        %v8930 = vpack.c.b16 %v8917, %v8916
        %v8931 = vpack.c.b16 %v8919, %v8918
        %v8932 = vpack.c.b16 %v8921, %v8920
        %v8933 = vpack.c.b16 %v8923, %v8922
        %v8934 = vpack.c.b16 %v8925, %v8924
        %v8935 = vpack.c.b16 %v8927, %v8926
        %8944 = vmatprep.subr.bf16.mxu0 0
        %8945 = vmatpush1.bf16.msra.mxu0 %v8928
        %8946 = vmatprep.subr.bf16.mxu0 0
        %8947 = vmatpush1.bf16.msra.mxu0 %v8929
        %8948 = vmatprep.subr.bf16.mxu0 0
        %8949 = vmatpush1.bf16.msra.mxu0 %v8930
        %8950 = vmatprep.subr.bf16.mxu0 0
        %8951 = vmatpush1.bf16.msra.mxu0 %v8931
        %8952 = vmatprep.subr.bf16.mxu0 0
        %8953 = vmatpush1.bf16.msra.mxu0 %v8932
        %8954 = vmatprep.subr.bf16.mxu0 0
        %8955 = vmatpush1.bf16.msra.mxu0 %v8933
        %8956 = vmatprep.subr.bf16.mxu0 0
        %8957 = vmatpush1.bf16.msra.mxu0 %v8934
        %8958 = vmatprep.subr.bf16.mxu0 0
        %8959 = vmatpush1.bf16.msra.mxu0 %v8935
        %8960 = vmatprep.subr.bf16.mxu0 0
        %8961 = vmatpush1.bf16.msra.mxu0 0
        %8962 = vmatprep.subr.bf16.mxu0 0
        %8963 = vmatpush1.bf16.msra.mxu0 0
        %8964 = vmatprep.subr.bf16.mxu0 0
        %8965 = vmatpush1.bf16.msra.mxu0 0
        %8966 = vmatprep.subr.bf16.mxu0 0
        %8967 = vmatpush1.bf16.msra.mxu0 0
        %8968 = vmatprep.subr.bf16.mxu0 0
        %8969 = vmatpush1.bf16.msra.mxu0 0
        %8970 = vmatprep.subr.bf16.mxu0 0
        %8971 = vmatpush1.bf16.msra.mxu0 0
        %8972 = vmatprep.subr.bf16.mxu0 0
        %8973 = vmatpush1.bf16.msra.mxu0 0
        %8974 = vmatprep.subr.bf16.mxu0 0
        %8975 = vmatpush1.bf16.msra.mxu0 0
        %8976 = vmatprep.mubr.bf16.mxu0 0
        %8977 = vmatmul.mubr.bf16.gmra.mrb[0].mxu0 %v8875
        %v8978 = vpop.f32.mrb[0].mxu0
        %v8979 = vadd.f32 %v8895, %v8978
        %v8980 = vpop.f32.mrb[0].mxu0
        %v8981 = vpop.f32.mrb[0].mxu0
        %v8982 = vadd.f32 %v8895, %v8981
        %v8983 = vpop.f32.mrb[0].mxu0
        %8984 = vdwg.mxu0
        %v8985 = vadd.f32 %v8752, %v8979
        %v8986 = vadd.f32 %v8753, %v8982
        %8987 = vst.msk [vmem:[#allocation2] sm:$0xff] %vm423, %v8985
        %8988 = vst.msk [vmem:[#allocation2 + $0x8] sm:$0xff] %vm423, %v8986
        %p8989 = scmp.eq.s32.totalorder %s24, 1
        // Predicated region
        $region53: #{tpu_custom_call.1} parent=47 // pred_check
          %p8990 = pneg %p8989
        $region54: #{tpu_custom_call.1} parent=47 // pred_check_branch
          %8992 = sbr.rel (%p8990) target = $region56
        $region55: #{tpu_custom_call.1} parent=47 // pred_region
          %8993 = vst.msk [vmem:[#allocation3] sm:$0xff] %vm423, %v8985
          %8994 = vst.msk [vmem:[#allocation3 + $0x8] sm:$0xff] %vm423, %v8986
        $region56: #{tpu_custom_call.1} parent=47 // pred_fallthru
          _
        // Predicated region
        $region57: #{tpu_custom_call.1} parent=47 // pred_check
          %p8995 = pneg %p231
        $region58: #{tpu_custom_call.1} parent=47 // pred_check_branch
          %8997 = sbr.rel (%p8995) target = $region60
        $region59: #{tpu_custom_call.1} parent=47 // pred_region
          %s8998 = smul.u32 2, %s23
          %s9000 = ssub.s32 256, 256
          %9001 = vsyncadd [#allocation4], %s9000
          %s9002 = smul.addr %s8998, 128
          %s9003 = scalar_lea.hbm %s7, %s9002
          %s9004 = sshll.u32 [#allocation3], 4
          %s9005 = int_to_ptr.vmem [resolvable:$true] %s9004
          %9010 = dma.vmem_to_hbm [thread:$0]  %s9005, 256, %s9003, [#allocation4], 128, 128, 8
        $region60: #{tpu_custom_call.1} parent=47 // pred_fallthru
          _
        // Predicated region
        $region61: #{tpu_custom_call.1} parent=47 // pred_check
          %p9011 = pneg %p231
        $region62: #{tpu_custom_call.1} parent=47 // pred_check_branch
          %9013 = sbr.rel (%p9011) target = $region64
        $region63: #{tpu_custom_call.1} parent=47 // pred_region
          %9014 = dma.done [#allocation4], 256
        $region64: #{tpu_custom_call.1} parent=47 // pred_fallthru
          _
      $region48: #{tpu_custom_call.1} parent=5 // pred_fallthru
        _
      %p9015 = scmp.le.s32.totalorder 2, %s14
      // Predicated region
      $region65: #{tpu_custom_call.1} parent=5 // pred_check
        %p9016 = pneg %p9015
      $region66: #{tpu_custom_call.1} parent=5 // pred_check_branch
        %9018 = sbr.rel (%p9016) target = $region68
      $region67: #{tpu_custom_call.1} parent=5 // pred_region
        %s9019 = ssub.s32 %s14, 2
      $region68: #{tpu_custom_call.1} parent=5 // pred_fallthru
        _
    $region6: #{tpu_custom_call.1} parent=1 // loop_footer
      %s18 = sadd.s32 1, %s14
    $region7: #{tpu_custom_call.1} parent=1 // loop_footer_branch
      %13 = sbr.rel target = $region3
    $region8: #{tpu_custom_call.1} parent=1 // loop_exit
      _
    %9020 = vsyncpa [#allocation4], 1
    %s9021 = scalar_lea.sflag [#allocation4], 1
    %9022 = vsyncpa %s9021, 1

</llo_original>
